<compile_context>
chip_gen: v5e
topology: v5e:2x2
jax: 0.10.0
libtpu: 0.0.40
codegen_flags: <defaults>
</compile_context>

<pallas_src>
import functools

import jax
import jax.numpy as jnp
from jax.experimental import pallas as pl
from jax.experimental.pallas import tpu as pltpu

IN_F = 128 * 4 * 4   # 2048
HID = 1024
OUT_F = 1

# Row layout of the packed small-operand array `aux` (shape (8, HID), f32):
#   row 0: quant scale for layer-1 output columns
#   row 1: folded shift t1 (bias*bn_scale + bn_shift)
#   row 2: quant scale for layer-2 output columns
#   row 3: folded shift t2
#   row 4: final-layer weight row w3 (1024,)
#   row 5: [0] = final-layer bias b3, rest zero
#   rows 6-7: padding (sublane multiple of 8)


def _dann_kernel(x_ref, w1_ref, w2_ref, aux_ref, o_ref):
    # Gradient-reversal layer is identity in the forward pass.
    x = x_ref[...]                                                    # (B, 2048) bf16

    # ---- Linear(2048,1024) + folded BN + ReLU (+ Dropout = identity) ----
    w1 = w1_ref[...].astype(jnp.bfloat16)                             # int8 -> bf16 (exact)
    h1 = jnp.dot(x, w1, preferred_element_type=jnp.float32)           # bf16 MXU, f32 acc
    h1 = jnp.maximum(h1 * aux_ref[0:1, :] + aux_ref[1:2, :], 0.0)

    # ---- Linear(1024,1024) + folded BN + ReLU (+ Dropout = identity) ----
    w2 = w2_ref[...].astype(jnp.bfloat16)
    h2 = jnp.dot(h1.astype(jnp.bfloat16), w2,
                 preferred_element_type=jnp.float32)
    h2 = jnp.maximum(h2 * aux_ref[2:3, :] + aux_ref[3:4, :], 0.0)

    # ---- Linear(1024,1) + sigmoid : multiply + lane reduction (XLU), no MXU ----
    logits = (jnp.sum(h2 * aux_ref[4:5, :], axis=-1, keepdims=True)
              + aux_ref[5:6, 0:1])
    o_ref[...] = 1.0 / (1.0 + jnp.exp(-logits))                       # sigmoid


def _full_spec(shape):
    ndim = len(shape)
    return pl.BlockSpec(shape, lambda: (0,) * ndim)


@functools.partial(jax.jit, static_argnames=())
def domain_classifier_forward(x, lambda_, params):
    """Forward pass. `lambda_` only affects the backward pass in the PyTorch
    module (gradient reversal), so it is accepted but unused here."""
    del lambda_
    (w1q, w2q, aux) = params
    B = x.shape[0]

    xb = x.astype(jnp.bfloat16)   # pre-cast in wrapper: fewer in-kernel VPU ops, half the read
    inputs = (xb, w1q, w2q, aux)
    in_specs = [_full_spec(a.shape) for a in inputs]

    out = pl.pallas_call(
        _dann_kernel,
        out_shape=jax.ShapeDtypeStruct((B, OUT_F), jnp.float32),
        in_specs=in_specs,
        out_specs=_full_spec((B, OUT_F)),
        compiler_params=pltpu.CompilerParams(vmem_limit_bytes=24 << 20),
    )(*inputs)
    return out


def init_raw_params(key):
    """Deterministic synthetic parameters with the module's native layout/semantics."""
    ks = jax.random.split(key, 10)
    # Linear weights in (in, out) layout; small scale to keep activations sane.
    w1 = jax.random.normal(ks[0], (IN_F, HID), jnp.float32) * 0.02
    b1 = jax.random.normal(ks[1], (1, HID), jnp.float32) * 0.01
    w2 = jax.random.normal(ks[2], (HID, HID), jnp.float32) * 0.02
    b2 = jax.random.normal(ks[3], (1, HID), jnp.float32) * 0.01
    w3 = jax.random.normal(ks[4], (HID, OUT_F), jnp.float32) * 0.02
    b3 = jax.random.normal(ks[5], (1, OUT_F), jnp.float32) * 0.01

    eps = 1e-5
    gamma1 = 1.0 + 0.1 * jax.random.normal(ks[6], (1, HID), jnp.float32)
    beta1 = 0.1 * jax.random.normal(ks[7], (1, HID), jnp.float32)
    rmean1 = jnp.zeros((1, HID), jnp.float32)
    rvar1 = jnp.ones((1, HID), jnp.float32)

    gamma2 = 1.0 + 0.1 * jax.random.normal(ks[8], (1, HID), jnp.float32)
    beta2 = 0.1 * jax.random.normal(ks[9], (1, HID), jnp.float32)
    rmean2 = jnp.zeros((1, HID), jnp.float32)
    rvar2 = jnp.ones((1, HID), jnp.float32)

    return dict(w1=w1, b1=b1, g1=gamma1, be1=beta1, rm1=rmean1, rv1=rvar1,
                w2=w2, b2=b2, g2=gamma2, be2=beta2, rm2=rmean2, rv2=rvar2,
                w3=w3, b3=b3, eps=eps)


def _quantize_int8_cols(w):
    """Symmetric int8 quantization with a per-output-column scale."""
    amax = jnp.max(jnp.abs(w), axis=0, keepdims=True)                 # (1, out)
    scale = jnp.maximum(amax, 1e-8) / 127.0
    wq = jnp.clip(jnp.round(w / scale), -127.0, 127.0).astype(jnp.int8)
    return wq, scale.astype(jnp.float32)


def fold_params(p):
    """Fold eval-mode BN + bias into the weights, then int8-quantize the big weights.

    (x @ w + b) * s + t  ==  x @ (w * s) + (b * s + t),
    with s = gamma / sqrt(var + eps), t = beta - mean * s.
    The folded weight is quantized per output column: x @ wq -> * qscale restores it.
    Small operands are packed into one (8, HID) f32 array (single DMA).
    """
    s1 = p["g1"] / jnp.sqrt(p["rv1"] + p["eps"])
    t1 = p["be1"] - p["rm1"] * s1
    w1f = p["w1"] * s1                                   # (2048,1024) folded f32
    t1f = p["b1"] * s1 + t1                              # (1,1024)
    w1q, qs1 = _quantize_int8_cols(w1f)                  # int8 + (1,1024) scale

    s2 = p["g2"] / jnp.sqrt(p["rv2"] + p["eps"])
    t2 = p["be2"] - p["rm2"] * s2
    w2f = p["w2"] * s2                                   # (1024,1024) folded f32
    t2f = p["b2"] * s2 + t2
    w2q, qs2 = _quantize_int8_cols(w2f)

    w3row = p["w3"].reshape(1, HID).astype(jnp.float32)  # (1,1024) row for lane-reduce
    b3 = p["b3"].astype(jnp.float32)                     # (1,1)

    aux = jnp.zeros((8, HID), jnp.float32)
    aux = aux.at[0].set(qs1[0])
    aux = aux.at[1].set(t1f[0])
    aux = aux.at[2].set(qs2[0])
    aux = aux.at[3].set(t2f[0])
    aux = aux.at[4].set(w3row[0])
    aux = aux.at[5, 0].set(b3[0, 0])
    return (w1q, w2q, aux)


def reference_forward_matched(x, folded):
    """Pure-JAX reference matching the kernel's math (int8 weights, bf16 MXU inputs,
    f32 accumulation)."""
    (w1q, w2q, aux) = folded
    qs1, t1f = aux[0:1, :], aux[1:2, :]
    qs2, t2f = aux[2:3, :], aux[3:4, :]
    w3row, b3 = aux[4:5, :], aux[5:6, 0:1]

    xb = x.astype(jnp.bfloat16).astype(jnp.float32)
    h1 = jnp.maximum((xb @ w1q.astype(jnp.float32)) * qs1 + t1f, 0.0)
    h1b = h1.astype(jnp.bfloat16).astype(jnp.float32)
    h2 = jnp.maximum((h1b @ w2q.astype(jnp.float32)) * qs2 + t2f, 0.0)
    logits = jnp.sum(h2 * w3row, axis=-1, keepdims=True) + b3
    return jax.nn.sigmoid(logits)


def reference_forward_f32(x, p):
    """Full-precision reference with the original (unfolded) parameterization."""
    eps = p["eps"]
    s1 = p["g1"] / jnp.sqrt(p["rv1"] + eps)
    t1 = p["be1"] - p["rm1"] * s1
    s2 = p["g2"] / jnp.sqrt(p["rv2"] + eps)
    t2 = p["be2"] - p["rm2"] * s2
    h1 = jnp.maximum((x @ p["w1"] + p["b1"]) * s1 + t1, 0.0)
    h2 = jnp.maximum((h1 @ p["w2"] + p["b2"]) * s2 + t2, 0.0)
    return jax.nn.sigmoid(h2 @ p["w3"] + p["b3"])


if __name__ == "__main__":
    key = jax.random.PRNGKey(0)
    k_x, k_p = jax.random.split(key)

    B = 8
    x = jax.random.normal(k_x, (B, IN_F), jnp.float32)   # flattened 128*4*4 features
    raw = init_raw_params(k_p)
    params = fold_params(raw)
    lambda_ = 0.5  # only used by the backward (gradient reversal); unused in forward

    out = domain_classifier_forward(x, lambda_, params)
    out = jax.block_until_ready(out)
    assert out.shape == (B, OUT_F), out.shape

    # Check against a reference that mirrors the kernel's quantized math (tight tol)
    ref_m = reference_forward_matched(x, params)
    assert jnp.allclose(out, ref_m, atol=2e-4, rtol=2e-4), (out, ref_m)

    # And against the original full-f32 module semantics (loose tol: int8 weights)
    ref_f = reference_forward_f32(x, raw)
    assert jnp.allclose(out, ref_f, atol=5e-2, rtol=5e-2), (out, ref_f)

    print("KERNEL_OK")
</pallas_src>

<mosaic_0001>
module attributes {stable_mosaic.version = 11 : i64} {
  func.func @_dann_kernel(%arg0: memref<8x2048xbf16, #tpu.memory_space<vmem>>, %arg1: memref<2048x1024xi8, #tpu.memory_space<vmem>>, %arg2: memref<1024x1024xi8, #tpu.memory_space<vmem>>, %arg3: memref<8x1024xf32, #tpu.memory_space<vmem>>, %arg4: memref<8x1xf32, #tpu.memory_space<vmem>>) attributes {dimension_semantics = [], scalar_prefetch = 0 : i64, scratch_operands = 0 : i64, tpu.core_type = #tpu.core_type<tc>} {
    %c0 = arith.constant 0 : index
    %c0_0 = arith.constant 0 : index
    %0 = vector.load %arg0[%c0, %c0_0] : memref<8x2048xbf16, #tpu.memory_space<vmem>>, vector<8x2048xbf16>
    %c0_1 = arith.constant 0 : index
    %c0_2 = arith.constant 0 : index
    %1 = vector.load %arg1[%c0_1, %c0_2] : memref<2048x1024xi8, #tpu.memory_space<vmem>>, vector<2048x1024xi8>
    %2 = arith.sitofp %1 : vector<2048x1024xi8> to vector<2048x1024xbf16>
    %cst = arith.constant dense<0.000000e+00> : vector<8x1024xf32>
    %3 = tpu.matmul %0, %2, %cst {dimension_numbers = #tpu.dot_dimension_numbers<[1], [0], [0], [1], [0, 0, 1, 1], [], []>} : vector<8x2048xbf16>, vector<2048x1024xbf16>, vector<8x1024xf32> -> vector<8x1024xf32>
    %c0_3 = arith.constant 0 : index
    %c0_4 = arith.constant 0 : index
    %4 = vector.load %arg3[%c0_3, %c0_4] : memref<8x1024xf32, #tpu.memory_space<vmem>>, vector<1x1024xf32>
    %5 = vector.broadcast %4 : vector<1x1024xf32> to vector<8x1024xf32>
    %6 = arith.mulf %3, %5 : vector<8x1024xf32>
    %c1 = arith.constant 1 : index
    %c0_5 = arith.constant 0 : index
    %7 = vector.load %arg3[%c1, %c0_5] : memref<8x1024xf32, #tpu.memory_space<vmem>>, vector<1x1024xf32>
    %8 = vector.broadcast %7 : vector<1x1024xf32> to vector<8x1024xf32>
    %9 = arith.addf %6, %8 : vector<8x1024xf32>
    %cst_6 = arith.constant 0.000000e+00 : f32
    %10 = vector.broadcast %cst_6 : f32 to vector<8x1024xf32>
    %11 = arith.maximumf %9, %10 : vector<8x1024xf32>
    %c0_7 = arith.constant 0 : index
    %c0_8 = arith.constant 0 : index
    %12 = vector.load %arg2[%c0_7, %c0_8] : memref<1024x1024xi8, #tpu.memory_space<vmem>>, vector<1024x1024xi8>
    %13 = arith.sitofp %12 : vector<1024x1024xi8> to vector<1024x1024xbf16>
    %14 = arith.truncf %11 : vector<8x1024xf32> to vector<8x1024xbf16>
    %cst_9 = arith.constant dense<0.000000e+00> : vector<8x1024xf32>
    %15 = tpu.matmul %14, %13, %cst_9 {dimension_numbers = #tpu.dot_dimension_numbers<[1], [0], [0], [1], [0, 0, 1, 1], [], []>} : vector<8x1024xbf16>, vector<1024x1024xbf16>, vector<8x1024xf32> -> vector<8x1024xf32>
    %c2 = arith.constant 2 : index
    %c0_10 = arith.constant 0 : index
    %16 = vector.load %arg3[%c2, %c0_10] : memref<8x1024xf32, #tpu.memory_space<vmem>>, vector<1x1024xf32>
    %17 = vector.broadcast %16 : vector<1x1024xf32> to vector<8x1024xf32>
    %18 = arith.mulf %15, %17 : vector<8x1024xf32>
    %c3 = arith.constant 3 : index
    %c0_11 = arith.constant 0 : index
    %19 = vector.load %arg3[%c3, %c0_11] : memref<8x1024xf32, #tpu.memory_space<vmem>>, vector<1x1024xf32>
    %20 = vector.broadcast %19 : vector<1x1024xf32> to vector<8x1024xf32>
    %21 = arith.addf %18, %20 : vector<8x1024xf32>
    %cst_12 = arith.constant 0.000000e+00 : f32
    %22 = vector.broadcast %cst_12 : f32 to vector<8x1024xf32>
    %23 = arith.maximumf %21, %22 : vector<8x1024xf32>
    %c4 = arith.constant 4 : index
    %c0_13 = arith.constant 0 : index
    %24 = vector.load %arg3[%c4, %c0_13] : memref<8x1024xf32, #tpu.memory_space<vmem>>, vector<1x1024xf32>
    %25 = vector.broadcast %24 : vector<1x1024xf32> to vector<8x1024xf32>
    %26 = arith.mulf %23, %25 : vector<8x1024xf32>
    %cst_14 = arith.constant dense<0.000000e+00> : vector<8xf32>
    %27 = vector.multi_reduction <add>, %26, %cst_14 [1] : vector<8x1024xf32> to vector<8xf32>
    %28 = vector.shape_cast %27 : vector<8xf32> to vector<8x1xf32>
    %c5 = arith.constant 5 : index
    %c0_15 = arith.constant 0 : index
    %29 = vector.load %arg3[%c5, %c0_15] : memref<8x1024xf32, #tpu.memory_space<vmem>>, vector<1x1xf32>
    %30 = vector.broadcast %29 : vector<1x1xf32> to vector<8x1xf32>
    %31 = arith.addf %28, %30 : vector<8x1xf32>
    %cst_16 = arith.constant 0.000000e+00 : f32
    %32 = vector.broadcast %cst_16 : f32 to vector<8x1xf32>
    %33 = arith.subf %32, %31 : vector<8x1xf32>
    %34 = math.exp %33 : vector<8x1xf32>
    %cst_17 = arith.constant 1.000000e+00 : f32
    %35 = vector.broadcast %cst_17 : f32 to vector<8x1xf32>
    %36 = arith.addf %35, %34 : vector<8x1xf32>
    %cst_18 = arith.constant 1.000000e+00 : f32
    %37 = vector.broadcast %cst_18 : f32 to vector<8x1xf32>
    %38 = arith.divf %37, %36 : vector<8x1xf32>
    %c0_19 = arith.constant 0 : index
    %c0_20 = arith.constant 0 : index
    %39 = vector.load %arg4[%c0_19, %c0_20] : memref<8x1xf32, #tpu.memory_space<vmem>>, vector<8x1xf32>
    tpu.vector_store %arg4[%c0_19, %c0_20], %38 {strides = array<i32>} : memref<8x1xf32, #tpu.memory_space<vmem>>, vector<8x1xf32>,
    return
  }
}

</mosaic_0001>

<llo_original>
// kernel: domain_classifier_forward.1
$region0: #{domain_classifier_forward.1}
  #allocation0 [shape = 'u32[]', space=smem, size = 0x4, offset = 0x4, fixed_abs, tag = 'smem constant byte address 0x4 - core index']
  #allocation1 [shape = 'u32[72,128]{1,0:T(1,128)}', space=vmem, size = 0x9000, scoped, tag = 'internal scratch']
  %s0 = inlined_call_operand.vmem [shape: bf16[8,2048], index: 0, kind: input, shape index: {}]
  %s1 = inlined_call_operand.hbm [shape: s8[2048,1024], index: 1, kind: input, shape index: {}]
  %s2 = inlined_call_operand.hbm [shape: s8[1024,1024], index: 2, kind: input, shape index: {}]
  %s3 = inlined_call_operand.hbm [shape: f32[8,1024], index: 3, kind: input, shape index: {}]
  %s4 = inlined_call_operand.vmem [shape: f32[8,1], index: 4, kind: output, shape index: {}]
  %s5 = sld [smem:[#allocation0]]
  $region38: #{domain_classifier_forward.1} parent=0
    _
  %s7 = ssub.s32 1, %s5
  %s8 = scalar_select 0, %s7, %s5
  $region1: #{domain_classifier_forward.1} parent=0
    #allocation2 [shape = 'u8[2097152]{0}', space=vmem, size = 0x200000, scoped, tag = 'input window, operand 1, single buffered']
    #allocation3 [shape = 's32[1]{0}', space=sflag, size = 0x4, scoped, tag = 'scoped memory for domain_classifier_forward.1']
    #allocation4 [shape = 'u8[1048576]{0}', space=vmem, size = 0x100000, scoped, tag = 'input window, operand 2, single buffered']
    #allocation5 [shape = 's32[1]{0}', space=sflag, size = 0x4, scoped, tag = 'scoped memory for domain_classifier_forward.1']
    #allocation6 [shape = 'u8[32768]{0}', space=vmem, size = 0x8000, scoped, tag = 'input window, operand 3, single buffered']
    %9 = vsyncpa [#allocation3], 0
    %10 = vsyncpa [#allocation5], 0
    // Predicated region
    $region2: #{domain_classifier_forward.1} parent=1 // pred_check
      _
    $region3: #{domain_classifier_forward.1} parent=1 // pred_check_branch
      %12 = sbr.rel (0) target = $region5
    $region4: #{domain_classifier_forward.1} parent=1 // pred_region
      _
    $region5: #{domain_classifier_forward.1} parent=1 // pred_fallthru
      _
    // Predicated region
    $region6: #{domain_classifier_forward.1} parent=1 // pred_check
      _
    $region7: #{domain_classifier_forward.1} parent=1 // pred_check_branch
      %14 = sbr.rel (0) target = $region9
    $region8: #{domain_classifier_forward.1} parent=1 // pred_region
      %16 = vsyncadd [#allocation3], 0
      %s17 = sshll.u32 %s1, 4
      %s18 = int_to_ptr.hbm [resolvable:$true] %s17
      %s19 = sshll.u32 [#allocation2], 4
      %s20 = int_to_ptr.vmem [resolvable:$true] %s19
      %25 = dma.hbm_to_vmem [thread:$0]  %s18, 65536, %s20, [#allocation3], 1024, 1024, 64
    $region9: #{domain_classifier_forward.1} parent=1 // pred_fallthru
      _
    // Predicated region
    $region10: #{domain_classifier_forward.1} parent=1 // pred_check
      _
    $region11: #{domain_classifier_forward.1} parent=1 // pred_check_branch
      %27 = sbr.rel (0) target = $region13
    $region12: #{domain_classifier_forward.1} parent=1 // pred_region
      %29 = vsyncadd [#allocation5], 0
      %s30 = sshll.u32 %s2, 4
      %s31 = int_to_ptr.hbm [resolvable:$true] %s30
      %s32 = sshll.u32 [#allocation4], 4
      %s33 = int_to_ptr.vmem [resolvable:$true] %s32
      %38 = dma.hbm_to_vmem [thread:$0]  %s31, 32768, %s33, [#allocation5], 1024, 1024, 64
    $region13: #{domain_classifier_forward.1} parent=1 // pred_fallthru
      _
    // Predicated region
    $region14: #{domain_classifier_forward.1} parent=1 // pred_check
      _
    $region15: #{domain_classifier_forward.1} parent=1 // pred_check_branch
      %40 = sbr.rel (0) target = $region17
    $region16: #{domain_classifier_forward.1} parent=1 // pred_region
      %42 = vsyncadd [#allocation5], 0
      %s44 = sshll.u32 %s3, 4
      %s45 = int_to_ptr.hbm [resolvable:$true] %s44
      %s46 = sshll.u32 [#allocation6], 4
      %s47 = int_to_ptr.vmem [resolvable:$true] %s46
      %49 = dma.hbm_to_vmem [thread:$0]  %s45, 1024, %s47, [#allocation5]
    $region17: #{domain_classifier_forward.1} parent=1 // pred_fallthru
      _
    // Predicated region
    $region18: #{domain_classifier_forward.1} parent=1 // pred_check
      _
    $region19: #{domain_classifier_forward.1} parent=1 // pred_check_branch
      %51 = sbr.rel (0) target = $region21
    $region20: #{domain_classifier_forward.1} parent=1 // pred_region
      %53 = dma.done [#allocation3], 65536
    $region21: #{domain_classifier_forward.1} parent=1 // pred_fallthru
      _
    // Predicated region
    $region22: #{domain_classifier_forward.1} parent=1 // pred_check
      _
    $region23: #{domain_classifier_forward.1} parent=1 // pred_check_branch
      %55 = sbr.rel (0) target = $region25
    $region24: #{domain_classifier_forward.1} parent=1 // pred_region
      %57 = dma.done [#allocation5], 32768
    $region25: #{domain_classifier_forward.1} parent=1 // pred_fallthru
      _
    // Predicated region
    $region26: #{domain_classifier_forward.1} parent=1 // pred_check
      _
    $region27: #{domain_classifier_forward.1} parent=1 // pred_check_branch
      %59 = sbr.rel (0) target = $region29
    $region28: #{domain_classifier_forward.1} parent=1 // pred_region
      %61 = dma.done [#allocation5], 1024
    $region29: #{domain_classifier_forward.1} parent=1 // pred_fallthru
      _
    %v62 = vld [vmem:[%s0] sm:$0xff]
    %v63 = vld [vmem:[%s0 + $0x8] sm:$0xff]
    %v64 = vld [vmem:[%s0 + $0x10] sm:$0xff]
    %v65 = vld [vmem:[%s0 + $0x18] sm:$0xff]
    %v66 = vld [vmem:[%s0 + $0x20] sm:$0xff]
    %v67 = vld [vmem:[%s0 + $0x28] sm:$0xff]
    %v68 = vld [vmem:[%s0 + $0x30] sm:$0xff]
    %v69 = vld [vmem:[%s0 + $0x38] sm:$0xff]
    %v70 = vld [vmem:[#allocation2] sm:$0xff]
    %v71 = vld [vmem:[#allocation2 + $0x8] sm:$0xff]
    %v72 = vld [vmem:[#allocation2 + $0x10] sm:$0xff]
    %v73 = vld [vmem:[#allocation2 + $0x18] sm:$0xff]
    %v74 = vld [vmem:[#allocation2 + $0x20] sm:$0xff]
    %v75 = vld [vmem:[#allocation2 + $0x28] sm:$0xff]
    %v76 = vld [vmem:[#allocation2 + $0x30] sm:$0xff]
    %v77 = vld [vmem:[#allocation2 + $0x38] sm:$0xff]
    %v78 = vld [vmem:[#allocation2 + $0x40] sm:$0xff]
    %v79 = vld [vmem:[#allocation2 + $0x48] sm:$0xff]
    %v80 = vld [vmem:[#allocation2 + $0x50] sm:$0xff]
    %v81 = vld [vmem:[#allocation2 + $0x58] sm:$0xff]
    %v82 = vld [vmem:[#allocation2 + $0x60] sm:$0xff]
    %v83 = vld [vmem:[#allocation2 + $0x68] sm:$0xff]
    %v84 = vld [vmem:[#allocation2 + $0x70] sm:$0xff]
    %v85 = vld [vmem:[#allocation2 + $0x78] sm:$0xff]
    %v86 = vld [vmem:[#allocation2 + $0x80] sm:$0xff]
    %v87 = vld [vmem:[#allocation2 + $0x88] sm:$0xff]
    %v88 = vld [vmem:[#allocation2 + $0x90] sm:$0xff]
    %v89 = vld [vmem:[#allocation2 + $0x98] sm:$0xff]
    %v90 = vld [vmem:[#allocation2 + $0xa0] sm:$0xff]
    %v91 = vld [vmem:[#allocation2 + $0xa8] sm:$0xff]
    %v92 = vld [vmem:[#allocation2 + $0xb0] sm:$0xff]
    %v93 = vld [vmem:[#allocation2 + $0xb8] sm:$0xff]
    %v94 = vld [vmem:[#allocation2 + $0xc0] sm:$0xff]
    %v95 = vld [vmem:[#allocation2 + $0xc8] sm:$0xff]
    %v96 = vld [vmem:[#allocation2 + $0xd0] sm:$0xff]
    %v97 = vld [vmem:[#allocation2 + $0xd8] sm:$0xff]
    %v98 = vld [vmem:[#allocation2 + $0xe0] sm:$0xff]
    %v99 = vld [vmem:[#allocation2 + $0xe8] sm:$0xff]
    %v100 = vld [vmem:[#allocation2 + $0xf0] sm:$0xff]
    %v101 = vld [vmem:[#allocation2 + $0xf8] sm:$0xff]
    %v102 = vld [vmem:[#allocation2 + $0x100] sm:$0xff]
    %v103 = vld [vmem:[#allocation2 + $0x108] sm:$0xff]
    %v104 = vld [vmem:[#allocation2 + $0x110] sm:$0xff]
    %v105 = vld [vmem:[#allocation2 + $0x118] sm:$0xff]
    %v106 = vld [vmem:[#allocation2 + $0x120] sm:$0xff]
    %v107 = vld [vmem:[#allocation2 + $0x128] sm:$0xff]
    %v108 = vld [vmem:[#allocation2 + $0x130] sm:$0xff]
    %v109 = vld [vmem:[#allocation2 + $0x138] sm:$0xff]
    %v110 = vld [vmem:[#allocation2 + $0x140] sm:$0xff]
    %v111 = vld [vmem:[#allocation2 + $0x148] sm:$0xff]
    %v112 = vld [vmem:[#allocation2 + $0x150] sm:$0xff]
    %v113 = vld [vmem:[#allocation2 + $0x158] sm:$0xff]
    %v114 = vld [vmem:[#allocation2 + $0x160] sm:$0xff]
    %v115 = vld [vmem:[#allocation2 + $0x168] sm:$0xff]
    %v116 = vld [vmem:[#allocation2 + $0x170] sm:$0xff]
    %v117 = vld [vmem:[#allocation2 + $0x178] sm:$0xff]
    %v118 = vld [vmem:[#allocation2 + $0x180] sm:$0xff]
    %v119 = vld [vmem:[#allocation2 + $0x188] sm:$0xff]
    %v120 = vld [vmem:[#allocation2 + $0x190] sm:$0xff]
    %v121 = vld [vmem:[#allocation2 + $0x198] sm:$0xff]
    %v122 = vld [vmem:[#allocation2 + $0x1a0] sm:$0xff]
    %v123 = vld [vmem:[#allocation2 + $0x1a8] sm:$0xff]
    %v124 = vld [vmem:[#allocation2 + $0x1b0] sm:$0xff]
    %v125 = vld [vmem:[#allocation2 + $0x1b8] sm:$0xff]
    %v126 = vld [vmem:[#allocation2 + $0x1c0] sm:$0xff]
    %v127 = vld [vmem:[#allocation2 + $0x1c8] sm:$0xff]
    %v128 = vld [vmem:[#allocation2 + $0x1d0] sm:$0xff]
    %v129 = vld [vmem:[#allocation2 + $0x1d8] sm:$0xff]
    %v130 = vld [vmem:[#allocation2 + $0x1e0] sm:$0xff]
    %v131 = vld [vmem:[#allocation2 + $0x1e8] sm:$0xff]
    %v132 = vld [vmem:[#allocation2 + $0x1f0] sm:$0xff]
    %v133 = vld [vmem:[#allocation2 + $0x1f8] sm:$0xff]
    %v134 = vld [vmem:[#allocation2 + $0x200] sm:$0xff]
    %v135 = vld [vmem:[#allocation2 + $0x208] sm:$0xff]
    %v136 = vld [vmem:[#allocation2 + $0x210] sm:$0xff]
    %v137 = vld [vmem:[#allocation2 + $0x218] sm:$0xff]
    %v138 = vld [vmem:[#allocation2 + $0x220] sm:$0xff]
    %v139 = vld [vmem:[#allocation2 + $0x228] sm:$0xff]
    %v140 = vld [vmem:[#allocation2 + $0x230] sm:$0xff]
    %v141 = vld [vmem:[#allocation2 + $0x238] sm:$0xff]
    %v142 = vld [vmem:[#allocation2 + $0x240] sm:$0xff]
    %v143 = vld [vmem:[#allocation2 + $0x248] sm:$0xff]
    %v144 = vld [vmem:[#allocation2 + $0x250] sm:$0xff]
    %v145 = vld [vmem:[#allocation2 + $0x258] sm:$0xff]
    %v146 = vld [vmem:[#allocation2 + $0x260] sm:$0xff]
    %v147 = vld [vmem:[#allocation2 + $0x268] sm:$0xff]
    %v148 = vld [vmem:[#allocation2 + $0x270] sm:$0xff]
    %v149 = vld [vmem:[#allocation2 + $0x278] sm:$0xff]
    %v150 = vld [vmem:[#allocation2 + $0x280] sm:$0xff]
    %v151 = vld [vmem:[#allocation2 + $0x288] sm:$0xff]
    %v152 = vld [vmem:[#allocation2 + $0x290] sm:$0xff]
    %v153 = vld [vmem:[#allocation2 + $0x298] sm:$0xff]
    %v154 = vld [vmem:[#allocation2 + $0x2a0] sm:$0xff]
    %v155 = vld [vmem:[#allocation2 + $0x2a8] sm:$0xff]
    %v156 = vld [vmem:[#allocation2 + $0x2b0] sm:$0xff]
    %v157 = vld [vmem:[#allocation2 + $0x2b8] sm:$0xff]
    %v158 = vld [vmem:[#allocation2 + $0x2c0] sm:$0xff]
    %v159 = vld [vmem:[#allocation2 + $0x2c8] sm:$0xff]
    %v160 = vld [vmem:[#allocation2 + $0x2d0] sm:$0xff]
    %v161 = vld [vmem:[#allocation2 + $0x2d8] sm:$0xff]
    %v162 = vld [vmem:[#allocation2 + $0x2e0] sm:$0xff]
    %v163 = vld [vmem:[#allocation2 + $0x2e8] sm:$0xff]
    %v164 = vld [vmem:[#allocation2 + $0x2f0] sm:$0xff]
    %v165 = vld [vmem:[#allocation2 + $0x2f8] sm:$0xff]
    %v166 = vld [vmem:[#allocation2 + $0x300] sm:$0xff]
    %v167 = vld [vmem:[#allocation2 + $0x308] sm:$0xff]
    %v168 = vld [vmem:[#allocation2 + $0x310] sm:$0xff]
    %v169 = vld [vmem:[#allocation2 + $0x318] sm:$0xff]
    %v170 = vld [vmem:[#allocation2 + $0x320] sm:$0xff]
    %v171 = vld [vmem:[#allocation2 + $0x328] sm:$0xff]
    %v172 = vld [vmem:[#allocation2 + $0x330] sm:$0xff]
    %v173 = vld [vmem:[#allocation2 + $0x338] sm:$0xff]
    %v174 = vld [vmem:[#allocation2 + $0x340] sm:$0xff]
    %v175 = vld [vmem:[#allocation2 + $0x348] sm:$0xff]
    %v176 = vld [vmem:[#allocation2 + $0x350] sm:$0xff]
    %v177 = vld [vmem:[#allocation2 + $0x358] sm:$0xff]
    %v178 = vld [vmem:[#allocation2 + $0x360] sm:$0xff]
    %v179 = vld [vmem:[#allocation2 + $0x368] sm:$0xff]
    %v180 = vld [vmem:[#allocation2 + $0x370] sm:$0xff]
    %v181 = vld [vmem:[#allocation2 + $0x378] sm:$0xff]
    %v182 = vld [vmem:[#allocation2 + $0x380] sm:$0xff]
    %v183 = vld [vmem:[#allocation2 + $0x388] sm:$0xff]
    %v184 = vld [vmem:[#allocation2 + $0x390] sm:$0xff]
    %v185 = vld [vmem:[#allocation2 + $0x398] sm:$0xff]
    %v186 = vld [vmem:[#allocation2 + $0x3a0] sm:$0xff]
    %v187 = vld [vmem:[#allocation2 + $0x3a8] sm:$0xff]
    %v188 = vld [vmem:[#allocation2 + $0x3b0] sm:$0xff]
    %v189 = vld [vmem:[#allocation2 + $0x3b8] sm:$0xff]
    %v190 = vld [vmem:[#allocation2 + $0x3c0] sm:$0xff]
    %v191 = vld [vmem:[#allocation2 + $0x3c8] sm:$0xff]
    %v192 = vld [vmem:[#allocation2 + $0x3d0] sm:$0xff]
    %v193 = vld [vmem:[#allocation2 + $0x3d8] sm:$0xff]
    %v194 = vld [vmem:[#allocation2 + $0x3e0] sm:$0xff]
    %v195 = vld [vmem:[#allocation2 + $0x3e8] sm:$0xff]
    %v196 = vld [vmem:[#allocation2 + $0x3f0] sm:$0xff]
    %v197 = vld [vmem:[#allocation2 + $0x3f8] sm:$0xff]
    %v198 = vld [vmem:[#allocation2 + $0x400] sm:$0xff]
    %v199 = vld [vmem:[#allocation2 + $0x408] sm:$0xff]
    %v200 = vld [vmem:[#allocation2 + $0x410] sm:$0xff]
    %v201 = vld [vmem:[#allocation2 + $0x418] sm:$0xff]
    %v202 = vld [vmem:[#allocation2 + $0x420] sm:$0xff]
    %v203 = vld [vmem:[#allocation2 + $0x428] sm:$0xff]
    %v204 = vld [vmem:[#allocation2 + $0x430] sm:$0xff]
    %v205 = vld [vmem:[#allocation2 + $0x438] sm:$0xff]
    %v206 = vld [vmem:[#allocation2 + $0x440] sm:$0xff]
    %v207 = vld [vmem:[#allocation2 + $0x448] sm:$0xff]
    %v208 = vld [vmem:[#allocation2 + $0x450] sm:$0xff]
    %v209 = vld [vmem:[#allocation2 + $0x458] sm:$0xff]
    %v210 = vld [vmem:[#allocation2 + $0x460] sm:$0xff]
    %v211 = vld [vmem:[#allocation2 + $0x468] sm:$0xff]
    %v212 = vld [vmem:[#allocation2 + $0x470] sm:$0xff]
    %v213 = vld [vmem:[#allocation2 + $0x478] sm:$0xff]
    %v214 = vld [vmem:[#allocation2 + $0x480] sm:$0xff]
    %v215 = vld [vmem:[#allocation2 + $0x488] sm:$0xff]
    %v216 = vld [vmem:[#allocation2 + $0x490] sm:$0xff]
    %v217 = vld [vmem:[#allocation2 + $0x498] sm:$0xff]
    %v218 = vld [vmem:[#allocation2 + $0x4a0] sm:$0xff]
    %v219 = vld [vmem:[#allocation2 + $0x4a8] sm:$0xff]
    %v220 = vld [vmem:[#allocation2 + $0x4b0] sm:$0xff]
    %v221 = vld [vmem:[#allocation2 + $0x4b8] sm:$0xff]
    %v222 = vld [vmem:[#allocation2 + $0x4c0] sm:$0xff]
    %v223 = vld [vmem:[#allocation2 + $0x4c8] sm:$0xff]
    %v224 = vld [vmem:[#allocation2 + $0x4d0] sm:$0xff]
    %v225 = vld [vmem:[#allocation2 + $0x4d8] sm:$0xff]
    %v226 = vld [vmem:[#allocation2 + $0x4e0] sm:$0xff]
    %v227 = vld [vmem:[#allocation2 + $0x4e8] sm:$0xff]
    %v228 = vld [vmem:[#allocation2 + $0x4f0] sm:$0xff]
    %v229 = vld [vmem:[#allocation2 + $0x4f8] sm:$0xff]
    %v230 = vld [vmem:[#allocation2 + $0x500] sm:$0xff]
    %v231 = vld [vmem:[#allocation2 + $0x508] sm:$0xff]
    %v232 = vld [vmem:[#allocation2 + $0x510] sm:$0xff]
    %v233 = vld [vmem:[#allocation2 + $0x518] sm:$0xff]
    %v234 = vld [vmem:[#allocation2 + $0x520] sm:$0xff]
    %v235 = vld [vmem:[#allocation2 + $0x528] sm:$0xff]
    %v236 = vld [vmem:[#allocation2 + $0x530] sm:$0xff]
    %v237 = vld [vmem:[#allocation2 + $0x538] sm:$0xff]
    %v238 = vld [vmem:[#allocation2 + $0x540] sm:$0xff]
    %v239 = vld [vmem:[#allocation2 + $0x548] sm:$0xff]
    %v240 = vld [vmem:[#allocation2 + $0x550] sm:$0xff]
    %v241 = vld [vmem:[#allocation2 + $0x558] sm:$0xff]
    %v242 = vld [vmem:[#allocation2 + $0x560] sm:$0xff]
    %v243 = vld [vmem:[#allocation2 + $0x568] sm:$0xff]
    %v244 = vld [vmem:[#allocation2 + $0x570] sm:$0xff]
    %v245 = vld [vmem:[#allocation2 + $0x578] sm:$0xff]
    %v246 = vld [vmem:[#allocation2 + $0x580] sm:$0xff]
    %v247 = vld [vmem:[#allocation2 + $0x588] sm:$0xff]
    %v248 = vld [vmem:[#allocation2 + $0x590] sm:$0xff]
    %v249 = vld [vmem:[#allocation2 + $0x598] sm:$0xff]
    %v250 = vld [vmem:[#allocation2 + $0x5a0] sm:$0xff]
    %v251 = vld [vmem:[#allocation2 + $0x5a8] sm:$0xff]
    %v252 = vld [vmem:[#allocation2 + $0x5b0] sm:$0xff]
    %v253 = vld [vmem:[#allocation2 + $0x5b8] sm:$0xff]
    %v254 = vld [vmem:[#allocation2 + $0x5c0] sm:$0xff]
    %v255 = vld [vmem:[#allocation2 + $0x5c8] sm:$0xff]
    %v256 = vld [vmem:[#allocation2 + $0x5d0] sm:$0xff]
    %v257 = vld [vmem:[#allocation2 + $0x5d8] sm:$0xff]
    %v258 = vld [vmem:[#allocation2 + $0x5e0] sm:$0xff]
    %v259 = vld [vmem:[#allocation2 + $0x5e8] sm:$0xff]
    %v260 = vld [vmem:[#allocation2 + $0x5f0] sm:$0xff]
    %v261 = vld [vmem:[#allocation2 + $0x5f8] sm:$0xff]
    %v262 = vld [vmem:[#allocation2 + $0x600] sm:$0xff]
    %v263 = vld [vmem:[#allocation2 + $0x608] sm:$0xff]
    %v264 = vld [vmem:[#allocation2 + $0x610] sm:$0xff]
    %v265 = vld [vmem:[#allocation2 + $0x618] sm:$0xff]
    %v266 = vld [vmem:[#allocation2 + $0x620] sm:$0xff]
    %v267 = vld [vmem:[#allocation2 + $0x628] sm:$0xff]
    %v268 = vld [vmem:[#allocation2 + $0x630] sm:$0xff]
    %v269 = vld [vmem:[#allocation2 + $0x638] sm:$0xff]
    %v270 = vld [vmem:[#allocation2 + $0x640] sm:$0xff]
    %v271 = vld [vmem:[#allocation2 + $0x648] sm:$0xff]
    %v272 = vld [vmem:[#allocation2 + $0x650] sm:$0xff]
    %v273 = vld [vmem:[#allocation2 + $0x658] sm:$0xff]
    %v274 = vld [vmem:[#allocation2 + $0x660] sm:$0xff]
    %v275 = vld [vmem:[#allocation2 + $0x668] sm:$0xff]
    %v276 = vld [vmem:[#allocation2 + $0x670] sm:$0xff]
    %v277 = vld [vmem:[#allocation2 + $0x678] sm:$0xff]
    %v278 = vld [vmem:[#allocation2 + $0x680] sm:$0xff]
    %v279 = vld [vmem:[#allocation2 + $0x688] sm:$0xff]
    %v280 = vld [vmem:[#allocation2 + $0x690] sm:$0xff]
    %v281 = vld [vmem:[#allocation2 + $0x698] sm:$0xff]
    %v282 = vld [vmem:[#allocation2 + $0x6a0] sm:$0xff]
    %v283 = vld [vmem:[#allocation2 + $0x6a8] sm:$0xff]
    %v284 = vld [vmem:[#allocation2 + $0x6b0] sm:$0xff]
    %v285 = vld [vmem:[#allocation2 + $0x6b8] sm:$0xff]
    %v286 = vld [vmem:[#allocation2 + $0x6c0] sm:$0xff]
    %v287 = vld [vmem:[#allocation2 + $0x6c8] sm:$0xff]
    %v288 = vld [vmem:[#allocation2 + $0x6d0] sm:$0xff]
    %v289 = vld [vmem:[#allocation2 + $0x6d8] sm:$0xff]
    %v290 = vld [vmem:[#allocation2 + $0x6e0] sm:$0xff]
    %v291 = vld [vmem:[#allocation2 + $0x6e8] sm:$0xff]
    %v292 = vld [vmem:[#allocation2 + $0x6f0] sm:$0xff]
    %v293 = vld [vmem:[#allocation2 + $0x6f8] sm:$0xff]
    %v294 = vld [vmem:[#allocation2 + $0x700] sm:$0xff]
    %v295 = vld [vmem:[#allocation2 + $0x708] sm:$0xff]
    %v296 = vld [vmem:[#allocation2 + $0x710] sm:$0xff]
    %v297 = vld [vmem:[#allocation2 + $0x718] sm:$0xff]
    %v298 = vld [vmem:[#allocation2 + $0x720] sm:$0xff]
    %v299 = vld [vmem:[#allocation2 + $0x728] sm:$0xff]
    %v300 = vld [vmem:[#allocation2 + $0x730] sm:$0xff]
    %v301 = vld [vmem:[#allocation2 + $0x738] sm:$0xff]
    %v302 = vld [vmem:[#allocation2 + $0x740] sm:$0xff]
    %v303 = vld [vmem:[#allocation2 + $0x748] sm:$0xff]
    %v304 = vld [vmem:[#allocation2 + $0x750] sm:$0xff]
    %v305 = vld [vmem:[#allocation2 + $0x758] sm:$0xff]
    %v306 = vld [vmem:[#allocation2 + $0x760] sm:$0xff]
    %v307 = vld [vmem:[#allocation2 + $0x768] sm:$0xff]
    %v308 = vld [vmem:[#allocation2 + $0x770] sm:$0xff]
    %v309 = vld [vmem:[#allocation2 + $0x778] sm:$0xff]
    %v310 = vld [vmem:[#allocation2 + $0x780] sm:$0xff]
    %v311 = vld [vmem:[#allocation2 + $0x788] sm:$0xff]
    %v312 = vld [vmem:[#allocation2 + $0x790] sm:$0xff]
    %v313 = vld [vmem:[#allocation2 + $0x798] sm:$0xff]
    %v314 = vld [vmem:[#allocation2 + $0x7a0] sm:$0xff]
    %v315 = vld [vmem:[#allocation2 + $0x7a8] sm:$0xff]
    %v316 = vld [vmem:[#allocation2 + $0x7b0] sm:$0xff]
    %v317 = vld [vmem:[#allocation2 + $0x7b8] sm:$0xff]
    %v318 = vld [vmem:[#allocation2 + $0x7c0] sm:$0xff]
    %v319 = vld [vmem:[#allocation2 + $0x7c8] sm:$0xff]
    %v320 = vld [vmem:[#allocation2 + $0x7d0] sm:$0xff]
    %v321 = vld [vmem:[#allocation2 + $0x7d8] sm:$0xff]
    %v322 = vld [vmem:[#allocation2 + $0x7e0] sm:$0xff]
    %v323 = vld [vmem:[#allocation2 + $0x7e8] sm:$0xff]
    %v324 = vld [vmem:[#allocation2 + $0x7f0] sm:$0xff]
    %v325 = vld [vmem:[#allocation2 + $0x7f8] sm:$0xff]
    %v326 = vld [vmem:[#allocation2 + $0x800] sm:$0xff]
    %v327 = vld [vmem:[#allocation2 + $0x808] sm:$0xff]
    %v328 = vld [vmem:[#allocation2 + $0x810] sm:$0xff]
    %v329 = vld [vmem:[#allocation2 + $0x818] sm:$0xff]
    %v330 = vld [vmem:[#allocation2 + $0x820] sm:$0xff]
    %v331 = vld [vmem:[#allocation2 + $0x828] sm:$0xff]
    %v332 = vld [vmem:[#allocation2 + $0x830] sm:$0xff]
    %v333 = vld [vmem:[#allocation2 + $0x838] sm:$0xff]
    %v334 = vld [vmem:[#allocation2 + $0x840] sm:$0xff]
    %v335 = vld [vmem:[#allocation2 + $0x848] sm:$0xff]
    %v336 = vld [vmem:[#allocation2 + $0x850] sm:$0xff]
    %v337 = vld [vmem:[#allocation2 + $0x858] sm:$0xff]
    %v338 = vld [vmem:[#allocation2 + $0x860] sm:$0xff]
    %v339 = vld [vmem:[#allocation2 + $0x868] sm:$0xff]
    %v340 = vld [vmem:[#allocation2 + $0x870] sm:$0xff]
    %v341 = vld [vmem:[#allocation2 + $0x878] sm:$0xff]
    %v342 = vld [vmem:[#allocation2 + $0x880] sm:$0xff]
    %v343 = vld [vmem:[#allocation2 + $0x888] sm:$0xff]
    %v344 = vld [vmem:[#allocation2 + $0x890] sm:$0xff]
    %v345 = vld [vmem:[#allocation2 + $0x898] sm:$0xff]
    %v346 = vld [vmem:[#allocation2 + $0x8a0] sm:$0xff]
    %v347 = vld [vmem:[#allocation2 + $0x8a8] sm:$0xff]
    %v348 = vld [vmem:[#allocation2 + $0x8b0] sm:$0xff]
    %v349 = vld [vmem:[#allocation2 + $0x8b8] sm:$0xff]
    %v350 = vld [vmem:[#allocation2 + $0x8c0] sm:$0xff]
    %v351 = vld [vmem:[#allocation2 + $0x8c8] sm:$0xff]
    %v352 = vld [vmem:[#allocation2 + $0x8d0] sm:$0xff]
    %v353 = vld [vmem:[#allocation2 + $0x8d8] sm:$0xff]
    %v354 = vld [vmem:[#allocation2 + $0x8e0] sm:$0xff]
    %v355 = vld [vmem:[#allocation2 + $0x8e8] sm:$0xff]
    %v356 = vld [vmem:[#allocation2 + $0x8f0] sm:$0xff]
    %v357 = vld [vmem:[#allocation2 + $0x8f8] sm:$0xff]
    %v358 = vld [vmem:[#allocation2 + $0x900] sm:$0xff]
    %v359 = vld [vmem:[#allocation2 + $0x908] sm:$0xff]
    %v360 = vld [vmem:[#allocation2 + $0x910] sm:$0xff]
    %v361 = vld [vmem:[#allocation2 + $0x918] sm:$0xff]
    %v362 = vld [vmem:[#allocation2 + $0x920] sm:$0xff]
    %v363 = vld [vmem:[#allocation2 + $0x928] sm:$0xff]
    %v364 = vld [vmem:[#allocation2 + $0x930] sm:$0xff]
    %v365 = vld [vmem:[#allocation2 + $0x938] sm:$0xff]
    %v366 = vld [vmem:[#allocation2 + $0x940] sm:$0xff]
    %v367 = vld [vmem:[#allocation2 + $0x948] sm:$0xff]
    %v368 = vld [vmem:[#allocation2 + $0x950] sm:$0xff]
    %v369 = vld [vmem:[#allocation2 + $0x958] sm:$0xff]
    %v370 = vld [vmem:[#allocation2 + $0x960] sm:$0xff]
    %v371 = vld [vmem:[#allocation2 + $0x968] sm:$0xff]
    %v372 = vld [vmem:[#allocation2 + $0x970] sm:$0xff]
    %v373 = vld [vmem:[#allocation2 + $0x978] sm:$0xff]
    %v374 = vld [vmem:[#allocation2 + $0x980] sm:$0xff]
    %v375 = vld [vmem:[#allocation2 + $0x988] sm:$0xff]
    %v376 = vld [vmem:[#allocation2 + $0x990] sm:$0xff]
    %v377 = vld [vmem:[#allocation2 + $0x998] sm:$0xff]
    %v378 = vld [vmem:[#allocation2 + $0x9a0] sm:$0xff]
    %v379 = vld [vmem:[#allocation2 + $0x9a8] sm:$0xff]
    %v380 = vld [vmem:[#allocation2 + $0x9b0] sm:$0xff]
    %v381 = vld [vmem:[#allocation2 + $0x9b8] sm:$0xff]
    %v382 = vld [vmem:[#allocation2 + $0x9c0] sm:$0xff]
    %v383 = vld [vmem:[#allocation2 + $0x9c8] sm:$0xff]
    %v384 = vld [vmem:[#allocation2 + $0x9d0] sm:$0xff]
    %v385 = vld [vmem:[#allocation2 + $0x9d8] sm:$0xff]
    %v386 = vld [vmem:[#allocation2 + $0x9e0] sm:$0xff]
    %v387 = vld [vmem:[#allocation2 + $0x9e8] sm:$0xff]
    %v388 = vld [vmem:[#allocation2 + $0x9f0] sm:$0xff]
    %v389 = vld [vmem:[#allocation2 + $0x9f8] sm:$0xff]
    %v390 = vld [vmem:[#allocation2 + $0xa00] sm:$0xff]
    %v391 = vld [vmem:[#allocation2 + $0xa08] sm:$0xff]
    %v392 = vld [vmem:[#allocation2 + $0xa10] sm:$0xff]
    %v393 = vld [vmem:[#allocation2 + $0xa18] sm:$0xff]
    %v394 = vld [vmem:[#allocation2 + $0xa20] sm:$0xff]
    %v395 = vld [vmem:[#allocation2 + $0xa28] sm:$0xff]
    %v396 = vld [vmem:[#allocation2 + $0xa30] sm:$0xff]
    %v397 = vld [vmem:[#allocation2 + $0xa38] sm:$0xff]
    %v398 = vld [vmem:[#allocation2 + $0xa40] sm:$0xff]
    %v399 = vld [vmem:[#allocation2 + $0xa48] sm:$0xff]
    %v400 = vld [vmem:[#allocation2 + $0xa50] sm:$0xff]
    %v401 = vld [vmem:[#allocation2 + $0xa58] sm:$0xff]
    %v402 = vld [vmem:[#allocation2 + $0xa60] sm:$0xff]
    %v403 = vld [vmem:[#allocation2 + $0xa68] sm:$0xff]
    %v404 = vld [vmem:[#allocation2 + $0xa70] sm:$0xff]
    %v405 = vld [vmem:[#allocation2 + $0xa78] sm:$0xff]
    %v406 = vld [vmem:[#allocation2 + $0xa80] sm:$0xff]
    %v407 = vld [vmem:[#allocation2 + $0xa88] sm:$0xff]
    %v408 = vld [vmem:[#allocation2 + $0xa90] sm:$0xff]
    %v409 = vld [vmem:[#allocation2 + $0xa98] sm:$0xff]
    %v410 = vld [vmem:[#allocation2 + $0xaa0] sm:$0xff]
    %v411 = vld [vmem:[#allocation2 + $0xaa8] sm:$0xff]
    %v412 = vld [vmem:[#allocation2 + $0xab0] sm:$0xff]
    %v413 = vld [vmem:[#allocation2 + $0xab8] sm:$0xff]
    %v414 = vld [vmem:[#allocation2 + $0xac0] sm:$0xff]
    %v415 = vld [vmem:[#allocation2 + $0xac8] sm:$0xff]
    %v416 = vld [vmem:[#allocation2 + $0xad0] sm:$0xff]
    %v417 = vld [vmem:[#allocation2 + $0xad8] sm:$0xff]
    %v418 = vld [vmem:[#allocation2 + $0xae0] sm:$0xff]
    %v419 = vld [vmem:[#allocation2 + $0xae8] sm:$0xff]
    %v420 = vld [vmem:[#allocation2 + $0xaf0] sm:$0xff]
    %v421 = vld [vmem:[#allocation2 + $0xaf8] sm:$0xff]
    %v422 = vld [vmem:[#allocation2 + $0xb00] sm:$0xff]
    %v423 = vld [vmem:[#allocation2 + $0xb08] sm:$0xff]
    %v424 = vld [vmem:[#allocation2 + $0xb10] sm:$0xff]
    %v425 = vld [vmem:[#allocation2 + $0xb18] sm:$0xff]
    %v426 = vld [vmem:[#allocation2 + $0xb20] sm:$0xff]
    %v427 = vld [vmem:[#allocation2 + $0xb28] sm:$0xff]
    %v428 = vld [vmem:[#allocation2 + $0xb30] sm:$0xff]
    %v429 = vld [vmem:[#allocation2 + $0xb38] sm:$0xff]
    %v430 = vld [vmem:[#allocation2 + $0xb40] sm:$0xff]
    %v431 = vld [vmem:[#allocation2 + $0xb48] sm:$0xff]
    %v432 = vld [vmem:[#allocation2 + $0xb50] sm:$0xff]
    %v433 = vld [vmem:[#allocation2 + $0xb58] sm:$0xff]
    %v434 = vld [vmem:[#allocation2 + $0xb60] sm:$0xff]
    %v435 = vld [vmem:[#allocation2 + $0xb68] sm:$0xff]
    %v436 = vld [vmem:[#allocation2 + $0xb70] sm:$0xff]
    %v437 = vld [vmem:[#allocation2 + $0xb78] sm:$0xff]
    %v438 = vld [vmem:[#allocation2 + $0xb80] sm:$0xff]
    %v439 = vld [vmem:[#allocation2 + $0xb88] sm:$0xff]
    %v440 = vld [vmem:[#allocation2 + $0xb90] sm:$0xff]
    %v441 = vld [vmem:[#allocation2 + $0xb98] sm:$0xff]
    %v442 = vld [vmem:[#allocation2 + $0xba0] sm:$0xff]
    %v443 = vld [vmem:[#allocation2 + $0xba8] sm:$0xff]
    %v444 = vld [vmem:[#allocation2 + $0xbb0] sm:$0xff]
    %v445 = vld [vmem:[#allocation2 + $0xbb8] sm:$0xff]
    %v446 = vld [vmem:[#allocation2 + $0xbc0] sm:$0xff]
    %v447 = vld [vmem:[#allocation2 + $0xbc8] sm:$0xff]
    %v448 = vld [vmem:[#allocation2 + $0xbd0] sm:$0xff]
    %v449 = vld [vmem:[#allocation2 + $0xbd8] sm:$0xff]
    %v450 = vld [vmem:[#allocation2 + $0xbe0] sm:$0xff]
    %v451 = vld [vmem:[#allocation2 + $0xbe8] sm:$0xff]
    %v452 = vld [vmem:[#allocation2 + $0xbf0] sm:$0xff]
    %v453 = vld [vmem:[#allocation2 + $0xbf8] sm:$0xff]
    %v454 = vld [vmem:[#allocation2 + $0xc00] sm:$0xff]
    %v455 = vld [vmem:[#allocation2 + $0xc08] sm:$0xff]
    %v456 = vld [vmem:[#allocation2 + $0xc10] sm:$0xff]
    %v457 = vld [vmem:[#allocation2 + $0xc18] sm:$0xff]
    %v458 = vld [vmem:[#allocation2 + $0xc20] sm:$0xff]
    %v459 = vld [vmem:[#allocation2 + $0xc28] sm:$0xff]
    %v460 = vld [vmem:[#allocation2 + $0xc30] sm:$0xff]
    %v461 = vld [vmem:[#allocation2 + $0xc38] sm:$0xff]
    %v462 = vld [vmem:[#allocation2 + $0xc40] sm:$0xff]
    %v463 = vld [vmem:[#allocation2 + $0xc48] sm:$0xff]
    %v464 = vld [vmem:[#allocation2 + $0xc50] sm:$0xff]
    %v465 = vld [vmem:[#allocation2 + $0xc58] sm:$0xff]
    %v466 = vld [vmem:[#allocation2 + $0xc60] sm:$0xff]
    %v467 = vld [vmem:[#allocation2 + $0xc68] sm:$0xff]
    %v468 = vld [vmem:[#allocation2 + $0xc70] sm:$0xff]
    %v469 = vld [vmem:[#allocation2 + $0xc78] sm:$0xff]
    %v470 = vld [vmem:[#allocation2 + $0xc80] sm:$0xff]
    %v471 = vld [vmem:[#allocation2 + $0xc88] sm:$0xff]
    %v472 = vld [vmem:[#allocation2 + $0xc90] sm:$0xff]
    %v473 = vld [vmem:[#allocation2 + $0xc98] sm:$0xff]
    %v474 = vld [vmem:[#allocation2 + $0xca0] sm:$0xff]
    %v475 = vld [vmem:[#allocation2 + $0xca8] sm:$0xff]
    %v476 = vld [vmem:[#allocation2 + $0xcb0] sm:$0xff]
    %v477 = vld [vmem:[#allocation2 + $0xcb8] sm:$0xff]
    %v478 = vld [vmem:[#allocation2 + $0xcc0] sm:$0xff]
    %v479 = vld [vmem:[#allocation2 + $0xcc8] sm:$0xff]
    %v480 = vld [vmem:[#allocation2 + $0xcd0] sm:$0xff]
    %v481 = vld [vmem:[#allocation2 + $0xcd8] sm:$0xff]
    %v482 = vld [vmem:[#allocation2 + $0xce0] sm:$0xff]
    %v483 = vld [vmem:[#allocation2 + $0xce8] sm:$0xff]
    %v484 = vld [vmem:[#allocation2 + $0xcf0] sm:$0xff]
    %v485 = vld [vmem:[#allocation2 + $0xcf8] sm:$0xff]
    %v486 = vld [vmem:[#allocation2 + $0xd00] sm:$0xff]
    %v487 = vld [vmem:[#allocation2 + $0xd08] sm:$0xff]
    %v488 = vld [vmem:[#allocation2 + $0xd10] sm:$0xff]
    %v489 = vld [vmem:[#allocation2 + $0xd18] sm:$0xff]
    %v490 = vld [vmem:[#allocation2 + $0xd20] sm:$0xff]
    %v491 = vld [vmem:[#allocation2 + $0xd28] sm:$0xff]
    %v492 = vld [vmem:[#allocation2 + $0xd30] sm:$0xff]
    %v493 = vld [vmem:[#allocation2 + $0xd38] sm:$0xff]
    %v494 = vld [vmem:[#allocation2 + $0xd40] sm:$0xff]
    %v495 = vld [vmem:[#allocation2 + $0xd48] sm:$0xff]
    %v496 = vld [vmem:[#allocation2 + $0xd50] sm:$0xff]
    %v497 = vld [vmem:[#allocation2 + $0xd58] sm:$0xff]
    %v498 = vld [vmem:[#allocation2 + $0xd60] sm:$0xff]
    %v499 = vld [vmem:[#allocation2 + $0xd68] sm:$0xff]
    %v500 = vld [vmem:[#allocation2 + $0xd70] sm:$0xff]
    %v501 = vld [vmem:[#allocation2 + $0xd78] sm:$0xff]
    %v502 = vld [vmem:[#allocation2 + $0xd80] sm:$0xff]
    %v503 = vld [vmem:[#allocation2 + $0xd88] sm:$0xff]
    %v504 = vld [vmem:[#allocation2 + $0xd90] sm:$0xff]
    %v505 = vld [vmem:[#allocation2 + $0xd98] sm:$0xff]
    %v506 = vld [vmem:[#allocation2 + $0xda0] sm:$0xff]
    %v507 = vld [vmem:[#allocation2 + $0xda8] sm:$0xff]
    %v508 = vld [vmem:[#allocation2 + $0xdb0] sm:$0xff]
    %v509 = vld [vmem:[#allocation2 + $0xdb8] sm:$0xff]
    %v510 = vld [vmem:[#allocation2 + $0xdc0] sm:$0xff]
    %v511 = vld [vmem:[#allocation2 + $0xdc8] sm:$0xff]
    %v512 = vld [vmem:[#allocation2 + $0xdd0] sm:$0xff]
    %v513 = vld [vmem:[#allocation2 + $0xdd8] sm:$0xff]
    %v514 = vld [vmem:[#allocation2 + $0xde0] sm:$0xff]
    %v515 = vld [vmem:[#allocation2 + $0xde8] sm:$0xff]
    %v516 = vld [vmem:[#allocation2 + $0xdf0] sm:$0xff]
    %v517 = vld [vmem:[#allocation2 + $0xdf8] sm:$0xff]
    %v518 = vld [vmem:[#allocation2 + $0xe00] sm:$0xff]
    %v519 = vld [vmem:[#allocation2 + $0xe08] sm:$0xff]
    %v520 = vld [vmem:[#allocation2 + $0xe10] sm:$0xff]
    %v521 = vld [vmem:[#allocation2 + $0xe18] sm:$0xff]
    %v522 = vld [vmem:[#allocation2 + $0xe20] sm:$0xff]
    %v523 = vld [vmem:[#allocation2 + $0xe28] sm:$0xff]
    %v524 = vld [vmem:[#allocation2 + $0xe30] sm:$0xff]
    %v525 = vld [vmem:[#allocation2 + $0xe38] sm:$0xff]
    %v526 = vld [vmem:[#allocation2 + $0xe40] sm:$0xff]
    %v527 = vld [vmem:[#allocation2 + $0xe48] sm:$0xff]
    %v528 = vld [vmem:[#allocation2 + $0xe50] sm:$0xff]
    %v529 = vld [vmem:[#allocation2 + $0xe58] sm:$0xff]
    %v530 = vld [vmem:[#allocation2 + $0xe60] sm:$0xff]
    %v531 = vld [vmem:[#allocation2 + $0xe68] sm:$0xff]
    %v532 = vld [vmem:[#allocation2 + $0xe70] sm:$0xff]
    %v533 = vld [vmem:[#allocation2 + $0xe78] sm:$0xff]
    %v534 = vld [vmem:[#allocation2 + $0xe80] sm:$0xff]
    %v535 = vld [vmem:[#allocation2 + $0xe88] sm:$0xff]
    %v536 = vld [vmem:[#allocation2 + $0xe90] sm:$0xff]
    %v537 = vld [vmem:[#allocation2 + $0xe98] sm:$0xff]
    %v538 = vld [vmem:[#allocation2 + $0xea0] sm:$0xff]
    %v539 = vld [vmem:[#allocation2 + $0xea8] sm:$0xff]
    %v540 = vld [vmem:[#allocation2 + $0xeb0] sm:$0xff]
    %v541 = vld [vmem:[#allocation2 + $0xeb8] sm:$0xff]
    %v542 = vld [vmem:[#allocation2 + $0xec0] sm:$0xff]
    %v543 = vld [vmem:[#allocation2 + $0xec8] sm:$0xff]
    %v544 = vld [vmem:[#allocation2 + $0xed0] sm:$0xff]
    %v545 = vld [vmem:[#allocation2 + $0xed8] sm:$0xff]
    %v546 = vld [vmem:[#allocation2 + $0xee0] sm:$0xff]
    %v547 = vld [vmem:[#allocation2 + $0xee8] sm:$0xff]
    %v548 = vld [vmem:[#allocation2 + $0xef0] sm:$0xff]
    %v549 = vld [vmem:[#allocation2 + $0xef8] sm:$0xff]
    %v550 = vld [vmem:[#allocation2 + $0xf00] sm:$0xff]
    %v551 = vld [vmem:[#allocation2 + $0xf08] sm:$0xff]
    %v552 = vld [vmem:[#allocation2 + $0xf10] sm:$0xff]
    %v553 = vld [vmem:[#allocation2 + $0xf18] sm:$0xff]
    %v554 = vld [vmem:[#allocation2 + $0xf20] sm:$0xff]
    %v555 = vld [vmem:[#allocation2 + $0xf28] sm:$0xff]
    %v556 = vld [vmem:[#allocation2 + $0xf30] sm:$0xff]
    %v557 = vld [vmem:[#allocation2 + $0xf38] sm:$0xff]
    %v558 = vld [vmem:[#allocation2 + $0xf40] sm:$0xff]
    %v559 = vld [vmem:[#allocation2 + $0xf48] sm:$0xff]
    %v560 = vld [vmem:[#allocation2 + $0xf50] sm:$0xff]
    %v561 = vld [vmem:[#allocation2 + $0xf58] sm:$0xff]
    %v562 = vld [vmem:[#allocation2 + $0xf60] sm:$0xff]
    %v563 = vld [vmem:[#allocation2 + $0xf68] sm:$0xff]
    %v564 = vld [vmem:[#allocation2 + $0xf70] sm:$0xff]
    %v565 = vld [vmem:[#allocation2 + $0xf78] sm:$0xff]
    %v566 = vld [vmem:[#allocation2 + $0xf80] sm:$0xff]
    %v567 = vld [vmem:[#allocation2 + $0xf88] sm:$0xff]
    %v568 = vld [vmem:[#allocation2 + $0xf90] sm:$0xff]
    %v569 = vld [vmem:[#allocation2 + $0xf98] sm:$0xff]
    %v570 = vld [vmem:[#allocation2 + $0xfa0] sm:$0xff]
    %v571 = vld [vmem:[#allocation2 + $0xfa8] sm:$0xff]
    %v572 = vld [vmem:[#allocation2 + $0xfb0] sm:$0xff]
    %v573 = vld [vmem:[#allocation2 + $0xfb8] sm:$0xff]
    %v574 = vld [vmem:[#allocation2 + $0xfc0] sm:$0xff]
    %v575 = vld [vmem:[#allocation2 + $0xfc8] sm:$0xff]
    %v576 = vld [vmem:[#allocation2 + $0xfd0] sm:$0xff]
    %v577 = vld [vmem:[#allocation2 + $0xfd8] sm:$0xff]
    %v578 = vld [vmem:[#allocation2 + $0xfe0] sm:$0xff]
    %v579 = vld [vmem:[#allocation2 + $0xfe8] sm:$0xff]
    %v580 = vld [vmem:[#allocation2 + $0xff0] sm:$0xff]
    %v581 = vld [vmem:[#allocation2 + $0xff8] sm:$0xff]
    %v582 = vunpack.c.0.s8 %v70
    %v583 = vunpack.c.0.s8 %v71
    %v584 = vunpack.c.0.s8 %v72
    %v585 = vunpack.c.0.s8 %v73
    %v586 = vunpack.c.0.s8 %v74
    %v587 = vunpack.c.0.s8 %v75
    %v588 = vunpack.c.0.s8 %v76
    %v589 = vunpack.c.0.s8 %v77
    %v590 = vunpack.c.1.s8 %v70
    %v591 = vunpack.c.1.s8 %v71
    %v592 = vunpack.c.1.s8 %v72
    %v593 = vunpack.c.1.s8 %v73
    %v594 = vunpack.c.1.s8 %v74
    %v595 = vunpack.c.1.s8 %v75
    %v596 = vunpack.c.1.s8 %v76
    %v597 = vunpack.c.1.s8 %v77
    %v598 = vunpack.c.2.s8 %v70
    %v599 = vunpack.c.2.s8 %v71
    %v600 = vunpack.c.2.s8 %v72
    %v601 = vunpack.c.2.s8 %v73
    %v602 = vunpack.c.2.s8 %v74
    %v603 = vunpack.c.2.s8 %v75
    %v604 = vunpack.c.2.s8 %v76
    %v605 = vunpack.c.2.s8 %v77
    %v606 = vunpack.c.3.s8 %v70
    %v607 = vunpack.c.3.s8 %v71
    %v608 = vunpack.c.3.s8 %v72
    %v609 = vunpack.c.3.s8 %v73
    %v610 = vunpack.c.3.s8 %v74
    %v611 = vunpack.c.3.s8 %v75
    %v612 = vunpack.c.3.s8 %v76
    %v613 = vunpack.c.3.s8 %v77
    %v614 = vunpack.c.0.s8 %v78
    %v615 = vunpack.c.0.s8 %v79
    %v616 = vunpack.c.0.s8 %v80
    %v617 = vunpack.c.0.s8 %v81
    %v618 = vunpack.c.0.s8 %v82
    %v619 = vunpack.c.0.s8 %v83
    %v620 = vunpack.c.0.s8 %v84
    %v621 = vunpack.c.0.s8 %v85
    %v622 = vunpack.c.1.s8 %v78
    %v623 = vunpack.c.1.s8 %v79
    %v624 = vunpack.c.1.s8 %v80
    %v625 = vunpack.c.1.s8 %v81
    %v626 = vunpack.c.1.s8 %v82
    %v627 = vunpack.c.1.s8 %v83
    %v628 = vunpack.c.1.s8 %v84
    %v629 = vunpack.c.1.s8 %v85
    %v630 = vunpack.c.2.s8 %v78
    %v631 = vunpack.c.2.s8 %v79
    %v632 = vunpack.c.2.s8 %v80
    %v633 = vunpack.c.2.s8 %v81
    %v634 = vunpack.c.2.s8 %v82
    %v635 = vunpack.c.2.s8 %v83
    %v636 = vunpack.c.2.s8 %v84
    %v637 = vunpack.c.2.s8 %v85
    %v638 = vunpack.c.3.s8 %v78
    %v639 = vunpack.c.3.s8 %v79
    %v640 = vunpack.c.3.s8 %v80
    %v641 = vunpack.c.3.s8 %v81
    %v642 = vunpack.c.3.s8 %v82
    %v643 = vunpack.c.3.s8 %v83
    %v644 = vunpack.c.3.s8 %v84
    %v645 = vunpack.c.3.s8 %v85
    %v646 = vunpack.c.0.s8 %v86
    %v647 = vunpack.c.0.s8 %v87
    %v648 = vunpack.c.0.s8 %v88
    %v649 = vunpack.c.0.s8 %v89
    %v650 = vunpack.c.0.s8 %v90
    %v651 = vunpack.c.0.s8 %v91
    %v652 = vunpack.c.0.s8 %v92
    %v653 = vunpack.c.0.s8 %v93
    %v654 = vunpack.c.1.s8 %v86
    %v655 = vunpack.c.1.s8 %v87
    %v656 = vunpack.c.1.s8 %v88
    %v657 = vunpack.c.1.s8 %v89
    %v658 = vunpack.c.1.s8 %v90
    %v659 = vunpack.c.1.s8 %v91
    %v660 = vunpack.c.1.s8 %v92
    %v661 = vunpack.c.1.s8 %v93
    %v662 = vunpack.c.2.s8 %v86
    %v663 = vunpack.c.2.s8 %v87
    %v664 = vunpack.c.2.s8 %v88
    %v665 = vunpack.c.2.s8 %v89
    %v666 = vunpack.c.2.s8 %v90
    %v667 = vunpack.c.2.s8 %v91
    %v668 = vunpack.c.2.s8 %v92
    %v669 = vunpack.c.2.s8 %v93
    %v670 = vunpack.c.3.s8 %v86
    %v671 = vunpack.c.3.s8 %v87
    %v672 = vunpack.c.3.s8 %v88
    %v673 = vunpack.c.3.s8 %v89
    %v674 = vunpack.c.3.s8 %v90
    %v675 = vunpack.c.3.s8 %v91
    %v676 = vunpack.c.3.s8 %v92
    %v677 = vunpack.c.3.s8 %v93
    %v678 = vunpack.c.0.s8 %v94
    %v679 = vunpack.c.0.s8 %v95
    %v680 = vunpack.c.0.s8 %v96
    %v681 = vunpack.c.0.s8 %v97
    %v682 = vunpack.c.0.s8 %v98
    %v683 = vunpack.c.0.s8 %v99
    %v684 = vunpack.c.0.s8 %v100
    %v685 = vunpack.c.0.s8 %v101
    %v686 = vunpack.c.1.s8 %v94
    %v687 = vunpack.c.1.s8 %v95
    %v688 = vunpack.c.1.s8 %v96
    %v689 = vunpack.c.1.s8 %v97
    %v690 = vunpack.c.1.s8 %v98
    %v691 = vunpack.c.1.s8 %v99
    %v692 = vunpack.c.1.s8 %v100
    %v693 = vunpack.c.1.s8 %v101
    %v694 = vunpack.c.2.s8 %v94
    %v695 = vunpack.c.2.s8 %v95
    %v696 = vunpack.c.2.s8 %v96
    %v697 = vunpack.c.2.s8 %v97
    %v698 = vunpack.c.2.s8 %v98
    %v699 = vunpack.c.2.s8 %v99
    %v700 = vunpack.c.2.s8 %v100
    %v701 = vunpack.c.2.s8 %v101
    %v702 = vunpack.c.3.s8 %v94
    %v703 = vunpack.c.3.s8 %v95
    %v704 = vunpack.c.3.s8 %v96
    %v705 = vunpack.c.3.s8 %v97
    %v706 = vunpack.c.3.s8 %v98
    %v707 = vunpack.c.3.s8 %v99
    %v708 = vunpack.c.3.s8 %v100
    %v709 = vunpack.c.3.s8 %v101
    %v710 = vunpack.c.0.s8 %v102
    %v711 = vunpack.c.0.s8 %v103
    %v712 = vunpack.c.0.s8 %v104
    %v713 = vunpack.c.0.s8 %v105
    %v714 = vunpack.c.0.s8 %v106
    %v715 = vunpack.c.0.s8 %v107
    %v716 = vunpack.c.0.s8 %v108
    %v717 = vunpack.c.0.s8 %v109
    %v718 = vunpack.c.1.s8 %v102
    %v719 = vunpack.c.1.s8 %v103
    %v720 = vunpack.c.1.s8 %v104
    %v721 = vunpack.c.1.s8 %v105
    %v722 = vunpack.c.1.s8 %v106
    %v723 = vunpack.c.1.s8 %v107
    %v724 = vunpack.c.1.s8 %v108
    %v725 = vunpack.c.1.s8 %v109
    %v726 = vunpack.c.2.s8 %v102
    %v727 = vunpack.c.2.s8 %v103
    %v728 = vunpack.c.2.s8 %v104
    %v729 = vunpack.c.2.s8 %v105
    %v730 = vunpack.c.2.s8 %v106
    %v731 = vunpack.c.2.s8 %v107
    %v732 = vunpack.c.2.s8 %v108
    %v733 = vunpack.c.2.s8 %v109
    %v734 = vunpack.c.3.s8 %v102
    %v735 = vunpack.c.3.s8 %v103
    %v736 = vunpack.c.3.s8 %v104
    %v737 = vunpack.c.3.s8 %v105
    %v738 = vunpack.c.3.s8 %v106
    %v739 = vunpack.c.3.s8 %v107
    %v740 = vunpack.c.3.s8 %v108
    %v741 = vunpack.c.3.s8 %v109
    %v742 = vunpack.c.0.s8 %v110
    %v743 = vunpack.c.0.s8 %v111
    %v744 = vunpack.c.0.s8 %v112
    %v745 = vunpack.c.0.s8 %v113
    %v746 = vunpack.c.0.s8 %v114
    %v747 = vunpack.c.0.s8 %v115
    %v748 = vunpack.c.0.s8 %v116
    %v749 = vunpack.c.0.s8 %v117
    %v750 = vunpack.c.1.s8 %v110
    %v751 = vunpack.c.1.s8 %v111
    %v752 = vunpack.c.1.s8 %v112
    %v753 = vunpack.c.1.s8 %v113
    %v754 = vunpack.c.1.s8 %v114
    %v755 = vunpack.c.1.s8 %v115
    %v756 = vunpack.c.1.s8 %v116
    %v757 = vunpack.c.1.s8 %v117
    %v758 = vunpack.c.2.s8 %v110
    %v759 = vunpack.c.2.s8 %v111
    %v760 = vunpack.c.2.s8 %v112
    %v761 = vunpack.c.2.s8 %v113
    %v762 = vunpack.c.2.s8 %v114
    %v763 = vunpack.c.2.s8 %v115
    %v764 = vunpack.c.2.s8 %v116
    %v765 = vunpack.c.2.s8 %v117
    %v766 = vunpack.c.3.s8 %v110
    %v767 = vunpack.c.3.s8 %v111
    %v768 = vunpack.c.3.s8 %v112
    %v769 = vunpack.c.3.s8 %v113
    %v770 = vunpack.c.3.s8 %v114
    %v771 = vunpack.c.3.s8 %v115
    %v772 = vunpack.c.3.s8 %v116
    %v773 = vunpack.c.3.s8 %v117
    %v774 = vunpack.c.0.s8 %v118
    %v775 = vunpack.c.0.s8 %v119
    %v776 = vunpack.c.0.s8 %v120
    %v777 = vunpack.c.0.s8 %v121
    %v778 = vunpack.c.0.s8 %v122
    %v779 = vunpack.c.0.s8 %v123
    %v780 = vunpack.c.0.s8 %v124
    %v781 = vunpack.c.0.s8 %v125
    %v782 = vunpack.c.1.s8 %v118
    %v783 = vunpack.c.1.s8 %v119
    %v784 = vunpack.c.1.s8 %v120
    %v785 = vunpack.c.1.s8 %v121
    %v786 = vunpack.c.1.s8 %v122
    %v787 = vunpack.c.1.s8 %v123
    %v788 = vunpack.c.1.s8 %v124
    %v789 = vunpack.c.1.s8 %v125
    %v790 = vunpack.c.2.s8 %v118
    %v791 = vunpack.c.2.s8 %v119
    %v792 = vunpack.c.2.s8 %v120
    %v793 = vunpack.c.2.s8 %v121
    %v794 = vunpack.c.2.s8 %v122
    %v795 = vunpack.c.2.s8 %v123
    %v796 = vunpack.c.2.s8 %v124
    %v797 = vunpack.c.2.s8 %v125
    %v798 = vunpack.c.3.s8 %v118
    %v799 = vunpack.c.3.s8 %v119
    %v800 = vunpack.c.3.s8 %v120
    %v801 = vunpack.c.3.s8 %v121
    %v802 = vunpack.c.3.s8 %v122
    %v803 = vunpack.c.3.s8 %v123
    %v804 = vunpack.c.3.s8 %v124
    %v805 = vunpack.c.3.s8 %v125
    %v806 = vunpack.c.0.s8 %v126
    %v807 = vunpack.c.0.s8 %v127
    %v808 = vunpack.c.0.s8 %v128
    %v809 = vunpack.c.0.s8 %v129
    %v810 = vunpack.c.0.s8 %v130
    %v811 = vunpack.c.0.s8 %v131
    %v812 = vunpack.c.0.s8 %v132
    %v813 = vunpack.c.0.s8 %v133
    %v814 = vunpack.c.1.s8 %v126
    %v815 = vunpack.c.1.s8 %v127
    %v816 = vunpack.c.1.s8 %v128
    %v817 = vunpack.c.1.s8 %v129
    %v818 = vunpack.c.1.s8 %v130
    %v819 = vunpack.c.1.s8 %v131
    %v820 = vunpack.c.1.s8 %v132
    %v821 = vunpack.c.1.s8 %v133
    %v822 = vunpack.c.2.s8 %v126
    %v823 = vunpack.c.2.s8 %v127
    %v824 = vunpack.c.2.s8 %v128
    %v825 = vunpack.c.2.s8 %v129
    %v826 = vunpack.c.2.s8 %v130
    %v827 = vunpack.c.2.s8 %v131
    %v828 = vunpack.c.2.s8 %v132
    %v829 = vunpack.c.2.s8 %v133
    %v830 = vunpack.c.3.s8 %v126
    %v831 = vunpack.c.3.s8 %v127
    %v832 = vunpack.c.3.s8 %v128
    %v833 = vunpack.c.3.s8 %v129
    %v834 = vunpack.c.3.s8 %v130
    %v835 = vunpack.c.3.s8 %v131
    %v836 = vunpack.c.3.s8 %v132
    %v837 = vunpack.c.3.s8 %v133
    %v838 = vunpack.c.0.s8 %v134
    %v839 = vunpack.c.0.s8 %v135
    %v840 = vunpack.c.0.s8 %v136
    %v841 = vunpack.c.0.s8 %v137
    %v842 = vunpack.c.0.s8 %v138
    %v843 = vunpack.c.0.s8 %v139
    %v844 = vunpack.c.0.s8 %v140
    %v845 = vunpack.c.0.s8 %v141
    %v846 = vunpack.c.1.s8 %v134
    %v847 = vunpack.c.1.s8 %v135
    %v848 = vunpack.c.1.s8 %v136
    %v849 = vunpack.c.1.s8 %v137
    %v850 = vunpack.c.1.s8 %v138
    %v851 = vunpack.c.1.s8 %v139
    %v852 = vunpack.c.1.s8 %v140
    %v853 = vunpack.c.1.s8 %v141
    %v854 = vunpack.c.2.s8 %v134
    %v855 = vunpack.c.2.s8 %v135
    %v856 = vunpack.c.2.s8 %v136
    %v857 = vunpack.c.2.s8 %v137
    %v858 = vunpack.c.2.s8 %v138
    %v859 = vunpack.c.2.s8 %v139
    %v860 = vunpack.c.2.s8 %v140
    %v861 = vunpack.c.2.s8 %v141
    %v862 = vunpack.c.3.s8 %v134
    %v863 = vunpack.c.3.s8 %v135
    %v864 = vunpack.c.3.s8 %v136
    %v865 = vunpack.c.3.s8 %v137
    %v866 = vunpack.c.3.s8 %v138
    %v867 = vunpack.c.3.s8 %v139
    %v868 = vunpack.c.3.s8 %v140
    %v869 = vunpack.c.3.s8 %v141
    %v870 = vunpack.c.0.s8 %v142
    %v871 = vunpack.c.0.s8 %v143
    %v872 = vunpack.c.0.s8 %v144
    %v873 = vunpack.c.0.s8 %v145
    %v874 = vunpack.c.0.s8 %v146
    %v875 = vunpack.c.0.s8 %v147
    %v876 = vunpack.c.0.s8 %v148
    %v877 = vunpack.c.0.s8 %v149
    %v878 = vunpack.c.1.s8 %v142
    %v879 = vunpack.c.1.s8 %v143
    %v880 = vunpack.c.1.s8 %v144
    %v881 = vunpack.c.1.s8 %v145
    %v882 = vunpack.c.1.s8 %v146
    %v883 = vunpack.c.1.s8 %v147
    %v884 = vunpack.c.1.s8 %v148
    %v885 = vunpack.c.1.s8 %v149
    %v886 = vunpack.c.2.s8 %v142
    %v887 = vunpack.c.2.s8 %v143
    %v888 = vunpack.c.2.s8 %v144
    %v889 = vunpack.c.2.s8 %v145
    %v890 = vunpack.c.2.s8 %v146
    %v891 = vunpack.c.2.s8 %v147
    %v892 = vunpack.c.2.s8 %v148
    %v893 = vunpack.c.2.s8 %v149
    %v894 = vunpack.c.3.s8 %v142
    %v895 = vunpack.c.3.s8 %v143
    %v896 = vunpack.c.3.s8 %v144
    %v897 = vunpack.c.3.s8 %v145
    %v898 = vunpack.c.3.s8 %v146
    %v899 = vunpack.c.3.s8 %v147
    %v900 = vunpack.c.3.s8 %v148
    %v901 = vunpack.c.3.s8 %v149
    %v902 = vunpack.c.0.s8 %v150
    %v903 = vunpack.c.0.s8 %v151
    %v904 = vunpack.c.0.s8 %v152
    %v905 = vunpack.c.0.s8 %v153
    %v906 = vunpack.c.0.s8 %v154
    %v907 = vunpack.c.0.s8 %v155
    %v908 = vunpack.c.0.s8 %v156
    %v909 = vunpack.c.0.s8 %v157
    %v910 = vunpack.c.1.s8 %v150
    %v911 = vunpack.c.1.s8 %v151
    %v912 = vunpack.c.1.s8 %v152
    %v913 = vunpack.c.1.s8 %v153
    %v914 = vunpack.c.1.s8 %v154
    %v915 = vunpack.c.1.s8 %v155
    %v916 = vunpack.c.1.s8 %v156
    %v917 = vunpack.c.1.s8 %v157
    %v918 = vunpack.c.2.s8 %v150
    %v919 = vunpack.c.2.s8 %v151
    %v920 = vunpack.c.2.s8 %v152
    %v921 = vunpack.c.2.s8 %v153
    %v922 = vunpack.c.2.s8 %v154
    %v923 = vunpack.c.2.s8 %v155
    %v924 = vunpack.c.2.s8 %v156
    %v925 = vunpack.c.2.s8 %v157
    %v926 = vunpack.c.3.s8 %v150
    %v927 = vunpack.c.3.s8 %v151
    %v928 = vunpack.c.3.s8 %v152
    %v929 = vunpack.c.3.s8 %v153
    %v930 = vunpack.c.3.s8 %v154
    %v931 = vunpack.c.3.s8 %v155
    %v932 = vunpack.c.3.s8 %v156
    %v933 = vunpack.c.3.s8 %v157
    %v934 = vunpack.c.0.s8 %v158
    %v935 = vunpack.c.0.s8 %v159
    %v936 = vunpack.c.0.s8 %v160
    %v937 = vunpack.c.0.s8 %v161
    %v938 = vunpack.c.0.s8 %v162
    %v939 = vunpack.c.0.s8 %v163
    %v940 = vunpack.c.0.s8 %v164
    %v941 = vunpack.c.0.s8 %v165
    %v942 = vunpack.c.1.s8 %v158
    %v943 = vunpack.c.1.s8 %v159
    %v944 = vunpack.c.1.s8 %v160
    %v945 = vunpack.c.1.s8 %v161
    %v946 = vunpack.c.1.s8 %v162
    %v947 = vunpack.c.1.s8 %v163
    %v948 = vunpack.c.1.s8 %v164
    %v949 = vunpack.c.1.s8 %v165
    %v950 = vunpack.c.2.s8 %v158
    %v951 = vunpack.c.2.s8 %v159
    %v952 = vunpack.c.2.s8 %v160
    %v953 = vunpack.c.2.s8 %v161
    %v954 = vunpack.c.2.s8 %v162
    %v955 = vunpack.c.2.s8 %v163
    %v956 = vunpack.c.2.s8 %v164
    %v957 = vunpack.c.2.s8 %v165
    %v958 = vunpack.c.3.s8 %v158
    %v959 = vunpack.c.3.s8 %v159
    %v960 = vunpack.c.3.s8 %v160
    %v961 = vunpack.c.3.s8 %v161
    %v962 = vunpack.c.3.s8 %v162
    %v963 = vunpack.c.3.s8 %v163
    %v964 = vunpack.c.3.s8 %v164
    %v965 = vunpack.c.3.s8 %v165
    %v966 = vunpack.c.0.s8 %v166
    %v967 = vunpack.c.0.s8 %v167
    %v968 = vunpack.c.0.s8 %v168
    %v969 = vunpack.c.0.s8 %v169
    %v970 = vunpack.c.0.s8 %v170
    %v971 = vunpack.c.0.s8 %v171
    %v972 = vunpack.c.0.s8 %v172
    %v973 = vunpack.c.0.s8 %v173
    %v974 = vunpack.c.1.s8 %v166
    %v975 = vunpack.c.1.s8 %v167
    %v976 = vunpack.c.1.s8 %v168
    %v977 = vunpack.c.1.s8 %v169
    %v978 = vunpack.c.1.s8 %v170
    %v979 = vunpack.c.1.s8 %v171
    %v980 = vunpack.c.1.s8 %v172
    %v981 = vunpack.c.1.s8 %v173
    %v982 = vunpack.c.2.s8 %v166
    %v983 = vunpack.c.2.s8 %v167
    %v984 = vunpack.c.2.s8 %v168
    %v985 = vunpack.c.2.s8 %v169
    %v986 = vunpack.c.2.s8 %v170
    %v987 = vunpack.c.2.s8 %v171
    %v988 = vunpack.c.2.s8 %v172
    %v989 = vunpack.c.2.s8 %v173
    %v990 = vunpack.c.3.s8 %v166
    %v991 = vunpack.c.3.s8 %v167
    %v992 = vunpack.c.3.s8 %v168
    %v993 = vunpack.c.3.s8 %v169
    %v994 = vunpack.c.3.s8 %v170
    %v995 = vunpack.c.3.s8 %v171
    %v996 = vunpack.c.3.s8 %v172
    %v997 = vunpack.c.3.s8 %v173
    %v998 = vunpack.c.0.s8 %v174
    %v999 = vunpack.c.0.s8 %v175
    %v1000 = vunpack.c.0.s8 %v176
    %v1001 = vunpack.c.0.s8 %v177
    %v1002 = vunpack.c.0.s8 %v178
    %v1003 = vunpack.c.0.s8 %v179
    %v1004 = vunpack.c.0.s8 %v180
    %v1005 = vunpack.c.0.s8 %v181
    %v1006 = vunpack.c.1.s8 %v174
    %v1007 = vunpack.c.1.s8 %v175
    %v1008 = vunpack.c.1.s8 %v176
    %v1009 = vunpack.c.1.s8 %v177
    %v1010 = vunpack.c.1.s8 %v178
    %v1011 = vunpack.c.1.s8 %v179
    %v1012 = vunpack.c.1.s8 %v180
    %v1013 = vunpack.c.1.s8 %v181
    %v1014 = vunpack.c.2.s8 %v174
    %v1015 = vunpack.c.2.s8 %v175
    %v1016 = vunpack.c.2.s8 %v176
    %v1017 = vunpack.c.2.s8 %v177
    %v1018 = vunpack.c.2.s8 %v178
    %v1019 = vunpack.c.2.s8 %v179
    %v1020 = vunpack.c.2.s8 %v180
    %v1021 = vunpack.c.2.s8 %v181
    %v1022 = vunpack.c.3.s8 %v174
    %v1023 = vunpack.c.3.s8 %v175
    %v1024 = vunpack.c.3.s8 %v176
    %v1025 = vunpack.c.3.s8 %v177
    %v1026 = vunpack.c.3.s8 %v178
    %v1027 = vunpack.c.3.s8 %v179
    %v1028 = vunpack.c.3.s8 %v180
    %v1029 = vunpack.c.3.s8 %v181
    %v1030 = vunpack.c.0.s8 %v182
    %v1031 = vunpack.c.0.s8 %v183
    %v1032 = vunpack.c.0.s8 %v184
    %v1033 = vunpack.c.0.s8 %v185
    %v1034 = vunpack.c.0.s8 %v186
    %v1035 = vunpack.c.0.s8 %v187
    %v1036 = vunpack.c.0.s8 %v188
    %v1037 = vunpack.c.0.s8 %v189
    %v1038 = vunpack.c.1.s8 %v182
    %v1039 = vunpack.c.1.s8 %v183
    %v1040 = vunpack.c.1.s8 %v184
    %v1041 = vunpack.c.1.s8 %v185
    %v1042 = vunpack.c.1.s8 %v186
    %v1043 = vunpack.c.1.s8 %v187
    %v1044 = vunpack.c.1.s8 %v188
    %v1045 = vunpack.c.1.s8 %v189
    %v1046 = vunpack.c.2.s8 %v182
    %v1047 = vunpack.c.2.s8 %v183
    %v1048 = vunpack.c.2.s8 %v184
    %v1049 = vunpack.c.2.s8 %v185
    %v1050 = vunpack.c.2.s8 %v186
    %v1051 = vunpack.c.2.s8 %v187
    %v1052 = vunpack.c.2.s8 %v188
    %v1053 = vunpack.c.2.s8 %v189
    %v1054 = vunpack.c.3.s8 %v182
    %v1055 = vunpack.c.3.s8 %v183
    %v1056 = vunpack.c.3.s8 %v184
    %v1057 = vunpack.c.3.s8 %v185
    %v1058 = vunpack.c.3.s8 %v186
    %v1059 = vunpack.c.3.s8 %v187
    %v1060 = vunpack.c.3.s8 %v188
    %v1061 = vunpack.c.3.s8 %v189
    %v1062 = vunpack.c.0.s8 %v190
    %v1063 = vunpack.c.0.s8 %v191
    %v1064 = vunpack.c.0.s8 %v192
    %v1065 = vunpack.c.0.s8 %v193
    %v1066 = vunpack.c.0.s8 %v194
    %v1067 = vunpack.c.0.s8 %v195
    %v1068 = vunpack.c.0.s8 %v196
    %v1069 = vunpack.c.0.s8 %v197
    %v1070 = vunpack.c.1.s8 %v190
    %v1071 = vunpack.c.1.s8 %v191
    %v1072 = vunpack.c.1.s8 %v192
    %v1073 = vunpack.c.1.s8 %v193
    %v1074 = vunpack.c.1.s8 %v194
    %v1075 = vunpack.c.1.s8 %v195
    %v1076 = vunpack.c.1.s8 %v196
    %v1077 = vunpack.c.1.s8 %v197
    %v1078 = vunpack.c.2.s8 %v190
    %v1079 = vunpack.c.2.s8 %v191
    %v1080 = vunpack.c.2.s8 %v192
    %v1081 = vunpack.c.2.s8 %v193
    %v1082 = vunpack.c.2.s8 %v194
    %v1083 = vunpack.c.2.s8 %v195
    %v1084 = vunpack.c.2.s8 %v196
    %v1085 = vunpack.c.2.s8 %v197
    %v1086 = vunpack.c.3.s8 %v190
    %v1087 = vunpack.c.3.s8 %v191
    %v1088 = vunpack.c.3.s8 %v192
    %v1089 = vunpack.c.3.s8 %v193
    %v1090 = vunpack.c.3.s8 %v194
    %v1091 = vunpack.c.3.s8 %v195
    %v1092 = vunpack.c.3.s8 %v196
    %v1093 = vunpack.c.3.s8 %v197
    %v1094 = vunpack.c.0.s8 %v198
    %v1095 = vunpack.c.0.s8 %v199
    %v1096 = vunpack.c.0.s8 %v200
    %v1097 = vunpack.c.0.s8 %v201
    %v1098 = vunpack.c.0.s8 %v202
    %v1099 = vunpack.c.0.s8 %v203
    %v1100 = vunpack.c.0.s8 %v204
    %v1101 = vunpack.c.0.s8 %v205
    %v1102 = vunpack.c.1.s8 %v198
    %v1103 = vunpack.c.1.s8 %v199
    %v1104 = vunpack.c.1.s8 %v200
    %v1105 = vunpack.c.1.s8 %v201
    %v1106 = vunpack.c.1.s8 %v202
    %v1107 = vunpack.c.1.s8 %v203
    %v1108 = vunpack.c.1.s8 %v204
    %v1109 = vunpack.c.1.s8 %v205
    %v1110 = vunpack.c.2.s8 %v198
    %v1111 = vunpack.c.2.s8 %v199
    %v1112 = vunpack.c.2.s8 %v200
    %v1113 = vunpack.c.2.s8 %v201
    %v1114 = vunpack.c.2.s8 %v202
    %v1115 = vunpack.c.2.s8 %v203
    %v1116 = vunpack.c.2.s8 %v204
    %v1117 = vunpack.c.2.s8 %v205
    %v1118 = vunpack.c.3.s8 %v198
    %v1119 = vunpack.c.3.s8 %v199
    %v1120 = vunpack.c.3.s8 %v200
    %v1121 = vunpack.c.3.s8 %v201
    %v1122 = vunpack.c.3.s8 %v202
    %v1123 = vunpack.c.3.s8 %v203
    %v1124 = vunpack.c.3.s8 %v204
    %v1125 = vunpack.c.3.s8 %v205
    %v1126 = vunpack.c.0.s8 %v206
    %v1127 = vunpack.c.0.s8 %v207
    %v1128 = vunpack.c.0.s8 %v208
    %v1129 = vunpack.c.0.s8 %v209
    %v1130 = vunpack.c.0.s8 %v210
    %v1131 = vunpack.c.0.s8 %v211
    %v1132 = vunpack.c.0.s8 %v212
    %v1133 = vunpack.c.0.s8 %v213
    %v1134 = vunpack.c.1.s8 %v206
    %v1135 = vunpack.c.1.s8 %v207
    %v1136 = vunpack.c.1.s8 %v208
    %v1137 = vunpack.c.1.s8 %v209
    %v1138 = vunpack.c.1.s8 %v210
    %v1139 = vunpack.c.1.s8 %v211
    %v1140 = vunpack.c.1.s8 %v212
    %v1141 = vunpack.c.1.s8 %v213
    %v1142 = vunpack.c.2.s8 %v206
    %v1143 = vunpack.c.2.s8 %v207
    %v1144 = vunpack.c.2.s8 %v208
    %v1145 = vunpack.c.2.s8 %v209
    %v1146 = vunpack.c.2.s8 %v210
    %v1147 = vunpack.c.2.s8 %v211
    %v1148 = vunpack.c.2.s8 %v212
    %v1149 = vunpack.c.2.s8 %v213
    %v1150 = vunpack.c.3.s8 %v206
    %v1151 = vunpack.c.3.s8 %v207
    %v1152 = vunpack.c.3.s8 %v208
    %v1153 = vunpack.c.3.s8 %v209
    %v1154 = vunpack.c.3.s8 %v210
    %v1155 = vunpack.c.3.s8 %v211
    %v1156 = vunpack.c.3.s8 %v212
    %v1157 = vunpack.c.3.s8 %v213
    %v1158 = vunpack.c.0.s8 %v214
    %v1159 = vunpack.c.0.s8 %v215
    %v1160 = vunpack.c.0.s8 %v216
    %v1161 = vunpack.c.0.s8 %v217
    %v1162 = vunpack.c.0.s8 %v218
    %v1163 = vunpack.c.0.s8 %v219
    %v1164 = vunpack.c.0.s8 %v220
    %v1165 = vunpack.c.0.s8 %v221
    %v1166 = vunpack.c.1.s8 %v214
    %v1167 = vunpack.c.1.s8 %v215
    %v1168 = vunpack.c.1.s8 %v216
    %v1169 = vunpack.c.1.s8 %v217
    %v1170 = vunpack.c.1.s8 %v218
    %v1171 = vunpack.c.1.s8 %v219
    %v1172 = vunpack.c.1.s8 %v220
    %v1173 = vunpack.c.1.s8 %v221
    %v1174 = vunpack.c.2.s8 %v214
    %v1175 = vunpack.c.2.s8 %v215
    %v1176 = vunpack.c.2.s8 %v216
    %v1177 = vunpack.c.2.s8 %v217
    %v1178 = vunpack.c.2.s8 %v218
    %v1179 = vunpack.c.2.s8 %v219
    %v1180 = vunpack.c.2.s8 %v220
    %v1181 = vunpack.c.2.s8 %v221
    %v1182 = vunpack.c.3.s8 %v214
    %v1183 = vunpack.c.3.s8 %v215
    %v1184 = vunpack.c.3.s8 %v216
    %v1185 = vunpack.c.3.s8 %v217
    %v1186 = vunpack.c.3.s8 %v218
    %v1187 = vunpack.c.3.s8 %v219
    %v1188 = vunpack.c.3.s8 %v220
    %v1189 = vunpack.c.3.s8 %v221
    %v1190 = vunpack.c.0.s8 %v222
    %v1191 = vunpack.c.0.s8 %v223
    %v1192 = vunpack.c.0.s8 %v224
    %v1193 = vunpack.c.0.s8 %v225
    %v1194 = vunpack.c.0.s8 %v226
    %v1195 = vunpack.c.0.s8 %v227
    %v1196 = vunpack.c.0.s8 %v228
    %v1197 = vunpack.c.0.s8 %v229
    %v1198 = vunpack.c.1.s8 %v222
    %v1199 = vunpack.c.1.s8 %v223
    %v1200 = vunpack.c.1.s8 %v224
    %v1201 = vunpack.c.1.s8 %v225
    %v1202 = vunpack.c.1.s8 %v226
    %v1203 = vunpack.c.1.s8 %v227
    %v1204 = vunpack.c.1.s8 %v228
    %v1205 = vunpack.c.1.s8 %v229
    %v1206 = vunpack.c.2.s8 %v222
    %v1207 = vunpack.c.2.s8 %v223
    %v1208 = vunpack.c.2.s8 %v224
    %v1209 = vunpack.c.2.s8 %v225
    %v1210 = vunpack.c.2.s8 %v226
    %v1211 = vunpack.c.2.s8 %v227
    %v1212 = vunpack.c.2.s8 %v228
    %v1213 = vunpack.c.2.s8 %v229
    %v1214 = vunpack.c.3.s8 %v222
    %v1215 = vunpack.c.3.s8 %v223
    %v1216 = vunpack.c.3.s8 %v224
    %v1217 = vunpack.c.3.s8 %v225
    %v1218 = vunpack.c.3.s8 %v226
    %v1219 = vunpack.c.3.s8 %v227
    %v1220 = vunpack.c.3.s8 %v228
    %v1221 = vunpack.c.3.s8 %v229
    %v1222 = vunpack.c.0.s8 %v230
    %v1223 = vunpack.c.0.s8 %v231
    %v1224 = vunpack.c.0.s8 %v232
    %v1225 = vunpack.c.0.s8 %v233
    %v1226 = vunpack.c.0.s8 %v234
    %v1227 = vunpack.c.0.s8 %v235
    %v1228 = vunpack.c.0.s8 %v236
    %v1229 = vunpack.c.0.s8 %v237
    %v1230 = vunpack.c.1.s8 %v230
    %v1231 = vunpack.c.1.s8 %v231
    %v1232 = vunpack.c.1.s8 %v232
    %v1233 = vunpack.c.1.s8 %v233
    %v1234 = vunpack.c.1.s8 %v234
    %v1235 = vunpack.c.1.s8 %v235
    %v1236 = vunpack.c.1.s8 %v236
    %v1237 = vunpack.c.1.s8 %v237
    %v1238 = vunpack.c.2.s8 %v230
    %v1239 = vunpack.c.2.s8 %v231
    %v1240 = vunpack.c.2.s8 %v232
    %v1241 = vunpack.c.2.s8 %v233
    %v1242 = vunpack.c.2.s8 %v234
    %v1243 = vunpack.c.2.s8 %v235
    %v1244 = vunpack.c.2.s8 %v236
    %v1245 = vunpack.c.2.s8 %v237
    %v1246 = vunpack.c.3.s8 %v230
    %v1247 = vunpack.c.3.s8 %v231
    %v1248 = vunpack.c.3.s8 %v232
    %v1249 = vunpack.c.3.s8 %v233
    %v1250 = vunpack.c.3.s8 %v234
    %v1251 = vunpack.c.3.s8 %v235
    %v1252 = vunpack.c.3.s8 %v236
    %v1253 = vunpack.c.3.s8 %v237
    %v1254 = vunpack.c.0.s8 %v238
    %v1255 = vunpack.c.0.s8 %v239
    %v1256 = vunpack.c.0.s8 %v240
    %v1257 = vunpack.c.0.s8 %v241
    %v1258 = vunpack.c.0.s8 %v242
    %v1259 = vunpack.c.0.s8 %v243
    %v1260 = vunpack.c.0.s8 %v244
    %v1261 = vunpack.c.0.s8 %v245
    %v1262 = vunpack.c.1.s8 %v238
    %v1263 = vunpack.c.1.s8 %v239
    %v1264 = vunpack.c.1.s8 %v240
    %v1265 = vunpack.c.1.s8 %v241
    %v1266 = vunpack.c.1.s8 %v242
    %v1267 = vunpack.c.1.s8 %v243
    %v1268 = vunpack.c.1.s8 %v244
    %v1269 = vunpack.c.1.s8 %v245
    %v1270 = vunpack.c.2.s8 %v238
    %v1271 = vunpack.c.2.s8 %v239
    %v1272 = vunpack.c.2.s8 %v240
    %v1273 = vunpack.c.2.s8 %v241
    %v1274 = vunpack.c.2.s8 %v242
    %v1275 = vunpack.c.2.s8 %v243
    %v1276 = vunpack.c.2.s8 %v244
    %v1277 = vunpack.c.2.s8 %v245
    %v1278 = vunpack.c.3.s8 %v238
    %v1279 = vunpack.c.3.s8 %v239
    %v1280 = vunpack.c.3.s8 %v240
    %v1281 = vunpack.c.3.s8 %v241
    %v1282 = vunpack.c.3.s8 %v242
    %v1283 = vunpack.c.3.s8 %v243
    %v1284 = vunpack.c.3.s8 %v244
    %v1285 = vunpack.c.3.s8 %v245
    %v1286 = vunpack.c.0.s8 %v246
    %v1287 = vunpack.c.0.s8 %v247
    %v1288 = vunpack.c.0.s8 %v248
    %v1289 = vunpack.c.0.s8 %v249
    %v1290 = vunpack.c.0.s8 %v250
    %v1291 = vunpack.c.0.s8 %v251
    %v1292 = vunpack.c.0.s8 %v252
    %v1293 = vunpack.c.0.s8 %v253
    %v1294 = vunpack.c.1.s8 %v246
    %v1295 = vunpack.c.1.s8 %v247
    %v1296 = vunpack.c.1.s8 %v248
    %v1297 = vunpack.c.1.s8 %v249
    %v1298 = vunpack.c.1.s8 %v250
    %v1299 = vunpack.c.1.s8 %v251
    %v1300 = vunpack.c.1.s8 %v252
    %v1301 = vunpack.c.1.s8 %v253
    %v1302 = vunpack.c.2.s8 %v246
    %v1303 = vunpack.c.2.s8 %v247
    %v1304 = vunpack.c.2.s8 %v248
    %v1305 = vunpack.c.2.s8 %v249
    %v1306 = vunpack.c.2.s8 %v250
    %v1307 = vunpack.c.2.s8 %v251
    %v1308 = vunpack.c.2.s8 %v252
    %v1309 = vunpack.c.2.s8 %v253
    %v1310 = vunpack.c.3.s8 %v246
    %v1311 = vunpack.c.3.s8 %v247
    %v1312 = vunpack.c.3.s8 %v248
    %v1313 = vunpack.c.3.s8 %v249
    %v1314 = vunpack.c.3.s8 %v250
    %v1315 = vunpack.c.3.s8 %v251
    %v1316 = vunpack.c.3.s8 %v252
    %v1317 = vunpack.c.3.s8 %v253
    %v1318 = vunpack.c.0.s8 %v254
    %v1319 = vunpack.c.0.s8 %v255
    %v1320 = vunpack.c.0.s8 %v256
    %v1321 = vunpack.c.0.s8 %v257
    %v1322 = vunpack.c.0.s8 %v258
    %v1323 = vunpack.c.0.s8 %v259
    %v1324 = vunpack.c.0.s8 %v260
    %v1325 = vunpack.c.0.s8 %v261
    %v1326 = vunpack.c.1.s8 %v254
    %v1327 = vunpack.c.1.s8 %v255
    %v1328 = vunpack.c.1.s8 %v256
    %v1329 = vunpack.c.1.s8 %v257
    %v1330 = vunpack.c.1.s8 %v258
    %v1331 = vunpack.c.1.s8 %v259
    %v1332 = vunpack.c.1.s8 %v260
    %v1333 = vunpack.c.1.s8 %v261
    %v1334 = vunpack.c.2.s8 %v254
    %v1335 = vunpack.c.2.s8 %v255
    %v1336 = vunpack.c.2.s8 %v256
    %v1337 = vunpack.c.2.s8 %v257
    %v1338 = vunpack.c.2.s8 %v258
    %v1339 = vunpack.c.2.s8 %v259
    %v1340 = vunpack.c.2.s8 %v260
    %v1341 = vunpack.c.2.s8 %v261
    %v1342 = vunpack.c.3.s8 %v254
    %v1343 = vunpack.c.3.s8 %v255
    %v1344 = vunpack.c.3.s8 %v256
    %v1345 = vunpack.c.3.s8 %v257
    %v1346 = vunpack.c.3.s8 %v258
    %v1347 = vunpack.c.3.s8 %v259
    %v1348 = vunpack.c.3.s8 %v260
    %v1349 = vunpack.c.3.s8 %v261
    %v1350 = vunpack.c.0.s8 %v262
    %v1351 = vunpack.c.0.s8 %v263
    %v1352 = vunpack.c.0.s8 %v264
    %v1353 = vunpack.c.0.s8 %v265
    %v1354 = vunpack.c.0.s8 %v266
    %v1355 = vunpack.c.0.s8 %v267
    %v1356 = vunpack.c.0.s8 %v268
    %v1357 = vunpack.c.0.s8 %v269
    %v1358 = vunpack.c.1.s8 %v262
    %v1359 = vunpack.c.1.s8 %v263
    %v1360 = vunpack.c.1.s8 %v264
    %v1361 = vunpack.c.1.s8 %v265
    %v1362 = vunpack.c.1.s8 %v266
    %v1363 = vunpack.c.1.s8 %v267
    %v1364 = vunpack.c.1.s8 %v268
    %v1365 = vunpack.c.1.s8 %v269
    %v1366 = vunpack.c.2.s8 %v262
    %v1367 = vunpack.c.2.s8 %v263
    %v1368 = vunpack.c.2.s8 %v264
    %v1369 = vunpack.c.2.s8 %v265
    %v1370 = vunpack.c.2.s8 %v266
    %v1371 = vunpack.c.2.s8 %v267
    %v1372 = vunpack.c.2.s8 %v268
    %v1373 = vunpack.c.2.s8 %v269
    %v1374 = vunpack.c.3.s8 %v262
    %v1375 = vunpack.c.3.s8 %v263
    %v1376 = vunpack.c.3.s8 %v264
    %v1377 = vunpack.c.3.s8 %v265
    %v1378 = vunpack.c.3.s8 %v266
    %v1379 = vunpack.c.3.s8 %v267
    %v1380 = vunpack.c.3.s8 %v268
    %v1381 = vunpack.c.3.s8 %v269
    %v1382 = vunpack.c.0.s8 %v270
    %v1383 = vunpack.c.0.s8 %v271
    %v1384 = vunpack.c.0.s8 %v272
    %v1385 = vunpack.c.0.s8 %v273
    %v1386 = vunpack.c.0.s8 %v274
    %v1387 = vunpack.c.0.s8 %v275
    %v1388 = vunpack.c.0.s8 %v276
    %v1389 = vunpack.c.0.s8 %v277
    %v1390 = vunpack.c.1.s8 %v270
    %v1391 = vunpack.c.1.s8 %v271
    %v1392 = vunpack.c.1.s8 %v272
    %v1393 = vunpack.c.1.s8 %v273
    %v1394 = vunpack.c.1.s8 %v274
    %v1395 = vunpack.c.1.s8 %v275
    %v1396 = vunpack.c.1.s8 %v276
    %v1397 = vunpack.c.1.s8 %v277
    %v1398 = vunpack.c.2.s8 %v270
    %v1399 = vunpack.c.2.s8 %v271
    %v1400 = vunpack.c.2.s8 %v272
    %v1401 = vunpack.c.2.s8 %v273
    %v1402 = vunpack.c.2.s8 %v274
    %v1403 = vunpack.c.2.s8 %v275
    %v1404 = vunpack.c.2.s8 %v276
    %v1405 = vunpack.c.2.s8 %v277
    %v1406 = vunpack.c.3.s8 %v270
    %v1407 = vunpack.c.3.s8 %v271
    %v1408 = vunpack.c.3.s8 %v272
    %v1409 = vunpack.c.3.s8 %v273
    %v1410 = vunpack.c.3.s8 %v274
    %v1411 = vunpack.c.3.s8 %v275
    %v1412 = vunpack.c.3.s8 %v276
    %v1413 = vunpack.c.3.s8 %v277
    %v1414 = vunpack.c.0.s8 %v278
    %v1415 = vunpack.c.0.s8 %v279
    %v1416 = vunpack.c.0.s8 %v280
    %v1417 = vunpack.c.0.s8 %v281
    %v1418 = vunpack.c.0.s8 %v282
    %v1419 = vunpack.c.0.s8 %v283
    %v1420 = vunpack.c.0.s8 %v284
    %v1421 = vunpack.c.0.s8 %v285
    %v1422 = vunpack.c.1.s8 %v278
    %v1423 = vunpack.c.1.s8 %v279
    %v1424 = vunpack.c.1.s8 %v280
    %v1425 = vunpack.c.1.s8 %v281
    %v1426 = vunpack.c.1.s8 %v282
    %v1427 = vunpack.c.1.s8 %v283
    %v1428 = vunpack.c.1.s8 %v284
    %v1429 = vunpack.c.1.s8 %v285
    %v1430 = vunpack.c.2.s8 %v278
    %v1431 = vunpack.c.2.s8 %v279
    %v1432 = vunpack.c.2.s8 %v280
    %v1433 = vunpack.c.2.s8 %v281
    %v1434 = vunpack.c.2.s8 %v282
    %v1435 = vunpack.c.2.s8 %v283
    %v1436 = vunpack.c.2.s8 %v284
    %v1437 = vunpack.c.2.s8 %v285
    %v1438 = vunpack.c.3.s8 %v278
    %v1439 = vunpack.c.3.s8 %v279
    %v1440 = vunpack.c.3.s8 %v280
    %v1441 = vunpack.c.3.s8 %v281
    %v1442 = vunpack.c.3.s8 %v282
    %v1443 = vunpack.c.3.s8 %v283
    %v1444 = vunpack.c.3.s8 %v284
    %v1445 = vunpack.c.3.s8 %v285
    %v1446 = vunpack.c.0.s8 %v286
    %v1447 = vunpack.c.0.s8 %v287
    %v1448 = vunpack.c.0.s8 %v288
    %v1449 = vunpack.c.0.s8 %v289
    %v1450 = vunpack.c.0.s8 %v290
    %v1451 = vunpack.c.0.s8 %v291
    %v1452 = vunpack.c.0.s8 %v292
    %v1453 = vunpack.c.0.s8 %v293
    %v1454 = vunpack.c.1.s8 %v286
    %v1455 = vunpack.c.1.s8 %v287
    %v1456 = vunpack.c.1.s8 %v288
    %v1457 = vunpack.c.1.s8 %v289
    %v1458 = vunpack.c.1.s8 %v290
    %v1459 = vunpack.c.1.s8 %v291
    %v1460 = vunpack.c.1.s8 %v292
    %v1461 = vunpack.c.1.s8 %v293
    %v1462 = vunpack.c.2.s8 %v286
    %v1463 = vunpack.c.2.s8 %v287
    %v1464 = vunpack.c.2.s8 %v288
    %v1465 = vunpack.c.2.s8 %v289
    %v1466 = vunpack.c.2.s8 %v290
    %v1467 = vunpack.c.2.s8 %v291
    %v1468 = vunpack.c.2.s8 %v292
    %v1469 = vunpack.c.2.s8 %v293
    %v1470 = vunpack.c.3.s8 %v286
    %v1471 = vunpack.c.3.s8 %v287
    %v1472 = vunpack.c.3.s8 %v288
    %v1473 = vunpack.c.3.s8 %v289
    %v1474 = vunpack.c.3.s8 %v290
    %v1475 = vunpack.c.3.s8 %v291
    %v1476 = vunpack.c.3.s8 %v292
    %v1477 = vunpack.c.3.s8 %v293
    %v1478 = vunpack.c.0.s8 %v294
    %v1479 = vunpack.c.0.s8 %v295
    %v1480 = vunpack.c.0.s8 %v296
    %v1481 = vunpack.c.0.s8 %v297
    %v1482 = vunpack.c.0.s8 %v298
    %v1483 = vunpack.c.0.s8 %v299
    %v1484 = vunpack.c.0.s8 %v300
    %v1485 = vunpack.c.0.s8 %v301
    %v1486 = vunpack.c.1.s8 %v294
    %v1487 = vunpack.c.1.s8 %v295
    %v1488 = vunpack.c.1.s8 %v296
    %v1489 = vunpack.c.1.s8 %v297
    %v1490 = vunpack.c.1.s8 %v298
    %v1491 = vunpack.c.1.s8 %v299
    %v1492 = vunpack.c.1.s8 %v300
    %v1493 = vunpack.c.1.s8 %v301
    %v1494 = vunpack.c.2.s8 %v294
    %v1495 = vunpack.c.2.s8 %v295
    %v1496 = vunpack.c.2.s8 %v296
    %v1497 = vunpack.c.2.s8 %v297
    %v1498 = vunpack.c.2.s8 %v298
    %v1499 = vunpack.c.2.s8 %v299
    %v1500 = vunpack.c.2.s8 %v300
    %v1501 = vunpack.c.2.s8 %v301
    %v1502 = vunpack.c.3.s8 %v294
    %v1503 = vunpack.c.3.s8 %v295
    %v1504 = vunpack.c.3.s8 %v296
    %v1505 = vunpack.c.3.s8 %v297
    %v1506 = vunpack.c.3.s8 %v298
    %v1507 = vunpack.c.3.s8 %v299
    %v1508 = vunpack.c.3.s8 %v300
    %v1509 = vunpack.c.3.s8 %v301
    %v1510 = vunpack.c.0.s8 %v302
    %v1511 = vunpack.c.0.s8 %v303
    %v1512 = vunpack.c.0.s8 %v304
    %v1513 = vunpack.c.0.s8 %v305
    %v1514 = vunpack.c.0.s8 %v306
    %v1515 = vunpack.c.0.s8 %v307
    %v1516 = vunpack.c.0.s8 %v308
    %v1517 = vunpack.c.0.s8 %v309
    %v1518 = vunpack.c.1.s8 %v302
    %v1519 = vunpack.c.1.s8 %v303
    %v1520 = vunpack.c.1.s8 %v304
    %v1521 = vunpack.c.1.s8 %v305
    %v1522 = vunpack.c.1.s8 %v306
    %v1523 = vunpack.c.1.s8 %v307
    %v1524 = vunpack.c.1.s8 %v308
    %v1525 = vunpack.c.1.s8 %v309
    %v1526 = vunpack.c.2.s8 %v302
    %v1527 = vunpack.c.2.s8 %v303
    %v1528 = vunpack.c.2.s8 %v304
    %v1529 = vunpack.c.2.s8 %v305
    %v1530 = vunpack.c.2.s8 %v306
    %v1531 = vunpack.c.2.s8 %v307
    %v1532 = vunpack.c.2.s8 %v308
    %v1533 = vunpack.c.2.s8 %v309
    %v1534 = vunpack.c.3.s8 %v302
    %v1535 = vunpack.c.3.s8 %v303
    %v1536 = vunpack.c.3.s8 %v304
    %v1537 = vunpack.c.3.s8 %v305
    %v1538 = vunpack.c.3.s8 %v306
    %v1539 = vunpack.c.3.s8 %v307
    %v1540 = vunpack.c.3.s8 %v308
    %v1541 = vunpack.c.3.s8 %v309
    %v1542 = vunpack.c.0.s8 %v310
    %v1543 = vunpack.c.0.s8 %v311
    %v1544 = vunpack.c.0.s8 %v312
    %v1545 = vunpack.c.0.s8 %v313
    %v1546 = vunpack.c.0.s8 %v314
    %v1547 = vunpack.c.0.s8 %v315
    %v1548 = vunpack.c.0.s8 %v316
    %v1549 = vunpack.c.0.s8 %v317
    %v1550 = vunpack.c.1.s8 %v310
    %v1551 = vunpack.c.1.s8 %v311
    %v1552 = vunpack.c.1.s8 %v312
    %v1553 = vunpack.c.1.s8 %v313
    %v1554 = vunpack.c.1.s8 %v314
    %v1555 = vunpack.c.1.s8 %v315
    %v1556 = vunpack.c.1.s8 %v316
    %v1557 = vunpack.c.1.s8 %v317
    %v1558 = vunpack.c.2.s8 %v310
    %v1559 = vunpack.c.2.s8 %v311
    %v1560 = vunpack.c.2.s8 %v312
    %v1561 = vunpack.c.2.s8 %v313
    %v1562 = vunpack.c.2.s8 %v314
    %v1563 = vunpack.c.2.s8 %v315
    %v1564 = vunpack.c.2.s8 %v316
    %v1565 = vunpack.c.2.s8 %v317
    %v1566 = vunpack.c.3.s8 %v310
    %v1567 = vunpack.c.3.s8 %v311
    %v1568 = vunpack.c.3.s8 %v312
    %v1569 = vunpack.c.3.s8 %v313
    %v1570 = vunpack.c.3.s8 %v314
    %v1571 = vunpack.c.3.s8 %v315
    %v1572 = vunpack.c.3.s8 %v316
    %v1573 = vunpack.c.3.s8 %v317
    %v1574 = vunpack.c.0.s8 %v318
    %v1575 = vunpack.c.0.s8 %v319
    %v1576 = vunpack.c.0.s8 %v320
    %v1577 = vunpack.c.0.s8 %v321
    %v1578 = vunpack.c.0.s8 %v322
    %v1579 = vunpack.c.0.s8 %v323
    %v1580 = vunpack.c.0.s8 %v324
    %v1581 = vunpack.c.0.s8 %v325
    %v1582 = vunpack.c.1.s8 %v318
    %v1583 = vunpack.c.1.s8 %v319
    %v1584 = vunpack.c.1.s8 %v320
    %v1585 = vunpack.c.1.s8 %v321
    %v1586 = vunpack.c.1.s8 %v322
    %v1587 = vunpack.c.1.s8 %v323
    %v1588 = vunpack.c.1.s8 %v324
    %v1589 = vunpack.c.1.s8 %v325
    %v1590 = vunpack.c.2.s8 %v318
    %v1591 = vunpack.c.2.s8 %v319
    %v1592 = vunpack.c.2.s8 %v320
    %v1593 = vunpack.c.2.s8 %v321
    %v1594 = vunpack.c.2.s8 %v322
    %v1595 = vunpack.c.2.s8 %v323
    %v1596 = vunpack.c.2.s8 %v324
    %v1597 = vunpack.c.2.s8 %v325
    %v1598 = vunpack.c.3.s8 %v318
    %v1599 = vunpack.c.3.s8 %v319
    %v1600 = vunpack.c.3.s8 %v320
    %v1601 = vunpack.c.3.s8 %v321
    %v1602 = vunpack.c.3.s8 %v322
    %v1603 = vunpack.c.3.s8 %v323
    %v1604 = vunpack.c.3.s8 %v324
    %v1605 = vunpack.c.3.s8 %v325
    %v1606 = vunpack.c.0.s8 %v326
    %v1607 = vunpack.c.0.s8 %v327
    %v1608 = vunpack.c.0.s8 %v328
    %v1609 = vunpack.c.0.s8 %v329
    %v1610 = vunpack.c.0.s8 %v330
    %v1611 = vunpack.c.0.s8 %v331
    %v1612 = vunpack.c.0.s8 %v332
    %v1613 = vunpack.c.0.s8 %v333
    %v1614 = vunpack.c.1.s8 %v326
    %v1615 = vunpack.c.1.s8 %v327
    %v1616 = vunpack.c.1.s8 %v328
    %v1617 = vunpack.c.1.s8 %v329
    %v1618 = vunpack.c.1.s8 %v330
    %v1619 = vunpack.c.1.s8 %v331
    %v1620 = vunpack.c.1.s8 %v332
    %v1621 = vunpack.c.1.s8 %v333
    %v1622 = vunpack.c.2.s8 %v326
    %v1623 = vunpack.c.2.s8 %v327
    %v1624 = vunpack.c.2.s8 %v328
    %v1625 = vunpack.c.2.s8 %v329
    %v1626 = vunpack.c.2.s8 %v330
    %v1627 = vunpack.c.2.s8 %v331
    %v1628 = vunpack.c.2.s8 %v332
    %v1629 = vunpack.c.2.s8 %v333
    %v1630 = vunpack.c.3.s8 %v326
    %v1631 = vunpack.c.3.s8 %v327
    %v1632 = vunpack.c.3.s8 %v328
    %v1633 = vunpack.c.3.s8 %v329
    %v1634 = vunpack.c.3.s8 %v330
    %v1635 = vunpack.c.3.s8 %v331
    %v1636 = vunpack.c.3.s8 %v332
    %v1637 = vunpack.c.3.s8 %v333
    %v1638 = vunpack.c.0.s8 %v334
    %v1639 = vunpack.c.0.s8 %v335
    %v1640 = vunpack.c.0.s8 %v336
    %v1641 = vunpack.c.0.s8 %v337
    %v1642 = vunpack.c.0.s8 %v338
    %v1643 = vunpack.c.0.s8 %v339
    %v1644 = vunpack.c.0.s8 %v340
    %v1645 = vunpack.c.0.s8 %v341
    %v1646 = vunpack.c.1.s8 %v334
    %v1647 = vunpack.c.1.s8 %v335
    %v1648 = vunpack.c.1.s8 %v336
    %v1649 = vunpack.c.1.s8 %v337
    %v1650 = vunpack.c.1.s8 %v338
    %v1651 = vunpack.c.1.s8 %v339
    %v1652 = vunpack.c.1.s8 %v340
    %v1653 = vunpack.c.1.s8 %v341
    %v1654 = vunpack.c.2.s8 %v334
    %v1655 = vunpack.c.2.s8 %v335
    %v1656 = vunpack.c.2.s8 %v336
    %v1657 = vunpack.c.2.s8 %v337
    %v1658 = vunpack.c.2.s8 %v338
    %v1659 = vunpack.c.2.s8 %v339
    %v1660 = vunpack.c.2.s8 %v340
    %v1661 = vunpack.c.2.s8 %v341
    %v1662 = vunpack.c.3.s8 %v334
    %v1663 = vunpack.c.3.s8 %v335
    %v1664 = vunpack.c.3.s8 %v336
    %v1665 = vunpack.c.3.s8 %v337
    %v1666 = vunpack.c.3.s8 %v338
    %v1667 = vunpack.c.3.s8 %v339
    %v1668 = vunpack.c.3.s8 %v340
    %v1669 = vunpack.c.3.s8 %v341
    %v1670 = vunpack.c.0.s8 %v342
    %v1671 = vunpack.c.0.s8 %v343
    %v1672 = vunpack.c.0.s8 %v344
    %v1673 = vunpack.c.0.s8 %v345
    %v1674 = vunpack.c.0.s8 %v346
    %v1675 = vunpack.c.0.s8 %v347
    %v1676 = vunpack.c.0.s8 %v348
    %v1677 = vunpack.c.0.s8 %v349
    %v1678 = vunpack.c.1.s8 %v342
    %v1679 = vunpack.c.1.s8 %v343
    %v1680 = vunpack.c.1.s8 %v344
    %v1681 = vunpack.c.1.s8 %v345
    %v1682 = vunpack.c.1.s8 %v346
    %v1683 = vunpack.c.1.s8 %v347
    %v1684 = vunpack.c.1.s8 %v348
    %v1685 = vunpack.c.1.s8 %v349
    %v1686 = vunpack.c.2.s8 %v342
    %v1687 = vunpack.c.2.s8 %v343
    %v1688 = vunpack.c.2.s8 %v344
    %v1689 = vunpack.c.2.s8 %v345
    %v1690 = vunpack.c.2.s8 %v346
    %v1691 = vunpack.c.2.s8 %v347
    %v1692 = vunpack.c.2.s8 %v348
    %v1693 = vunpack.c.2.s8 %v349
    %v1694 = vunpack.c.3.s8 %v342
    %v1695 = vunpack.c.3.s8 %v343
    %v1696 = vunpack.c.3.s8 %v344
    %v1697 = vunpack.c.3.s8 %v345
    %v1698 = vunpack.c.3.s8 %v346
    %v1699 = vunpack.c.3.s8 %v347
    %v1700 = vunpack.c.3.s8 %v348
    %v1701 = vunpack.c.3.s8 %v349
    %v1702 = vunpack.c.0.s8 %v350
    %v1703 = vunpack.c.0.s8 %v351
    %v1704 = vunpack.c.0.s8 %v352
    %v1705 = vunpack.c.0.s8 %v353
    %v1706 = vunpack.c.0.s8 %v354
    %v1707 = vunpack.c.0.s8 %v355
    %v1708 = vunpack.c.0.s8 %v356
    %v1709 = vunpack.c.0.s8 %v357
    %v1710 = vunpack.c.1.s8 %v350
    %v1711 = vunpack.c.1.s8 %v351
    %v1712 = vunpack.c.1.s8 %v352
    %v1713 = vunpack.c.1.s8 %v353
    %v1714 = vunpack.c.1.s8 %v354
    %v1715 = vunpack.c.1.s8 %v355
    %v1716 = vunpack.c.1.s8 %v356
    %v1717 = vunpack.c.1.s8 %v357
    %v1718 = vunpack.c.2.s8 %v350
    %v1719 = vunpack.c.2.s8 %v351
    %v1720 = vunpack.c.2.s8 %v352
    %v1721 = vunpack.c.2.s8 %v353
    %v1722 = vunpack.c.2.s8 %v354
    %v1723 = vunpack.c.2.s8 %v355
    %v1724 = vunpack.c.2.s8 %v356
    %v1725 = vunpack.c.2.s8 %v357
    %v1726 = vunpack.c.3.s8 %v350
    %v1727 = vunpack.c.3.s8 %v351
    %v1728 = vunpack.c.3.s8 %v352
    %v1729 = vunpack.c.3.s8 %v353
    %v1730 = vunpack.c.3.s8 %v354
    %v1731 = vunpack.c.3.s8 %v355
    %v1732 = vunpack.c.3.s8 %v356
    %v1733 = vunpack.c.3.s8 %v357
    %v1734 = vunpack.c.0.s8 %v358
    %v1735 = vunpack.c.0.s8 %v359
    %v1736 = vunpack.c.0.s8 %v360
    %v1737 = vunpack.c.0.s8 %v361
    %v1738 = vunpack.c.0.s8 %v362
    %v1739 = vunpack.c.0.s8 %v363
    %v1740 = vunpack.c.0.s8 %v364
    %v1741 = vunpack.c.0.s8 %v365
    %v1742 = vunpack.c.1.s8 %v358
    %v1743 = vunpack.c.1.s8 %v359
    %v1744 = vunpack.c.1.s8 %v360
    %v1745 = vunpack.c.1.s8 %v361
    %v1746 = vunpack.c.1.s8 %v362
    %v1747 = vunpack.c.1.s8 %v363
    %v1748 = vunpack.c.1.s8 %v364
    %v1749 = vunpack.c.1.s8 %v365
    %v1750 = vunpack.c.2.s8 %v358
    %v1751 = vunpack.c.2.s8 %v359
    %v1752 = vunpack.c.2.s8 %v360
    %v1753 = vunpack.c.2.s8 %v361
    %v1754 = vunpack.c.2.s8 %v362
    %v1755 = vunpack.c.2.s8 %v363
    %v1756 = vunpack.c.2.s8 %v364
    %v1757 = vunpack.c.2.s8 %v365
    %v1758 = vunpack.c.3.s8 %v358
    %v1759 = vunpack.c.3.s8 %v359
    %v1760 = vunpack.c.3.s8 %v360
    %v1761 = vunpack.c.3.s8 %v361
    %v1762 = vunpack.c.3.s8 %v362
    %v1763 = vunpack.c.3.s8 %v363
    %v1764 = vunpack.c.3.s8 %v364
    %v1765 = vunpack.c.3.s8 %v365
    %v1766 = vunpack.c.0.s8 %v366
    %v1767 = vunpack.c.0.s8 %v367
    %v1768 = vunpack.c.0.s8 %v368
    %v1769 = vunpack.c.0.s8 %v369
    %v1770 = vunpack.c.0.s8 %v370
    %v1771 = vunpack.c.0.s8 %v371
    %v1772 = vunpack.c.0.s8 %v372
    %v1773 = vunpack.c.0.s8 %v373
    %v1774 = vunpack.c.1.s8 %v366
    %v1775 = vunpack.c.1.s8 %v367
    %v1776 = vunpack.c.1.s8 %v368
    %v1777 = vunpack.c.1.s8 %v369
    %v1778 = vunpack.c.1.s8 %v370
    %v1779 = vunpack.c.1.s8 %v371
    %v1780 = vunpack.c.1.s8 %v372
    %v1781 = vunpack.c.1.s8 %v373
    %v1782 = vunpack.c.2.s8 %v366
    %v1783 = vunpack.c.2.s8 %v367
    %v1784 = vunpack.c.2.s8 %v368
    %v1785 = vunpack.c.2.s8 %v369
    %v1786 = vunpack.c.2.s8 %v370
    %v1787 = vunpack.c.2.s8 %v371
    %v1788 = vunpack.c.2.s8 %v372
    %v1789 = vunpack.c.2.s8 %v373
    %v1790 = vunpack.c.3.s8 %v366
    %v1791 = vunpack.c.3.s8 %v367
    %v1792 = vunpack.c.3.s8 %v368
    %v1793 = vunpack.c.3.s8 %v369
    %v1794 = vunpack.c.3.s8 %v370
    %v1795 = vunpack.c.3.s8 %v371
    %v1796 = vunpack.c.3.s8 %v372
    %v1797 = vunpack.c.3.s8 %v373
    %v1798 = vunpack.c.0.s8 %v374
    %v1799 = vunpack.c.0.s8 %v375
    %v1800 = vunpack.c.0.s8 %v376
    %v1801 = vunpack.c.0.s8 %v377
    %v1802 = vunpack.c.0.s8 %v378
    %v1803 = vunpack.c.0.s8 %v379
    %v1804 = vunpack.c.0.s8 %v380
    %v1805 = vunpack.c.0.s8 %v381
    %v1806 = vunpack.c.1.s8 %v374
    %v1807 = vunpack.c.1.s8 %v375
    %v1808 = vunpack.c.1.s8 %v376
    %v1809 = vunpack.c.1.s8 %v377
    %v1810 = vunpack.c.1.s8 %v378
    %v1811 = vunpack.c.1.s8 %v379
    %v1812 = vunpack.c.1.s8 %v380
    %v1813 = vunpack.c.1.s8 %v381
    %v1814 = vunpack.c.2.s8 %v374
    %v1815 = vunpack.c.2.s8 %v375
    %v1816 = vunpack.c.2.s8 %v376
    %v1817 = vunpack.c.2.s8 %v377
    %v1818 = vunpack.c.2.s8 %v378
    %v1819 = vunpack.c.2.s8 %v379
    %v1820 = vunpack.c.2.s8 %v380
    %v1821 = vunpack.c.2.s8 %v381
    %v1822 = vunpack.c.3.s8 %v374
    %v1823 = vunpack.c.3.s8 %v375
    %v1824 = vunpack.c.3.s8 %v376
    %v1825 = vunpack.c.3.s8 %v377
    %v1826 = vunpack.c.3.s8 %v378
    %v1827 = vunpack.c.3.s8 %v379
    %v1828 = vunpack.c.3.s8 %v380
    %v1829 = vunpack.c.3.s8 %v381
    %v1830 = vunpack.c.0.s8 %v382
    %v1831 = vunpack.c.0.s8 %v383
    %v1832 = vunpack.c.0.s8 %v384
    %v1833 = vunpack.c.0.s8 %v385
    %v1834 = vunpack.c.0.s8 %v386
    %v1835 = vunpack.c.0.s8 %v387
    %v1836 = vunpack.c.0.s8 %v388
    %v1837 = vunpack.c.0.s8 %v389
    %v1838 = vunpack.c.1.s8 %v382
    %v1839 = vunpack.c.1.s8 %v383
    %v1840 = vunpack.c.1.s8 %v384
    %v1841 = vunpack.c.1.s8 %v385
    %v1842 = vunpack.c.1.s8 %v386
    %v1843 = vunpack.c.1.s8 %v387
    %v1844 = vunpack.c.1.s8 %v388
    %v1845 = vunpack.c.1.s8 %v389
    %v1846 = vunpack.c.2.s8 %v382
    %v1847 = vunpack.c.2.s8 %v383
    %v1848 = vunpack.c.2.s8 %v384
    %v1849 = vunpack.c.2.s8 %v385
    %v1850 = vunpack.c.2.s8 %v386
    %v1851 = vunpack.c.2.s8 %v387
    %v1852 = vunpack.c.2.s8 %v388
    %v1853 = vunpack.c.2.s8 %v389
    %v1854 = vunpack.c.3.s8 %v382
    %v1855 = vunpack.c.3.s8 %v383
    %v1856 = vunpack.c.3.s8 %v384
    %v1857 = vunpack.c.3.s8 %v385
    %v1858 = vunpack.c.3.s8 %v386
    %v1859 = vunpack.c.3.s8 %v387
    %v1860 = vunpack.c.3.s8 %v388
    %v1861 = vunpack.c.3.s8 %v389
    %v1862 = vunpack.c.0.s8 %v390
    %v1863 = vunpack.c.0.s8 %v391
    %v1864 = vunpack.c.0.s8 %v392
    %v1865 = vunpack.c.0.s8 %v393
    %v1866 = vunpack.c.0.s8 %v394
    %v1867 = vunpack.c.0.s8 %v395
    %v1868 = vunpack.c.0.s8 %v396
    %v1869 = vunpack.c.0.s8 %v397
    %v1870 = vunpack.c.1.s8 %v390
    %v1871 = vunpack.c.1.s8 %v391
    %v1872 = vunpack.c.1.s8 %v392
    %v1873 = vunpack.c.1.s8 %v393
    %v1874 = vunpack.c.1.s8 %v394
    %v1875 = vunpack.c.1.s8 %v395
    %v1876 = vunpack.c.1.s8 %v396
    %v1877 = vunpack.c.1.s8 %v397
    %v1878 = vunpack.c.2.s8 %v390
    %v1879 = vunpack.c.2.s8 %v391
    %v1880 = vunpack.c.2.s8 %v392
    %v1881 = vunpack.c.2.s8 %v393
    %v1882 = vunpack.c.2.s8 %v394
    %v1883 = vunpack.c.2.s8 %v395
    %v1884 = vunpack.c.2.s8 %v396
    %v1885 = vunpack.c.2.s8 %v397
    %v1886 = vunpack.c.3.s8 %v390
    %v1887 = vunpack.c.3.s8 %v391
    %v1888 = vunpack.c.3.s8 %v392
    %v1889 = vunpack.c.3.s8 %v393
    %v1890 = vunpack.c.3.s8 %v394
    %v1891 = vunpack.c.3.s8 %v395
    %v1892 = vunpack.c.3.s8 %v396
    %v1893 = vunpack.c.3.s8 %v397
    %v1894 = vunpack.c.0.s8 %v398
    %v1895 = vunpack.c.0.s8 %v399
    %v1896 = vunpack.c.0.s8 %v400
    %v1897 = vunpack.c.0.s8 %v401
    %v1898 = vunpack.c.0.s8 %v402
    %v1899 = vunpack.c.0.s8 %v403
    %v1900 = vunpack.c.0.s8 %v404
    %v1901 = vunpack.c.0.s8 %v405
    %v1902 = vunpack.c.1.s8 %v398
    %v1903 = vunpack.c.1.s8 %v399
    %v1904 = vunpack.c.1.s8 %v400
    %v1905 = vunpack.c.1.s8 %v401
    %v1906 = vunpack.c.1.s8 %v402
    %v1907 = vunpack.c.1.s8 %v403
    %v1908 = vunpack.c.1.s8 %v404
    %v1909 = vunpack.c.1.s8 %v405
    %v1910 = vunpack.c.2.s8 %v398
    %v1911 = vunpack.c.2.s8 %v399
    %v1912 = vunpack.c.2.s8 %v400
    %v1913 = vunpack.c.2.s8 %v401
    %v1914 = vunpack.c.2.s8 %v402
    %v1915 = vunpack.c.2.s8 %v403
    %v1916 = vunpack.c.2.s8 %v404
    %v1917 = vunpack.c.2.s8 %v405
    %v1918 = vunpack.c.3.s8 %v398
    %v1919 = vunpack.c.3.s8 %v399
    %v1920 = vunpack.c.3.s8 %v400
    %v1921 = vunpack.c.3.s8 %v401
    %v1922 = vunpack.c.3.s8 %v402
    %v1923 = vunpack.c.3.s8 %v403
    %v1924 = vunpack.c.3.s8 %v404
    %v1925 = vunpack.c.3.s8 %v405
    %v1926 = vunpack.c.0.s8 %v406
    %v1927 = vunpack.c.0.s8 %v407
    %v1928 = vunpack.c.0.s8 %v408
    %v1929 = vunpack.c.0.s8 %v409
    %v1930 = vunpack.c.0.s8 %v410
    %v1931 = vunpack.c.0.s8 %v411
    %v1932 = vunpack.c.0.s8 %v412
    %v1933 = vunpack.c.0.s8 %v413
    %v1934 = vunpack.c.1.s8 %v406
    %v1935 = vunpack.c.1.s8 %v407
    %v1936 = vunpack.c.1.s8 %v408
    %v1937 = vunpack.c.1.s8 %v409
    %v1938 = vunpack.c.1.s8 %v410
    %v1939 = vunpack.c.1.s8 %v411
    %v1940 = vunpack.c.1.s8 %v412
    %v1941 = vunpack.c.1.s8 %v413
    %v1942 = vunpack.c.2.s8 %v406
    %v1943 = vunpack.c.2.s8 %v407
    %v1944 = vunpack.c.2.s8 %v408
    %v1945 = vunpack.c.2.s8 %v409
    %v1946 = vunpack.c.2.s8 %v410
    %v1947 = vunpack.c.2.s8 %v411
    %v1948 = vunpack.c.2.s8 %v412
    %v1949 = vunpack.c.2.s8 %v413
    %v1950 = vunpack.c.3.s8 %v406
    %v1951 = vunpack.c.3.s8 %v407
    %v1952 = vunpack.c.3.s8 %v408
    %v1953 = vunpack.c.3.s8 %v409
    %v1954 = vunpack.c.3.s8 %v410
    %v1955 = vunpack.c.3.s8 %v411
    %v1956 = vunpack.c.3.s8 %v412
    %v1957 = vunpack.c.3.s8 %v413
    %v1958 = vunpack.c.0.s8 %v414
    %v1959 = vunpack.c.0.s8 %v415
    %v1960 = vunpack.c.0.s8 %v416
    %v1961 = vunpack.c.0.s8 %v417
    %v1962 = vunpack.c.0.s8 %v418
    %v1963 = vunpack.c.0.s8 %v419
    %v1964 = vunpack.c.0.s8 %v420
    %v1965 = vunpack.c.0.s8 %v421
    %v1966 = vunpack.c.1.s8 %v414
    %v1967 = vunpack.c.1.s8 %v415
    %v1968 = vunpack.c.1.s8 %v416
    %v1969 = vunpack.c.1.s8 %v417
    %v1970 = vunpack.c.1.s8 %v418
    %v1971 = vunpack.c.1.s8 %v419
    %v1972 = vunpack.c.1.s8 %v420
    %v1973 = vunpack.c.1.s8 %v421
    %v1974 = vunpack.c.2.s8 %v414
    %v1975 = vunpack.c.2.s8 %v415
    %v1976 = vunpack.c.2.s8 %v416
    %v1977 = vunpack.c.2.s8 %v417
    %v1978 = vunpack.c.2.s8 %v418
    %v1979 = vunpack.c.2.s8 %v419
    %v1980 = vunpack.c.2.s8 %v420
    %v1981 = vunpack.c.2.s8 %v421
    %v1982 = vunpack.c.3.s8 %v414
    %v1983 = vunpack.c.3.s8 %v415
    %v1984 = vunpack.c.3.s8 %v416
    %v1985 = vunpack.c.3.s8 %v417
    %v1986 = vunpack.c.3.s8 %v418
    %v1987 = vunpack.c.3.s8 %v419
    %v1988 = vunpack.c.3.s8 %v420
    %v1989 = vunpack.c.3.s8 %v421
    %v1990 = vunpack.c.0.s8 %v422
    %v1991 = vunpack.c.0.s8 %v423
    %v1992 = vunpack.c.0.s8 %v424
    %v1993 = vunpack.c.0.s8 %v425
    %v1994 = vunpack.c.0.s8 %v426
    %v1995 = vunpack.c.0.s8 %v427
    %v1996 = vunpack.c.0.s8 %v428
    %v1997 = vunpack.c.0.s8 %v429
    %v1998 = vunpack.c.1.s8 %v422
    %v1999 = vunpack.c.1.s8 %v423
    %v2000 = vunpack.c.1.s8 %v424
    %v2001 = vunpack.c.1.s8 %v425
    %v2002 = vunpack.c.1.s8 %v426
    %v2003 = vunpack.c.1.s8 %v427
    %v2004 = vunpack.c.1.s8 %v428
    %v2005 = vunpack.c.1.s8 %v429
    %v2006 = vunpack.c.2.s8 %v422
    %v2007 = vunpack.c.2.s8 %v423
    %v2008 = vunpack.c.2.s8 %v424
    %v2009 = vunpack.c.2.s8 %v425
    %v2010 = vunpack.c.2.s8 %v426
    %v2011 = vunpack.c.2.s8 %v427
    %v2012 = vunpack.c.2.s8 %v428
    %v2013 = vunpack.c.2.s8 %v429
    %v2014 = vunpack.c.3.s8 %v422
    %v2015 = vunpack.c.3.s8 %v423
    %v2016 = vunpack.c.3.s8 %v424
    %v2017 = vunpack.c.3.s8 %v425
    %v2018 = vunpack.c.3.s8 %v426
    %v2019 = vunpack.c.3.s8 %v427
    %v2020 = vunpack.c.3.s8 %v428
    %v2021 = vunpack.c.3.s8 %v429
    %v2022 = vunpack.c.0.s8 %v430
    %v2023 = vunpack.c.0.s8 %v431
    %v2024 = vunpack.c.0.s8 %v432
    %v2025 = vunpack.c.0.s8 %v433
    %v2026 = vunpack.c.0.s8 %v434
    %v2027 = vunpack.c.0.s8 %v435
    %v2028 = vunpack.c.0.s8 %v436
    %v2029 = vunpack.c.0.s8 %v437
    %v2030 = vunpack.c.1.s8 %v430
    %v2031 = vunpack.c.1.s8 %v431
    %v2032 = vunpack.c.1.s8 %v432
    %v2033 = vunpack.c.1.s8 %v433
    %v2034 = vunpack.c.1.s8 %v434
    %v2035 = vunpack.c.1.s8 %v435
    %v2036 = vunpack.c.1.s8 %v436
    %v2037 = vunpack.c.1.s8 %v437
    %v2038 = vunpack.c.2.s8 %v430
    %v2039 = vunpack.c.2.s8 %v431
    %v2040 = vunpack.c.2.s8 %v432
    %v2041 = vunpack.c.2.s8 %v433
    %v2042 = vunpack.c.2.s8 %v434
    %v2043 = vunpack.c.2.s8 %v435
    %v2044 = vunpack.c.2.s8 %v436
    %v2045 = vunpack.c.2.s8 %v437
    %v2046 = vunpack.c.3.s8 %v430
    %v2047 = vunpack.c.3.s8 %v431
    %v2048 = vunpack.c.3.s8 %v432
    %v2049 = vunpack.c.3.s8 %v433
    %v2050 = vunpack.c.3.s8 %v434
    %v2051 = vunpack.c.3.s8 %v435
    %v2052 = vunpack.c.3.s8 %v436
    %v2053 = vunpack.c.3.s8 %v437
    %v2054 = vunpack.c.0.s8 %v438
    %v2055 = vunpack.c.0.s8 %v439
    %v2056 = vunpack.c.0.s8 %v440
    %v2057 = vunpack.c.0.s8 %v441
    %v2058 = vunpack.c.0.s8 %v442
    %v2059 = vunpack.c.0.s8 %v443
    %v2060 = vunpack.c.0.s8 %v444
    %v2061 = vunpack.c.0.s8 %v445
    %v2062 = vunpack.c.1.s8 %v438
    %v2063 = vunpack.c.1.s8 %v439
    %v2064 = vunpack.c.1.s8 %v440
    %v2065 = vunpack.c.1.s8 %v441
    %v2066 = vunpack.c.1.s8 %v442
    %v2067 = vunpack.c.1.s8 %v443
    %v2068 = vunpack.c.1.s8 %v444
    %v2069 = vunpack.c.1.s8 %v445
    %v2070 = vunpack.c.2.s8 %v438
    %v2071 = vunpack.c.2.s8 %v439
    %v2072 = vunpack.c.2.s8 %v440
    %v2073 = vunpack.c.2.s8 %v441
    %v2074 = vunpack.c.2.s8 %v442
    %v2075 = vunpack.c.2.s8 %v443
    %v2076 = vunpack.c.2.s8 %v444
    %v2077 = vunpack.c.2.s8 %v445
    %v2078 = vunpack.c.3.s8 %v438
    %v2079 = vunpack.c.3.s8 %v439
    %v2080 = vunpack.c.3.s8 %v440
    %v2081 = vunpack.c.3.s8 %v441
    %v2082 = vunpack.c.3.s8 %v442
    %v2083 = vunpack.c.3.s8 %v443
    %v2084 = vunpack.c.3.s8 %v444
    %v2085 = vunpack.c.3.s8 %v445
    %v2086 = vunpack.c.0.s8 %v446
    %v2087 = vunpack.c.0.s8 %v447
    %v2088 = vunpack.c.0.s8 %v448
    %v2089 = vunpack.c.0.s8 %v449
    %v2090 = vunpack.c.0.s8 %v450
    %v2091 = vunpack.c.0.s8 %v451
    %v2092 = vunpack.c.0.s8 %v452
    %v2093 = vunpack.c.0.s8 %v453
    %v2094 = vunpack.c.1.s8 %v446
    %v2095 = vunpack.c.1.s8 %v447
    %v2096 = vunpack.c.1.s8 %v448
    %v2097 = vunpack.c.1.s8 %v449
    %v2098 = vunpack.c.1.s8 %v450
    %v2099 = vunpack.c.1.s8 %v451
    %v2100 = vunpack.c.1.s8 %v452
    %v2101 = vunpack.c.1.s8 %v453
    %v2102 = vunpack.c.2.s8 %v446
    %v2103 = vunpack.c.2.s8 %v447
    %v2104 = vunpack.c.2.s8 %v448
    %v2105 = vunpack.c.2.s8 %v449
    %v2106 = vunpack.c.2.s8 %v450
    %v2107 = vunpack.c.2.s8 %v451
    %v2108 = vunpack.c.2.s8 %v452
    %v2109 = vunpack.c.2.s8 %v453
    %v2110 = vunpack.c.3.s8 %v446
    %v2111 = vunpack.c.3.s8 %v447
    %v2112 = vunpack.c.3.s8 %v448
    %v2113 = vunpack.c.3.s8 %v449
    %v2114 = vunpack.c.3.s8 %v450
    %v2115 = vunpack.c.3.s8 %v451
    %v2116 = vunpack.c.3.s8 %v452
    %v2117 = vunpack.c.3.s8 %v453
    %v2118 = vunpack.c.0.s8 %v454
    %v2119 = vunpack.c.0.s8 %v455
    %v2120 = vunpack.c.0.s8 %v456
    %v2121 = vunpack.c.0.s8 %v457
    %v2122 = vunpack.c.0.s8 %v458
    %v2123 = vunpack.c.0.s8 %v459
    %v2124 = vunpack.c.0.s8 %v460
    %v2125 = vunpack.c.0.s8 %v461
    %v2126 = vunpack.c.1.s8 %v454
    %v2127 = vunpack.c.1.s8 %v455
    %v2128 = vunpack.c.1.s8 %v456
    %v2129 = vunpack.c.1.s8 %v457
    %v2130 = vunpack.c.1.s8 %v458
    %v2131 = vunpack.c.1.s8 %v459
    %v2132 = vunpack.c.1.s8 %v460
    %v2133 = vunpack.c.1.s8 %v461
    %v2134 = vunpack.c.2.s8 %v454
    %v2135 = vunpack.c.2.s8 %v455
    %v2136 = vunpack.c.2.s8 %v456
    %v2137 = vunpack.c.2.s8 %v457
    %v2138 = vunpack.c.2.s8 %v458
    %v2139 = vunpack.c.2.s8 %v459
    %v2140 = vunpack.c.2.s8 %v460
    %v2141 = vunpack.c.2.s8 %v461
    %v2142 = vunpack.c.3.s8 %v454
    %v2143 = vunpack.c.3.s8 %v455
    %v2144 = vunpack.c.3.s8 %v456
    %v2145 = vunpack.c.3.s8 %v457
    %v2146 = vunpack.c.3.s8 %v458
    %v2147 = vunpack.c.3.s8 %v459
    %v2148 = vunpack.c.3.s8 %v460
    %v2149 = vunpack.c.3.s8 %v461
    %v2150 = vunpack.c.0.s8 %v462
    %v2151 = vunpack.c.0.s8 %v463
    %v2152 = vunpack.c.0.s8 %v464
    %v2153 = vunpack.c.0.s8 %v465
    %v2154 = vunpack.c.0.s8 %v466
    %v2155 = vunpack.c.0.s8 %v467
    %v2156 = vunpack.c.0.s8 %v468
    %v2157 = vunpack.c.0.s8 %v469
    %v2158 = vunpack.c.1.s8 %v462
    %v2159 = vunpack.c.1.s8 %v463
    %v2160 = vunpack.c.1.s8 %v464
    %v2161 = vunpack.c.1.s8 %v465
    %v2162 = vunpack.c.1.s8 %v466
    %v2163 = vunpack.c.1.s8 %v467
    %v2164 = vunpack.c.1.s8 %v468
    %v2165 = vunpack.c.1.s8 %v469
    %v2166 = vunpack.c.2.s8 %v462
    %v2167 = vunpack.c.2.s8 %v463
    %v2168 = vunpack.c.2.s8 %v464
    %v2169 = vunpack.c.2.s8 %v465
    %v2170 = vunpack.c.2.s8 %v466
    %v2171 = vunpack.c.2.s8 %v467
    %v2172 = vunpack.c.2.s8 %v468
    %v2173 = vunpack.c.2.s8 %v469
    %v2174 = vunpack.c.3.s8 %v462
    %v2175 = vunpack.c.3.s8 %v463
    %v2176 = vunpack.c.3.s8 %v464
    %v2177 = vunpack.c.3.s8 %v465
    %v2178 = vunpack.c.3.s8 %v466
    %v2179 = vunpack.c.3.s8 %v467
    %v2180 = vunpack.c.3.s8 %v468
    %v2181 = vunpack.c.3.s8 %v469
    %v2182 = vunpack.c.0.s8 %v470
    %v2183 = vunpack.c.0.s8 %v471
    %v2184 = vunpack.c.0.s8 %v472
    %v2185 = vunpack.c.0.s8 %v473
    %v2186 = vunpack.c.0.s8 %v474
    %v2187 = vunpack.c.0.s8 %v475
    %v2188 = vunpack.c.0.s8 %v476
    %v2189 = vunpack.c.0.s8 %v477
    %v2190 = vunpack.c.1.s8 %v470
    %v2191 = vunpack.c.1.s8 %v471
    %v2192 = vunpack.c.1.s8 %v472
    %v2193 = vunpack.c.1.s8 %v473
    %v2194 = vunpack.c.1.s8 %v474
    %v2195 = vunpack.c.1.s8 %v475
    %v2196 = vunpack.c.1.s8 %v476
    %v2197 = vunpack.c.1.s8 %v477
    %v2198 = vunpack.c.2.s8 %v470
    %v2199 = vunpack.c.2.s8 %v471
    %v2200 = vunpack.c.2.s8 %v472
    %v2201 = vunpack.c.2.s8 %v473
    %v2202 = vunpack.c.2.s8 %v474
    %v2203 = vunpack.c.2.s8 %v475
    %v2204 = vunpack.c.2.s8 %v476
    %v2205 = vunpack.c.2.s8 %v477
    %v2206 = vunpack.c.3.s8 %v470
    %v2207 = vunpack.c.3.s8 %v471
    %v2208 = vunpack.c.3.s8 %v472
    %v2209 = vunpack.c.3.s8 %v473
    %v2210 = vunpack.c.3.s8 %v474
    %v2211 = vunpack.c.3.s8 %v475
    %v2212 = vunpack.c.3.s8 %v476
    %v2213 = vunpack.c.3.s8 %v477
    %v2214 = vunpack.c.0.s8 %v478
    %v2215 = vunpack.c.0.s8 %v479
    %v2216 = vunpack.c.0.s8 %v480
    %v2217 = vunpack.c.0.s8 %v481
    %v2218 = vunpack.c.0.s8 %v482
    %v2219 = vunpack.c.0.s8 %v483
    %v2220 = vunpack.c.0.s8 %v484
    %v2221 = vunpack.c.0.s8 %v485
    %v2222 = vunpack.c.1.s8 %v478
    %v2223 = vunpack.c.1.s8 %v479
    %v2224 = vunpack.c.1.s8 %v480
    %v2225 = vunpack.c.1.s8 %v481
    %v2226 = vunpack.c.1.s8 %v482
    %v2227 = vunpack.c.1.s8 %v483
    %v2228 = vunpack.c.1.s8 %v484
    %v2229 = vunpack.c.1.s8 %v485
    %v2230 = vunpack.c.2.s8 %v478
    %v2231 = vunpack.c.2.s8 %v479
    %v2232 = vunpack.c.2.s8 %v480
    %v2233 = vunpack.c.2.s8 %v481
    %v2234 = vunpack.c.2.s8 %v482
    %v2235 = vunpack.c.2.s8 %v483
    %v2236 = vunpack.c.2.s8 %v484
    %v2237 = vunpack.c.2.s8 %v485
    %v2238 = vunpack.c.3.s8 %v478
    %v2239 = vunpack.c.3.s8 %v479
    %v2240 = vunpack.c.3.s8 %v480
    %v2241 = vunpack.c.3.s8 %v481
    %v2242 = vunpack.c.3.s8 %v482
    %v2243 = vunpack.c.3.s8 %v483
    %v2244 = vunpack.c.3.s8 %v484
    %v2245 = vunpack.c.3.s8 %v485
    %v2246 = vunpack.c.0.s8 %v486
    %v2247 = vunpack.c.0.s8 %v487
    %v2248 = vunpack.c.0.s8 %v488
    %v2249 = vunpack.c.0.s8 %v489
    %v2250 = vunpack.c.0.s8 %v490
    %v2251 = vunpack.c.0.s8 %v491
    %v2252 = vunpack.c.0.s8 %v492
    %v2253 = vunpack.c.0.s8 %v493
    %v2254 = vunpack.c.1.s8 %v486
    %v2255 = vunpack.c.1.s8 %v487
    %v2256 = vunpack.c.1.s8 %v488
    %v2257 = vunpack.c.1.s8 %v489
    %v2258 = vunpack.c.1.s8 %v490
    %v2259 = vunpack.c.1.s8 %v491
    %v2260 = vunpack.c.1.s8 %v492
    %v2261 = vunpack.c.1.s8 %v493
    %v2262 = vunpack.c.2.s8 %v486
    %v2263 = vunpack.c.2.s8 %v487
    %v2264 = vunpack.c.2.s8 %v488
    %v2265 = vunpack.c.2.s8 %v489
    %v2266 = vunpack.c.2.s8 %v490
    %v2267 = vunpack.c.2.s8 %v491
    %v2268 = vunpack.c.2.s8 %v492
    %v2269 = vunpack.c.2.s8 %v493
    %v2270 = vunpack.c.3.s8 %v486
    %v2271 = vunpack.c.3.s8 %v487
    %v2272 = vunpack.c.3.s8 %v488
    %v2273 = vunpack.c.3.s8 %v489
    %v2274 = vunpack.c.3.s8 %v490
    %v2275 = vunpack.c.3.s8 %v491
    %v2276 = vunpack.c.3.s8 %v492
    %v2277 = vunpack.c.3.s8 %v493
    %v2278 = vunpack.c.0.s8 %v494
    %v2279 = vunpack.c.0.s8 %v495
    %v2280 = vunpack.c.0.s8 %v496
    %v2281 = vunpack.c.0.s8 %v497
    %v2282 = vunpack.c.0.s8 %v498
    %v2283 = vunpack.c.0.s8 %v499
    %v2284 = vunpack.c.0.s8 %v500
    %v2285 = vunpack.c.0.s8 %v501
    %v2286 = vunpack.c.1.s8 %v494
    %v2287 = vunpack.c.1.s8 %v495
    %v2288 = vunpack.c.1.s8 %v496
    %v2289 = vunpack.c.1.s8 %v497
    %v2290 = vunpack.c.1.s8 %v498
    %v2291 = vunpack.c.1.s8 %v499
    %v2292 = vunpack.c.1.s8 %v500
    %v2293 = vunpack.c.1.s8 %v501
    %v2294 = vunpack.c.2.s8 %v494
    %v2295 = vunpack.c.2.s8 %v495
    %v2296 = vunpack.c.2.s8 %v496
    %v2297 = vunpack.c.2.s8 %v497
    %v2298 = vunpack.c.2.s8 %v498
    %v2299 = vunpack.c.2.s8 %v499
    %v2300 = vunpack.c.2.s8 %v500
    %v2301 = vunpack.c.2.s8 %v501
    %v2302 = vunpack.c.3.s8 %v494
    %v2303 = vunpack.c.3.s8 %v495
    %v2304 = vunpack.c.3.s8 %v496
    %v2305 = vunpack.c.3.s8 %v497
    %v2306 = vunpack.c.3.s8 %v498
    %v2307 = vunpack.c.3.s8 %v499
    %v2308 = vunpack.c.3.s8 %v500
    %v2309 = vunpack.c.3.s8 %v501
    %v2310 = vunpack.c.0.s8 %v502
    %v2311 = vunpack.c.0.s8 %v503
    %v2312 = vunpack.c.0.s8 %v504
    %v2313 = vunpack.c.0.s8 %v505
    %v2314 = vunpack.c.0.s8 %v506
    %v2315 = vunpack.c.0.s8 %v507
    %v2316 = vunpack.c.0.s8 %v508
    %v2317 = vunpack.c.0.s8 %v509
    %v2318 = vunpack.c.1.s8 %v502
    %v2319 = vunpack.c.1.s8 %v503
    %v2320 = vunpack.c.1.s8 %v504
    %v2321 = vunpack.c.1.s8 %v505
    %v2322 = vunpack.c.1.s8 %v506
    %v2323 = vunpack.c.1.s8 %v507
    %v2324 = vunpack.c.1.s8 %v508
    %v2325 = vunpack.c.1.s8 %v509
    %v2326 = vunpack.c.2.s8 %v502
    %v2327 = vunpack.c.2.s8 %v503
    %v2328 = vunpack.c.2.s8 %v504
    %v2329 = vunpack.c.2.s8 %v505
    %v2330 = vunpack.c.2.s8 %v506
    %v2331 = vunpack.c.2.s8 %v507
    %v2332 = vunpack.c.2.s8 %v508
    %v2333 = vunpack.c.2.s8 %v509
    %v2334 = vunpack.c.3.s8 %v502
    %v2335 = vunpack.c.3.s8 %v503
    %v2336 = vunpack.c.3.s8 %v504
    %v2337 = vunpack.c.3.s8 %v505
    %v2338 = vunpack.c.3.s8 %v506
    %v2339 = vunpack.c.3.s8 %v507
    %v2340 = vunpack.c.3.s8 %v508
    %v2341 = vunpack.c.3.s8 %v509
    %v2342 = vunpack.c.0.s8 %v510
    %v2343 = vunpack.c.0.s8 %v511
    %v2344 = vunpack.c.0.s8 %v512
    %v2345 = vunpack.c.0.s8 %v513
    %v2346 = vunpack.c.0.s8 %v514
    %v2347 = vunpack.c.0.s8 %v515
    %v2348 = vunpack.c.0.s8 %v516
    %v2349 = vunpack.c.0.s8 %v517
    %v2350 = vunpack.c.1.s8 %v510
    %v2351 = vunpack.c.1.s8 %v511
    %v2352 = vunpack.c.1.s8 %v512
    %v2353 = vunpack.c.1.s8 %v513
    %v2354 = vunpack.c.1.s8 %v514
    %v2355 = vunpack.c.1.s8 %v515
    %v2356 = vunpack.c.1.s8 %v516
    %v2357 = vunpack.c.1.s8 %v517
    %v2358 = vunpack.c.2.s8 %v510
    %v2359 = vunpack.c.2.s8 %v511
    %v2360 = vunpack.c.2.s8 %v512
    %v2361 = vunpack.c.2.s8 %v513
    %v2362 = vunpack.c.2.s8 %v514
    %v2363 = vunpack.c.2.s8 %v515
    %v2364 = vunpack.c.2.s8 %v516
    %v2365 = vunpack.c.2.s8 %v517
    %v2366 = vunpack.c.3.s8 %v510
    %v2367 = vunpack.c.3.s8 %v511
    %v2368 = vunpack.c.3.s8 %v512
    %v2369 = vunpack.c.3.s8 %v513
    %v2370 = vunpack.c.3.s8 %v514
    %v2371 = vunpack.c.3.s8 %v515
    %v2372 = vunpack.c.3.s8 %v516
    %v2373 = vunpack.c.3.s8 %v517
    %v2374 = vunpack.c.0.s8 %v518
    %v2375 = vunpack.c.0.s8 %v519
    %v2376 = vunpack.c.0.s8 %v520
    %v2377 = vunpack.c.0.s8 %v521
    %v2378 = vunpack.c.0.s8 %v522
    %v2379 = vunpack.c.0.s8 %v523
    %v2380 = vunpack.c.0.s8 %v524
    %v2381 = vunpack.c.0.s8 %v525
    %v2382 = vunpack.c.1.s8 %v518
    %v2383 = vunpack.c.1.s8 %v519
    %v2384 = vunpack.c.1.s8 %v520
    %v2385 = vunpack.c.1.s8 %v521
    %v2386 = vunpack.c.1.s8 %v522
    %v2387 = vunpack.c.1.s8 %v523
    %v2388 = vunpack.c.1.s8 %v524
    %v2389 = vunpack.c.1.s8 %v525
    %v2390 = vunpack.c.2.s8 %v518
    %v2391 = vunpack.c.2.s8 %v519
    %v2392 = vunpack.c.2.s8 %v520
    %v2393 = vunpack.c.2.s8 %v521
    %v2394 = vunpack.c.2.s8 %v522
    %v2395 = vunpack.c.2.s8 %v523
    %v2396 = vunpack.c.2.s8 %v524
    %v2397 = vunpack.c.2.s8 %v525
    %v2398 = vunpack.c.3.s8 %v518
    %v2399 = vunpack.c.3.s8 %v519
    %v2400 = vunpack.c.3.s8 %v520
    %v2401 = vunpack.c.3.s8 %v521
    %v2402 = vunpack.c.3.s8 %v522
    %v2403 = vunpack.c.3.s8 %v523
    %v2404 = vunpack.c.3.s8 %v524
    %v2405 = vunpack.c.3.s8 %v525
    %v2406 = vunpack.c.0.s8 %v526
    %v2407 = vunpack.c.0.s8 %v527
    %v2408 = vunpack.c.0.s8 %v528
    %v2409 = vunpack.c.0.s8 %v529
    %v2410 = vunpack.c.0.s8 %v530
    %v2411 = vunpack.c.0.s8 %v531
    %v2412 = vunpack.c.0.s8 %v532
    %v2413 = vunpack.c.0.s8 %v533
    %v2414 = vunpack.c.1.s8 %v526
    %v2415 = vunpack.c.1.s8 %v527
    %v2416 = vunpack.c.1.s8 %v528
    %v2417 = vunpack.c.1.s8 %v529
    %v2418 = vunpack.c.1.s8 %v530
    %v2419 = vunpack.c.1.s8 %v531
    %v2420 = vunpack.c.1.s8 %v532
    %v2421 = vunpack.c.1.s8 %v533
    %v2422 = vunpack.c.2.s8 %v526
    %v2423 = vunpack.c.2.s8 %v527
    %v2424 = vunpack.c.2.s8 %v528
    %v2425 = vunpack.c.2.s8 %v529
    %v2426 = vunpack.c.2.s8 %v530
    %v2427 = vunpack.c.2.s8 %v531
    %v2428 = vunpack.c.2.s8 %v532
    %v2429 = vunpack.c.2.s8 %v533
    %v2430 = vunpack.c.3.s8 %v526
    %v2431 = vunpack.c.3.s8 %v527
    %v2432 = vunpack.c.3.s8 %v528
    %v2433 = vunpack.c.3.s8 %v529
    %v2434 = vunpack.c.3.s8 %v530
    %v2435 = vunpack.c.3.s8 %v531
    %v2436 = vunpack.c.3.s8 %v532
    %v2437 = vunpack.c.3.s8 %v533
    %v2438 = vunpack.c.0.s8 %v534
    %v2439 = vunpack.c.0.s8 %v535
    %v2440 = vunpack.c.0.s8 %v536
    %v2441 = vunpack.c.0.s8 %v537
    %v2442 = vunpack.c.0.s8 %v538
    %v2443 = vunpack.c.0.s8 %v539
    %v2444 = vunpack.c.0.s8 %v540
    %v2445 = vunpack.c.0.s8 %v541
    %v2446 = vunpack.c.1.s8 %v534
    %v2447 = vunpack.c.1.s8 %v535
    %v2448 = vunpack.c.1.s8 %v536
    %v2449 = vunpack.c.1.s8 %v537
    %v2450 = vunpack.c.1.s8 %v538
    %v2451 = vunpack.c.1.s8 %v539
    %v2452 = vunpack.c.1.s8 %v540
    %v2453 = vunpack.c.1.s8 %v541
    %v2454 = vunpack.c.2.s8 %v534
    %v2455 = vunpack.c.2.s8 %v535
    %v2456 = vunpack.c.2.s8 %v536
    %v2457 = vunpack.c.2.s8 %v537
    %v2458 = vunpack.c.2.s8 %v538
    %v2459 = vunpack.c.2.s8 %v539
    %v2460 = vunpack.c.2.s8 %v540
    %v2461 = vunpack.c.2.s8 %v541
    %v2462 = vunpack.c.3.s8 %v534
    %v2463 = vunpack.c.3.s8 %v535
    %v2464 = vunpack.c.3.s8 %v536
    %v2465 = vunpack.c.3.s8 %v537
    %v2466 = vunpack.c.3.s8 %v538
    %v2467 = vunpack.c.3.s8 %v539
    %v2468 = vunpack.c.3.s8 %v540
    %v2469 = vunpack.c.3.s8 %v541
    %v2470 = vunpack.c.0.s8 %v542
    %v2471 = vunpack.c.0.s8 %v543
    %v2472 = vunpack.c.0.s8 %v544
    %v2473 = vunpack.c.0.s8 %v545
    %v2474 = vunpack.c.0.s8 %v546
    %v2475 = vunpack.c.0.s8 %v547
    %v2476 = vunpack.c.0.s8 %v548
    %v2477 = vunpack.c.0.s8 %v549
    %v2478 = vunpack.c.1.s8 %v542
    %v2479 = vunpack.c.1.s8 %v543
    %v2480 = vunpack.c.1.s8 %v544
    %v2481 = vunpack.c.1.s8 %v545
    %v2482 = vunpack.c.1.s8 %v546
    %v2483 = vunpack.c.1.s8 %v547
    %v2484 = vunpack.c.1.s8 %v548
    %v2485 = vunpack.c.1.s8 %v549
    %v2486 = vunpack.c.2.s8 %v542
    %v2487 = vunpack.c.2.s8 %v543
    %v2488 = vunpack.c.2.s8 %v544
    %v2489 = vunpack.c.2.s8 %v545
    %v2490 = vunpack.c.2.s8 %v546
    %v2491 = vunpack.c.2.s8 %v547
    %v2492 = vunpack.c.2.s8 %v548
    %v2493 = vunpack.c.2.s8 %v549
    %v2494 = vunpack.c.3.s8 %v542
    %v2495 = vunpack.c.3.s8 %v543
    %v2496 = vunpack.c.3.s8 %v544
    %v2497 = vunpack.c.3.s8 %v545
    %v2498 = vunpack.c.3.s8 %v546
    %v2499 = vunpack.c.3.s8 %v547
    %v2500 = vunpack.c.3.s8 %v548
    %v2501 = vunpack.c.3.s8 %v549
    %v2502 = vunpack.c.0.s8 %v550
    %v2503 = vunpack.c.0.s8 %v551
    %v2504 = vunpack.c.0.s8 %v552
    %v2505 = vunpack.c.0.s8 %v553
    %v2506 = vunpack.c.0.s8 %v554
    %v2507 = vunpack.c.0.s8 %v555
    %v2508 = vunpack.c.0.s8 %v556
    %v2509 = vunpack.c.0.s8 %v557
    %v2510 = vunpack.c.1.s8 %v550
    %v2511 = vunpack.c.1.s8 %v551
    %v2512 = vunpack.c.1.s8 %v552
    %v2513 = vunpack.c.1.s8 %v553
    %v2514 = vunpack.c.1.s8 %v554
    %v2515 = vunpack.c.1.s8 %v555
    %v2516 = vunpack.c.1.s8 %v556
    %v2517 = vunpack.c.1.s8 %v557
    %v2518 = vunpack.c.2.s8 %v550
    %v2519 = vunpack.c.2.s8 %v551
    %v2520 = vunpack.c.2.s8 %v552
    %v2521 = vunpack.c.2.s8 %v553
    %v2522 = vunpack.c.2.s8 %v554
    %v2523 = vunpack.c.2.s8 %v555
    %v2524 = vunpack.c.2.s8 %v556
    %v2525 = vunpack.c.2.s8 %v557
    %v2526 = vunpack.c.3.s8 %v550
    %v2527 = vunpack.c.3.s8 %v551
    %v2528 = vunpack.c.3.s8 %v552
    %v2529 = vunpack.c.3.s8 %v553
    %v2530 = vunpack.c.3.s8 %v554
    %v2531 = vunpack.c.3.s8 %v555
    %v2532 = vunpack.c.3.s8 %v556
    %v2533 = vunpack.c.3.s8 %v557
    %v2534 = vunpack.c.0.s8 %v558
    %v2535 = vunpack.c.0.s8 %v559
    %v2536 = vunpack.c.0.s8 %v560
    %v2537 = vunpack.c.0.s8 %v561
    %v2538 = vunpack.c.0.s8 %v562
    %v2539 = vunpack.c.0.s8 %v563
    %v2540 = vunpack.c.0.s8 %v564
    %v2541 = vunpack.c.0.s8 %v565
    %v2542 = vunpack.c.1.s8 %v558
    %v2543 = vunpack.c.1.s8 %v559
    %v2544 = vunpack.c.1.s8 %v560
    %v2545 = vunpack.c.1.s8 %v561
    %v2546 = vunpack.c.1.s8 %v562
    %v2547 = vunpack.c.1.s8 %v563
    %v2548 = vunpack.c.1.s8 %v564
    %v2549 = vunpack.c.1.s8 %v565
    %v2550 = vunpack.c.2.s8 %v558
    %v2551 = vunpack.c.2.s8 %v559
    %v2552 = vunpack.c.2.s8 %v560
    %v2553 = vunpack.c.2.s8 %v561
    %v2554 = vunpack.c.2.s8 %v562
    %v2555 = vunpack.c.2.s8 %v563
    %v2556 = vunpack.c.2.s8 %v564
    %v2557 = vunpack.c.2.s8 %v565
    %v2558 = vunpack.c.3.s8 %v558
    %v2559 = vunpack.c.3.s8 %v559
    %v2560 = vunpack.c.3.s8 %v560
    %v2561 = vunpack.c.3.s8 %v561
    %v2562 = vunpack.c.3.s8 %v562
    %v2563 = vunpack.c.3.s8 %v563
    %v2564 = vunpack.c.3.s8 %v564
    %v2565 = vunpack.c.3.s8 %v565
    %v2566 = vunpack.c.0.s8 %v566
    %v2567 = vunpack.c.0.s8 %v567
    %v2568 = vunpack.c.0.s8 %v568
    %v2569 = vunpack.c.0.s8 %v569
    %v2570 = vunpack.c.0.s8 %v570
    %v2571 = vunpack.c.0.s8 %v571
    %v2572 = vunpack.c.0.s8 %v572
    %v2573 = vunpack.c.0.s8 %v573
    %v2574 = vunpack.c.1.s8 %v566
    %v2575 = vunpack.c.1.s8 %v567
    %v2576 = vunpack.c.1.s8 %v568
    %v2577 = vunpack.c.1.s8 %v569
    %v2578 = vunpack.c.1.s8 %v570
    %v2579 = vunpack.c.1.s8 %v571
    %v2580 = vunpack.c.1.s8 %v572
    %v2581 = vunpack.c.1.s8 %v573
    %v2582 = vunpack.c.2.s8 %v566
    %v2583 = vunpack.c.2.s8 %v567
    %v2584 = vunpack.c.2.s8 %v568
    %v2585 = vunpack.c.2.s8 %v569
    %v2586 = vunpack.c.2.s8 %v570
    %v2587 = vunpack.c.2.s8 %v571
    %v2588 = vunpack.c.2.s8 %v572
    %v2589 = vunpack.c.2.s8 %v573
    %v2590 = vunpack.c.3.s8 %v566
    %v2591 = vunpack.c.3.s8 %v567
    %v2592 = vunpack.c.3.s8 %v568
    %v2593 = vunpack.c.3.s8 %v569
    %v2594 = vunpack.c.3.s8 %v570
    %v2595 = vunpack.c.3.s8 %v571
    %v2596 = vunpack.c.3.s8 %v572
    %v2597 = vunpack.c.3.s8 %v573
    %v2598 = vunpack.c.0.s8 %v574
    %v2599 = vunpack.c.0.s8 %v575
    %v2600 = vunpack.c.0.s8 %v576
    %v2601 = vunpack.c.0.s8 %v577
    %v2602 = vunpack.c.0.s8 %v578
    %v2603 = vunpack.c.0.s8 %v579
    %v2604 = vunpack.c.0.s8 %v580
    %v2605 = vunpack.c.0.s8 %v581
    %v2606 = vunpack.c.1.s8 %v574
    %v2607 = vunpack.c.1.s8 %v575
    %v2608 = vunpack.c.1.s8 %v576
    %v2609 = vunpack.c.1.s8 %v577
    %v2610 = vunpack.c.1.s8 %v578
    %v2611 = vunpack.c.1.s8 %v579
    %v2612 = vunpack.c.1.s8 %v580
    %v2613 = vunpack.c.1.s8 %v581
    %v2614 = vunpack.c.2.s8 %v574
    %v2615 = vunpack.c.2.s8 %v575
    %v2616 = vunpack.c.2.s8 %v576
    %v2617 = vunpack.c.2.s8 %v577
    %v2618 = vunpack.c.2.s8 %v578
    %v2619 = vunpack.c.2.s8 %v579
    %v2620 = vunpack.c.2.s8 %v580
    %v2621 = vunpack.c.2.s8 %v581
    %v2622 = vunpack.c.3.s8 %v574
    %v2623 = vunpack.c.3.s8 %v575
    %v2624 = vunpack.c.3.s8 %v576
    %v2625 = vunpack.c.3.s8 %v577
    %v2626 = vunpack.c.3.s8 %v578
    %v2627 = vunpack.c.3.s8 %v579
    %v2628 = vunpack.c.3.s8 %v580
    %v2629 = vunpack.c.3.s8 %v581
    %v2630 = vcvt.s32.f32 %v582
    %v2631 = vcvt.s32.f32 %v583
    %v2632 = vcvt.s32.f32 %v584
    %v2633 = vcvt.s32.f32 %v585
    %v2634 = vcvt.s32.f32 %v586
    %v2635 = vcvt.s32.f32 %v587
    %v2636 = vcvt.s32.f32 %v588
    %v2637 = vcvt.s32.f32 %v589
    %v2638 = vcvt.s32.f32 %v590
    %v2639 = vcvt.s32.f32 %v591
    %v2640 = vcvt.s32.f32 %v592
    %v2641 = vcvt.s32.f32 %v593
    %v2642 = vcvt.s32.f32 %v594
    %v2643 = vcvt.s32.f32 %v595
    %v2644 = vcvt.s32.f32 %v596
    %v2645 = vcvt.s32.f32 %v597
    %v2646 = vcvt.s32.f32 %v598
    %v2647 = vcvt.s32.f32 %v599
    %v2648 = vcvt.s32.f32 %v600
    %v2649 = vcvt.s32.f32 %v601
    %v2650 = vcvt.s32.f32 %v602
    %v2651 = vcvt.s32.f32 %v603
    %v2652 = vcvt.s32.f32 %v604
    %v2653 = vcvt.s32.f32 %v605
    %v2654 = vcvt.s32.f32 %v606
    %v2655 = vcvt.s32.f32 %v607
    %v2656 = vcvt.s32.f32 %v608
    %v2657 = vcvt.s32.f32 %v609
    %v2658 = vcvt.s32.f32 %v610
    %v2659 = vcvt.s32.f32 %v611
    %v2660 = vcvt.s32.f32 %v612
    %v2661 = vcvt.s32.f32 %v613
    %v2662 = vcvt.s32.f32 %v614
    %v2663 = vcvt.s32.f32 %v615
    %v2664 = vcvt.s32.f32 %v616
    %v2665 = vcvt.s32.f32 %v617
    %v2666 = vcvt.s32.f32 %v618
    %v2667 = vcvt.s32.f32 %v619
    %v2668 = vcvt.s32.f32 %v620
    %v2669 = vcvt.s32.f32 %v621
    %v2670 = vcvt.s32.f32 %v622
    %v2671 = vcvt.s32.f32 %v623
    %v2672 = vcvt.s32.f32 %v624
    %v2673 = vcvt.s32.f32 %v625
    %v2674 = vcvt.s32.f32 %v626
    %v2675 = vcvt.s32.f32 %v627
    %v2676 = vcvt.s32.f32 %v628
    %v2677 = vcvt.s32.f32 %v629
    %v2678 = vcvt.s32.f32 %v630
    %v2679 = vcvt.s32.f32 %v631
    %v2680 = vcvt.s32.f32 %v632
    %v2681 = vcvt.s32.f32 %v633
    %v2682 = vcvt.s32.f32 %v634
    %v2683 = vcvt.s32.f32 %v635
    %v2684 = vcvt.s32.f32 %v636
    %v2685 = vcvt.s32.f32 %v637
    %v2686 = vcvt.s32.f32 %v638
    %v2687 = vcvt.s32.f32 %v639
    %v2688 = vcvt.s32.f32 %v640
    %v2689 = vcvt.s32.f32 %v641
    %v2690 = vcvt.s32.f32 %v642
    %v2691 = vcvt.s32.f32 %v643
    %v2692 = vcvt.s32.f32 %v644
    %v2693 = vcvt.s32.f32 %v645
    %v2694 = vcvt.s32.f32 %v646
    %v2695 = vcvt.s32.f32 %v647
    %v2696 = vcvt.s32.f32 %v648
    %v2697 = vcvt.s32.f32 %v649
    %v2698 = vcvt.s32.f32 %v650
    %v2699 = vcvt.s32.f32 %v651
    %v2700 = vcvt.s32.f32 %v652
    %v2701 = vcvt.s32.f32 %v653
    %v2702 = vcvt.s32.f32 %v654
    %v2703 = vcvt.s32.f32 %v655
    %v2704 = vcvt.s32.f32 %v656
    %v2705 = vcvt.s32.f32 %v657
    %v2706 = vcvt.s32.f32 %v658
    %v2707 = vcvt.s32.f32 %v659
    %v2708 = vcvt.s32.f32 %v660
    %v2709 = vcvt.s32.f32 %v661
    %v2710 = vcvt.s32.f32 %v662
    %v2711 = vcvt.s32.f32 %v663
    %v2712 = vcvt.s32.f32 %v664
    %v2713 = vcvt.s32.f32 %v665
    %v2714 = vcvt.s32.f32 %v666
    %v2715 = vcvt.s32.f32 %v667
    %v2716 = vcvt.s32.f32 %v668
    %v2717 = vcvt.s32.f32 %v669
    %v2718 = vcvt.s32.f32 %v670
    %v2719 = vcvt.s32.f32 %v671
    %v2720 = vcvt.s32.f32 %v672
    %v2721 = vcvt.s32.f32 %v673
    %v2722 = vcvt.s32.f32 %v674
    %v2723 = vcvt.s32.f32 %v675
    %v2724 = vcvt.s32.f32 %v676
    %v2725 = vcvt.s32.f32 %v677
    %v2726 = vcvt.s32.f32 %v678
    %v2727 = vcvt.s32.f32 %v679
    %v2728 = vcvt.s32.f32 %v680
    %v2729 = vcvt.s32.f32 %v681
    %v2730 = vcvt.s32.f32 %v682
    %v2731 = vcvt.s32.f32 %v683
    %v2732 = vcvt.s32.f32 %v684
    %v2733 = vcvt.s32.f32 %v685
    %v2734 = vcvt.s32.f32 %v686
    %v2735 = vcvt.s32.f32 %v687
    %v2736 = vcvt.s32.f32 %v688
    %v2737 = vcvt.s32.f32 %v689
    %v2738 = vcvt.s32.f32 %v690
    %v2739 = vcvt.s32.f32 %v691
    %v2740 = vcvt.s32.f32 %v692
    %v2741 = vcvt.s32.f32 %v693
    %v2742 = vcvt.s32.f32 %v694
    %v2743 = vcvt.s32.f32 %v695
    %v2744 = vcvt.s32.f32 %v696
    %v2745 = vcvt.s32.f32 %v697
    %v2746 = vcvt.s32.f32 %v698
    %v2747 = vcvt.s32.f32 %v699
    %v2748 = vcvt.s32.f32 %v700
    %v2749 = vcvt.s32.f32 %v701
    %v2750 = vcvt.s32.f32 %v702
    %v2751 = vcvt.s32.f32 %v703
    %v2752 = vcvt.s32.f32 %v704
    %v2753 = vcvt.s32.f32 %v705
    %v2754 = vcvt.s32.f32 %v706
    %v2755 = vcvt.s32.f32 %v707
    %v2756 = vcvt.s32.f32 %v708
    %v2757 = vcvt.s32.f32 %v709
    %v2758 = vcvt.s32.f32 %v710
    %v2759 = vcvt.s32.f32 %v711
    %v2760 = vcvt.s32.f32 %v712
    %v2761 = vcvt.s32.f32 %v713
    %v2762 = vcvt.s32.f32 %v714
    %v2763 = vcvt.s32.f32 %v715
    %v2764 = vcvt.s32.f32 %v716
    %v2765 = vcvt.s32.f32 %v717
    %v2766 = vcvt.s32.f32 %v718
    %v2767 = vcvt.s32.f32 %v719
    %v2768 = vcvt.s32.f32 %v720
    %v2769 = vcvt.s32.f32 %v721
    %v2770 = vcvt.s32.f32 %v722
    %v2771 = vcvt.s32.f32 %v723
    %v2772 = vcvt.s32.f32 %v724
    %v2773 = vcvt.s32.f32 %v725
    %v2774 = vcvt.s32.f32 %v726
    %v2775 = vcvt.s32.f32 %v727
    %v2776 = vcvt.s32.f32 %v728
    %v2777 = vcvt.s32.f32 %v729
    %v2778 = vcvt.s32.f32 %v730
    %v2779 = vcvt.s32.f32 %v731
    %v2780 = vcvt.s32.f32 %v732
    %v2781 = vcvt.s32.f32 %v733
    %v2782 = vcvt.s32.f32 %v734
    %v2783 = vcvt.s32.f32 %v735
    %v2784 = vcvt.s32.f32 %v736
    %v2785 = vcvt.s32.f32 %v737
    %v2786 = vcvt.s32.f32 %v738
    %v2787 = vcvt.s32.f32 %v739
    %v2788 = vcvt.s32.f32 %v740
    %v2789 = vcvt.s32.f32 %v741
    %v2790 = vcvt.s32.f32 %v742
    %v2791 = vcvt.s32.f32 %v743
    %v2792 = vcvt.s32.f32 %v744
    %v2793 = vcvt.s32.f32 %v745
    %v2794 = vcvt.s32.f32 %v746
    %v2795 = vcvt.s32.f32 %v747
    %v2796 = vcvt.s32.f32 %v748
    %v2797 = vcvt.s32.f32 %v749
    %v2798 = vcvt.s32.f32 %v750
    %v2799 = vcvt.s32.f32 %v751
    %v2800 = vcvt.s32.f32 %v752
    %v2801 = vcvt.s32.f32 %v753
    %v2802 = vcvt.s32.f32 %v754
    %v2803 = vcvt.s32.f32 %v755
    %v2804 = vcvt.s32.f32 %v756
    %v2805 = vcvt.s32.f32 %v757
    %v2806 = vcvt.s32.f32 %v758
    %v2807 = vcvt.s32.f32 %v759
    %v2808 = vcvt.s32.f32 %v760
    %v2809 = vcvt.s32.f32 %v761
    %v2810 = vcvt.s32.f32 %v762
    %v2811 = vcvt.s32.f32 %v763
    %v2812 = vcvt.s32.f32 %v764
    %v2813 = vcvt.s32.f32 %v765
    %v2814 = vcvt.s32.f32 %v766
    %v2815 = vcvt.s32.f32 %v767
    %v2816 = vcvt.s32.f32 %v768
    %v2817 = vcvt.s32.f32 %v769
    %v2818 = vcvt.s32.f32 %v770
    %v2819 = vcvt.s32.f32 %v771
    %v2820 = vcvt.s32.f32 %v772
    %v2821 = vcvt.s32.f32 %v773
    %v2822 = vcvt.s32.f32 %v774
    %v2823 = vcvt.s32.f32 %v775
    %v2824 = vcvt.s32.f32 %v776
    %v2825 = vcvt.s32.f32 %v777
    %v2826 = vcvt.s32.f32 %v778
    %v2827 = vcvt.s32.f32 %v779
    %v2828 = vcvt.s32.f32 %v780
    %v2829 = vcvt.s32.f32 %v781
    %v2830 = vcvt.s32.f32 %v782
    %v2831 = vcvt.s32.f32 %v783
    %v2832 = vcvt.s32.f32 %v784
    %v2833 = vcvt.s32.f32 %v785
    %v2834 = vcvt.s32.f32 %v786
    %v2835 = vcvt.s32.f32 %v787
    %v2836 = vcvt.s32.f32 %v788
    %v2837 = vcvt.s32.f32 %v789
    %v2838 = vcvt.s32.f32 %v790
    %v2839 = vcvt.s32.f32 %v791
    %v2840 = vcvt.s32.f32 %v792
    %v2841 = vcvt.s32.f32 %v793
    %v2842 = vcvt.s32.f32 %v794
    %v2843 = vcvt.s32.f32 %v795
    %v2844 = vcvt.s32.f32 %v796
    %v2845 = vcvt.s32.f32 %v797
    %v2846 = vcvt.s32.f32 %v798
    %v2847 = vcvt.s32.f32 %v799
    %v2848 = vcvt.s32.f32 %v800
    %v2849 = vcvt.s32.f32 %v801
    %v2850 = vcvt.s32.f32 %v802
    %v2851 = vcvt.s32.f32 %v803
    %v2852 = vcvt.s32.f32 %v804
    %v2853 = vcvt.s32.f32 %v805
    %v2854 = vcvt.s32.f32 %v806
    %v2855 = vcvt.s32.f32 %v807
    %v2856 = vcvt.s32.f32 %v808
    %v2857 = vcvt.s32.f32 %v809
    %v2858 = vcvt.s32.f32 %v810
    %v2859 = vcvt.s32.f32 %v811
    %v2860 = vcvt.s32.f32 %v812
    %v2861 = vcvt.s32.f32 %v813
    %v2862 = vcvt.s32.f32 %v814
    %v2863 = vcvt.s32.f32 %v815
    %v2864 = vcvt.s32.f32 %v816
    %v2865 = vcvt.s32.f32 %v817
    %v2866 = vcvt.s32.f32 %v818
    %v2867 = vcvt.s32.f32 %v819
    %v2868 = vcvt.s32.f32 %v820
    %v2869 = vcvt.s32.f32 %v821
    %v2870 = vcvt.s32.f32 %v822
    %v2871 = vcvt.s32.f32 %v823
    %v2872 = vcvt.s32.f32 %v824
    %v2873 = vcvt.s32.f32 %v825
    %v2874 = vcvt.s32.f32 %v826
    %v2875 = vcvt.s32.f32 %v827
    %v2876 = vcvt.s32.f32 %v828
    %v2877 = vcvt.s32.f32 %v829
    %v2878 = vcvt.s32.f32 %v830
    %v2879 = vcvt.s32.f32 %v831
    %v2880 = vcvt.s32.f32 %v832
    %v2881 = vcvt.s32.f32 %v833
    %v2882 = vcvt.s32.f32 %v834
    %v2883 = vcvt.s32.f32 %v835
    %v2884 = vcvt.s32.f32 %v836
    %v2885 = vcvt.s32.f32 %v837
    %v2886 = vcvt.s32.f32 %v838
    %v2887 = vcvt.s32.f32 %v839
    %v2888 = vcvt.s32.f32 %v840
    %v2889 = vcvt.s32.f32 %v841
    %v2890 = vcvt.s32.f32 %v842
    %v2891 = vcvt.s32.f32 %v843
    %v2892 = vcvt.s32.f32 %v844
    %v2893 = vcvt.s32.f32 %v845
    %v2894 = vcvt.s32.f32 %v846
    %v2895 = vcvt.s32.f32 %v847
    %v2896 = vcvt.s32.f32 %v848
    %v2897 = vcvt.s32.f32 %v849
    %v2898 = vcvt.s32.f32 %v850
    %v2899 = vcvt.s32.f32 %v851
    %v2900 = vcvt.s32.f32 %v852
    %v2901 = vcvt.s32.f32 %v853
    %v2902 = vcvt.s32.f32 %v854
    %v2903 = vcvt.s32.f32 %v855
    %v2904 = vcvt.s32.f32 %v856
    %v2905 = vcvt.s32.f32 %v857
    %v2906 = vcvt.s32.f32 %v858
    %v2907 = vcvt.s32.f32 %v859
    %v2908 = vcvt.s32.f32 %v860
    %v2909 = vcvt.s32.f32 %v861
    %v2910 = vcvt.s32.f32 %v862
    %v2911 = vcvt.s32.f32 %v863
    %v2912 = vcvt.s32.f32 %v864
    %v2913 = vcvt.s32.f32 %v865
    %v2914 = vcvt.s32.f32 %v866
    %v2915 = vcvt.s32.f32 %v867
    %v2916 = vcvt.s32.f32 %v868
    %v2917 = vcvt.s32.f32 %v869
    %v2918 = vcvt.s32.f32 %v870
    %v2919 = vcvt.s32.f32 %v871
    %v2920 = vcvt.s32.f32 %v872
    %v2921 = vcvt.s32.f32 %v873
    %v2922 = vcvt.s32.f32 %v874
    %v2923 = vcvt.s32.f32 %v875
    %v2924 = vcvt.s32.f32 %v876
    %v2925 = vcvt.s32.f32 %v877
    %v2926 = vcvt.s32.f32 %v878
    %v2927 = vcvt.s32.f32 %v879
    %v2928 = vcvt.s32.f32 %v880
    %v2929 = vcvt.s32.f32 %v881
    %v2930 = vcvt.s32.f32 %v882
    %v2931 = vcvt.s32.f32 %v883
    %v2932 = vcvt.s32.f32 %v884
    %v2933 = vcvt.s32.f32 %v885
    %v2934 = vcvt.s32.f32 %v886
    %v2935 = vcvt.s32.f32 %v887
    %v2936 = vcvt.s32.f32 %v888
    %v2937 = vcvt.s32.f32 %v889
    %v2938 = vcvt.s32.f32 %v890
    %v2939 = vcvt.s32.f32 %v891
    %v2940 = vcvt.s32.f32 %v892
    %v2941 = vcvt.s32.f32 %v893
    %v2942 = vcvt.s32.f32 %v894
    %v2943 = vcvt.s32.f32 %v895
    %v2944 = vcvt.s32.f32 %v896
    %v2945 = vcvt.s32.f32 %v897
    %v2946 = vcvt.s32.f32 %v898
    %v2947 = vcvt.s32.f32 %v899
    %v2948 = vcvt.s32.f32 %v900
    %v2949 = vcvt.s32.f32 %v901
    %v2950 = vcvt.s32.f32 %v902
    %v2951 = vcvt.s32.f32 %v903
    %v2952 = vcvt.s32.f32 %v904
    %v2953 = vcvt.s32.f32 %v905
    %v2954 = vcvt.s32.f32 %v906
    %v2955 = vcvt.s32.f32 %v907
    %v2956 = vcvt.s32.f32 %v908
    %v2957 = vcvt.s32.f32 %v909
    %v2958 = vcvt.s32.f32 %v910
    %v2959 = vcvt.s32.f32 %v911
    %v2960 = vcvt.s32.f32 %v912
    %v2961 = vcvt.s32.f32 %v913
    %v2962 = vcvt.s32.f32 %v914
    %v2963 = vcvt.s32.f32 %v915
    %v2964 = vcvt.s32.f32 %v916
    %v2965 = vcvt.s32.f32 %v917
    %v2966 = vcvt.s32.f32 %v918
    %v2967 = vcvt.s32.f32 %v919
    %v2968 = vcvt.s32.f32 %v920
    %v2969 = vcvt.s32.f32 %v921
    %v2970 = vcvt.s32.f32 %v922
    %v2971 = vcvt.s32.f32 %v923
    %v2972 = vcvt.s32.f32 %v924
    %v2973 = vcvt.s32.f32 %v925
    %v2974 = vcvt.s32.f32 %v926
    %v2975 = vcvt.s32.f32 %v927
    %v2976 = vcvt.s32.f32 %v928
    %v2977 = vcvt.s32.f32 %v929
    %v2978 = vcvt.s32.f32 %v930
    %v2979 = vcvt.s32.f32 %v931
    %v2980 = vcvt.s32.f32 %v932
    %v2981 = vcvt.s32.f32 %v933
    %v2982 = vcvt.s32.f32 %v934
    %v2983 = vcvt.s32.f32 %v935
    %v2984 = vcvt.s32.f32 %v936
    %v2985 = vcvt.s32.f32 %v937
    %v2986 = vcvt.s32.f32 %v938
    %v2987 = vcvt.s32.f32 %v939
    %v2988 = vcvt.s32.f32 %v940
    %v2989 = vcvt.s32.f32 %v941
    %v2990 = vcvt.s32.f32 %v942
    %v2991 = vcvt.s32.f32 %v943
    %v2992 = vcvt.s32.f32 %v944
    %v2993 = vcvt.s32.f32 %v945
    %v2994 = vcvt.s32.f32 %v946
    %v2995 = vcvt.s32.f32 %v947
    %v2996 = vcvt.s32.f32 %v948
    %v2997 = vcvt.s32.f32 %v949
    %v2998 = vcvt.s32.f32 %v950
    %v2999 = vcvt.s32.f32 %v951
    %v3000 = vcvt.s32.f32 %v952
    %v3001 = vcvt.s32.f32 %v953
    %v3002 = vcvt.s32.f32 %v954
    %v3003 = vcvt.s32.f32 %v955
    %v3004 = vcvt.s32.f32 %v956
    %v3005 = vcvt.s32.f32 %v957
    %v3006 = vcvt.s32.f32 %v958
    %v3007 = vcvt.s32.f32 %v959
    %v3008 = vcvt.s32.f32 %v960
    %v3009 = vcvt.s32.f32 %v961
    %v3010 = vcvt.s32.f32 %v962
    %v3011 = vcvt.s32.f32 %v963
    %v3012 = vcvt.s32.f32 %v964
    %v3013 = vcvt.s32.f32 %v965
    %v3014 = vcvt.s32.f32 %v966
    %v3015 = vcvt.s32.f32 %v967
    %v3016 = vcvt.s32.f32 %v968
    %v3017 = vcvt.s32.f32 %v969
    %v3018 = vcvt.s32.f32 %v970
    %v3019 = vcvt.s32.f32 %v971
    %v3020 = vcvt.s32.f32 %v972
    %v3021 = vcvt.s32.f32 %v973
    %v3022 = vcvt.s32.f32 %v974
    %v3023 = vcvt.s32.f32 %v975
    %v3024 = vcvt.s32.f32 %v976
    %v3025 = vcvt.s32.f32 %v977
    %v3026 = vcvt.s32.f32 %v978
    %v3027 = vcvt.s32.f32 %v979
    %v3028 = vcvt.s32.f32 %v980
    %v3029 = vcvt.s32.f32 %v981
    %v3030 = vcvt.s32.f32 %v982
    %v3031 = vcvt.s32.f32 %v983
    %v3032 = vcvt.s32.f32 %v984
    %v3033 = vcvt.s32.f32 %v985
    %v3034 = vcvt.s32.f32 %v986
    %v3035 = vcvt.s32.f32 %v987
    %v3036 = vcvt.s32.f32 %v988
    %v3037 = vcvt.s32.f32 %v989
    %v3038 = vcvt.s32.f32 %v990
    %v3039 = vcvt.s32.f32 %v991
    %v3040 = vcvt.s32.f32 %v992
    %v3041 = vcvt.s32.f32 %v993
    %v3042 = vcvt.s32.f32 %v994
    %v3043 = vcvt.s32.f32 %v995
    %v3044 = vcvt.s32.f32 %v996
    %v3045 = vcvt.s32.f32 %v997
    %v3046 = vcvt.s32.f32 %v998
    %v3047 = vcvt.s32.f32 %v999
    %v3048 = vcvt.s32.f32 %v1000
    %v3049 = vcvt.s32.f32 %v1001
    %v3050 = vcvt.s32.f32 %v1002
    %v3051 = vcvt.s32.f32 %v1003
    %v3052 = vcvt.s32.f32 %v1004
    %v3053 = vcvt.s32.f32 %v1005
    %v3054 = vcvt.s32.f32 %v1006
    %v3055 = vcvt.s32.f32 %v1007
    %v3056 = vcvt.s32.f32 %v1008
    %v3057 = vcvt.s32.f32 %v1009
    %v3058 = vcvt.s32.f32 %v1010
    %v3059 = vcvt.s32.f32 %v1011
    %v3060 = vcvt.s32.f32 %v1012
    %v3061 = vcvt.s32.f32 %v1013
    %v3062 = vcvt.s32.f32 %v1014
    %v3063 = vcvt.s32.f32 %v1015
    %v3064 = vcvt.s32.f32 %v1016
    %v3065 = vcvt.s32.f32 %v1017
    %v3066 = vcvt.s32.f32 %v1018
    %v3067 = vcvt.s32.f32 %v1019
    %v3068 = vcvt.s32.f32 %v1020
    %v3069 = vcvt.s32.f32 %v1021
    %v3070 = vcvt.s32.f32 %v1022
    %v3071 = vcvt.s32.f32 %v1023
    %v3072 = vcvt.s32.f32 %v1024
    %v3073 = vcvt.s32.f32 %v1025
    %v3074 = vcvt.s32.f32 %v1026
    %v3075 = vcvt.s32.f32 %v1027
    %v3076 = vcvt.s32.f32 %v1028
    %v3077 = vcvt.s32.f32 %v1029
    %v3078 = vcvt.s32.f32 %v1030
    %v3079 = vcvt.s32.f32 %v1031
    %v3080 = vcvt.s32.f32 %v1032
    %v3081 = vcvt.s32.f32 %v1033
    %v3082 = vcvt.s32.f32 %v1034
    %v3083 = vcvt.s32.f32 %v1035
    %v3084 = vcvt.s32.f32 %v1036
    %v3085 = vcvt.s32.f32 %v1037
    %v3086 = vcvt.s32.f32 %v1038
    %v3087 = vcvt.s32.f32 %v1039
    %v3088 = vcvt.s32.f32 %v1040
    %v3089 = vcvt.s32.f32 %v1041
    %v3090 = vcvt.s32.f32 %v1042
    %v3091 = vcvt.s32.f32 %v1043
    %v3092 = vcvt.s32.f32 %v1044
    %v3093 = vcvt.s32.f32 %v1045
    %v3094 = vcvt.s32.f32 %v1046
    %v3095 = vcvt.s32.f32 %v1047
    %v3096 = vcvt.s32.f32 %v1048
    %v3097 = vcvt.s32.f32 %v1049
    %v3098 = vcvt.s32.f32 %v1050
    %v3099 = vcvt.s32.f32 %v1051
    %v3100 = vcvt.s32.f32 %v1052
    %v3101 = vcvt.s32.f32 %v1053
    %v3102 = vcvt.s32.f32 %v1054
    %v3103 = vcvt.s32.f32 %v1055
    %v3104 = vcvt.s32.f32 %v1056
    %v3105 = vcvt.s32.f32 %v1057
    %v3106 = vcvt.s32.f32 %v1058
    %v3107 = vcvt.s32.f32 %v1059
    %v3108 = vcvt.s32.f32 %v1060
    %v3109 = vcvt.s32.f32 %v1061
    %v3110 = vcvt.s32.f32 %v1062
    %v3111 = vcvt.s32.f32 %v1063
    %v3112 = vcvt.s32.f32 %v1064
    %v3113 = vcvt.s32.f32 %v1065
    %v3114 = vcvt.s32.f32 %v1066
    %v3115 = vcvt.s32.f32 %v1067
    %v3116 = vcvt.s32.f32 %v1068
    %v3117 = vcvt.s32.f32 %v1069
    %v3118 = vcvt.s32.f32 %v1070
    %v3119 = vcvt.s32.f32 %v1071
    %v3120 = vcvt.s32.f32 %v1072
    %v3121 = vcvt.s32.f32 %v1073
    %v3122 = vcvt.s32.f32 %v1074
    %v3123 = vcvt.s32.f32 %v1075
    %v3124 = vcvt.s32.f32 %v1076
    %v3125 = vcvt.s32.f32 %v1077
    %v3126 = vcvt.s32.f32 %v1078
    %v3127 = vcvt.s32.f32 %v1079
    %v3128 = vcvt.s32.f32 %v1080
    %v3129 = vcvt.s32.f32 %v1081
    %v3130 = vcvt.s32.f32 %v1082
    %v3131 = vcvt.s32.f32 %v1083
    %v3132 = vcvt.s32.f32 %v1084
    %v3133 = vcvt.s32.f32 %v1085
    %v3134 = vcvt.s32.f32 %v1086
    %v3135 = vcvt.s32.f32 %v1087
    %v3136 = vcvt.s32.f32 %v1088
    %v3137 = vcvt.s32.f32 %v1089
    %v3138 = vcvt.s32.f32 %v1090
    %v3139 = vcvt.s32.f32 %v1091
    %v3140 = vcvt.s32.f32 %v1092
    %v3141 = vcvt.s32.f32 %v1093
    %v3142 = vcvt.s32.f32 %v1094
    %v3143 = vcvt.s32.f32 %v1095
    %v3144 = vcvt.s32.f32 %v1096
    %v3145 = vcvt.s32.f32 %v1097
    %v3146 = vcvt.s32.f32 %v1098
    %v3147 = vcvt.s32.f32 %v1099
    %v3148 = vcvt.s32.f32 %v1100
    %v3149 = vcvt.s32.f32 %v1101
    %v3150 = vcvt.s32.f32 %v1102
    %v3151 = vcvt.s32.f32 %v1103
    %v3152 = vcvt.s32.f32 %v1104
    %v3153 = vcvt.s32.f32 %v1105
    %v3154 = vcvt.s32.f32 %v1106
    %v3155 = vcvt.s32.f32 %v1107
    %v3156 = vcvt.s32.f32 %v1108
    %v3157 = vcvt.s32.f32 %v1109
    %v3158 = vcvt.s32.f32 %v1110
    %v3159 = vcvt.s32.f32 %v1111
    %v3160 = vcvt.s32.f32 %v1112
    %v3161 = vcvt.s32.f32 %v1113
    %v3162 = vcvt.s32.f32 %v1114
    %v3163 = vcvt.s32.f32 %v1115
    %v3164 = vcvt.s32.f32 %v1116
    %v3165 = vcvt.s32.f32 %v1117
    %v3166 = vcvt.s32.f32 %v1118
    %v3167 = vcvt.s32.f32 %v1119
    %v3168 = vcvt.s32.f32 %v1120
    %v3169 = vcvt.s32.f32 %v1121
    %v3170 = vcvt.s32.f32 %v1122
    %v3171 = vcvt.s32.f32 %v1123
    %v3172 = vcvt.s32.f32 %v1124
    %v3173 = vcvt.s32.f32 %v1125
    %v3174 = vcvt.s32.f32 %v1126
    %v3175 = vcvt.s32.f32 %v1127
    %v3176 = vcvt.s32.f32 %v1128
    %v3177 = vcvt.s32.f32 %v1129
    %v3178 = vcvt.s32.f32 %v1130
    %v3179 = vcvt.s32.f32 %v1131
    %v3180 = vcvt.s32.f32 %v1132
    %v3181 = vcvt.s32.f32 %v1133
    %v3182 = vcvt.s32.f32 %v1134
    %v3183 = vcvt.s32.f32 %v1135
    %v3184 = vcvt.s32.f32 %v1136
    %v3185 = vcvt.s32.f32 %v1137
    %v3186 = vcvt.s32.f32 %v1138
    %v3187 = vcvt.s32.f32 %v1139
    %v3188 = vcvt.s32.f32 %v1140
    %v3189 = vcvt.s32.f32 %v1141
    %v3190 = vcvt.s32.f32 %v1142
    %v3191 = vcvt.s32.f32 %v1143
    %v3192 = vcvt.s32.f32 %v1144
    %v3193 = vcvt.s32.f32 %v1145
    %v3194 = vcvt.s32.f32 %v1146
    %v3195 = vcvt.s32.f32 %v1147
    %v3196 = vcvt.s32.f32 %v1148
    %v3197 = vcvt.s32.f32 %v1149
    %v3198 = vcvt.s32.f32 %v1150
    %v3199 = vcvt.s32.f32 %v1151
    %v3200 = vcvt.s32.f32 %v1152
    %v3201 = vcvt.s32.f32 %v1153
    %v3202 = vcvt.s32.f32 %v1154
    %v3203 = vcvt.s32.f32 %v1155
    %v3204 = vcvt.s32.f32 %v1156
    %v3205 = vcvt.s32.f32 %v1157
    %v3206 = vcvt.s32.f32 %v1158
    %v3207 = vcvt.s32.f32 %v1159
    %v3208 = vcvt.s32.f32 %v1160
    %v3209 = vcvt.s32.f32 %v1161
    %v3210 = vcvt.s32.f32 %v1162
    %v3211 = vcvt.s32.f32 %v1163
    %v3212 = vcvt.s32.f32 %v1164
    %v3213 = vcvt.s32.f32 %v1165
    %v3214 = vcvt.s32.f32 %v1166
    %v3215 = vcvt.s32.f32 %v1167
    %v3216 = vcvt.s32.f32 %v1168
    %v3217 = vcvt.s32.f32 %v1169
    %v3218 = vcvt.s32.f32 %v1170
    %v3219 = vcvt.s32.f32 %v1171
    %v3220 = vcvt.s32.f32 %v1172
    %v3221 = vcvt.s32.f32 %v1173
    %v3222 = vcvt.s32.f32 %v1174
    %v3223 = vcvt.s32.f32 %v1175
    %v3224 = vcvt.s32.f32 %v1176
    %v3225 = vcvt.s32.f32 %v1177
    %v3226 = vcvt.s32.f32 %v1178
    %v3227 = vcvt.s32.f32 %v1179
    %v3228 = vcvt.s32.f32 %v1180
    %v3229 = vcvt.s32.f32 %v1181
    %v3230 = vcvt.s32.f32 %v1182
    %v3231 = vcvt.s32.f32 %v1183
    %v3232 = vcvt.s32.f32 %v1184
    %v3233 = vcvt.s32.f32 %v1185
    %v3234 = vcvt.s32.f32 %v1186
    %v3235 = vcvt.s32.f32 %v1187
    %v3236 = vcvt.s32.f32 %v1188
    %v3237 = vcvt.s32.f32 %v1189
    %v3238 = vcvt.s32.f32 %v1190
    %v3239 = vcvt.s32.f32 %v1191
    %v3240 = vcvt.s32.f32 %v1192
    %v3241 = vcvt.s32.f32 %v1193
    %v3242 = vcvt.s32.f32 %v1194
    %v3243 = vcvt.s32.f32 %v1195
    %v3244 = vcvt.s32.f32 %v1196
    %v3245 = vcvt.s32.f32 %v1197
    %v3246 = vcvt.s32.f32 %v1198
    %v3247 = vcvt.s32.f32 %v1199
    %v3248 = vcvt.s32.f32 %v1200
    %v3249 = vcvt.s32.f32 %v1201
    %v3250 = vcvt.s32.f32 %v1202
    %v3251 = vcvt.s32.f32 %v1203
    %v3252 = vcvt.s32.f32 %v1204
    %v3253 = vcvt.s32.f32 %v1205
    %v3254 = vcvt.s32.f32 %v1206
    %v3255 = vcvt.s32.f32 %v1207
    %v3256 = vcvt.s32.f32 %v1208
    %v3257 = vcvt.s32.f32 %v1209
    %v3258 = vcvt.s32.f32 %v1210
    %v3259 = vcvt.s32.f32 %v1211
    %v3260 = vcvt.s32.f32 %v1212
    %v3261 = vcvt.s32.f32 %v1213
    %v3262 = vcvt.s32.f32 %v1214
    %v3263 = vcvt.s32.f32 %v1215
    %v3264 = vcvt.s32.f32 %v1216
    %v3265 = vcvt.s32.f32 %v1217
    %v3266 = vcvt.s32.f32 %v1218
    %v3267 = vcvt.s32.f32 %v1219
    %v3268 = vcvt.s32.f32 %v1220
    %v3269 = vcvt.s32.f32 %v1221
    %v3270 = vcvt.s32.f32 %v1222
    %v3271 = vcvt.s32.f32 %v1223
    %v3272 = vcvt.s32.f32 %v1224
    %v3273 = vcvt.s32.f32 %v1225
    %v3274 = vcvt.s32.f32 %v1226
    %v3275 = vcvt.s32.f32 %v1227
    %v3276 = vcvt.s32.f32 %v1228
    %v3277 = vcvt.s32.f32 %v1229
    %v3278 = vcvt.s32.f32 %v1230
    %v3279 = vcvt.s32.f32 %v1231
    %v3280 = vcvt.s32.f32 %v1232
    %v3281 = vcvt.s32.f32 %v1233
    %v3282 = vcvt.s32.f32 %v1234
    %v3283 = vcvt.s32.f32 %v1235
    %v3284 = vcvt.s32.f32 %v1236
    %v3285 = vcvt.s32.f32 %v1237
    %v3286 = vcvt.s32.f32 %v1238
    %v3287 = vcvt.s32.f32 %v1239
    %v3288 = vcvt.s32.f32 %v1240
    %v3289 = vcvt.s32.f32 %v1241
    %v3290 = vcvt.s32.f32 %v1242
    %v3291 = vcvt.s32.f32 %v1243
    %v3292 = vcvt.s32.f32 %v1244
    %v3293 = vcvt.s32.f32 %v1245
    %v3294 = vcvt.s32.f32 %v1246
    %v3295 = vcvt.s32.f32 %v1247
    %v3296 = vcvt.s32.f32 %v1248
    %v3297 = vcvt.s32.f32 %v1249
    %v3298 = vcvt.s32.f32 %v1250
    %v3299 = vcvt.s32.f32 %v1251
    %v3300 = vcvt.s32.f32 %v1252
    %v3301 = vcvt.s32.f32 %v1253
    %v3302 = vcvt.s32.f32 %v1254
    %v3303 = vcvt.s32.f32 %v1255
    %v3304 = vcvt.s32.f32 %v1256
    %v3305 = vcvt.s32.f32 %v1257
    %v3306 = vcvt.s32.f32 %v1258
    %v3307 = vcvt.s32.f32 %v1259
    %v3308 = vcvt.s32.f32 %v1260
    %v3309 = vcvt.s32.f32 %v1261
    %v3310 = vcvt.s32.f32 %v1262
    %v3311 = vcvt.s32.f32 %v1263
    %v3312 = vcvt.s32.f32 %v1264
    %v3313 = vcvt.s32.f32 %v1265
    %v3314 = vcvt.s32.f32 %v1266
    %v3315 = vcvt.s32.f32 %v1267
    %v3316 = vcvt.s32.f32 %v1268
    %v3317 = vcvt.s32.f32 %v1269
    %v3318 = vcvt.s32.f32 %v1270
    %v3319 = vcvt.s32.f32 %v1271
    %v3320 = vcvt.s32.f32 %v1272
    %v3321 = vcvt.s32.f32 %v1273
    %v3322 = vcvt.s32.f32 %v1274
    %v3323 = vcvt.s32.f32 %v1275
    %v3324 = vcvt.s32.f32 %v1276
    %v3325 = vcvt.s32.f32 %v1277
    %v3326 = vcvt.s32.f32 %v1278
    %v3327 = vcvt.s32.f32 %v1279
    %v3328 = vcvt.s32.f32 %v1280
    %v3329 = vcvt.s32.f32 %v1281
    %v3330 = vcvt.s32.f32 %v1282
    %v3331 = vcvt.s32.f32 %v1283
    %v3332 = vcvt.s32.f32 %v1284
    %v3333 = vcvt.s32.f32 %v1285
    %v3334 = vcvt.s32.f32 %v1286
    %v3335 = vcvt.s32.f32 %v1287
    %v3336 = vcvt.s32.f32 %v1288
    %v3337 = vcvt.s32.f32 %v1289
    %v3338 = vcvt.s32.f32 %v1290
    %v3339 = vcvt.s32.f32 %v1291
    %v3340 = vcvt.s32.f32 %v1292
    %v3341 = vcvt.s32.f32 %v1293
    %v3342 = vcvt.s32.f32 %v1294
    %v3343 = vcvt.s32.f32 %v1295
    %v3344 = vcvt.s32.f32 %v1296
    %v3345 = vcvt.s32.f32 %v1297
    %v3346 = vcvt.s32.f32 %v1298
    %v3347 = vcvt.s32.f32 %v1299
    %v3348 = vcvt.s32.f32 %v1300
    %v3349 = vcvt.s32.f32 %v1301
    %v3350 = vcvt.s32.f32 %v1302
    %v3351 = vcvt.s32.f32 %v1303
    %v3352 = vcvt.s32.f32 %v1304
    %v3353 = vcvt.s32.f32 %v1305
    %v3354 = vcvt.s32.f32 %v1306
    %v3355 = vcvt.s32.f32 %v1307
    %v3356 = vcvt.s32.f32 %v1308
    %v3357 = vcvt.s32.f32 %v1309
    %v3358 = vcvt.s32.f32 %v1310
    %v3359 = vcvt.s32.f32 %v1311
    %v3360 = vcvt.s32.f32 %v1312
    %v3361 = vcvt.s32.f32 %v1313
    %v3362 = vcvt.s32.f32 %v1314
    %v3363 = vcvt.s32.f32 %v1315
    %v3364 = vcvt.s32.f32 %v1316
    %v3365 = vcvt.s32.f32 %v1317
    %v3366 = vcvt.s32.f32 %v1318
    %v3367 = vcvt.s32.f32 %v1319
    %v3368 = vcvt.s32.f32 %v1320
    %v3369 = vcvt.s32.f32 %v1321
    %v3370 = vcvt.s32.f32 %v1322
    %v3371 = vcvt.s32.f32 %v1323
    %v3372 = vcvt.s32.f32 %v1324
    %v3373 = vcvt.s32.f32 %v1325
    %v3374 = vcvt.s32.f32 %v1326
    %v3375 = vcvt.s32.f32 %v1327
    %v3376 = vcvt.s32.f32 %v1328
    %v3377 = vcvt.s32.f32 %v1329
    %v3378 = vcvt.s32.f32 %v1330
    %v3379 = vcvt.s32.f32 %v1331
    %v3380 = vcvt.s32.f32 %v1332
    %v3381 = vcvt.s32.f32 %v1333
    %v3382 = vcvt.s32.f32 %v1334
    %v3383 = vcvt.s32.f32 %v1335
    %v3384 = vcvt.s32.f32 %v1336
    %v3385 = vcvt.s32.f32 %v1337
    %v3386 = vcvt.s32.f32 %v1338
    %v3387 = vcvt.s32.f32 %v1339
    %v3388 = vcvt.s32.f32 %v1340
    %v3389 = vcvt.s32.f32 %v1341
    %v3390 = vcvt.s32.f32 %v1342
    %v3391 = vcvt.s32.f32 %v1343
    %v3392 = vcvt.s32.f32 %v1344
    %v3393 = vcvt.s32.f32 %v1345
    %v3394 = vcvt.s32.f32 %v1346
    %v3395 = vcvt.s32.f32 %v1347
    %v3396 = vcvt.s32.f32 %v1348
    %v3397 = vcvt.s32.f32 %v1349
    %v3398 = vcvt.s32.f32 %v1350
    %v3399 = vcvt.s32.f32 %v1351
    %v3400 = vcvt.s32.f32 %v1352
    %v3401 = vcvt.s32.f32 %v1353
    %v3402 = vcvt.s32.f32 %v1354
    %v3403 = vcvt.s32.f32 %v1355
    %v3404 = vcvt.s32.f32 %v1356
    %v3405 = vcvt.s32.f32 %v1357
    %v3406 = vcvt.s32.f32 %v1358
    %v3407 = vcvt.s32.f32 %v1359
    %v3408 = vcvt.s32.f32 %v1360
    %v3409 = vcvt.s32.f32 %v1361
    %v3410 = vcvt.s32.f32 %v1362
    %v3411 = vcvt.s32.f32 %v1363
    %v3412 = vcvt.s32.f32 %v1364
    %v3413 = vcvt.s32.f32 %v1365
    %v3414 = vcvt.s32.f32 %v1366
    %v3415 = vcvt.s32.f32 %v1367
    %v3416 = vcvt.s32.f32 %v1368
    %v3417 = vcvt.s32.f32 %v1369
    %v3418 = vcvt.s32.f32 %v1370
    %v3419 = vcvt.s32.f32 %v1371
    %v3420 = vcvt.s32.f32 %v1372
    %v3421 = vcvt.s32.f32 %v1373
    %v3422 = vcvt.s32.f32 %v1374
    %v3423 = vcvt.s32.f32 %v1375
    %v3424 = vcvt.s32.f32 %v1376
    %v3425 = vcvt.s32.f32 %v1377
    %v3426 = vcvt.s32.f32 %v1378
    %v3427 = vcvt.s32.f32 %v1379
    %v3428 = vcvt.s32.f32 %v1380
    %v3429 = vcvt.s32.f32 %v1381
    %v3430 = vcvt.s32.f32 %v1382
    %v3431 = vcvt.s32.f32 %v1383
    %v3432 = vcvt.s32.f32 %v1384
    %v3433 = vcvt.s32.f32 %v1385
    %v3434 = vcvt.s32.f32 %v1386
    %v3435 = vcvt.s32.f32 %v1387
    %v3436 = vcvt.s32.f32 %v1388
    %v3437 = vcvt.s32.f32 %v1389
    %v3438 = vcvt.s32.f32 %v1390
    %v3439 = vcvt.s32.f32 %v1391
    %v3440 = vcvt.s32.f32 %v1392
    %v3441 = vcvt.s32.f32 %v1393
    %v3442 = vcvt.s32.f32 %v1394
    %v3443 = vcvt.s32.f32 %v1395
    %v3444 = vcvt.s32.f32 %v1396
    %v3445 = vcvt.s32.f32 %v1397
    %v3446 = vcvt.s32.f32 %v1398
    %v3447 = vcvt.s32.f32 %v1399
    %v3448 = vcvt.s32.f32 %v1400
    %v3449 = vcvt.s32.f32 %v1401
    %v3450 = vcvt.s32.f32 %v1402
    %v3451 = vcvt.s32.f32 %v1403
    %v3452 = vcvt.s32.f32 %v1404
    %v3453 = vcvt.s32.f32 %v1405
    %v3454 = vcvt.s32.f32 %v1406
    %v3455 = vcvt.s32.f32 %v1407
    %v3456 = vcvt.s32.f32 %v1408
    %v3457 = vcvt.s32.f32 %v1409
    %v3458 = vcvt.s32.f32 %v1410
    %v3459 = vcvt.s32.f32 %v1411
    %v3460 = vcvt.s32.f32 %v1412
    %v3461 = vcvt.s32.f32 %v1413
    %v3462 = vcvt.s32.f32 %v1414
    %v3463 = vcvt.s32.f32 %v1415
    %v3464 = vcvt.s32.f32 %v1416
    %v3465 = vcvt.s32.f32 %v1417
    %v3466 = vcvt.s32.f32 %v1418
    %v3467 = vcvt.s32.f32 %v1419
    %v3468 = vcvt.s32.f32 %v1420
    %v3469 = vcvt.s32.f32 %v1421
    %v3470 = vcvt.s32.f32 %v1422
    %v3471 = vcvt.s32.f32 %v1423
    %v3472 = vcvt.s32.f32 %v1424
    %v3473 = vcvt.s32.f32 %v1425
    %v3474 = vcvt.s32.f32 %v1426
    %v3475 = vcvt.s32.f32 %v1427
    %v3476 = vcvt.s32.f32 %v1428
    %v3477 = vcvt.s32.f32 %v1429
    %v3478 = vcvt.s32.f32 %v1430
    %v3479 = vcvt.s32.f32 %v1431
    %v3480 = vcvt.s32.f32 %v1432
    %v3481 = vcvt.s32.f32 %v1433
    %v3482 = vcvt.s32.f32 %v1434
    %v3483 = vcvt.s32.f32 %v1435
    %v3484 = vcvt.s32.f32 %v1436
    %v3485 = vcvt.s32.f32 %v1437
    %v3486 = vcvt.s32.f32 %v1438
    %v3487 = vcvt.s32.f32 %v1439
    %v3488 = vcvt.s32.f32 %v1440
    %v3489 = vcvt.s32.f32 %v1441
    %v3490 = vcvt.s32.f32 %v1442
    %v3491 = vcvt.s32.f32 %v1443
    %v3492 = vcvt.s32.f32 %v1444
    %v3493 = vcvt.s32.f32 %v1445
    %v3494 = vcvt.s32.f32 %v1446
    %v3495 = vcvt.s32.f32 %v1447
    %v3496 = vcvt.s32.f32 %v1448
    %v3497 = vcvt.s32.f32 %v1449
    %v3498 = vcvt.s32.f32 %v1450
    %v3499 = vcvt.s32.f32 %v1451
    %v3500 = vcvt.s32.f32 %v1452
    %v3501 = vcvt.s32.f32 %v1453
    %v3502 = vcvt.s32.f32 %v1454
    %v3503 = vcvt.s32.f32 %v1455
    %v3504 = vcvt.s32.f32 %v1456
    %v3505 = vcvt.s32.f32 %v1457
    %v3506 = vcvt.s32.f32 %v1458
    %v3507 = vcvt.s32.f32 %v1459
    %v3508 = vcvt.s32.f32 %v1460
    %v3509 = vcvt.s32.f32 %v1461
    %v3510 = vcvt.s32.f32 %v1462
    %v3511 = vcvt.s32.f32 %v1463
    %v3512 = vcvt.s32.f32 %v1464
    %v3513 = vcvt.s32.f32 %v1465
    %v3514 = vcvt.s32.f32 %v1466
    %v3515 = vcvt.s32.f32 %v1467
    %v3516 = vcvt.s32.f32 %v1468
    %v3517 = vcvt.s32.f32 %v1469
    %v3518 = vcvt.s32.f32 %v1470
    %v3519 = vcvt.s32.f32 %v1471
    %v3520 = vcvt.s32.f32 %v1472
    %v3521 = vcvt.s32.f32 %v1473
    %v3522 = vcvt.s32.f32 %v1474
    %v3523 = vcvt.s32.f32 %v1475
    %v3524 = vcvt.s32.f32 %v1476
    %v3525 = vcvt.s32.f32 %v1477
    %v3526 = vcvt.s32.f32 %v1478
    %v3527 = vcvt.s32.f32 %v1479
    %v3528 = vcvt.s32.f32 %v1480
    %v3529 = vcvt.s32.f32 %v1481
    %v3530 = vcvt.s32.f32 %v1482
    %v3531 = vcvt.s32.f32 %v1483
    %v3532 = vcvt.s32.f32 %v1484
    %v3533 = vcvt.s32.f32 %v1485
    %v3534 = vcvt.s32.f32 %v1486
    %v3535 = vcvt.s32.f32 %v1487
    %v3536 = vcvt.s32.f32 %v1488
    %v3537 = vcvt.s32.f32 %v1489
    %v3538 = vcvt.s32.f32 %v1490
    %v3539 = vcvt.s32.f32 %v1491
    %v3540 = vcvt.s32.f32 %v1492
    %v3541 = vcvt.s32.f32 %v1493
    %v3542 = vcvt.s32.f32 %v1494
    %v3543 = vcvt.s32.f32 %v1495
    %v3544 = vcvt.s32.f32 %v1496
    %v3545 = vcvt.s32.f32 %v1497
    %v3546 = vcvt.s32.f32 %v1498
    %v3547 = vcvt.s32.f32 %v1499
    %v3548 = vcvt.s32.f32 %v1500
    %v3549 = vcvt.s32.f32 %v1501
    %v3550 = vcvt.s32.f32 %v1502
    %v3551 = vcvt.s32.f32 %v1503
    %v3552 = vcvt.s32.f32 %v1504
    %v3553 = vcvt.s32.f32 %v1505
    %v3554 = vcvt.s32.f32 %v1506
    %v3555 = vcvt.s32.f32 %v1507
    %v3556 = vcvt.s32.f32 %v1508
    %v3557 = vcvt.s32.f32 %v1509
    %v3558 = vcvt.s32.f32 %v1510
    %v3559 = vcvt.s32.f32 %v1511
    %v3560 = vcvt.s32.f32 %v1512
    %v3561 = vcvt.s32.f32 %v1513
    %v3562 = vcvt.s32.f32 %v1514
    %v3563 = vcvt.s32.f32 %v1515
    %v3564 = vcvt.s32.f32 %v1516
    %v3565 = vcvt.s32.f32 %v1517
    %v3566 = vcvt.s32.f32 %v1518
    %v3567 = vcvt.s32.f32 %v1519
    %v3568 = vcvt.s32.f32 %v1520
    %v3569 = vcvt.s32.f32 %v1521
    %v3570 = vcvt.s32.f32 %v1522
    %v3571 = vcvt.s32.f32 %v1523
    %v3572 = vcvt.s32.f32 %v1524
    %v3573 = vcvt.s32.f32 %v1525
    %v3574 = vcvt.s32.f32 %v1526
    %v3575 = vcvt.s32.f32 %v1527
    %v3576 = vcvt.s32.f32 %v1528
    %v3577 = vcvt.s32.f32 %v1529
    %v3578 = vcvt.s32.f32 %v1530
    %v3579 = vcvt.s32.f32 %v1531
    %v3580 = vcvt.s32.f32 %v1532
    %v3581 = vcvt.s32.f32 %v1533
    %v3582 = vcvt.s32.f32 %v1534
    %v3583 = vcvt.s32.f32 %v1535
    %v3584 = vcvt.s32.f32 %v1536
    %v3585 = vcvt.s32.f32 %v1537
    %v3586 = vcvt.s32.f32 %v1538
    %v3587 = vcvt.s32.f32 %v1539
    %v3588 = vcvt.s32.f32 %v1540
    %v3589 = vcvt.s32.f32 %v1541
    %v3590 = vcvt.s32.f32 %v1542
    %v3591 = vcvt.s32.f32 %v1543
    %v3592 = vcvt.s32.f32 %v1544
    %v3593 = vcvt.s32.f32 %v1545
    %v3594 = vcvt.s32.f32 %v1546
    %v3595 = vcvt.s32.f32 %v1547
    %v3596 = vcvt.s32.f32 %v1548
    %v3597 = vcvt.s32.f32 %v1549
    %v3598 = vcvt.s32.f32 %v1550
    %v3599 = vcvt.s32.f32 %v1551
    %v3600 = vcvt.s32.f32 %v1552
    %v3601 = vcvt.s32.f32 %v1553
    %v3602 = vcvt.s32.f32 %v1554
    %v3603 = vcvt.s32.f32 %v1555
    %v3604 = vcvt.s32.f32 %v1556
    %v3605 = vcvt.s32.f32 %v1557
    %v3606 = vcvt.s32.f32 %v1558
    %v3607 = vcvt.s32.f32 %v1559
    %v3608 = vcvt.s32.f32 %v1560
    %v3609 = vcvt.s32.f32 %v1561
    %v3610 = vcvt.s32.f32 %v1562
    %v3611 = vcvt.s32.f32 %v1563
    %v3612 = vcvt.s32.f32 %v1564
    %v3613 = vcvt.s32.f32 %v1565
    %v3614 = vcvt.s32.f32 %v1566
    %v3615 = vcvt.s32.f32 %v1567
    %v3616 = vcvt.s32.f32 %v1568
    %v3617 = vcvt.s32.f32 %v1569
    %v3618 = vcvt.s32.f32 %v1570
    %v3619 = vcvt.s32.f32 %v1571
    %v3620 = vcvt.s32.f32 %v1572
    %v3621 = vcvt.s32.f32 %v1573
    %v3622 = vcvt.s32.f32 %v1574
    %v3623 = vcvt.s32.f32 %v1575
    %v3624 = vcvt.s32.f32 %v1576
    %v3625 = vcvt.s32.f32 %v1577
    %v3626 = vcvt.s32.f32 %v1578
    %v3627 = vcvt.s32.f32 %v1579
    %v3628 = vcvt.s32.f32 %v1580
    %v3629 = vcvt.s32.f32 %v1581
    %v3630 = vcvt.s32.f32 %v1582
    %v3631 = vcvt.s32.f32 %v1583
    %v3632 = vcvt.s32.f32 %v1584
    %v3633 = vcvt.s32.f32 %v1585
    %v3634 = vcvt.s32.f32 %v1586
    %v3635 = vcvt.s32.f32 %v1587
    %v3636 = vcvt.s32.f32 %v1588
    %v3637 = vcvt.s32.f32 %v1589
    %v3638 = vcvt.s32.f32 %v1590
    %v3639 = vcvt.s32.f32 %v1591
    %v3640 = vcvt.s32.f32 %v1592
    %v3641 = vcvt.s32.f32 %v1593
    %v3642 = vcvt.s32.f32 %v1594
    %v3643 = vcvt.s32.f32 %v1595
    %v3644 = vcvt.s32.f32 %v1596
    %v3645 = vcvt.s32.f32 %v1597
    %v3646 = vcvt.s32.f32 %v1598
    %v3647 = vcvt.s32.f32 %v1599
    %v3648 = vcvt.s32.f32 %v1600
    %v3649 = vcvt.s32.f32 %v1601
    %v3650 = vcvt.s32.f32 %v1602
    %v3651 = vcvt.s32.f32 %v1603
    %v3652 = vcvt.s32.f32 %v1604
    %v3653 = vcvt.s32.f32 %v1605
    %v3654 = vcvt.s32.f32 %v1606
    %v3655 = vcvt.s32.f32 %v1607
    %v3656 = vcvt.s32.f32 %v1608
    %v3657 = vcvt.s32.f32 %v1609
    %v3658 = vcvt.s32.f32 %v1610
    %v3659 = vcvt.s32.f32 %v1611
    %v3660 = vcvt.s32.f32 %v1612
    %v3661 = vcvt.s32.f32 %v1613
    %v3662 = vcvt.s32.f32 %v1614
    %v3663 = vcvt.s32.f32 %v1615
    %v3664 = vcvt.s32.f32 %v1616
    %v3665 = vcvt.s32.f32 %v1617
    %v3666 = vcvt.s32.f32 %v1618
    %v3667 = vcvt.s32.f32 %v1619
    %v3668 = vcvt.s32.f32 %v1620
    %v3669 = vcvt.s32.f32 %v1621
    %v3670 = vcvt.s32.f32 %v1622
    %v3671 = vcvt.s32.f32 %v1623
    %v3672 = vcvt.s32.f32 %v1624
    %v3673 = vcvt.s32.f32 %v1625
    %v3674 = vcvt.s32.f32 %v1626
    %v3675 = vcvt.s32.f32 %v1627
    %v3676 = vcvt.s32.f32 %v1628
    %v3677 = vcvt.s32.f32 %v1629
    %v3678 = vcvt.s32.f32 %v1630
    %v3679 = vcvt.s32.f32 %v1631
    %v3680 = vcvt.s32.f32 %v1632
    %v3681 = vcvt.s32.f32 %v1633
    %v3682 = vcvt.s32.f32 %v1634
    %v3683 = vcvt.s32.f32 %v1635
    %v3684 = vcvt.s32.f32 %v1636
    %v3685 = vcvt.s32.f32 %v1637
    %v3686 = vcvt.s32.f32 %v1638
    %v3687 = vcvt.s32.f32 %v1639
    %v3688 = vcvt.s32.f32 %v1640
    %v3689 = vcvt.s32.f32 %v1641
    %v3690 = vcvt.s32.f32 %v1642
    %v3691 = vcvt.s32.f32 %v1643
    %v3692 = vcvt.s32.f32 %v1644
    %v3693 = vcvt.s32.f32 %v1645
    %v3694 = vcvt.s32.f32 %v1646
    %v3695 = vcvt.s32.f32 %v1647
    %v3696 = vcvt.s32.f32 %v1648
    %v3697 = vcvt.s32.f32 %v1649
    %v3698 = vcvt.s32.f32 %v1650
    %v3699 = vcvt.s32.f32 %v1651
    %v3700 = vcvt.s32.f32 %v1652
    %v3701 = vcvt.s32.f32 %v1653
    %v3702 = vcvt.s32.f32 %v1654
    %v3703 = vcvt.s32.f32 %v1655
    %v3704 = vcvt.s32.f32 %v1656
    %v3705 = vcvt.s32.f32 %v1657
    %v3706 = vcvt.s32.f32 %v1658
    %v3707 = vcvt.s32.f32 %v1659
    %v3708 = vcvt.s32.f32 %v1660
    %v3709 = vcvt.s32.f32 %v1661
    %v3710 = vcvt.s32.f32 %v1662
    %v3711 = vcvt.s32.f32 %v1663
    %v3712 = vcvt.s32.f32 %v1664
    %v3713 = vcvt.s32.f32 %v1665
    %v3714 = vcvt.s32.f32 %v1666
    %v3715 = vcvt.s32.f32 %v1667
    %v3716 = vcvt.s32.f32 %v1668
    %v3717 = vcvt.s32.f32 %v1669
    %v3718 = vcvt.s32.f32 %v1670
    %v3719 = vcvt.s32.f32 %v1671
    %v3720 = vcvt.s32.f32 %v1672
    %v3721 = vcvt.s32.f32 %v1673
    %v3722 = vcvt.s32.f32 %v1674
    %v3723 = vcvt.s32.f32 %v1675
    %v3724 = vcvt.s32.f32 %v1676
    %v3725 = vcvt.s32.f32 %v1677
    %v3726 = vcvt.s32.f32 %v1678
    %v3727 = vcvt.s32.f32 %v1679
    %v3728 = vcvt.s32.f32 %v1680
    %v3729 = vcvt.s32.f32 %v1681
    %v3730 = vcvt.s32.f32 %v1682
    %v3731 = vcvt.s32.f32 %v1683
    %v3732 = vcvt.s32.f32 %v1684
    %v3733 = vcvt.s32.f32 %v1685
    %v3734 = vcvt.s32.f32 %v1686
    %v3735 = vcvt.s32.f32 %v1687
    %v3736 = vcvt.s32.f32 %v1688
    %v3737 = vcvt.s32.f32 %v1689
    %v3738 = vcvt.s32.f32 %v1690
    %v3739 = vcvt.s32.f32 %v1691
    %v3740 = vcvt.s32.f32 %v1692
    %v3741 = vcvt.s32.f32 %v1693
    %v3742 = vcvt.s32.f32 %v1694
    %v3743 = vcvt.s32.f32 %v1695
    %v3744 = vcvt.s32.f32 %v1696
    %v3745 = vcvt.s32.f32 %v1697
    %v3746 = vcvt.s32.f32 %v1698
    %v3747 = vcvt.s32.f32 %v1699
    %v3748 = vcvt.s32.f32 %v1700
    %v3749 = vcvt.s32.f32 %v1701
    %v3750 = vcvt.s32.f32 %v1702
    %v3751 = vcvt.s32.f32 %v1703
    %v3752 = vcvt.s32.f32 %v1704
    %v3753 = vcvt.s32.f32 %v1705
    %v3754 = vcvt.s32.f32 %v1706
    %v3755 = vcvt.s32.f32 %v1707
    %v3756 = vcvt.s32.f32 %v1708
    %v3757 = vcvt.s32.f32 %v1709
    %v3758 = vcvt.s32.f32 %v1710
    %v3759 = vcvt.s32.f32 %v1711
    %v3760 = vcvt.s32.f32 %v1712
    %v3761 = vcvt.s32.f32 %v1713
    %v3762 = vcvt.s32.f32 %v1714
    %v3763 = vcvt.s32.f32 %v1715
    %v3764 = vcvt.s32.f32 %v1716
    %v3765 = vcvt.s32.f32 %v1717
    %v3766 = vcvt.s32.f32 %v1718
    %v3767 = vcvt.s32.f32 %v1719
    %v3768 = vcvt.s32.f32 %v1720
    %v3769 = vcvt.s32.f32 %v1721
    %v3770 = vcvt.s32.f32 %v1722
    %v3771 = vcvt.s32.f32 %v1723
    %v3772 = vcvt.s32.f32 %v1724
    %v3773 = vcvt.s32.f32 %v1725
    %v3774 = vcvt.s32.f32 %v1726
    %v3775 = vcvt.s32.f32 %v1727
    %v3776 = vcvt.s32.f32 %v1728
    %v3777 = vcvt.s32.f32 %v1729
    %v3778 = vcvt.s32.f32 %v1730
    %v3779 = vcvt.s32.f32 %v1731
    %v3780 = vcvt.s32.f32 %v1732
    %v3781 = vcvt.s32.f32 %v1733
    %v3782 = vcvt.s32.f32 %v1734
    %v3783 = vcvt.s32.f32 %v1735
    %v3784 = vcvt.s32.f32 %v1736
    %v3785 = vcvt.s32.f32 %v1737
    %v3786 = vcvt.s32.f32 %v1738
    %v3787 = vcvt.s32.f32 %v1739
    %v3788 = vcvt.s32.f32 %v1740
    %v3789 = vcvt.s32.f32 %v1741
    %v3790 = vcvt.s32.f32 %v1742
    %v3791 = vcvt.s32.f32 %v1743
    %v3792 = vcvt.s32.f32 %v1744
    %v3793 = vcvt.s32.f32 %v1745
    %v3794 = vcvt.s32.f32 %v1746
    %v3795 = vcvt.s32.f32 %v1747
    %v3796 = vcvt.s32.f32 %v1748
    %v3797 = vcvt.s32.f32 %v1749
    %v3798 = vcvt.s32.f32 %v1750
    %v3799 = vcvt.s32.f32 %v1751
    %v3800 = vcvt.s32.f32 %v1752
    %v3801 = vcvt.s32.f32 %v1753
    %v3802 = vcvt.s32.f32 %v1754
    %v3803 = vcvt.s32.f32 %v1755
    %v3804 = vcvt.s32.f32 %v1756
    %v3805 = vcvt.s32.f32 %v1757
    %v3806 = vcvt.s32.f32 %v1758
    %v3807 = vcvt.s32.f32 %v1759
    %v3808 = vcvt.s32.f32 %v1760
    %v3809 = vcvt.s32.f32 %v1761
    %v3810 = vcvt.s32.f32 %v1762
    %v3811 = vcvt.s32.f32 %v1763
    %v3812 = vcvt.s32.f32 %v1764
    %v3813 = vcvt.s32.f32 %v1765
    %v3814 = vcvt.s32.f32 %v1766
    %v3815 = vcvt.s32.f32 %v1767
    %v3816 = vcvt.s32.f32 %v1768
    %v3817 = vcvt.s32.f32 %v1769
    %v3818 = vcvt.s32.f32 %v1770
    %v3819 = vcvt.s32.f32 %v1771
    %v3820 = vcvt.s32.f32 %v1772
    %v3821 = vcvt.s32.f32 %v1773
    %v3822 = vcvt.s32.f32 %v1774
    %v3823 = vcvt.s32.f32 %v1775
    %v3824 = vcvt.s32.f32 %v1776
    %v3825 = vcvt.s32.f32 %v1777
    %v3826 = vcvt.s32.f32 %v1778
    %v3827 = vcvt.s32.f32 %v1779
    %v3828 = vcvt.s32.f32 %v1780
    %v3829 = vcvt.s32.f32 %v1781
    %v3830 = vcvt.s32.f32 %v1782
    %v3831 = vcvt.s32.f32 %v1783
    %v3832 = vcvt.s32.f32 %v1784
    %v3833 = vcvt.s32.f32 %v1785
    %v3834 = vcvt.s32.f32 %v1786
    %v3835 = vcvt.s32.f32 %v1787
    %v3836 = vcvt.s32.f32 %v1788
    %v3837 = vcvt.s32.f32 %v1789
    %v3838 = vcvt.s32.f32 %v1790
    %v3839 = vcvt.s32.f32 %v1791
    %v3840 = vcvt.s32.f32 %v1792
    %v3841 = vcvt.s32.f32 %v1793
    %v3842 = vcvt.s32.f32 %v1794
    %v3843 = vcvt.s32.f32 %v1795
    %v3844 = vcvt.s32.f32 %v1796
    %v3845 = vcvt.s32.f32 %v1797
    %v3846 = vcvt.s32.f32 %v1798
    %v3847 = vcvt.s32.f32 %v1799
    %v3848 = vcvt.s32.f32 %v1800
    %v3849 = vcvt.s32.f32 %v1801
    %v3850 = vcvt.s32.f32 %v1802
    %v3851 = vcvt.s32.f32 %v1803
    %v3852 = vcvt.s32.f32 %v1804
    %v3853 = vcvt.s32.f32 %v1805
    %v3854 = vcvt.s32.f32 %v1806
    %v3855 = vcvt.s32.f32 %v1807
    %v3856 = vcvt.s32.f32 %v1808
    %v3857 = vcvt.s32.f32 %v1809
    %v3858 = vcvt.s32.f32 %v1810
    %v3859 = vcvt.s32.f32 %v1811
    %v3860 = vcvt.s32.f32 %v1812
    %v3861 = vcvt.s32.f32 %v1813
    %v3862 = vcvt.s32.f32 %v1814
    %v3863 = vcvt.s32.f32 %v1815
    %v3864 = vcvt.s32.f32 %v1816
    %v3865 = vcvt.s32.f32 %v1817
    %v3866 = vcvt.s32.f32 %v1818
    %v3867 = vcvt.s32.f32 %v1819
    %v3868 = vcvt.s32.f32 %v1820
    %v3869 = vcvt.s32.f32 %v1821
    %v3870 = vcvt.s32.f32 %v1822
    %v3871 = vcvt.s32.f32 %v1823
    %v3872 = vcvt.s32.f32 %v1824
    %v3873 = vcvt.s32.f32 %v1825
    %v3874 = vcvt.s32.f32 %v1826
    %v3875 = vcvt.s32.f32 %v1827
    %v3876 = vcvt.s32.f32 %v1828
    %v3877 = vcvt.s32.f32 %v1829
    %v3878 = vcvt.s32.f32 %v1830
    %v3879 = vcvt.s32.f32 %v1831
    %v3880 = vcvt.s32.f32 %v1832
    %v3881 = vcvt.s32.f32 %v1833
    %v3882 = vcvt.s32.f32 %v1834
    %v3883 = vcvt.s32.f32 %v1835
    %v3884 = vcvt.s32.f32 %v1836
    %v3885 = vcvt.s32.f32 %v1837
    %v3886 = vcvt.s32.f32 %v1838
    %v3887 = vcvt.s32.f32 %v1839
    %v3888 = vcvt.s32.f32 %v1840
    %v3889 = vcvt.s32.f32 %v1841
    %v3890 = vcvt.s32.f32 %v1842
    %v3891 = vcvt.s32.f32 %v1843
    %v3892 = vcvt.s32.f32 %v1844
    %v3893 = vcvt.s32.f32 %v1845
    %v3894 = vcvt.s32.f32 %v1846
    %v3895 = vcvt.s32.f32 %v1847
    %v3896 = vcvt.s32.f32 %v1848
    %v3897 = vcvt.s32.f32 %v1849
    %v3898 = vcvt.s32.f32 %v1850
    %v3899 = vcvt.s32.f32 %v1851
    %v3900 = vcvt.s32.f32 %v1852
    %v3901 = vcvt.s32.f32 %v1853
    %v3902 = vcvt.s32.f32 %v1854
    %v3903 = vcvt.s32.f32 %v1855
    %v3904 = vcvt.s32.f32 %v1856
    %v3905 = vcvt.s32.f32 %v1857
    %v3906 = vcvt.s32.f32 %v1858
    %v3907 = vcvt.s32.f32 %v1859
    %v3908 = vcvt.s32.f32 %v1860
    %v3909 = vcvt.s32.f32 %v1861
    %v3910 = vcvt.s32.f32 %v1862
    %v3911 = vcvt.s32.f32 %v1863
    %v3912 = vcvt.s32.f32 %v1864
    %v3913 = vcvt.s32.f32 %v1865
    %v3914 = vcvt.s32.f32 %v1866
    %v3915 = vcvt.s32.f32 %v1867
    %v3916 = vcvt.s32.f32 %v1868
    %v3917 = vcvt.s32.f32 %v1869
    %v3918 = vcvt.s32.f32 %v1870
    %v3919 = vcvt.s32.f32 %v1871
    %v3920 = vcvt.s32.f32 %v1872
    %v3921 = vcvt.s32.f32 %v1873
    %v3922 = vcvt.s32.f32 %v1874
    %v3923 = vcvt.s32.f32 %v1875
    %v3924 = vcvt.s32.f32 %v1876
    %v3925 = vcvt.s32.f32 %v1877
    %v3926 = vcvt.s32.f32 %v1878
    %v3927 = vcvt.s32.f32 %v1879
    %v3928 = vcvt.s32.f32 %v1880
    %v3929 = vcvt.s32.f32 %v1881
    %v3930 = vcvt.s32.f32 %v1882
    %v3931 = vcvt.s32.f32 %v1883
    %v3932 = vcvt.s32.f32 %v1884
    %v3933 = vcvt.s32.f32 %v1885
    %v3934 = vcvt.s32.f32 %v1886
    %v3935 = vcvt.s32.f32 %v1887
    %v3936 = vcvt.s32.f32 %v1888
    %v3937 = vcvt.s32.f32 %v1889
    %v3938 = vcvt.s32.f32 %v1890
    %v3939 = vcvt.s32.f32 %v1891
    %v3940 = vcvt.s32.f32 %v1892
    %v3941 = vcvt.s32.f32 %v1893
    %v3942 = vcvt.s32.f32 %v1894
    %v3943 = vcvt.s32.f32 %v1895
    %v3944 = vcvt.s32.f32 %v1896
    %v3945 = vcvt.s32.f32 %v1897
    %v3946 = vcvt.s32.f32 %v1898
    %v3947 = vcvt.s32.f32 %v1899
    %v3948 = vcvt.s32.f32 %v1900
    %v3949 = vcvt.s32.f32 %v1901
    %v3950 = vcvt.s32.f32 %v1902
    %v3951 = vcvt.s32.f32 %v1903
    %v3952 = vcvt.s32.f32 %v1904
    %v3953 = vcvt.s32.f32 %v1905
    %v3954 = vcvt.s32.f32 %v1906
    %v3955 = vcvt.s32.f32 %v1907
    %v3956 = vcvt.s32.f32 %v1908
    %v3957 = vcvt.s32.f32 %v1909
    %v3958 = vcvt.s32.f32 %v1910
    %v3959 = vcvt.s32.f32 %v1911
    %v3960 = vcvt.s32.f32 %v1912
    %v3961 = vcvt.s32.f32 %v1913
    %v3962 = vcvt.s32.f32 %v1914
    %v3963 = vcvt.s32.f32 %v1915
    %v3964 = vcvt.s32.f32 %v1916
    %v3965 = vcvt.s32.f32 %v1917
    %v3966 = vcvt.s32.f32 %v1918
    %v3967 = vcvt.s32.f32 %v1919
    %v3968 = vcvt.s32.f32 %v1920
    %v3969 = vcvt.s32.f32 %v1921
    %v3970 = vcvt.s32.f32 %v1922
    %v3971 = vcvt.s32.f32 %v1923
    %v3972 = vcvt.s32.f32 %v1924
    %v3973 = vcvt.s32.f32 %v1925
    %v3974 = vcvt.s32.f32 %v1926
    %v3975 = vcvt.s32.f32 %v1927
    %v3976 = vcvt.s32.f32 %v1928
    %v3977 = vcvt.s32.f32 %v1929
    %v3978 = vcvt.s32.f32 %v1930
    %v3979 = vcvt.s32.f32 %v1931
    %v3980 = vcvt.s32.f32 %v1932
    %v3981 = vcvt.s32.f32 %v1933
    %v3982 = vcvt.s32.f32 %v1934
    %v3983 = vcvt.s32.f32 %v1935
    %v3984 = vcvt.s32.f32 %v1936
    %v3985 = vcvt.s32.f32 %v1937
    %v3986 = vcvt.s32.f32 %v1938
    %v3987 = vcvt.s32.f32 %v1939
    %v3988 = vcvt.s32.f32 %v1940
    %v3989 = vcvt.s32.f32 %v1941
    %v3990 = vcvt.s32.f32 %v1942
    %v3991 = vcvt.s32.f32 %v1943
    %v3992 = vcvt.s32.f32 %v1944
    %v3993 = vcvt.s32.f32 %v1945
    %v3994 = vcvt.s32.f32 %v1946
    %v3995 = vcvt.s32.f32 %v1947
    %v3996 = vcvt.s32.f32 %v1948
    %v3997 = vcvt.s32.f32 %v1949
    %v3998 = vcvt.s32.f32 %v1950
    %v3999 = vcvt.s32.f32 %v1951
    %v4000 = vcvt.s32.f32 %v1952
    %v4001 = vcvt.s32.f32 %v1953
    %v4002 = vcvt.s32.f32 %v1954
    %v4003 = vcvt.s32.f32 %v1955
    %v4004 = vcvt.s32.f32 %v1956
    %v4005 = vcvt.s32.f32 %v1957
    %v4006 = vcvt.s32.f32 %v1958
    %v4007 = vcvt.s32.f32 %v1959
    %v4008 = vcvt.s32.f32 %v1960
    %v4009 = vcvt.s32.f32 %v1961
    %v4010 = vcvt.s32.f32 %v1962
    %v4011 = vcvt.s32.f32 %v1963
    %v4012 = vcvt.s32.f32 %v1964
    %v4013 = vcvt.s32.f32 %v1965
    %v4014 = vcvt.s32.f32 %v1966
    %v4015 = vcvt.s32.f32 %v1967
    %v4016 = vcvt.s32.f32 %v1968
    %v4017 = vcvt.s32.f32 %v1969
    %v4018 = vcvt.s32.f32 %v1970
    %v4019 = vcvt.s32.f32 %v1971
    %v4020 = vcvt.s32.f32 %v1972
    %v4021 = vcvt.s32.f32 %v1973
    %v4022 = vcvt.s32.f32 %v1974
    %v4023 = vcvt.s32.f32 %v1975
    %v4024 = vcvt.s32.f32 %v1976
    %v4025 = vcvt.s32.f32 %v1977
    %v4026 = vcvt.s32.f32 %v1978
    %v4027 = vcvt.s32.f32 %v1979
    %v4028 = vcvt.s32.f32 %v1980
    %v4029 = vcvt.s32.f32 %v1981
    %v4030 = vcvt.s32.f32 %v1982
    %v4031 = vcvt.s32.f32 %v1983
    %v4032 = vcvt.s32.f32 %v1984
    %v4033 = vcvt.s32.f32 %v1985
    %v4034 = vcvt.s32.f32 %v1986
    %v4035 = vcvt.s32.f32 %v1987
    %v4036 = vcvt.s32.f32 %v1988
    %v4037 = vcvt.s32.f32 %v1989
    %v4038 = vcvt.s32.f32 %v1990
    %v4039 = vcvt.s32.f32 %v1991
    %v4040 = vcvt.s32.f32 %v1992
    %v4041 = vcvt.s32.f32 %v1993
    %v4042 = vcvt.s32.f32 %v1994
    %v4043 = vcvt.s32.f32 %v1995
    %v4044 = vcvt.s32.f32 %v1996
    %v4045 = vcvt.s32.f32 %v1997
    %v4046 = vcvt.s32.f32 %v1998
    %v4047 = vcvt.s32.f32 %v1999
    %v4048 = vcvt.s32.f32 %v2000
    %v4049 = vcvt.s32.f32 %v2001
    %v4050 = vcvt.s32.f32 %v2002
    %v4051 = vcvt.s32.f32 %v2003
    %v4052 = vcvt.s32.f32 %v2004
    %v4053 = vcvt.s32.f32 %v2005
    %v4054 = vcvt.s32.f32 %v2006
    %v4055 = vcvt.s32.f32 %v2007
    %v4056 = vcvt.s32.f32 %v2008
    %v4057 = vcvt.s32.f32 %v2009
    %v4058 = vcvt.s32.f32 %v2010
    %v4059 = vcvt.s32.f32 %v2011
    %v4060 = vcvt.s32.f32 %v2012
    %v4061 = vcvt.s32.f32 %v2013
    %v4062 = vcvt.s32.f32 %v2014
    %v4063 = vcvt.s32.f32 %v2015
    %v4064 = vcvt.s32.f32 %v2016
    %v4065 = vcvt.s32.f32 %v2017
    %v4066 = vcvt.s32.f32 %v2018
    %v4067 = vcvt.s32.f32 %v2019
    %v4068 = vcvt.s32.f32 %v2020
    %v4069 = vcvt.s32.f32 %v2021
    %v4070 = vcvt.s32.f32 %v2022
    %v4071 = vcvt.s32.f32 %v2023
    %v4072 = vcvt.s32.f32 %v2024
    %v4073 = vcvt.s32.f32 %v2025
    %v4074 = vcvt.s32.f32 %v2026
    %v4075 = vcvt.s32.f32 %v2027
    %v4076 = vcvt.s32.f32 %v2028
    %v4077 = vcvt.s32.f32 %v2029
    %v4078 = vcvt.s32.f32 %v2030
    %v4079 = vcvt.s32.f32 %v2031
    %v4080 = vcvt.s32.f32 %v2032
    %v4081 = vcvt.s32.f32 %v2033
    %v4082 = vcvt.s32.f32 %v2034
    %v4083 = vcvt.s32.f32 %v2035
    %v4084 = vcvt.s32.f32 %v2036
    %v4085 = vcvt.s32.f32 %v2037
    %v4086 = vcvt.s32.f32 %v2038
    %v4087 = vcvt.s32.f32 %v2039
    %v4088 = vcvt.s32.f32 %v2040
    %v4089 = vcvt.s32.f32 %v2041
    %v4090 = vcvt.s32.f32 %v2042
    %v4091 = vcvt.s32.f32 %v2043
    %v4092 = vcvt.s32.f32 %v2044
    %v4093 = vcvt.s32.f32 %v2045
    %v4094 = vcvt.s32.f32 %v2046
    %v4095 = vcvt.s32.f32 %v2047
    %v4096 = vcvt.s32.f32 %v2048
    %v4097 = vcvt.s32.f32 %v2049
    %v4098 = vcvt.s32.f32 %v2050
    %v4099 = vcvt.s32.f32 %v2051
    %v4100 = vcvt.s32.f32 %v2052
    %v4101 = vcvt.s32.f32 %v2053
    %v4102 = vcvt.s32.f32 %v2054
    %v4103 = vcvt.s32.f32 %v2055
    %v4104 = vcvt.s32.f32 %v2056
    %v4105 = vcvt.s32.f32 %v2057
    %v4106 = vcvt.s32.f32 %v2058
    %v4107 = vcvt.s32.f32 %v2059
    %v4108 = vcvt.s32.f32 %v2060
    %v4109 = vcvt.s32.f32 %v2061
    %v4110 = vcvt.s32.f32 %v2062
    %v4111 = vcvt.s32.f32 %v2063
    %v4112 = vcvt.s32.f32 %v2064
    %v4113 = vcvt.s32.f32 %v2065
    %v4114 = vcvt.s32.f32 %v2066
    %v4115 = vcvt.s32.f32 %v2067
    %v4116 = vcvt.s32.f32 %v2068
    %v4117 = vcvt.s32.f32 %v2069
    %v4118 = vcvt.s32.f32 %v2070
    %v4119 = vcvt.s32.f32 %v2071
    %v4120 = vcvt.s32.f32 %v2072
    %v4121 = vcvt.s32.f32 %v2073
    %v4122 = vcvt.s32.f32 %v2074
    %v4123 = vcvt.s32.f32 %v2075
    %v4124 = vcvt.s32.f32 %v2076
    %v4125 = vcvt.s32.f32 %v2077
    %v4126 = vcvt.s32.f32 %v2078
    %v4127 = vcvt.s32.f32 %v2079
    %v4128 = vcvt.s32.f32 %v2080
    %v4129 = vcvt.s32.f32 %v2081
    %v4130 = vcvt.s32.f32 %v2082
    %v4131 = vcvt.s32.f32 %v2083
    %v4132 = vcvt.s32.f32 %v2084
    %v4133 = vcvt.s32.f32 %v2085
    %v4134 = vcvt.s32.f32 %v2086
    %v4135 = vcvt.s32.f32 %v2087
    %v4136 = vcvt.s32.f32 %v2088
    %v4137 = vcvt.s32.f32 %v2089
    %v4138 = vcvt.s32.f32 %v2090
    %v4139 = vcvt.s32.f32 %v2091
    %v4140 = vcvt.s32.f32 %v2092
    %v4141 = vcvt.s32.f32 %v2093
    %v4142 = vcvt.s32.f32 %v2094
    %v4143 = vcvt.s32.f32 %v2095
    %v4144 = vcvt.s32.f32 %v2096
    %v4145 = vcvt.s32.f32 %v2097
    %v4146 = vcvt.s32.f32 %v2098
    %v4147 = vcvt.s32.f32 %v2099
    %v4148 = vcvt.s32.f32 %v2100
    %v4149 = vcvt.s32.f32 %v2101
    %v4150 = vcvt.s32.f32 %v2102
    %v4151 = vcvt.s32.f32 %v2103
    %v4152 = vcvt.s32.f32 %v2104
    %v4153 = vcvt.s32.f32 %v2105
    %v4154 = vcvt.s32.f32 %v2106
    %v4155 = vcvt.s32.f32 %v2107
    %v4156 = vcvt.s32.f32 %v2108
    %v4157 = vcvt.s32.f32 %v2109
    %v4158 = vcvt.s32.f32 %v2110
    %v4159 = vcvt.s32.f32 %v2111
    %v4160 = vcvt.s32.f32 %v2112
    %v4161 = vcvt.s32.f32 %v2113
    %v4162 = vcvt.s32.f32 %v2114
    %v4163 = vcvt.s32.f32 %v2115
    %v4164 = vcvt.s32.f32 %v2116
    %v4165 = vcvt.s32.f32 %v2117
    %v4166 = vcvt.s32.f32 %v2118
    %v4167 = vcvt.s32.f32 %v2119
    %v4168 = vcvt.s32.f32 %v2120
    %v4169 = vcvt.s32.f32 %v2121
    %v4170 = vcvt.s32.f32 %v2122
    %v4171 = vcvt.s32.f32 %v2123
    %v4172 = vcvt.s32.f32 %v2124
    %v4173 = vcvt.s32.f32 %v2125
    %v4174 = vcvt.s32.f32 %v2126
    %v4175 = vcvt.s32.f32 %v2127
    %v4176 = vcvt.s32.f32 %v2128
    %v4177 = vcvt.s32.f32 %v2129
    %v4178 = vcvt.s32.f32 %v2130
    %v4179 = vcvt.s32.f32 %v2131
    %v4180 = vcvt.s32.f32 %v2132
    %v4181 = vcvt.s32.f32 %v2133
    %v4182 = vcvt.s32.f32 %v2134
    %v4183 = vcvt.s32.f32 %v2135
    %v4184 = vcvt.s32.f32 %v2136
    %v4185 = vcvt.s32.f32 %v2137
    %v4186 = vcvt.s32.f32 %v2138
    %v4187 = vcvt.s32.f32 %v2139
    %v4188 = vcvt.s32.f32 %v2140
    %v4189 = vcvt.s32.f32 %v2141
    %v4190 = vcvt.s32.f32 %v2142
    %v4191 = vcvt.s32.f32 %v2143
    %v4192 = vcvt.s32.f32 %v2144
    %v4193 = vcvt.s32.f32 %v2145
    %v4194 = vcvt.s32.f32 %v2146
    %v4195 = vcvt.s32.f32 %v2147
    %v4196 = vcvt.s32.f32 %v2148
    %v4197 = vcvt.s32.f32 %v2149
    %v4198 = vcvt.s32.f32 %v2150
    %v4199 = vcvt.s32.f32 %v2151
    %v4200 = vcvt.s32.f32 %v2152
    %v4201 = vcvt.s32.f32 %v2153
    %v4202 = vcvt.s32.f32 %v2154
    %v4203 = vcvt.s32.f32 %v2155
    %v4204 = vcvt.s32.f32 %v2156
    %v4205 = vcvt.s32.f32 %v2157
    %v4206 = vcvt.s32.f32 %v2158
    %v4207 = vcvt.s32.f32 %v2159
    %v4208 = vcvt.s32.f32 %v2160
    %v4209 = vcvt.s32.f32 %v2161
    %v4210 = vcvt.s32.f32 %v2162
    %v4211 = vcvt.s32.f32 %v2163
    %v4212 = vcvt.s32.f32 %v2164
    %v4213 = vcvt.s32.f32 %v2165
    %v4214 = vcvt.s32.f32 %v2166
    %v4215 = vcvt.s32.f32 %v2167
    %v4216 = vcvt.s32.f32 %v2168
    %v4217 = vcvt.s32.f32 %v2169
    %v4218 = vcvt.s32.f32 %v2170
    %v4219 = vcvt.s32.f32 %v2171
    %v4220 = vcvt.s32.f32 %v2172
    %v4221 = vcvt.s32.f32 %v2173
    %v4222 = vcvt.s32.f32 %v2174
    %v4223 = vcvt.s32.f32 %v2175
    %v4224 = vcvt.s32.f32 %v2176
    %v4225 = vcvt.s32.f32 %v2177
    %v4226 = vcvt.s32.f32 %v2178
    %v4227 = vcvt.s32.f32 %v2179
    %v4228 = vcvt.s32.f32 %v2180
    %v4229 = vcvt.s32.f32 %v2181
    %v4230 = vcvt.s32.f32 %v2182
    %v4231 = vcvt.s32.f32 %v2183
    %v4232 = vcvt.s32.f32 %v2184
    %v4233 = vcvt.s32.f32 %v2185
    %v4234 = vcvt.s32.f32 %v2186
    %v4235 = vcvt.s32.f32 %v2187
    %v4236 = vcvt.s32.f32 %v2188
    %v4237 = vcvt.s32.f32 %v2189
    %v4238 = vcvt.s32.f32 %v2190
    %v4239 = vcvt.s32.f32 %v2191
    %v4240 = vcvt.s32.f32 %v2192
    %v4241 = vcvt.s32.f32 %v2193
    %v4242 = vcvt.s32.f32 %v2194
    %v4243 = vcvt.s32.f32 %v2195
    %v4244 = vcvt.s32.f32 %v2196
    %v4245 = vcvt.s32.f32 %v2197
    %v4246 = vcvt.s32.f32 %v2198
    %v4247 = vcvt.s32.f32 %v2199
    %v4248 = vcvt.s32.f32 %v2200
    %v4249 = vcvt.s32.f32 %v2201
    %v4250 = vcvt.s32.f32 %v2202
    %v4251 = vcvt.s32.f32 %v2203
    %v4252 = vcvt.s32.f32 %v2204
    %v4253 = vcvt.s32.f32 %v2205
    %v4254 = vcvt.s32.f32 %v2206
    %v4255 = vcvt.s32.f32 %v2207
    %v4256 = vcvt.s32.f32 %v2208
    %v4257 = vcvt.s32.f32 %v2209
    %v4258 = vcvt.s32.f32 %v2210
    %v4259 = vcvt.s32.f32 %v2211
    %v4260 = vcvt.s32.f32 %v2212
    %v4261 = vcvt.s32.f32 %v2213
    %v4262 = vcvt.s32.f32 %v2214
    %v4263 = vcvt.s32.f32 %v2215
    %v4264 = vcvt.s32.f32 %v2216
    %v4265 = vcvt.s32.f32 %v2217
    %v4266 = vcvt.s32.f32 %v2218
    %v4267 = vcvt.s32.f32 %v2219
    %v4268 = vcvt.s32.f32 %v2220
    %v4269 = vcvt.s32.f32 %v2221
    %v4270 = vcvt.s32.f32 %v2222
    %v4271 = vcvt.s32.f32 %v2223
    %v4272 = vcvt.s32.f32 %v2224
    %v4273 = vcvt.s32.f32 %v2225
    %v4274 = vcvt.s32.f32 %v2226
    %v4275 = vcvt.s32.f32 %v2227
    %v4276 = vcvt.s32.f32 %v2228
    %v4277 = vcvt.s32.f32 %v2229
    %v4278 = vcvt.s32.f32 %v2230
    %v4279 = vcvt.s32.f32 %v2231
    %v4280 = vcvt.s32.f32 %v2232
    %v4281 = vcvt.s32.f32 %v2233
    %v4282 = vcvt.s32.f32 %v2234
    %v4283 = vcvt.s32.f32 %v2235
    %v4284 = vcvt.s32.f32 %v2236
    %v4285 = vcvt.s32.f32 %v2237
    %v4286 = vcvt.s32.f32 %v2238
    %v4287 = vcvt.s32.f32 %v2239
    %v4288 = vcvt.s32.f32 %v2240
    %v4289 = vcvt.s32.f32 %v2241
    %v4290 = vcvt.s32.f32 %v2242
    %v4291 = vcvt.s32.f32 %v2243
    %v4292 = vcvt.s32.f32 %v2244
    %v4293 = vcvt.s32.f32 %v2245
    %v4294 = vcvt.s32.f32 %v2246
    %v4295 = vcvt.s32.f32 %v2247
    %v4296 = vcvt.s32.f32 %v2248
    %v4297 = vcvt.s32.f32 %v2249
    %v4298 = vcvt.s32.f32 %v2250
    %v4299 = vcvt.s32.f32 %v2251
    %v4300 = vcvt.s32.f32 %v2252
    %v4301 = vcvt.s32.f32 %v2253
    %v4302 = vcvt.s32.f32 %v2254
    %v4303 = vcvt.s32.f32 %v2255
    %v4304 = vcvt.s32.f32 %v2256
    %v4305 = vcvt.s32.f32 %v2257
    %v4306 = vcvt.s32.f32 %v2258
    %v4307 = vcvt.s32.f32 %v2259
    %v4308 = vcvt.s32.f32 %v2260
    %v4309 = vcvt.s32.f32 %v2261
    %v4310 = vcvt.s32.f32 %v2262
    %v4311 = vcvt.s32.f32 %v2263
    %v4312 = vcvt.s32.f32 %v2264
    %v4313 = vcvt.s32.f32 %v2265
    %v4314 = vcvt.s32.f32 %v2266
    %v4315 = vcvt.s32.f32 %v2267
    %v4316 = vcvt.s32.f32 %v2268
    %v4317 = vcvt.s32.f32 %v2269
    %v4318 = vcvt.s32.f32 %v2270
    %v4319 = vcvt.s32.f32 %v2271
    %v4320 = vcvt.s32.f32 %v2272
    %v4321 = vcvt.s32.f32 %v2273
    %v4322 = vcvt.s32.f32 %v2274
    %v4323 = vcvt.s32.f32 %v2275
    %v4324 = vcvt.s32.f32 %v2276
    %v4325 = vcvt.s32.f32 %v2277
    %v4326 = vcvt.s32.f32 %v2278
    %v4327 = vcvt.s32.f32 %v2279
    %v4328 = vcvt.s32.f32 %v2280
    %v4329 = vcvt.s32.f32 %v2281
    %v4330 = vcvt.s32.f32 %v2282
    %v4331 = vcvt.s32.f32 %v2283
    %v4332 = vcvt.s32.f32 %v2284
    %v4333 = vcvt.s32.f32 %v2285
    %v4334 = vcvt.s32.f32 %v2286
    %v4335 = vcvt.s32.f32 %v2287
    %v4336 = vcvt.s32.f32 %v2288
    %v4337 = vcvt.s32.f32 %v2289
    %v4338 = vcvt.s32.f32 %v2290
    %v4339 = vcvt.s32.f32 %v2291
    %v4340 = vcvt.s32.f32 %v2292
    %v4341 = vcvt.s32.f32 %v2293
    %v4342 = vcvt.s32.f32 %v2294
    %v4343 = vcvt.s32.f32 %v2295
    %v4344 = vcvt.s32.f32 %v2296
    %v4345 = vcvt.s32.f32 %v2297
    %v4346 = vcvt.s32.f32 %v2298
    %v4347 = vcvt.s32.f32 %v2299
    %v4348 = vcvt.s32.f32 %v2300
    %v4349 = vcvt.s32.f32 %v2301
    %v4350 = vcvt.s32.f32 %v2302
    %v4351 = vcvt.s32.f32 %v2303
    %v4352 = vcvt.s32.f32 %v2304
    %v4353 = vcvt.s32.f32 %v2305
    %v4354 = vcvt.s32.f32 %v2306
    %v4355 = vcvt.s32.f32 %v2307
    %v4356 = vcvt.s32.f32 %v2308
    %v4357 = vcvt.s32.f32 %v2309
    %v4358 = vcvt.s32.f32 %v2310
    %v4359 = vcvt.s32.f32 %v2311
    %v4360 = vcvt.s32.f32 %v2312
    %v4361 = vcvt.s32.f32 %v2313
    %v4362 = vcvt.s32.f32 %v2314
    %v4363 = vcvt.s32.f32 %v2315
    %v4364 = vcvt.s32.f32 %v2316
    %v4365 = vcvt.s32.f32 %v2317
    %v4366 = vcvt.s32.f32 %v2318
    %v4367 = vcvt.s32.f32 %v2319
    %v4368 = vcvt.s32.f32 %v2320
    %v4369 = vcvt.s32.f32 %v2321
    %v4370 = vcvt.s32.f32 %v2322
    %v4371 = vcvt.s32.f32 %v2323
    %v4372 = vcvt.s32.f32 %v2324
    %v4373 = vcvt.s32.f32 %v2325
    %v4374 = vcvt.s32.f32 %v2326
    %v4375 = vcvt.s32.f32 %v2327
    %v4376 = vcvt.s32.f32 %v2328
    %v4377 = vcvt.s32.f32 %v2329
    %v4378 = vcvt.s32.f32 %v2330
    %v4379 = vcvt.s32.f32 %v2331
    %v4380 = vcvt.s32.f32 %v2332
    %v4381 = vcvt.s32.f32 %v2333
    %v4382 = vcvt.s32.f32 %v2334
    %v4383 = vcvt.s32.f32 %v2335
    %v4384 = vcvt.s32.f32 %v2336
    %v4385 = vcvt.s32.f32 %v2337
    %v4386 = vcvt.s32.f32 %v2338
    %v4387 = vcvt.s32.f32 %v2339
    %v4388 = vcvt.s32.f32 %v2340
    %v4389 = vcvt.s32.f32 %v2341
    %v4390 = vcvt.s32.f32 %v2342
    %v4391 = vcvt.s32.f32 %v2343
    %v4392 = vcvt.s32.f32 %v2344
    %v4393 = vcvt.s32.f32 %v2345
    %v4394 = vcvt.s32.f32 %v2346
    %v4395 = vcvt.s32.f32 %v2347
    %v4396 = vcvt.s32.f32 %v2348
    %v4397 = vcvt.s32.f32 %v2349
    %v4398 = vcvt.s32.f32 %v2350
    %v4399 = vcvt.s32.f32 %v2351
    %v4400 = vcvt.s32.f32 %v2352
    %v4401 = vcvt.s32.f32 %v2353
    %v4402 = vcvt.s32.f32 %v2354
    %v4403 = vcvt.s32.f32 %v2355
    %v4404 = vcvt.s32.f32 %v2356
    %v4405 = vcvt.s32.f32 %v2357
    %v4406 = vcvt.s32.f32 %v2358
    %v4407 = vcvt.s32.f32 %v2359
    %v4408 = vcvt.s32.f32 %v2360
    %v4409 = vcvt.s32.f32 %v2361
    %v4410 = vcvt.s32.f32 %v2362
    %v4411 = vcvt.s32.f32 %v2363
    %v4412 = vcvt.s32.f32 %v2364
    %v4413 = vcvt.s32.f32 %v2365
    %v4414 = vcvt.s32.f32 %v2366
    %v4415 = vcvt.s32.f32 %v2367
    %v4416 = vcvt.s32.f32 %v2368
    %v4417 = vcvt.s32.f32 %v2369
    %v4418 = vcvt.s32.f32 %v2370
    %v4419 = vcvt.s32.f32 %v2371
    %v4420 = vcvt.s32.f32 %v2372
    %v4421 = vcvt.s32.f32 %v2373
    %v4422 = vcvt.s32.f32 %v2374
    %v4423 = vcvt.s32.f32 %v2375
    %v4424 = vcvt.s32.f32 %v2376
    %v4425 = vcvt.s32.f32 %v2377
    %v4426 = vcvt.s32.f32 %v2378
    %v4427 = vcvt.s32.f32 %v2379
    %v4428 = vcvt.s32.f32 %v2380
    %v4429 = vcvt.s32.f32 %v2381
    %v4430 = vcvt.s32.f32 %v2382
    %v4431 = vcvt.s32.f32 %v2383
    %v4432 = vcvt.s32.f32 %v2384
    %v4433 = vcvt.s32.f32 %v2385
    %v4434 = vcvt.s32.f32 %v2386
    %v4435 = vcvt.s32.f32 %v2387
    %v4436 = vcvt.s32.f32 %v2388
    %v4437 = vcvt.s32.f32 %v2389
    %v4438 = vcvt.s32.f32 %v2390
    %v4439 = vcvt.s32.f32 %v2391
    %v4440 = vcvt.s32.f32 %v2392
    %v4441 = vcvt.s32.f32 %v2393
    %v4442 = vcvt.s32.f32 %v2394
    %v4443 = vcvt.s32.f32 %v2395
    %v4444 = vcvt.s32.f32 %v2396
    %v4445 = vcvt.s32.f32 %v2397
    %v4446 = vcvt.s32.f32 %v2398
    %v4447 = vcvt.s32.f32 %v2399
    %v4448 = vcvt.s32.f32 %v2400
    %v4449 = vcvt.s32.f32 %v2401
    %v4450 = vcvt.s32.f32 %v2402
    %v4451 = vcvt.s32.f32 %v2403
    %v4452 = vcvt.s32.f32 %v2404
    %v4453 = vcvt.s32.f32 %v2405
    %v4454 = vcvt.s32.f32 %v2406
    %v4455 = vcvt.s32.f32 %v2407
    %v4456 = vcvt.s32.f32 %v2408
    %v4457 = vcvt.s32.f32 %v2409
    %v4458 = vcvt.s32.f32 %v2410
    %v4459 = vcvt.s32.f32 %v2411
    %v4460 = vcvt.s32.f32 %v2412
    %v4461 = vcvt.s32.f32 %v2413
    %v4462 = vcvt.s32.f32 %v2414
    %v4463 = vcvt.s32.f32 %v2415
    %v4464 = vcvt.s32.f32 %v2416
    %v4465 = vcvt.s32.f32 %v2417
    %v4466 = vcvt.s32.f32 %v2418
    %v4467 = vcvt.s32.f32 %v2419
    %v4468 = vcvt.s32.f32 %v2420
    %v4469 = vcvt.s32.f32 %v2421
    %v4470 = vcvt.s32.f32 %v2422
    %v4471 = vcvt.s32.f32 %v2423
    %v4472 = vcvt.s32.f32 %v2424
    %v4473 = vcvt.s32.f32 %v2425
    %v4474 = vcvt.s32.f32 %v2426
    %v4475 = vcvt.s32.f32 %v2427
    %v4476 = vcvt.s32.f32 %v2428
    %v4477 = vcvt.s32.f32 %v2429
    %v4478 = vcvt.s32.f32 %v2430
    %v4479 = vcvt.s32.f32 %v2431
    %v4480 = vcvt.s32.f32 %v2432
    %v4481 = vcvt.s32.f32 %v2433
    %v4482 = vcvt.s32.f32 %v2434
    %v4483 = vcvt.s32.f32 %v2435
    %v4484 = vcvt.s32.f32 %v2436
    %v4485 = vcvt.s32.f32 %v2437
    %v4486 = vcvt.s32.f32 %v2438
    %v4487 = vcvt.s32.f32 %v2439
    %v4488 = vcvt.s32.f32 %v2440
    %v4489 = vcvt.s32.f32 %v2441
    %v4490 = vcvt.s32.f32 %v2442
    %v4491 = vcvt.s32.f32 %v2443
    %v4492 = vcvt.s32.f32 %v2444
    %v4493 = vcvt.s32.f32 %v2445
    %v4494 = vcvt.s32.f32 %v2446
    %v4495 = vcvt.s32.f32 %v2447
    %v4496 = vcvt.s32.f32 %v2448
    %v4497 = vcvt.s32.f32 %v2449
    %v4498 = vcvt.s32.f32 %v2450
    %v4499 = vcvt.s32.f32 %v2451
    %v4500 = vcvt.s32.f32 %v2452
    %v4501 = vcvt.s32.f32 %v2453
    %v4502 = vcvt.s32.f32 %v2454
    %v4503 = vcvt.s32.f32 %v2455
    %v4504 = vcvt.s32.f32 %v2456
    %v4505 = vcvt.s32.f32 %v2457
    %v4506 = vcvt.s32.f32 %v2458
    %v4507 = vcvt.s32.f32 %v2459
    %v4508 = vcvt.s32.f32 %v2460
    %v4509 = vcvt.s32.f32 %v2461
    %v4510 = vcvt.s32.f32 %v2462
    %v4511 = vcvt.s32.f32 %v2463
    %v4512 = vcvt.s32.f32 %v2464
    %v4513 = vcvt.s32.f32 %v2465
    %v4514 = vcvt.s32.f32 %v2466
    %v4515 = vcvt.s32.f32 %v2467
    %v4516 = vcvt.s32.f32 %v2468
    %v4517 = vcvt.s32.f32 %v2469
    %v4518 = vcvt.s32.f32 %v2470
    %v4519 = vcvt.s32.f32 %v2471
    %v4520 = vcvt.s32.f32 %v2472
    %v4521 = vcvt.s32.f32 %v2473
    %v4522 = vcvt.s32.f32 %v2474
    %v4523 = vcvt.s32.f32 %v2475
    %v4524 = vcvt.s32.f32 %v2476
    %v4525 = vcvt.s32.f32 %v2477
    %v4526 = vcvt.s32.f32 %v2478
    %v4527 = vcvt.s32.f32 %v2479
    %v4528 = vcvt.s32.f32 %v2480
    %v4529 = vcvt.s32.f32 %v2481
    %v4530 = vcvt.s32.f32 %v2482
    %v4531 = vcvt.s32.f32 %v2483
    %v4532 = vcvt.s32.f32 %v2484
    %v4533 = vcvt.s32.f32 %v2485
    %v4534 = vcvt.s32.f32 %v2486
    %v4535 = vcvt.s32.f32 %v2487
    %v4536 = vcvt.s32.f32 %v2488
    %v4537 = vcvt.s32.f32 %v2489
    %v4538 = vcvt.s32.f32 %v2490
    %v4539 = vcvt.s32.f32 %v2491
    %v4540 = vcvt.s32.f32 %v2492
    %v4541 = vcvt.s32.f32 %v2493
    %v4542 = vcvt.s32.f32 %v2494
    %v4543 = vcvt.s32.f32 %v2495
    %v4544 = vcvt.s32.f32 %v2496
    %v4545 = vcvt.s32.f32 %v2497
    %v4546 = vcvt.s32.f32 %v2498
    %v4547 = vcvt.s32.f32 %v2499
    %v4548 = vcvt.s32.f32 %v2500
    %v4549 = vcvt.s32.f32 %v2501
    %v4550 = vcvt.s32.f32 %v2502
    %v4551 = vcvt.s32.f32 %v2503
    %v4552 = vcvt.s32.f32 %v2504
    %v4553 = vcvt.s32.f32 %v2505
    %v4554 = vcvt.s32.f32 %v2506
    %v4555 = vcvt.s32.f32 %v2507
    %v4556 = vcvt.s32.f32 %v2508
    %v4557 = vcvt.s32.f32 %v2509
    %v4558 = vcvt.s32.f32 %v2510
    %v4559 = vcvt.s32.f32 %v2511
    %v4560 = vcvt.s32.f32 %v2512
    %v4561 = vcvt.s32.f32 %v2513
    %v4562 = vcvt.s32.f32 %v2514
    %v4563 = vcvt.s32.f32 %v2515
    %v4564 = vcvt.s32.f32 %v2516
    %v4565 = vcvt.s32.f32 %v2517
    %v4566 = vcvt.s32.f32 %v2518
    %v4567 = vcvt.s32.f32 %v2519
    %v4568 = vcvt.s32.f32 %v2520
    %v4569 = vcvt.s32.f32 %v2521
    %v4570 = vcvt.s32.f32 %v2522
    %v4571 = vcvt.s32.f32 %v2523
    %v4572 = vcvt.s32.f32 %v2524
    %v4573 = vcvt.s32.f32 %v2525
    %v4574 = vcvt.s32.f32 %v2526
    %v4575 = vcvt.s32.f32 %v2527
    %v4576 = vcvt.s32.f32 %v2528
    %v4577 = vcvt.s32.f32 %v2529
    %v4578 = vcvt.s32.f32 %v2530
    %v4579 = vcvt.s32.f32 %v2531
    %v4580 = vcvt.s32.f32 %v2532
    %v4581 = vcvt.s32.f32 %v2533
    %v4582 = vcvt.s32.f32 %v2534
    %v4583 = vcvt.s32.f32 %v2535
    %v4584 = vcvt.s32.f32 %v2536
    %v4585 = vcvt.s32.f32 %v2537
    %v4586 = vcvt.s32.f32 %v2538
    %v4587 = vcvt.s32.f32 %v2539
    %v4588 = vcvt.s32.f32 %v2540
    %v4589 = vcvt.s32.f32 %v2541
    %v4590 = vcvt.s32.f32 %v2542
    %v4591 = vcvt.s32.f32 %v2543
    %v4592 = vcvt.s32.f32 %v2544
    %v4593 = vcvt.s32.f32 %v2545
    %v4594 = vcvt.s32.f32 %v2546
    %v4595 = vcvt.s32.f32 %v2547
    %v4596 = vcvt.s32.f32 %v2548
    %v4597 = vcvt.s32.f32 %v2549
    %v4598 = vcvt.s32.f32 %v2550
    %v4599 = vcvt.s32.f32 %v2551
    %v4600 = vcvt.s32.f32 %v2552
    %v4601 = vcvt.s32.f32 %v2553
    %v4602 = vcvt.s32.f32 %v2554
    %v4603 = vcvt.s32.f32 %v2555
    %v4604 = vcvt.s32.f32 %v2556
    %v4605 = vcvt.s32.f32 %v2557
    %v4606 = vcvt.s32.f32 %v2558
    %v4607 = vcvt.s32.f32 %v2559
    %v4608 = vcvt.s32.f32 %v2560
    %v4609 = vcvt.s32.f32 %v2561
    %v4610 = vcvt.s32.f32 %v2562
    %v4611 = vcvt.s32.f32 %v2563
    %v4612 = vcvt.s32.f32 %v2564
    %v4613 = vcvt.s32.f32 %v2565
    %v4614 = vcvt.s32.f32 %v2566
    %v4615 = vcvt.s32.f32 %v2567
    %v4616 = vcvt.s32.f32 %v2568
    %v4617 = vcvt.s32.f32 %v2569
    %v4618 = vcvt.s32.f32 %v2570
    %v4619 = vcvt.s32.f32 %v2571
    %v4620 = vcvt.s32.f32 %v2572
    %v4621 = vcvt.s32.f32 %v2573
    %v4622 = vcvt.s32.f32 %v2574
    %v4623 = vcvt.s32.f32 %v2575
    %v4624 = vcvt.s32.f32 %v2576
    %v4625 = vcvt.s32.f32 %v2577
    %v4626 = vcvt.s32.f32 %v2578
    %v4627 = vcvt.s32.f32 %v2579
    %v4628 = vcvt.s32.f32 %v2580
    %v4629 = vcvt.s32.f32 %v2581
    %v4630 = vcvt.s32.f32 %v2582
    %v4631 = vcvt.s32.f32 %v2583
    %v4632 = vcvt.s32.f32 %v2584
    %v4633 = vcvt.s32.f32 %v2585
    %v4634 = vcvt.s32.f32 %v2586
    %v4635 = vcvt.s32.f32 %v2587
    %v4636 = vcvt.s32.f32 %v2588
    %v4637 = vcvt.s32.f32 %v2589
    %v4638 = vcvt.s32.f32 %v2590
    %v4639 = vcvt.s32.f32 %v2591
    %v4640 = vcvt.s32.f32 %v2592
    %v4641 = vcvt.s32.f32 %v2593
    %v4642 = vcvt.s32.f32 %v2594
    %v4643 = vcvt.s32.f32 %v2595
    %v4644 = vcvt.s32.f32 %v2596
    %v4645 = vcvt.s32.f32 %v2597
    %v4646 = vcvt.s32.f32 %v2598
    %v4647 = vcvt.s32.f32 %v2599
    %v4648 = vcvt.s32.f32 %v2600
    %v4649 = vcvt.s32.f32 %v2601
    %v4650 = vcvt.s32.f32 %v2602
    %v4651 = vcvt.s32.f32 %v2603
    %v4652 = vcvt.s32.f32 %v2604
    %v4653 = vcvt.s32.f32 %v2605
    %v4654 = vcvt.s32.f32 %v2606
    %v4655 = vcvt.s32.f32 %v2607
    %v4656 = vcvt.s32.f32 %v2608
    %v4657 = vcvt.s32.f32 %v2609
    %v4658 = vcvt.s32.f32 %v2610
    %v4659 = vcvt.s32.f32 %v2611
    %v4660 = vcvt.s32.f32 %v2612
    %v4661 = vcvt.s32.f32 %v2613
    %v4662 = vcvt.s32.f32 %v2614
    %v4663 = vcvt.s32.f32 %v2615
    %v4664 = vcvt.s32.f32 %v2616
    %v4665 = vcvt.s32.f32 %v2617
    %v4666 = vcvt.s32.f32 %v2618
    %v4667 = vcvt.s32.f32 %v2619
    %v4668 = vcvt.s32.f32 %v2620
    %v4669 = vcvt.s32.f32 %v2621
    %v4670 = vcvt.s32.f32 %v2622
    %v4671 = vcvt.s32.f32 %v2623
    %v4672 = vcvt.s32.f32 %v2624
    %v4673 = vcvt.s32.f32 %v2625
    %v4674 = vcvt.s32.f32 %v2626
    %v4675 = vcvt.s32.f32 %v2627
    %v4676 = vcvt.s32.f32 %v2628
    %v4677 = vcvt.s32.f32 %v2629
    %v4678 = vpack.c.bf16 %v2638, %v2630
    %v4679 = vpack.c.bf16 %v2639, %v2631
    %v4680 = vpack.c.bf16 %v2640, %v2632
    %v4681 = vpack.c.bf16 %v2641, %v2633
    %v4682 = vpack.c.bf16 %v2642, %v2634
    %v4683 = vpack.c.bf16 %v2643, %v2635
    %v4684 = vpack.c.bf16 %v2644, %v2636
    %v4685 = vpack.c.bf16 %v2645, %v2637
    %v4686 = vpack.c.bf16 %v2654, %v2646
    %v4687 = vpack.c.bf16 %v2655, %v2647
    %v4688 = vpack.c.bf16 %v2656, %v2648
    %v4689 = vpack.c.bf16 %v2657, %v2649
    %v4690 = vpack.c.bf16 %v2658, %v2650
    %v4691 = vpack.c.bf16 %v2659, %v2651
    %v4692 = vpack.c.bf16 %v2660, %v2652
    %v4693 = vpack.c.bf16 %v2661, %v2653
    %v4694 = vpack.c.bf16 %v2670, %v2662
    %v4695 = vpack.c.bf16 %v2671, %v2663
    %v4696 = vpack.c.bf16 %v2672, %v2664
    %v4697 = vpack.c.bf16 %v2673, %v2665
    %v4698 = vpack.c.bf16 %v2674, %v2666
    %v4699 = vpack.c.bf16 %v2675, %v2667
    %v4700 = vpack.c.bf16 %v2676, %v2668
    %v4701 = vpack.c.bf16 %v2677, %v2669
    %v4702 = vpack.c.bf16 %v2686, %v2678
    %v4703 = vpack.c.bf16 %v2687, %v2679
    %v4704 = vpack.c.bf16 %v2688, %v2680
    %v4705 = vpack.c.bf16 %v2689, %v2681
    %v4706 = vpack.c.bf16 %v2690, %v2682
    %v4707 = vpack.c.bf16 %v2691, %v2683
    %v4708 = vpack.c.bf16 %v2692, %v2684
    %v4709 = vpack.c.bf16 %v2693, %v2685
    %v4710 = vpack.c.bf16 %v2702, %v2694
    %v4711 = vpack.c.bf16 %v2703, %v2695
    %v4712 = vpack.c.bf16 %v2704, %v2696
    %v4713 = vpack.c.bf16 %v2705, %v2697
    %v4714 = vpack.c.bf16 %v2706, %v2698
    %v4715 = vpack.c.bf16 %v2707, %v2699
    %v4716 = vpack.c.bf16 %v2708, %v2700
    %v4717 = vpack.c.bf16 %v2709, %v2701
    %v4718 = vpack.c.bf16 %v2718, %v2710
    %v4719 = vpack.c.bf16 %v2719, %v2711
    %v4720 = vpack.c.bf16 %v2720, %v2712
    %v4721 = vpack.c.bf16 %v2721, %v2713
    %v4722 = vpack.c.bf16 %v2722, %v2714
    %v4723 = vpack.c.bf16 %v2723, %v2715
    %v4724 = vpack.c.bf16 %v2724, %v2716
    %v4725 = vpack.c.bf16 %v2725, %v2717
    %v4726 = vpack.c.bf16 %v2734, %v2726
    %v4727 = vpack.c.bf16 %v2735, %v2727
    %v4728 = vpack.c.bf16 %v2736, %v2728
    %v4729 = vpack.c.bf16 %v2737, %v2729
    %v4730 = vpack.c.bf16 %v2738, %v2730
    %v4731 = vpack.c.bf16 %v2739, %v2731
    %v4732 = vpack.c.bf16 %v2740, %v2732
    %v4733 = vpack.c.bf16 %v2741, %v2733
    %v4734 = vpack.c.bf16 %v2750, %v2742
    %v4735 = vpack.c.bf16 %v2751, %v2743
    %v4736 = vpack.c.bf16 %v2752, %v2744
    %v4737 = vpack.c.bf16 %v2753, %v2745
    %v4738 = vpack.c.bf16 %v2754, %v2746
    %v4739 = vpack.c.bf16 %v2755, %v2747
    %v4740 = vpack.c.bf16 %v2756, %v2748
    %v4741 = vpack.c.bf16 %v2757, %v2749
    %v4742 = vpack.c.bf16 %v2766, %v2758
    %v4743 = vpack.c.bf16 %v2767, %v2759
    %v4744 = vpack.c.bf16 %v2768, %v2760
    %v4745 = vpack.c.bf16 %v2769, %v2761
    %v4746 = vpack.c.bf16 %v2770, %v2762
    %v4747 = vpack.c.bf16 %v2771, %v2763
    %v4748 = vpack.c.bf16 %v2772, %v2764
    %v4749 = vpack.c.bf16 %v2773, %v2765
    %v4750 = vpack.c.bf16 %v2782, %v2774
    %v4751 = vpack.c.bf16 %v2783, %v2775
    %v4752 = vpack.c.bf16 %v2784, %v2776
    %v4753 = vpack.c.bf16 %v2785, %v2777
    %v4754 = vpack.c.bf16 %v2786, %v2778
    %v4755 = vpack.c.bf16 %v2787, %v2779
    %v4756 = vpack.c.bf16 %v2788, %v2780
    %v4757 = vpack.c.bf16 %v2789, %v2781
    %v4758 = vpack.c.bf16 %v2798, %v2790
    %v4759 = vpack.c.bf16 %v2799, %v2791
    %v4760 = vpack.c.bf16 %v2800, %v2792
    %v4761 = vpack.c.bf16 %v2801, %v2793
    %v4762 = vpack.c.bf16 %v2802, %v2794
    %v4763 = vpack.c.bf16 %v2803, %v2795
    %v4764 = vpack.c.bf16 %v2804, %v2796
    %v4765 = vpack.c.bf16 %v2805, %v2797
    %v4766 = vpack.c.bf16 %v2814, %v2806
    %v4767 = vpack.c.bf16 %v2815, %v2807
    %v4768 = vpack.c.bf16 %v2816, %v2808
    %v4769 = vpack.c.bf16 %v2817, %v2809
    %v4770 = vpack.c.bf16 %v2818, %v2810
    %v4771 = vpack.c.bf16 %v2819, %v2811
    %v4772 = vpack.c.bf16 %v2820, %v2812
    %v4773 = vpack.c.bf16 %v2821, %v2813
    %v4774 = vpack.c.bf16 %v2830, %v2822
    %v4775 = vpack.c.bf16 %v2831, %v2823
    %v4776 = vpack.c.bf16 %v2832, %v2824
    %v4777 = vpack.c.bf16 %v2833, %v2825
    %v4778 = vpack.c.bf16 %v2834, %v2826
    %v4779 = vpack.c.bf16 %v2835, %v2827
    %v4780 = vpack.c.bf16 %v2836, %v2828
    %v4781 = vpack.c.bf16 %v2837, %v2829
    %v4782 = vpack.c.bf16 %v2846, %v2838
    %v4783 = vpack.c.bf16 %v2847, %v2839
    %v4784 = vpack.c.bf16 %v2848, %v2840
    %v4785 = vpack.c.bf16 %v2849, %v2841
    %v4786 = vpack.c.bf16 %v2850, %v2842
    %v4787 = vpack.c.bf16 %v2851, %v2843
    %v4788 = vpack.c.bf16 %v2852, %v2844
    %v4789 = vpack.c.bf16 %v2853, %v2845
    %v4790 = vpack.c.bf16 %v2862, %v2854
    %v4791 = vpack.c.bf16 %v2863, %v2855
    %v4792 = vpack.c.bf16 %v2864, %v2856
    %v4793 = vpack.c.bf16 %v2865, %v2857
    %v4794 = vpack.c.bf16 %v2866, %v2858
    %v4795 = vpack.c.bf16 %v2867, %v2859
    %v4796 = vpack.c.bf16 %v2868, %v2860
    %v4797 = vpack.c.bf16 %v2869, %v2861
    %v4798 = vpack.c.bf16 %v2878, %v2870
    %v4799 = vpack.c.bf16 %v2879, %v2871
    %v4800 = vpack.c.bf16 %v2880, %v2872
    %v4801 = vpack.c.bf16 %v2881, %v2873
    %v4802 = vpack.c.bf16 %v2882, %v2874
    %v4803 = vpack.c.bf16 %v2883, %v2875
    %v4804 = vpack.c.bf16 %v2884, %v2876
    %v4805 = vpack.c.bf16 %v2885, %v2877
    %v4806 = vpack.c.bf16 %v2894, %v2886
    %v4807 = vpack.c.bf16 %v2895, %v2887
    %v4808 = vpack.c.bf16 %v2896, %v2888
    %v4809 = vpack.c.bf16 %v2897, %v2889
    %v4810 = vpack.c.bf16 %v2898, %v2890
    %v4811 = vpack.c.bf16 %v2899, %v2891
    %v4812 = vpack.c.bf16 %v2900, %v2892
    %v4813 = vpack.c.bf16 %v2901, %v2893
    %v4814 = vpack.c.bf16 %v2910, %v2902
    %v4815 = vpack.c.bf16 %v2911, %v2903
    %v4816 = vpack.c.bf16 %v2912, %v2904
    %v4817 = vpack.c.bf16 %v2913, %v2905
    %v4818 = vpack.c.bf16 %v2914, %v2906
    %v4819 = vpack.c.bf16 %v2915, %v2907
    %v4820 = vpack.c.bf16 %v2916, %v2908
    %v4821 = vpack.c.bf16 %v2917, %v2909
    %v4822 = vpack.c.bf16 %v2926, %v2918
    %v4823 = vpack.c.bf16 %v2927, %v2919
    %v4824 = vpack.c.bf16 %v2928, %v2920
    %v4825 = vpack.c.bf16 %v2929, %v2921
    %v4826 = vpack.c.bf16 %v2930, %v2922
    %v4827 = vpack.c.bf16 %v2931, %v2923
    %v4828 = vpack.c.bf16 %v2932, %v2924
    %v4829 = vpack.c.bf16 %v2933, %v2925
    %v4830 = vpack.c.bf16 %v2942, %v2934
    %v4831 = vpack.c.bf16 %v2943, %v2935
    %v4832 = vpack.c.bf16 %v2944, %v2936
    %v4833 = vpack.c.bf16 %v2945, %v2937
    %v4834 = vpack.c.bf16 %v2946, %v2938
    %v4835 = vpack.c.bf16 %v2947, %v2939
    %v4836 = vpack.c.bf16 %v2948, %v2940
    %v4837 = vpack.c.bf16 %v2949, %v2941
    %v4838 = vpack.c.bf16 %v2958, %v2950
    %v4839 = vpack.c.bf16 %v2959, %v2951
    %v4840 = vpack.c.bf16 %v2960, %v2952
    %v4841 = vpack.c.bf16 %v2961, %v2953
    %v4842 = vpack.c.bf16 %v2962, %v2954
    %v4843 = vpack.c.bf16 %v2963, %v2955
    %v4844 = vpack.c.bf16 %v2964, %v2956
    %v4845 = vpack.c.bf16 %v2965, %v2957
    %v4846 = vpack.c.bf16 %v2974, %v2966
    %v4847 = vpack.c.bf16 %v2975, %v2967
    %v4848 = vpack.c.bf16 %v2976, %v2968
    %v4849 = vpack.c.bf16 %v2977, %v2969
    %v4850 = vpack.c.bf16 %v2978, %v2970
    %v4851 = vpack.c.bf16 %v2979, %v2971
    %v4852 = vpack.c.bf16 %v2980, %v2972
    %v4853 = vpack.c.bf16 %v2981, %v2973
    %v4854 = vpack.c.bf16 %v2990, %v2982
    %v4855 = vpack.c.bf16 %v2991, %v2983
    %v4856 = vpack.c.bf16 %v2992, %v2984
    %v4857 = vpack.c.bf16 %v2993, %v2985
    %v4858 = vpack.c.bf16 %v2994, %v2986
    %v4859 = vpack.c.bf16 %v2995, %v2987
    %v4860 = vpack.c.bf16 %v2996, %v2988
    %v4861 = vpack.c.bf16 %v2997, %v2989
    %v4862 = vpack.c.bf16 %v3006, %v2998
    %v4863 = vpack.c.bf16 %v3007, %v2999
    %v4864 = vpack.c.bf16 %v3008, %v3000
    %v4865 = vpack.c.bf16 %v3009, %v3001
    %v4866 = vpack.c.bf16 %v3010, %v3002
    %v4867 = vpack.c.bf16 %v3011, %v3003
    %v4868 = vpack.c.bf16 %v3012, %v3004
    %v4869 = vpack.c.bf16 %v3013, %v3005
    %v4870 = vpack.c.bf16 %v3022, %v3014
    %v4871 = vpack.c.bf16 %v3023, %v3015
    %v4872 = vpack.c.bf16 %v3024, %v3016
    %v4873 = vpack.c.bf16 %v3025, %v3017
    %v4874 = vpack.c.bf16 %v3026, %v3018
    %v4875 = vpack.c.bf16 %v3027, %v3019
    %v4876 = vpack.c.bf16 %v3028, %v3020
    %v4877 = vpack.c.bf16 %v3029, %v3021
    %v4878 = vpack.c.bf16 %v3038, %v3030
    %v4879 = vpack.c.bf16 %v3039, %v3031
    %v4880 = vpack.c.bf16 %v3040, %v3032
    %v4881 = vpack.c.bf16 %v3041, %v3033
    %v4882 = vpack.c.bf16 %v3042, %v3034
    %v4883 = vpack.c.bf16 %v3043, %v3035
    %v4884 = vpack.c.bf16 %v3044, %v3036
    %v4885 = vpack.c.bf16 %v3045, %v3037
    %v4886 = vpack.c.bf16 %v3054, %v3046
    %v4887 = vpack.c.bf16 %v3055, %v3047
    %v4888 = vpack.c.bf16 %v3056, %v3048
    %v4889 = vpack.c.bf16 %v3057, %v3049
    %v4890 = vpack.c.bf16 %v3058, %v3050
    %v4891 = vpack.c.bf16 %v3059, %v3051
    %v4892 = vpack.c.bf16 %v3060, %v3052
    %v4893 = vpack.c.bf16 %v3061, %v3053
    %v4894 = vpack.c.bf16 %v3070, %v3062
    %v4895 = vpack.c.bf16 %v3071, %v3063
    %v4896 = vpack.c.bf16 %v3072, %v3064
    %v4897 = vpack.c.bf16 %v3073, %v3065
    %v4898 = vpack.c.bf16 %v3074, %v3066
    %v4899 = vpack.c.bf16 %v3075, %v3067
    %v4900 = vpack.c.bf16 %v3076, %v3068
    %v4901 = vpack.c.bf16 %v3077, %v3069
    %v4902 = vpack.c.bf16 %v3086, %v3078
    %v4903 = vpack.c.bf16 %v3087, %v3079
    %v4904 = vpack.c.bf16 %v3088, %v3080
    %v4905 = vpack.c.bf16 %v3089, %v3081
    %v4906 = vpack.c.bf16 %v3090, %v3082
    %v4907 = vpack.c.bf16 %v3091, %v3083
    %v4908 = vpack.c.bf16 %v3092, %v3084
    %v4909 = vpack.c.bf16 %v3093, %v3085
    %v4910 = vpack.c.bf16 %v3102, %v3094
    %v4911 = vpack.c.bf16 %v3103, %v3095
    %v4912 = vpack.c.bf16 %v3104, %v3096
    %v4913 = vpack.c.bf16 %v3105, %v3097
    %v4914 = vpack.c.bf16 %v3106, %v3098
    %v4915 = vpack.c.bf16 %v3107, %v3099
    %v4916 = vpack.c.bf16 %v3108, %v3100
    %v4917 = vpack.c.bf16 %v3109, %v3101
    %v4918 = vpack.c.bf16 %v3118, %v3110
    %v4919 = vpack.c.bf16 %v3119, %v3111
    %v4920 = vpack.c.bf16 %v3120, %v3112
    %v4921 = vpack.c.bf16 %v3121, %v3113
    %v4922 = vpack.c.bf16 %v3122, %v3114
    %v4923 = vpack.c.bf16 %v3123, %v3115
    %v4924 = vpack.c.bf16 %v3124, %v3116
    %v4925 = vpack.c.bf16 %v3125, %v3117
    %v4926 = vpack.c.bf16 %v3134, %v3126
    %v4927 = vpack.c.bf16 %v3135, %v3127
    %v4928 = vpack.c.bf16 %v3136, %v3128
    %v4929 = vpack.c.bf16 %v3137, %v3129
    %v4930 = vpack.c.bf16 %v3138, %v3130
    %v4931 = vpack.c.bf16 %v3139, %v3131
    %v4932 = vpack.c.bf16 %v3140, %v3132
    %v4933 = vpack.c.bf16 %v3141, %v3133
    %v4934 = vpack.c.bf16 %v3150, %v3142
    %v4935 = vpack.c.bf16 %v3151, %v3143
    %v4936 = vpack.c.bf16 %v3152, %v3144
    %v4937 = vpack.c.bf16 %v3153, %v3145
    %v4938 = vpack.c.bf16 %v3154, %v3146
    %v4939 = vpack.c.bf16 %v3155, %v3147
    %v4940 = vpack.c.bf16 %v3156, %v3148
    %v4941 = vpack.c.bf16 %v3157, %v3149
    %v4942 = vpack.c.bf16 %v3166, %v3158
    %v4943 = vpack.c.bf16 %v3167, %v3159
    %v4944 = vpack.c.bf16 %v3168, %v3160
    %v4945 = vpack.c.bf16 %v3169, %v3161
    %v4946 = vpack.c.bf16 %v3170, %v3162
    %v4947 = vpack.c.bf16 %v3171, %v3163
    %v4948 = vpack.c.bf16 %v3172, %v3164
    %v4949 = vpack.c.bf16 %v3173, %v3165
    %v4950 = vpack.c.bf16 %v3182, %v3174
    %v4951 = vpack.c.bf16 %v3183, %v3175
    %v4952 = vpack.c.bf16 %v3184, %v3176
    %v4953 = vpack.c.bf16 %v3185, %v3177
    %v4954 = vpack.c.bf16 %v3186, %v3178
    %v4955 = vpack.c.bf16 %v3187, %v3179
    %v4956 = vpack.c.bf16 %v3188, %v3180
    %v4957 = vpack.c.bf16 %v3189, %v3181
    %v4958 = vpack.c.bf16 %v3198, %v3190
    %v4959 = vpack.c.bf16 %v3199, %v3191
    %v4960 = vpack.c.bf16 %v3200, %v3192
    %v4961 = vpack.c.bf16 %v3201, %v3193
    %v4962 = vpack.c.bf16 %v3202, %v3194
    %v4963 = vpack.c.bf16 %v3203, %v3195
    %v4964 = vpack.c.bf16 %v3204, %v3196
    %v4965 = vpack.c.bf16 %v3205, %v3197
    %v4966 = vpack.c.bf16 %v3214, %v3206
    %v4967 = vpack.c.bf16 %v3215, %v3207
    %v4968 = vpack.c.bf16 %v3216, %v3208
    %v4969 = vpack.c.bf16 %v3217, %v3209
    %v4970 = vpack.c.bf16 %v3218, %v3210
    %v4971 = vpack.c.bf16 %v3219, %v3211
    %v4972 = vpack.c.bf16 %v3220, %v3212
    %v4973 = vpack.c.bf16 %v3221, %v3213
    %v4974 = vpack.c.bf16 %v3230, %v3222
    %v4975 = vpack.c.bf16 %v3231, %v3223
    %v4976 = vpack.c.bf16 %v3232, %v3224
    %v4977 = vpack.c.bf16 %v3233, %v3225
    %v4978 = vpack.c.bf16 %v3234, %v3226
    %v4979 = vpack.c.bf16 %v3235, %v3227
    %v4980 = vpack.c.bf16 %v3236, %v3228
    %v4981 = vpack.c.bf16 %v3237, %v3229
    %v4982 = vpack.c.bf16 %v3246, %v3238
    %v4983 = vpack.c.bf16 %v3247, %v3239
    %v4984 = vpack.c.bf16 %v3248, %v3240
    %v4985 = vpack.c.bf16 %v3249, %v3241
    %v4986 = vpack.c.bf16 %v3250, %v3242
    %v4987 = vpack.c.bf16 %v3251, %v3243
    %v4988 = vpack.c.bf16 %v3252, %v3244
    %v4989 = vpack.c.bf16 %v3253, %v3245
    %v4990 = vpack.c.bf16 %v3262, %v3254
    %v4991 = vpack.c.bf16 %v3263, %v3255
    %v4992 = vpack.c.bf16 %v3264, %v3256
    %v4993 = vpack.c.bf16 %v3265, %v3257
    %v4994 = vpack.c.bf16 %v3266, %v3258
    %v4995 = vpack.c.bf16 %v3267, %v3259
    %v4996 = vpack.c.bf16 %v3268, %v3260
    %v4997 = vpack.c.bf16 %v3269, %v3261
    %v4998 = vpack.c.bf16 %v3278, %v3270
    %v4999 = vpack.c.bf16 %v3279, %v3271
    %v5000 = vpack.c.bf16 %v3280, %v3272
    %v5001 = vpack.c.bf16 %v3281, %v3273
    %v5002 = vpack.c.bf16 %v3282, %v3274
    %v5003 = vpack.c.bf16 %v3283, %v3275
    %v5004 = vpack.c.bf16 %v3284, %v3276
    %v5005 = vpack.c.bf16 %v3285, %v3277
    %v5006 = vpack.c.bf16 %v3294, %v3286
    %v5007 = vpack.c.bf16 %v3295, %v3287
    %v5008 = vpack.c.bf16 %v3296, %v3288
    %v5009 = vpack.c.bf16 %v3297, %v3289
    %v5010 = vpack.c.bf16 %v3298, %v3290
    %v5011 = vpack.c.bf16 %v3299, %v3291
    %v5012 = vpack.c.bf16 %v3300, %v3292
    %v5013 = vpack.c.bf16 %v3301, %v3293
    %v5014 = vpack.c.bf16 %v3310, %v3302
    %v5015 = vpack.c.bf16 %v3311, %v3303
    %v5016 = vpack.c.bf16 %v3312, %v3304
    %v5017 = vpack.c.bf16 %v3313, %v3305
    %v5018 = vpack.c.bf16 %v3314, %v3306
    %v5019 = vpack.c.bf16 %v3315, %v3307
    %v5020 = vpack.c.bf16 %v3316, %v3308
    %v5021 = vpack.c.bf16 %v3317, %v3309
    %v5022 = vpack.c.bf16 %v3326, %v3318
    %v5023 = vpack.c.bf16 %v3327, %v3319
    %v5024 = vpack.c.bf16 %v3328, %v3320
    %v5025 = vpack.c.bf16 %v3329, %v3321
    %v5026 = vpack.c.bf16 %v3330, %v3322
    %v5027 = vpack.c.bf16 %v3331, %v3323
    %v5028 = vpack.c.bf16 %v3332, %v3324
    %v5029 = vpack.c.bf16 %v3333, %v3325
    %v5030 = vpack.c.bf16 %v3342, %v3334
    %v5031 = vpack.c.bf16 %v3343, %v3335
    %v5032 = vpack.c.bf16 %v3344, %v3336
    %v5033 = vpack.c.bf16 %v3345, %v3337
    %v5034 = vpack.c.bf16 %v3346, %v3338
    %v5035 = vpack.c.bf16 %v3347, %v3339
    %v5036 = vpack.c.bf16 %v3348, %v3340
    %v5037 = vpack.c.bf16 %v3349, %v3341
    %v5038 = vpack.c.bf16 %v3358, %v3350
    %v5039 = vpack.c.bf16 %v3359, %v3351
    %v5040 = vpack.c.bf16 %v3360, %v3352
    %v5041 = vpack.c.bf16 %v3361, %v3353
    %v5042 = vpack.c.bf16 %v3362, %v3354
    %v5043 = vpack.c.bf16 %v3363, %v3355
    %v5044 = vpack.c.bf16 %v3364, %v3356
    %v5045 = vpack.c.bf16 %v3365, %v3357
    %v5046 = vpack.c.bf16 %v3374, %v3366
    %v5047 = vpack.c.bf16 %v3375, %v3367
    %v5048 = vpack.c.bf16 %v3376, %v3368
    %v5049 = vpack.c.bf16 %v3377, %v3369
    %v5050 = vpack.c.bf16 %v3378, %v3370
    %v5051 = vpack.c.bf16 %v3379, %v3371
    %v5052 = vpack.c.bf16 %v3380, %v3372
    %v5053 = vpack.c.bf16 %v3381, %v3373
    %v5054 = vpack.c.bf16 %v3390, %v3382
    %v5055 = vpack.c.bf16 %v3391, %v3383
    %v5056 = vpack.c.bf16 %v3392, %v3384
    %v5057 = vpack.c.bf16 %v3393, %v3385
    %v5058 = vpack.c.bf16 %v3394, %v3386
    %v5059 = vpack.c.bf16 %v3395, %v3387
    %v5060 = vpack.c.bf16 %v3396, %v3388
    %v5061 = vpack.c.bf16 %v3397, %v3389
    %v5062 = vpack.c.bf16 %v3406, %v3398
    %v5063 = vpack.c.bf16 %v3407, %v3399
    %v5064 = vpack.c.bf16 %v3408, %v3400
    %v5065 = vpack.c.bf16 %v3409, %v3401
    %v5066 = vpack.c.bf16 %v3410, %v3402
    %v5067 = vpack.c.bf16 %v3411, %v3403
    %v5068 = vpack.c.bf16 %v3412, %v3404
    %v5069 = vpack.c.bf16 %v3413, %v3405
    %v5070 = vpack.c.bf16 %v3422, %v3414
    %v5071 = vpack.c.bf16 %v3423, %v3415
    %v5072 = vpack.c.bf16 %v3424, %v3416
    %v5073 = vpack.c.bf16 %v3425, %v3417
    %v5074 = vpack.c.bf16 %v3426, %v3418
    %v5075 = vpack.c.bf16 %v3427, %v3419
    %v5076 = vpack.c.bf16 %v3428, %v3420
    %v5077 = vpack.c.bf16 %v3429, %v3421
    %v5078 = vpack.c.bf16 %v3438, %v3430
    %v5079 = vpack.c.bf16 %v3439, %v3431
    %v5080 = vpack.c.bf16 %v3440, %v3432
    %v5081 = vpack.c.bf16 %v3441, %v3433
    %v5082 = vpack.c.bf16 %v3442, %v3434
    %v5083 = vpack.c.bf16 %v3443, %v3435
    %v5084 = vpack.c.bf16 %v3444, %v3436
    %v5085 = vpack.c.bf16 %v3445, %v3437
    %v5086 = vpack.c.bf16 %v3454, %v3446
    %v5087 = vpack.c.bf16 %v3455, %v3447
    %v5088 = vpack.c.bf16 %v3456, %v3448
    %v5089 = vpack.c.bf16 %v3457, %v3449
    %v5090 = vpack.c.bf16 %v3458, %v3450
    %v5091 = vpack.c.bf16 %v3459, %v3451
    %v5092 = vpack.c.bf16 %v3460, %v3452
    %v5093 = vpack.c.bf16 %v3461, %v3453
    %v5094 = vpack.c.bf16 %v3470, %v3462
    %v5095 = vpack.c.bf16 %v3471, %v3463
    %v5096 = vpack.c.bf16 %v3472, %v3464
    %v5097 = vpack.c.bf16 %v3473, %v3465
    %v5098 = vpack.c.bf16 %v3474, %v3466
    %v5099 = vpack.c.bf16 %v3475, %v3467
    %v5100 = vpack.c.bf16 %v3476, %v3468
    %v5101 = vpack.c.bf16 %v3477, %v3469
    %v5102 = vpack.c.bf16 %v3486, %v3478
    %v5103 = vpack.c.bf16 %v3487, %v3479
    %v5104 = vpack.c.bf16 %v3488, %v3480
    %v5105 = vpack.c.bf16 %v3489, %v3481
    %v5106 = vpack.c.bf16 %v3490, %v3482
    %v5107 = vpack.c.bf16 %v3491, %v3483
    %v5108 = vpack.c.bf16 %v3492, %v3484
    %v5109 = vpack.c.bf16 %v3493, %v3485
    %v5110 = vpack.c.bf16 %v3502, %v3494
    %v5111 = vpack.c.bf16 %v3503, %v3495
    %v5112 = vpack.c.bf16 %v3504, %v3496
    %v5113 = vpack.c.bf16 %v3505, %v3497
    %v5114 = vpack.c.bf16 %v3506, %v3498
    %v5115 = vpack.c.bf16 %v3507, %v3499
    %v5116 = vpack.c.bf16 %v3508, %v3500
    %v5117 = vpack.c.bf16 %v3509, %v3501
    %v5118 = vpack.c.bf16 %v3518, %v3510
    %v5119 = vpack.c.bf16 %v3519, %v3511
    %v5120 = vpack.c.bf16 %v3520, %v3512
    %v5121 = vpack.c.bf16 %v3521, %v3513
    %v5122 = vpack.c.bf16 %v3522, %v3514
    %v5123 = vpack.c.bf16 %v3523, %v3515
    %v5124 = vpack.c.bf16 %v3524, %v3516
    %v5125 = vpack.c.bf16 %v3525, %v3517
    %v5126 = vpack.c.bf16 %v3534, %v3526
    %v5127 = vpack.c.bf16 %v3535, %v3527
    %v5128 = vpack.c.bf16 %v3536, %v3528
    %v5129 = vpack.c.bf16 %v3537, %v3529
    %v5130 = vpack.c.bf16 %v3538, %v3530
    %v5131 = vpack.c.bf16 %v3539, %v3531
    %v5132 = vpack.c.bf16 %v3540, %v3532
    %v5133 = vpack.c.bf16 %v3541, %v3533
    %v5134 = vpack.c.bf16 %v3550, %v3542
    %v5135 = vpack.c.bf16 %v3551, %v3543
    %v5136 = vpack.c.bf16 %v3552, %v3544
    %v5137 = vpack.c.bf16 %v3553, %v3545
    %v5138 = vpack.c.bf16 %v3554, %v3546
    %v5139 = vpack.c.bf16 %v3555, %v3547
    %v5140 = vpack.c.bf16 %v3556, %v3548
    %v5141 = vpack.c.bf16 %v3557, %v3549
    %v5142 = vpack.c.bf16 %v3566, %v3558
    %v5143 = vpack.c.bf16 %v3567, %v3559
    %v5144 = vpack.c.bf16 %v3568, %v3560
    %v5145 = vpack.c.bf16 %v3569, %v3561
    %v5146 = vpack.c.bf16 %v3570, %v3562
    %v5147 = vpack.c.bf16 %v3571, %v3563
    %v5148 = vpack.c.bf16 %v3572, %v3564
    %v5149 = vpack.c.bf16 %v3573, %v3565
    %v5150 = vpack.c.bf16 %v3582, %v3574
    %v5151 = vpack.c.bf16 %v3583, %v3575
    %v5152 = vpack.c.bf16 %v3584, %v3576
    %v5153 = vpack.c.bf16 %v3585, %v3577
    %v5154 = vpack.c.bf16 %v3586, %v3578
    %v5155 = vpack.c.bf16 %v3587, %v3579
    %v5156 = vpack.c.bf16 %v3588, %v3580
    %v5157 = vpack.c.bf16 %v3589, %v3581
    %v5158 = vpack.c.bf16 %v3598, %v3590
    %v5159 = vpack.c.bf16 %v3599, %v3591
    %v5160 = vpack.c.bf16 %v3600, %v3592
    %v5161 = vpack.c.bf16 %v3601, %v3593
    %v5162 = vpack.c.bf16 %v3602, %v3594
    %v5163 = vpack.c.bf16 %v3603, %v3595
    %v5164 = vpack.c.bf16 %v3604, %v3596
    %v5165 = vpack.c.bf16 %v3605, %v3597
    %v5166 = vpack.c.bf16 %v3614, %v3606
    %v5167 = vpack.c.bf16 %v3615, %v3607
    %v5168 = vpack.c.bf16 %v3616, %v3608
    %v5169 = vpack.c.bf16 %v3617, %v3609
    %v5170 = vpack.c.bf16 %v3618, %v3610
    %v5171 = vpack.c.bf16 %v3619, %v3611
    %v5172 = vpack.c.bf16 %v3620, %v3612
    %v5173 = vpack.c.bf16 %v3621, %v3613
    %v5174 = vpack.c.bf16 %v3630, %v3622
    %v5175 = vpack.c.bf16 %v3631, %v3623
    %v5176 = vpack.c.bf16 %v3632, %v3624
    %v5177 = vpack.c.bf16 %v3633, %v3625
    %v5178 = vpack.c.bf16 %v3634, %v3626
    %v5179 = vpack.c.bf16 %v3635, %v3627
    %v5180 = vpack.c.bf16 %v3636, %v3628
    %v5181 = vpack.c.bf16 %v3637, %v3629
    %v5182 = vpack.c.bf16 %v3646, %v3638
    %v5183 = vpack.c.bf16 %v3647, %v3639
    %v5184 = vpack.c.bf16 %v3648, %v3640
    %v5185 = vpack.c.bf16 %v3649, %v3641
    %v5186 = vpack.c.bf16 %v3650, %v3642
    %v5187 = vpack.c.bf16 %v3651, %v3643
    %v5188 = vpack.c.bf16 %v3652, %v3644
    %v5189 = vpack.c.bf16 %v3653, %v3645
    %v5190 = vpack.c.bf16 %v3662, %v3654
    %v5191 = vpack.c.bf16 %v3663, %v3655
    %v5192 = vpack.c.bf16 %v3664, %v3656
    %v5193 = vpack.c.bf16 %v3665, %v3657
    %v5194 = vpack.c.bf16 %v3666, %v3658
    %v5195 = vpack.c.bf16 %v3667, %v3659
    %v5196 = vpack.c.bf16 %v3668, %v3660
    %v5197 = vpack.c.bf16 %v3669, %v3661
    %v5198 = vpack.c.bf16 %v3678, %v3670
    %v5199 = vpack.c.bf16 %v3679, %v3671
    %v5200 = vpack.c.bf16 %v3680, %v3672
    %v5201 = vpack.c.bf16 %v3681, %v3673
    %v5202 = vpack.c.bf16 %v3682, %v3674
    %v5203 = vpack.c.bf16 %v3683, %v3675
    %v5204 = vpack.c.bf16 %v3684, %v3676
    %v5205 = vpack.c.bf16 %v3685, %v3677
    %v5206 = vpack.c.bf16 %v3694, %v3686
    %v5207 = vpack.c.bf16 %v3695, %v3687
    %v5208 = vpack.c.bf16 %v3696, %v3688
    %v5209 = vpack.c.bf16 %v3697, %v3689
    %v5210 = vpack.c.bf16 %v3698, %v3690
    %v5211 = vpack.c.bf16 %v3699, %v3691
    %v5212 = vpack.c.bf16 %v3700, %v3692
    %v5213 = vpack.c.bf16 %v3701, %v3693
    %v5214 = vpack.c.bf16 %v3710, %v3702
    %v5215 = vpack.c.bf16 %v3711, %v3703
    %v5216 = vpack.c.bf16 %v3712, %v3704
    %v5217 = vpack.c.bf16 %v3713, %v3705
    %v5218 = vpack.c.bf16 %v3714, %v3706
    %v5219 = vpack.c.bf16 %v3715, %v3707
    %v5220 = vpack.c.bf16 %v3716, %v3708
    %v5221 = vpack.c.bf16 %v3717, %v3709
    %v5222 = vpack.c.bf16 %v3726, %v3718
    %v5223 = vpack.c.bf16 %v3727, %v3719
    %v5224 = vpack.c.bf16 %v3728, %v3720
    %v5225 = vpack.c.bf16 %v3729, %v3721
    %v5226 = vpack.c.bf16 %v3730, %v3722
    %v5227 = vpack.c.bf16 %v3731, %v3723
    %v5228 = vpack.c.bf16 %v3732, %v3724
    %v5229 = vpack.c.bf16 %v3733, %v3725
    %v5230 = vpack.c.bf16 %v3742, %v3734
    %v5231 = vpack.c.bf16 %v3743, %v3735
    %v5232 = vpack.c.bf16 %v3744, %v3736
    %v5233 = vpack.c.bf16 %v3745, %v3737
    %v5234 = vpack.c.bf16 %v3746, %v3738
    %v5235 = vpack.c.bf16 %v3747, %v3739
    %v5236 = vpack.c.bf16 %v3748, %v3740
    %v5237 = vpack.c.bf16 %v3749, %v3741
    %v5238 = vpack.c.bf16 %v3758, %v3750
    %v5239 = vpack.c.bf16 %v3759, %v3751
    %v5240 = vpack.c.bf16 %v3760, %v3752
    %v5241 = vpack.c.bf16 %v3761, %v3753
    %v5242 = vpack.c.bf16 %v3762, %v3754
    %v5243 = vpack.c.bf16 %v3763, %v3755
    %v5244 = vpack.c.bf16 %v3764, %v3756
    %v5245 = vpack.c.bf16 %v3765, %v3757
    %v5246 = vpack.c.bf16 %v3774, %v3766
    %v5247 = vpack.c.bf16 %v3775, %v3767
    %v5248 = vpack.c.bf16 %v3776, %v3768
    %v5249 = vpack.c.bf16 %v3777, %v3769
    %v5250 = vpack.c.bf16 %v3778, %v3770
    %v5251 = vpack.c.bf16 %v3779, %v3771
    %v5252 = vpack.c.bf16 %v3780, %v3772
    %v5253 = vpack.c.bf16 %v3781, %v3773
    %v5254 = vpack.c.bf16 %v3790, %v3782
    %v5255 = vpack.c.bf16 %v3791, %v3783
    %v5256 = vpack.c.bf16 %v3792, %v3784
    %v5257 = vpack.c.bf16 %v3793, %v3785
    %v5258 = vpack.c.bf16 %v3794, %v3786
    %v5259 = vpack.c.bf16 %v3795, %v3787
    %v5260 = vpack.c.bf16 %v3796, %v3788
    %v5261 = vpack.c.bf16 %v3797, %v3789
    %v5262 = vpack.c.bf16 %v3806, %v3798
    %v5263 = vpack.c.bf16 %v3807, %v3799
    %v5264 = vpack.c.bf16 %v3808, %v3800
    %v5265 = vpack.c.bf16 %v3809, %v3801
    %v5266 = vpack.c.bf16 %v3810, %v3802
    %v5267 = vpack.c.bf16 %v3811, %v3803
    %v5268 = vpack.c.bf16 %v3812, %v3804
    %v5269 = vpack.c.bf16 %v3813, %v3805
    %v5270 = vpack.c.bf16 %v3822, %v3814
    %v5271 = vpack.c.bf16 %v3823, %v3815
    %v5272 = vpack.c.bf16 %v3824, %v3816
    %v5273 = vpack.c.bf16 %v3825, %v3817
    %v5274 = vpack.c.bf16 %v3826, %v3818
    %v5275 = vpack.c.bf16 %v3827, %v3819
    %v5276 = vpack.c.bf16 %v3828, %v3820
    %v5277 = vpack.c.bf16 %v3829, %v3821
    %v5278 = vpack.c.bf16 %v3838, %v3830
    %v5279 = vpack.c.bf16 %v3839, %v3831
    %v5280 = vpack.c.bf16 %v3840, %v3832
    %v5281 = vpack.c.bf16 %v3841, %v3833
    %v5282 = vpack.c.bf16 %v3842, %v3834
    %v5283 = vpack.c.bf16 %v3843, %v3835
    %v5284 = vpack.c.bf16 %v3844, %v3836
    %v5285 = vpack.c.bf16 %v3845, %v3837
    %v5286 = vpack.c.bf16 %v3854, %v3846
    %v5287 = vpack.c.bf16 %v3855, %v3847
    %v5288 = vpack.c.bf16 %v3856, %v3848
    %v5289 = vpack.c.bf16 %v3857, %v3849
    %v5290 = vpack.c.bf16 %v3858, %v3850
    %v5291 = vpack.c.bf16 %v3859, %v3851
    %v5292 = vpack.c.bf16 %v3860, %v3852
    %v5293 = vpack.c.bf16 %v3861, %v3853
    %v5294 = vpack.c.bf16 %v3870, %v3862
    %v5295 = vpack.c.bf16 %v3871, %v3863
    %v5296 = vpack.c.bf16 %v3872, %v3864
    %v5297 = vpack.c.bf16 %v3873, %v3865
    %v5298 = vpack.c.bf16 %v3874, %v3866
    %v5299 = vpack.c.bf16 %v3875, %v3867
    %v5300 = vpack.c.bf16 %v3876, %v3868
    %v5301 = vpack.c.bf16 %v3877, %v3869
    %v5302 = vpack.c.bf16 %v3886, %v3878
    %v5303 = vpack.c.bf16 %v3887, %v3879
    %v5304 = vpack.c.bf16 %v3888, %v3880
    %v5305 = vpack.c.bf16 %v3889, %v3881
    %v5306 = vpack.c.bf16 %v3890, %v3882
    %v5307 = vpack.c.bf16 %v3891, %v3883
    %v5308 = vpack.c.bf16 %v3892, %v3884
    %v5309 = vpack.c.bf16 %v3893, %v3885
    %v5310 = vpack.c.bf16 %v3902, %v3894
    %v5311 = vpack.c.bf16 %v3903, %v3895
    %v5312 = vpack.c.bf16 %v3904, %v3896
    %v5313 = vpack.c.bf16 %v3905, %v3897
    %v5314 = vpack.c.bf16 %v3906, %v3898
    %v5315 = vpack.c.bf16 %v3907, %v3899
    %v5316 = vpack.c.bf16 %v3908, %v3900
    %v5317 = vpack.c.bf16 %v3909, %v3901
    %v5318 = vpack.c.bf16 %v3918, %v3910
    %v5319 = vpack.c.bf16 %v3919, %v3911
    %v5320 = vpack.c.bf16 %v3920, %v3912
    %v5321 = vpack.c.bf16 %v3921, %v3913
    %v5322 = vpack.c.bf16 %v3922, %v3914
    %v5323 = vpack.c.bf16 %v3923, %v3915
    %v5324 = vpack.c.bf16 %v3924, %v3916
    %v5325 = vpack.c.bf16 %v3925, %v3917
    %v5326 = vpack.c.bf16 %v3934, %v3926
    %v5327 = vpack.c.bf16 %v3935, %v3927
    %v5328 = vpack.c.bf16 %v3936, %v3928
    %v5329 = vpack.c.bf16 %v3937, %v3929
    %v5330 = vpack.c.bf16 %v3938, %v3930
    %v5331 = vpack.c.bf16 %v3939, %v3931
    %v5332 = vpack.c.bf16 %v3940, %v3932
    %v5333 = vpack.c.bf16 %v3941, %v3933
    %v5334 = vpack.c.bf16 %v3950, %v3942
    %v5335 = vpack.c.bf16 %v3951, %v3943
    %v5336 = vpack.c.bf16 %v3952, %v3944
    %v5337 = vpack.c.bf16 %v3953, %v3945
    %v5338 = vpack.c.bf16 %v3954, %v3946
    %v5339 = vpack.c.bf16 %v3955, %v3947
    %v5340 = vpack.c.bf16 %v3956, %v3948
    %v5341 = vpack.c.bf16 %v3957, %v3949
    %v5342 = vpack.c.bf16 %v3966, %v3958
    %v5343 = vpack.c.bf16 %v3967, %v3959
    %v5344 = vpack.c.bf16 %v3968, %v3960
    %v5345 = vpack.c.bf16 %v3969, %v3961
    %v5346 = vpack.c.bf16 %v3970, %v3962
    %v5347 = vpack.c.bf16 %v3971, %v3963
    %v5348 = vpack.c.bf16 %v3972, %v3964
    %v5349 = vpack.c.bf16 %v3973, %v3965
    %v5350 = vpack.c.bf16 %v3982, %v3974
    %v5351 = vpack.c.bf16 %v3983, %v3975
    %v5352 = vpack.c.bf16 %v3984, %v3976
    %v5353 = vpack.c.bf16 %v3985, %v3977
    %v5354 = vpack.c.bf16 %v3986, %v3978
    %v5355 = vpack.c.bf16 %v3987, %v3979
    %v5356 = vpack.c.bf16 %v3988, %v3980
    %v5357 = vpack.c.bf16 %v3989, %v3981
    %v5358 = vpack.c.bf16 %v3998, %v3990
    %v5359 = vpack.c.bf16 %v3999, %v3991
    %v5360 = vpack.c.bf16 %v4000, %v3992
    %v5361 = vpack.c.bf16 %v4001, %v3993
    %v5362 = vpack.c.bf16 %v4002, %v3994
    %v5363 = vpack.c.bf16 %v4003, %v3995
    %v5364 = vpack.c.bf16 %v4004, %v3996
    %v5365 = vpack.c.bf16 %v4005, %v3997
    %v5366 = vpack.c.bf16 %v4014, %v4006
    %v5367 = vpack.c.bf16 %v4015, %v4007
    %v5368 = vpack.c.bf16 %v4016, %v4008
    %v5369 = vpack.c.bf16 %v4017, %v4009
    %v5370 = vpack.c.bf16 %v4018, %v4010
    %v5371 = vpack.c.bf16 %v4019, %v4011
    %v5372 = vpack.c.bf16 %v4020, %v4012
    %v5373 = vpack.c.bf16 %v4021, %v4013
    %v5374 = vpack.c.bf16 %v4030, %v4022
    %v5375 = vpack.c.bf16 %v4031, %v4023
    %v5376 = vpack.c.bf16 %v4032, %v4024
    %v5377 = vpack.c.bf16 %v4033, %v4025
    %v5378 = vpack.c.bf16 %v4034, %v4026
    %v5379 = vpack.c.bf16 %v4035, %v4027
    %v5380 = vpack.c.bf16 %v4036, %v4028
    %v5381 = vpack.c.bf16 %v4037, %v4029
    %v5382 = vpack.c.bf16 %v4046, %v4038
    %v5383 = vpack.c.bf16 %v4047, %v4039
    %v5384 = vpack.c.bf16 %v4048, %v4040
    %v5385 = vpack.c.bf16 %v4049, %v4041
    %v5386 = vpack.c.bf16 %v4050, %v4042
    %v5387 = vpack.c.bf16 %v4051, %v4043
    %v5388 = vpack.c.bf16 %v4052, %v4044
    %v5389 = vpack.c.bf16 %v4053, %v4045
    %v5390 = vpack.c.bf16 %v4062, %v4054
    %v5391 = vpack.c.bf16 %v4063, %v4055
    %v5392 = vpack.c.bf16 %v4064, %v4056
    %v5393 = vpack.c.bf16 %v4065, %v4057
    %v5394 = vpack.c.bf16 %v4066, %v4058
    %v5395 = vpack.c.bf16 %v4067, %v4059
    %v5396 = vpack.c.bf16 %v4068, %v4060
    %v5397 = vpack.c.bf16 %v4069, %v4061
    %v5398 = vpack.c.bf16 %v4078, %v4070
    %v5399 = vpack.c.bf16 %v4079, %v4071
    %v5400 = vpack.c.bf16 %v4080, %v4072
    %v5401 = vpack.c.bf16 %v4081, %v4073
    %v5402 = vpack.c.bf16 %v4082, %v4074
    %v5403 = vpack.c.bf16 %v4083, %v4075
    %v5404 = vpack.c.bf16 %v4084, %v4076
    %v5405 = vpack.c.bf16 %v4085, %v4077
    %v5406 = vpack.c.bf16 %v4094, %v4086
    %v5407 = vpack.c.bf16 %v4095, %v4087
    %v5408 = vpack.c.bf16 %v4096, %v4088
    %v5409 = vpack.c.bf16 %v4097, %v4089
    %v5410 = vpack.c.bf16 %v4098, %v4090
    %v5411 = vpack.c.bf16 %v4099, %v4091
    %v5412 = vpack.c.bf16 %v4100, %v4092
    %v5413 = vpack.c.bf16 %v4101, %v4093
    %v5414 = vpack.c.bf16 %v4110, %v4102
    %v5415 = vpack.c.bf16 %v4111, %v4103
    %v5416 = vpack.c.bf16 %v4112, %v4104
    %v5417 = vpack.c.bf16 %v4113, %v4105
    %v5418 = vpack.c.bf16 %v4114, %v4106
    %v5419 = vpack.c.bf16 %v4115, %v4107
    %v5420 = vpack.c.bf16 %v4116, %v4108
    %v5421 = vpack.c.bf16 %v4117, %v4109
    %v5422 = vpack.c.bf16 %v4126, %v4118
    %v5423 = vpack.c.bf16 %v4127, %v4119
    %v5424 = vpack.c.bf16 %v4128, %v4120
    %v5425 = vpack.c.bf16 %v4129, %v4121
    %v5426 = vpack.c.bf16 %v4130, %v4122
    %v5427 = vpack.c.bf16 %v4131, %v4123
    %v5428 = vpack.c.bf16 %v4132, %v4124
    %v5429 = vpack.c.bf16 %v4133, %v4125
    %v5430 = vpack.c.bf16 %v4142, %v4134
    %v5431 = vpack.c.bf16 %v4143, %v4135
    %v5432 = vpack.c.bf16 %v4144, %v4136
    %v5433 = vpack.c.bf16 %v4145, %v4137
    %v5434 = vpack.c.bf16 %v4146, %v4138
    %v5435 = vpack.c.bf16 %v4147, %v4139
    %v5436 = vpack.c.bf16 %v4148, %v4140
    %v5437 = vpack.c.bf16 %v4149, %v4141
    %v5438 = vpack.c.bf16 %v4158, %v4150
    %v5439 = vpack.c.bf16 %v4159, %v4151
    %v5440 = vpack.c.bf16 %v4160, %v4152
    %v5441 = vpack.c.bf16 %v4161, %v4153
    %v5442 = vpack.c.bf16 %v4162, %v4154
    %v5443 = vpack.c.bf16 %v4163, %v4155
    %v5444 = vpack.c.bf16 %v4164, %v4156
    %v5445 = vpack.c.bf16 %v4165, %v4157
    %v5446 = vpack.c.bf16 %v4174, %v4166
    %v5447 = vpack.c.bf16 %v4175, %v4167
    %v5448 = vpack.c.bf16 %v4176, %v4168
    %v5449 = vpack.c.bf16 %v4177, %v4169
    %v5450 = vpack.c.bf16 %v4178, %v4170
    %v5451 = vpack.c.bf16 %v4179, %v4171
    %v5452 = vpack.c.bf16 %v4180, %v4172
    %v5453 = vpack.c.bf16 %v4181, %v4173
    %v5454 = vpack.c.bf16 %v4190, %v4182
    %v5455 = vpack.c.bf16 %v4191, %v4183
    %v5456 = vpack.c.bf16 %v4192, %v4184
    %v5457 = vpack.c.bf16 %v4193, %v4185
    %v5458 = vpack.c.bf16 %v4194, %v4186
    %v5459 = vpack.c.bf16 %v4195, %v4187
    %v5460 = vpack.c.bf16 %v4196, %v4188
    %v5461 = vpack.c.bf16 %v4197, %v4189
    %v5462 = vpack.c.bf16 %v4206, %v4198
    %v5463 = vpack.c.bf16 %v4207, %v4199
    %v5464 = vpack.c.bf16 %v4208, %v4200
    %v5465 = vpack.c.bf16 %v4209, %v4201
    %v5466 = vpack.c.bf16 %v4210, %v4202
    %v5467 = vpack.c.bf16 %v4211, %v4203
    %v5468 = vpack.c.bf16 %v4212, %v4204
    %v5469 = vpack.c.bf16 %v4213, %v4205
    %v5470 = vpack.c.bf16 %v4222, %v4214
    %v5471 = vpack.c.bf16 %v4223, %v4215
    %v5472 = vpack.c.bf16 %v4224, %v4216
    %v5473 = vpack.c.bf16 %v4225, %v4217
    %v5474 = vpack.c.bf16 %v4226, %v4218
    %v5475 = vpack.c.bf16 %v4227, %v4219
    %v5476 = vpack.c.bf16 %v4228, %v4220
    %v5477 = vpack.c.bf16 %v4229, %v4221
    %v5478 = vpack.c.bf16 %v4238, %v4230
    %v5479 = vpack.c.bf16 %v4239, %v4231
    %v5480 = vpack.c.bf16 %v4240, %v4232
    %v5481 = vpack.c.bf16 %v4241, %v4233
    %v5482 = vpack.c.bf16 %v4242, %v4234
    %v5483 = vpack.c.bf16 %v4243, %v4235
    %v5484 = vpack.c.bf16 %v4244, %v4236
    %v5485 = vpack.c.bf16 %v4245, %v4237
    %v5486 = vpack.c.bf16 %v4254, %v4246
    %v5487 = vpack.c.bf16 %v4255, %v4247
    %v5488 = vpack.c.bf16 %v4256, %v4248
    %v5489 = vpack.c.bf16 %v4257, %v4249
    %v5490 = vpack.c.bf16 %v4258, %v4250
    %v5491 = vpack.c.bf16 %v4259, %v4251
    %v5492 = vpack.c.bf16 %v4260, %v4252
    %v5493 = vpack.c.bf16 %v4261, %v4253
    %v5494 = vpack.c.bf16 %v4270, %v4262
    %v5495 = vpack.c.bf16 %v4271, %v4263
    %v5496 = vpack.c.bf16 %v4272, %v4264
    %v5497 = vpack.c.bf16 %v4273, %v4265
    %v5498 = vpack.c.bf16 %v4274, %v4266
    %v5499 = vpack.c.bf16 %v4275, %v4267
    %v5500 = vpack.c.bf16 %v4276, %v4268
    %v5501 = vpack.c.bf16 %v4277, %v4269
    %v5502 = vpack.c.bf16 %v4286, %v4278
    %v5503 = vpack.c.bf16 %v4287, %v4279
    %v5504 = vpack.c.bf16 %v4288, %v4280
    %v5505 = vpack.c.bf16 %v4289, %v4281
    %v5506 = vpack.c.bf16 %v4290, %v4282
    %v5507 = vpack.c.bf16 %v4291, %v4283
    %v5508 = vpack.c.bf16 %v4292, %v4284
    %v5509 = vpack.c.bf16 %v4293, %v4285
    %v5510 = vpack.c.bf16 %v4302, %v4294
    %v5511 = vpack.c.bf16 %v4303, %v4295
    %v5512 = vpack.c.bf16 %v4304, %v4296
    %v5513 = vpack.c.bf16 %v4305, %v4297
    %v5514 = vpack.c.bf16 %v4306, %v4298
    %v5515 = vpack.c.bf16 %v4307, %v4299
    %v5516 = vpack.c.bf16 %v4308, %v4300
    %v5517 = vpack.c.bf16 %v4309, %v4301
    %v5518 = vpack.c.bf16 %v4318, %v4310
    %v5519 = vpack.c.bf16 %v4319, %v4311
    %v5520 = vpack.c.bf16 %v4320, %v4312
    %v5521 = vpack.c.bf16 %v4321, %v4313
    %v5522 = vpack.c.bf16 %v4322, %v4314
    %v5523 = vpack.c.bf16 %v4323, %v4315
    %v5524 = vpack.c.bf16 %v4324, %v4316
    %v5525 = vpack.c.bf16 %v4325, %v4317
    %v5526 = vpack.c.bf16 %v4334, %v4326
    %v5527 = vpack.c.bf16 %v4335, %v4327
    %v5528 = vpack.c.bf16 %v4336, %v4328
    %v5529 = vpack.c.bf16 %v4337, %v4329
    %v5530 = vpack.c.bf16 %v4338, %v4330
    %v5531 = vpack.c.bf16 %v4339, %v4331
    %v5532 = vpack.c.bf16 %v4340, %v4332
    %v5533 = vpack.c.bf16 %v4341, %v4333
    %v5534 = vpack.c.bf16 %v4350, %v4342
    %v5535 = vpack.c.bf16 %v4351, %v4343
    %v5536 = vpack.c.bf16 %v4352, %v4344
    %v5537 = vpack.c.bf16 %v4353, %v4345
    %v5538 = vpack.c.bf16 %v4354, %v4346
    %v5539 = vpack.c.bf16 %v4355, %v4347
    %v5540 = vpack.c.bf16 %v4356, %v4348
    %v5541 = vpack.c.bf16 %v4357, %v4349
    %v5542 = vpack.c.bf16 %v4366, %v4358
    %v5543 = vpack.c.bf16 %v4367, %v4359
    %v5544 = vpack.c.bf16 %v4368, %v4360
    %v5545 = vpack.c.bf16 %v4369, %v4361
    %v5546 = vpack.c.bf16 %v4370, %v4362
    %v5547 = vpack.c.bf16 %v4371, %v4363
    %v5548 = vpack.c.bf16 %v4372, %v4364
    %v5549 = vpack.c.bf16 %v4373, %v4365
    %v5550 = vpack.c.bf16 %v4382, %v4374
    %v5551 = vpack.c.bf16 %v4383, %v4375
    %v5552 = vpack.c.bf16 %v4384, %v4376
    %v5553 = vpack.c.bf16 %v4385, %v4377
    %v5554 = vpack.c.bf16 %v4386, %v4378
    %v5555 = vpack.c.bf16 %v4387, %v4379
    %v5556 = vpack.c.bf16 %v4388, %v4380
    %v5557 = vpack.c.bf16 %v4389, %v4381
    %v5558 = vpack.c.bf16 %v4398, %v4390
    %v5559 = vpack.c.bf16 %v4399, %v4391
    %v5560 = vpack.c.bf16 %v4400, %v4392
    %v5561 = vpack.c.bf16 %v4401, %v4393
    %v5562 = vpack.c.bf16 %v4402, %v4394
    %v5563 = vpack.c.bf16 %v4403, %v4395
    %v5564 = vpack.c.bf16 %v4404, %v4396
    %v5565 = vpack.c.bf16 %v4405, %v4397
    %v5566 = vpack.c.bf16 %v4414, %v4406
    %v5567 = vpack.c.bf16 %v4415, %v4407
    %v5568 = vpack.c.bf16 %v4416, %v4408
    %v5569 = vpack.c.bf16 %v4417, %v4409
    %v5570 = vpack.c.bf16 %v4418, %v4410
    %v5571 = vpack.c.bf16 %v4419, %v4411
    %v5572 = vpack.c.bf16 %v4420, %v4412
    %v5573 = vpack.c.bf16 %v4421, %v4413
    %v5574 = vpack.c.bf16 %v4430, %v4422
    %v5575 = vpack.c.bf16 %v4431, %v4423
    %v5576 = vpack.c.bf16 %v4432, %v4424
    %v5577 = vpack.c.bf16 %v4433, %v4425
    %v5578 = vpack.c.bf16 %v4434, %v4426
    %v5579 = vpack.c.bf16 %v4435, %v4427
    %v5580 = vpack.c.bf16 %v4436, %v4428
    %v5581 = vpack.c.bf16 %v4437, %v4429
    %v5582 = vpack.c.bf16 %v4446, %v4438
    %v5583 = vpack.c.bf16 %v4447, %v4439
    %v5584 = vpack.c.bf16 %v4448, %v4440
    %v5585 = vpack.c.bf16 %v4449, %v4441
    %v5586 = vpack.c.bf16 %v4450, %v4442
    %v5587 = vpack.c.bf16 %v4451, %v4443
    %v5588 = vpack.c.bf16 %v4452, %v4444
    %v5589 = vpack.c.bf16 %v4453, %v4445
    %v5590 = vpack.c.bf16 %v4462, %v4454
    %v5591 = vpack.c.bf16 %v4463, %v4455
    %v5592 = vpack.c.bf16 %v4464, %v4456
    %v5593 = vpack.c.bf16 %v4465, %v4457
    %v5594 = vpack.c.bf16 %v4466, %v4458
    %v5595 = vpack.c.bf16 %v4467, %v4459
    %v5596 = vpack.c.bf16 %v4468, %v4460
    %v5597 = vpack.c.bf16 %v4469, %v4461
    %v5598 = vpack.c.bf16 %v4478, %v4470
    %v5599 = vpack.c.bf16 %v4479, %v4471
    %v5600 = vpack.c.bf16 %v4480, %v4472
    %v5601 = vpack.c.bf16 %v4481, %v4473
    %v5602 = vpack.c.bf16 %v4482, %v4474
    %v5603 = vpack.c.bf16 %v4483, %v4475
    %v5604 = vpack.c.bf16 %v4484, %v4476
    %v5605 = vpack.c.bf16 %v4485, %v4477
    %v5606 = vpack.c.bf16 %v4494, %v4486
    %v5607 = vpack.c.bf16 %v4495, %v4487
    %v5608 = vpack.c.bf16 %v4496, %v4488
    %v5609 = vpack.c.bf16 %v4497, %v4489
    %v5610 = vpack.c.bf16 %v4498, %v4490
    %v5611 = vpack.c.bf16 %v4499, %v4491
    %v5612 = vpack.c.bf16 %v4500, %v4492
    %v5613 = vpack.c.bf16 %v4501, %v4493
    %v5614 = vpack.c.bf16 %v4510, %v4502
    %v5615 = vpack.c.bf16 %v4511, %v4503
    %v5616 = vpack.c.bf16 %v4512, %v4504
    %v5617 = vpack.c.bf16 %v4513, %v4505
    %v5618 = vpack.c.bf16 %v4514, %v4506
    %v5619 = vpack.c.bf16 %v4515, %v4507
    %v5620 = vpack.c.bf16 %v4516, %v4508
    %v5621 = vpack.c.bf16 %v4517, %v4509
    %v5622 = vpack.c.bf16 %v4526, %v4518
    %v5623 = vpack.c.bf16 %v4527, %v4519
    %v5624 = vpack.c.bf16 %v4528, %v4520
    %v5625 = vpack.c.bf16 %v4529, %v4521
    %v5626 = vpack.c.bf16 %v4530, %v4522
    %v5627 = vpack.c.bf16 %v4531, %v4523
    %v5628 = vpack.c.bf16 %v4532, %v4524
    %v5629 = vpack.c.bf16 %v4533, %v4525
    %v5630 = vpack.c.bf16 %v4542, %v4534
    %v5631 = vpack.c.bf16 %v4543, %v4535
    %v5632 = vpack.c.bf16 %v4544, %v4536
    %v5633 = vpack.c.bf16 %v4545, %v4537
    %v5634 = vpack.c.bf16 %v4546, %v4538
    %v5635 = vpack.c.bf16 %v4547, %v4539
    %v5636 = vpack.c.bf16 %v4548, %v4540
    %v5637 = vpack.c.bf16 %v4549, %v4541
    %v5638 = vpack.c.bf16 %v4558, %v4550
    %v5639 = vpack.c.bf16 %v4559, %v4551
    %v5640 = vpack.c.bf16 %v4560, %v4552
    %v5641 = vpack.c.bf16 %v4561, %v4553
    %v5642 = vpack.c.bf16 %v4562, %v4554
    %v5643 = vpack.c.bf16 %v4563, %v4555
    %v5644 = vpack.c.bf16 %v4564, %v4556
    %v5645 = vpack.c.bf16 %v4565, %v4557
    %v5646 = vpack.c.bf16 %v4574, %v4566
    %v5647 = vpack.c.bf16 %v4575, %v4567
    %v5648 = vpack.c.bf16 %v4576, %v4568
    %v5649 = vpack.c.bf16 %v4577, %v4569
    %v5650 = vpack.c.bf16 %v4578, %v4570
    %v5651 = vpack.c.bf16 %v4579, %v4571
    %v5652 = vpack.c.bf16 %v4580, %v4572
    %v5653 = vpack.c.bf16 %v4581, %v4573
    %v5654 = vpack.c.bf16 %v4590, %v4582
    %v5655 = vpack.c.bf16 %v4591, %v4583
    %v5656 = vpack.c.bf16 %v4592, %v4584
    %v5657 = vpack.c.bf16 %v4593, %v4585
    %v5658 = vpack.c.bf16 %v4594, %v4586
    %v5659 = vpack.c.bf16 %v4595, %v4587
    %v5660 = vpack.c.bf16 %v4596, %v4588
    %v5661 = vpack.c.bf16 %v4597, %v4589
    %v5662 = vpack.c.bf16 %v4606, %v4598
    %v5663 = vpack.c.bf16 %v4607, %v4599
    %v5664 = vpack.c.bf16 %v4608, %v4600
    %v5665 = vpack.c.bf16 %v4609, %v4601
    %v5666 = vpack.c.bf16 %v4610, %v4602
    %v5667 = vpack.c.bf16 %v4611, %v4603
    %v5668 = vpack.c.bf16 %v4612, %v4604
    %v5669 = vpack.c.bf16 %v4613, %v4605
    %v5670 = vpack.c.bf16 %v4622, %v4614
    %v5671 = vpack.c.bf16 %v4623, %v4615
    %v5672 = vpack.c.bf16 %v4624, %v4616
    %v5673 = vpack.c.bf16 %v4625, %v4617
    %v5674 = vpack.c.bf16 %v4626, %v4618
    %v5675 = vpack.c.bf16 %v4627, %v4619
    %v5676 = vpack.c.bf16 %v4628, %v4620
    %v5677 = vpack.c.bf16 %v4629, %v4621
    %v5678 = vpack.c.bf16 %v4638, %v4630
    %v5679 = vpack.c.bf16 %v4639, %v4631
    %v5680 = vpack.c.bf16 %v4640, %v4632
    %v5681 = vpack.c.bf16 %v4641, %v4633
    %v5682 = vpack.c.bf16 %v4642, %v4634
    %v5683 = vpack.c.bf16 %v4643, %v4635
    %v5684 = vpack.c.bf16 %v4644, %v4636
    %v5685 = vpack.c.bf16 %v4645, %v4637
    %v5686 = vpack.c.bf16 %v4654, %v4646
    %v5687 = vpack.c.bf16 %v4655, %v4647
    %v5688 = vpack.c.bf16 %v4656, %v4648
    %v5689 = vpack.c.bf16 %v4657, %v4649
    %v5690 = vpack.c.bf16 %v4658, %v4650
    %v5691 = vpack.c.bf16 %v4659, %v4651
    %v5692 = vpack.c.bf16 %v4660, %v4652
    %v5693 = vpack.c.bf16 %v4661, %v4653
    %v5694 = vpack.c.bf16 %v4670, %v4662
    %v5695 = vpack.c.bf16 %v4671, %v4663
    %v5696 = vpack.c.bf16 %v4672, %v4664
    %v5697 = vpack.c.bf16 %v4673, %v4665
    %v5698 = vpack.c.bf16 %v4674, %v4666
    %v5699 = vpack.c.bf16 %v4675, %v4667
    %v5700 = vpack.c.bf16 %v4676, %v4668
    %v5701 = vpack.c.bf16 %v4677, %v4669
    %v5710 = vunpack.c.l.b16 %v62
    %v5711 = vunpack.c.h.b16 %v62
    %v5712 = vunpack.c.l.b16 %v63
    %v5713 = vunpack.c.h.b16 %v63
    %v5714 = vunpack.c.l.b16 %v64
    %v5715 = vunpack.c.h.b16 %v64
    %v5716 = vunpack.c.l.b16 %v65
    %v5717 = vunpack.c.h.b16 %v65
    %v5718 = vunpack.c.l.b16 %v66
    %v5719 = vunpack.c.h.b16 %v66
    %v5720 = vunpack.c.l.b16 %v67
    %v5721 = vunpack.c.h.b16 %v67
    %v5722 = vunpack.c.l.b16 %v68
    %v5723 = vunpack.c.h.b16 %v68
    %v5724 = vunpack.c.l.b16 %v69
    %v5725 = vunpack.c.h.b16 %v69
    %v5726 = vpack.c.b16 %v5710, %v5710
    %v5727 = vpack.c.b16 %v5711, %v5711
    %v5728 = vpack.c.b16 %v5712, %v5712
    %v5729 = vpack.c.b16 %v5713, %v5713
    %v5730 = vpack.c.b16 %v5714, %v5714
    %v5731 = vpack.c.b16 %v5715, %v5715
    %v5732 = vpack.c.b16 %v5716, %v5716
    %v5733 = vpack.c.b16 %v5717, %v5717
    %v5734 = vpack.c.b16 %v5718, %v5718
    %v5735 = vpack.c.b16 %v5719, %v5719
    %v5736 = vpack.c.b16 %v5720, %v5720
    %v5737 = vpack.c.b16 %v5721, %v5721
    %v5738 = vpack.c.b16 %v5722, %v5722
    %v5739 = vpack.c.b16 %v5723, %v5723
    %v5740 = vpack.c.b16 %v5724, %v5724
    %v5741 = vpack.c.b16 %v5725, %v5725
    %5758 = vmatpush.bf16.msra.mxu0 %v4734
    %5759 = vmatpush.bf16.msra.mxu0 %v4726
    %5760 = vmatpush.bf16.msra.mxu0 %v4718
    %5761 = vmatpush.bf16.msra.mxu0 %v4710
    %5762 = vmatpush.bf16.msra.mxu0 %v4702
    %5763 = vmatpush.bf16.msra.mxu0 %v4694
    %5764 = vmatpush.bf16.msra.mxu0 %v4686
    %5765 = vmatpush.bf16.msra.mxu0 %v4678
    %5766 = vmatmul.bf16.gmra.mxu0 %v5726
    %v5767 = vpop.f32.mrf.mxu0
    %v5768 = vadd.f32 0.0, %v5767
    %v5769 = vpop.f32.mrf.mxu0
    %5770 = vdwg.mxu0
    %5771 = vmatpush.bf16.msra.mxu0 %v4798
    %5772 = vmatpush.bf16.msra.mxu0 %v4790
    %5773 = vmatpush.bf16.msra.mxu0 %v4782
    %5774 = vmatpush.bf16.msra.mxu0 %v4774
    %5775 = vmatpush.bf16.msra.mxu0 %v4766
    %5776 = vmatpush.bf16.msra.mxu0 %v4758
    %5777 = vmatpush.bf16.msra.mxu0 %v4750
    %5778 = vmatpush.bf16.msra.mxu0 %v4742
    %5779 = vmatmul.bf16.gmra.mxu0 %v5727
    %v5780 = vpop.f32.mrf.mxu0
    %v5781 = vadd.f32 %v5768, %v5780
    %v5782 = vpop.f32.mrf.mxu0
    %5783 = vdwg.mxu0
    %5784 = vmatpush.bf16.msra.mxu0 %v4862
    %5785 = vmatpush.bf16.msra.mxu0 %v4854
    %5786 = vmatpush.bf16.msra.mxu0 %v4846
    %5787 = vmatpush.bf16.msra.mxu0 %v4838
    %5788 = vmatpush.bf16.msra.mxu0 %v4830
    %5789 = vmatpush.bf16.msra.mxu0 %v4822
    %5790 = vmatpush.bf16.msra.mxu0 %v4814
    %5791 = vmatpush.bf16.msra.mxu0 %v4806
    %5792 = vmatmul.bf16.gmra.mxu0 %v5728
    %v5793 = vpop.f32.mrf.mxu0
    %v5794 = vadd.f32 %v5781, %v5793
    %v5795 = vpop.f32.mrf.mxu0
    %5796 = vdwg.mxu0
    %5797 = vmatpush.bf16.msra.mxu0 %v4926
    %5798 = vmatpush.bf16.msra.mxu0 %v4918
    %5799 = vmatpush.bf16.msra.mxu0 %v4910
    %5800 = vmatpush.bf16.msra.mxu0 %v4902
    %5801 = vmatpush.bf16.msra.mxu0 %v4894
    %5802 = vmatpush.bf16.msra.mxu0 %v4886
    %5803 = vmatpush.bf16.msra.mxu0 %v4878
    %5804 = vmatpush.bf16.msra.mxu0 %v4870
    %5805 = vmatmul.bf16.gmra.mxu0 %v5729
    %v5806 = vpop.f32.mrf.mxu0
    %v5807 = vadd.f32 %v5794, %v5806
    %v5808 = vpop.f32.mrf.mxu0
    %5809 = vdwg.mxu0
    %5810 = vmatpush.bf16.msra.mxu0 %v4990
    %5811 = vmatpush.bf16.msra.mxu0 %v4982
    %5812 = vmatpush.bf16.msra.mxu0 %v4974
    %5813 = vmatpush.bf16.msra.mxu0 %v4966
    %5814 = vmatpush.bf16.msra.mxu0 %v4958
    %5815 = vmatpush.bf16.msra.mxu0 %v4950
    %5816 = vmatpush.bf16.msra.mxu0 %v4942
    %5817 = vmatpush.bf16.msra.mxu0 %v4934
    %5818 = vmatmul.bf16.gmra.mxu0 %v5730
    %v5819 = vpop.f32.mrf.mxu0
    %v5820 = vadd.f32 %v5807, %v5819
    %v5821 = vpop.f32.mrf.mxu0
    %5822 = vdwg.mxu0
    %5823 = vmatpush.bf16.msra.mxu0 %v5054
    %5824 = vmatpush.bf16.msra.mxu0 %v5046
    %5825 = vmatpush.bf16.msra.mxu0 %v5038
    %5826 = vmatpush.bf16.msra.mxu0 %v5030
    %5827 = vmatpush.bf16.msra.mxu0 %v5022
    %5828 = vmatpush.bf16.msra.mxu0 %v5014
    %5829 = vmatpush.bf16.msra.mxu0 %v5006
    %5830 = vmatpush.bf16.msra.mxu0 %v4998
    %5831 = vmatmul.bf16.gmra.mxu0 %v5731
    %v5832 = vpop.f32.mrf.mxu0
    %v5833 = vadd.f32 %v5820, %v5832
    %v5834 = vpop.f32.mrf.mxu0
    %5835 = vdwg.mxu0
    %5836 = vmatpush.bf16.msra.mxu0 %v5118
    %5837 = vmatpush.bf16.msra.mxu0 %v5110
    %5838 = vmatpush.bf16.msra.mxu0 %v5102
    %5839 = vmatpush.bf16.msra.mxu0 %v5094
    %5840 = vmatpush.bf16.msra.mxu0 %v5086
    %5841 = vmatpush.bf16.msra.mxu0 %v5078
    %5842 = vmatpush.bf16.msra.mxu0 %v5070
    %5843 = vmatpush.bf16.msra.mxu0 %v5062
    %5844 = vmatmul.bf16.gmra.mxu0 %v5732
    %v5845 = vpop.f32.mrf.mxu0
    %v5846 = vadd.f32 %v5833, %v5845
    %v5847 = vpop.f32.mrf.mxu0
    %5848 = vdwg.mxu0
    %5849 = vmatpush.bf16.msra.mxu0 %v5182
    %5850 = vmatpush.bf16.msra.mxu0 %v5174
    %5851 = vmatpush.bf16.msra.mxu0 %v5166
    %5852 = vmatpush.bf16.msra.mxu0 %v5158
    %5853 = vmatpush.bf16.msra.mxu0 %v5150
    %5854 = vmatpush.bf16.msra.mxu0 %v5142
    %5855 = vmatpush.bf16.msra.mxu0 %v5134
    %5856 = vmatpush.bf16.msra.mxu0 %v5126
    %5857 = vmatmul.bf16.gmra.mxu0 %v5733
    %v5858 = vpop.f32.mrf.mxu0
    %v5859 = vadd.f32 %v5846, %v5858
    %v5860 = vpop.f32.mrf.mxu0
    %5861 = vdwg.mxu0
    %5862 = vmatpush.bf16.msra.mxu0 %v5246
    %5863 = vmatpush.bf16.msra.mxu0 %v5238
    %5864 = vmatpush.bf16.msra.mxu0 %v5230
    %5865 = vmatpush.bf16.msra.mxu0 %v5222
    %5866 = vmatpush.bf16.msra.mxu0 %v5214
    %5867 = vmatpush.bf16.msra.mxu0 %v5206
    %5868 = vmatpush.bf16.msra.mxu0 %v5198
    %5869 = vmatpush.bf16.msra.mxu0 %v5190
    %5870 = vmatmul.bf16.gmra.mxu0 %v5734
    %v5871 = vpop.f32.mrf.mxu0
    %v5872 = vadd.f32 %v5859, %v5871
    %v5873 = vpop.f32.mrf.mxu0
    %5874 = vdwg.mxu0
    %5875 = vmatpush.bf16.msra.mxu0 %v5310
    %5876 = vmatpush.bf16.msra.mxu0 %v5302
    %5877 = vmatpush.bf16.msra.mxu0 %v5294
    %5878 = vmatpush.bf16.msra.mxu0 %v5286
    %5879 = vmatpush.bf16.msra.mxu0 %v5278
    %5880 = vmatpush.bf16.msra.mxu0 %v5270
    %5881 = vmatpush.bf16.msra.mxu0 %v5262
    %5882 = vmatpush.bf16.msra.mxu0 %v5254
    %5883 = vmatmul.bf16.gmra.mxu0 %v5735
    %v5884 = vpop.f32.mrf.mxu0
    %v5885 = vadd.f32 %v5872, %v5884
    %v5886 = vpop.f32.mrf.mxu0
    %5887 = vdwg.mxu0
    %5888 = vmatpush.bf16.msra.mxu0 %v5374
    %5889 = vmatpush.bf16.msra.mxu0 %v5366
    %5890 = vmatpush.bf16.msra.mxu0 %v5358
    %5891 = vmatpush.bf16.msra.mxu0 %v5350
    %5892 = vmatpush.bf16.msra.mxu0 %v5342
    %5893 = vmatpush.bf16.msra.mxu0 %v5334
    %5894 = vmatpush.bf16.msra.mxu0 %v5326
    %5895 = vmatpush.bf16.msra.mxu0 %v5318
    %5896 = vmatmul.bf16.gmra.mxu0 %v5736
    %v5897 = vpop.f32.mrf.mxu0
    %v5898 = vadd.f32 %v5885, %v5897
    %v5899 = vpop.f32.mrf.mxu0
    %5900 = vdwg.mxu0
    %5901 = vmatpush.bf16.msra.mxu0 %v5438
    %5902 = vmatpush.bf16.msra.mxu0 %v5430
    %5903 = vmatpush.bf16.msra.mxu0 %v5422
    %5904 = vmatpush.bf16.msra.mxu0 %v5414
    %5905 = vmatpush.bf16.msra.mxu0 %v5406
    %5906 = vmatpush.bf16.msra.mxu0 %v5398
    %5907 = vmatpush.bf16.msra.mxu0 %v5390
    %5908 = vmatpush.bf16.msra.mxu0 %v5382
    %5909 = vmatmul.bf16.gmra.mxu0 %v5737
    %v5910 = vpop.f32.mrf.mxu0
    %v5911 = vadd.f32 %v5898, %v5910
    %v5912 = vpop.f32.mrf.mxu0
    %5913 = vdwg.mxu0
    %5914 = vmatpush.bf16.msra.mxu0 %v5502
    %5915 = vmatpush.bf16.msra.mxu0 %v5494
    %5916 = vmatpush.bf16.msra.mxu0 %v5486
    %5917 = vmatpush.bf16.msra.mxu0 %v5478
    %5918 = vmatpush.bf16.msra.mxu0 %v5470
    %5919 = vmatpush.bf16.msra.mxu0 %v5462
    %5920 = vmatpush.bf16.msra.mxu0 %v5454
    %5921 = vmatpush.bf16.msra.mxu0 %v5446
    %5922 = vmatmul.bf16.gmra.mxu0 %v5738
    %v5923 = vpop.f32.mrf.mxu0
    %v5924 = vadd.f32 %v5911, %v5923
    %v5925 = vpop.f32.mrf.mxu0
    %5926 = vdwg.mxu0
    %5927 = vmatpush.bf16.msra.mxu0 %v5566
    %5928 = vmatpush.bf16.msra.mxu0 %v5558
    %5929 = vmatpush.bf16.msra.mxu0 %v5550
    %5930 = vmatpush.bf16.msra.mxu0 %v5542
    %5931 = vmatpush.bf16.msra.mxu0 %v5534
    %5932 = vmatpush.bf16.msra.mxu0 %v5526
    %5933 = vmatpush.bf16.msra.mxu0 %v5518
    %5934 = vmatpush.bf16.msra.mxu0 %v5510
    %5935 = vmatmul.bf16.gmra.mxu0 %v5739
    %v5936 = vpop.f32.mrf.mxu0
    %v5937 = vadd.f32 %v5924, %v5936
    %v5938 = vpop.f32.mrf.mxu0
    %5939 = vdwg.mxu0
    %5940 = vmatpush.bf16.msra.mxu0 %v5630
    %5941 = vmatpush.bf16.msra.mxu0 %v5622
    %5942 = vmatpush.bf16.msra.mxu0 %v5614
    %5943 = vmatpush.bf16.msra.mxu0 %v5606
    %5944 = vmatpush.bf16.msra.mxu0 %v5598
    %5945 = vmatpush.bf16.msra.mxu0 %v5590
    %5946 = vmatpush.bf16.msra.mxu0 %v5582
    %5947 = vmatpush.bf16.msra.mxu0 %v5574
    %5948 = vmatmul.bf16.gmra.mxu0 %v5740
    %v5949 = vpop.f32.mrf.mxu0
    %v5950 = vadd.f32 %v5937, %v5949
    %v5951 = vpop.f32.mrf.mxu0
    %5952 = vdwg.mxu0
    %5953 = vmatpush.bf16.msra.mxu0 %v5694
    %5954 = vmatpush.bf16.msra.mxu0 %v5686
    %5955 = vmatpush.bf16.msra.mxu0 %v5678
    %5956 = vmatpush.bf16.msra.mxu0 %v5670
    %5957 = vmatpush.bf16.msra.mxu0 %v5662
    %5958 = vmatpush.bf16.msra.mxu0 %v5654
    %5959 = vmatpush.bf16.msra.mxu0 %v5646
    %5960 = vmatpush.bf16.msra.mxu0 %v5638
    %5961 = vmatmul.bf16.gmra.mxu0 %v5741
    %v5962 = vpop.f32.mrf.mxu0
    %v5963 = vadd.f32 %v5950, %v5962
    %v5964 = vpop.f32.mrf.mxu0
    %5965 = vdwg.mxu0
    %5966 = vmatpush.bf16.msra.mxu0 %v4735
    %5967 = vmatpush.bf16.msra.mxu0 %v4727
    %5968 = vmatpush.bf16.msra.mxu0 %v4719
    %5969 = vmatpush.bf16.msra.mxu0 %v4711
    %5970 = vmatpush.bf16.msra.mxu0 %v4703
    %5971 = vmatpush.bf16.msra.mxu0 %v4695
    %5972 = vmatpush.bf16.msra.mxu0 %v4687
    %5973 = vmatpush.bf16.msra.mxu0 %v4679
    %5974 = vmatmul.bf16.gmra.mxu0 %v5726
    %v5975 = vpop.f32.mrf.mxu0
    %v5976 = vadd.f32 0.0, %v5975
    %v5977 = vpop.f32.mrf.mxu0
    %5978 = vdwg.mxu0
    %5979 = vmatpush.bf16.msra.mxu0 %v4799
    %5980 = vmatpush.bf16.msra.mxu0 %v4791
    %5981 = vmatpush.bf16.msra.mxu0 %v4783
    %5982 = vmatpush.bf16.msra.mxu0 %v4775
    %5983 = vmatpush.bf16.msra.mxu0 %v4767
    %5984 = vmatpush.bf16.msra.mxu0 %v4759
    %5985 = vmatpush.bf16.msra.mxu0 %v4751
    %5986 = vmatpush.bf16.msra.mxu0 %v4743
    %5987 = vmatmul.bf16.gmra.mxu0 %v5727
    %v5988 = vpop.f32.mrf.mxu0
    %v5989 = vadd.f32 %v5976, %v5988
    %v5990 = vpop.f32.mrf.mxu0
    %5991 = vdwg.mxu0
    %5992 = vmatpush.bf16.msra.mxu0 %v4863
    %5993 = vmatpush.bf16.msra.mxu0 %v4855
    %5994 = vmatpush.bf16.msra.mxu0 %v4847
    %5995 = vmatpush.bf16.msra.mxu0 %v4839
    %5996 = vmatpush.bf16.msra.mxu0 %v4831
    %5997 = vmatpush.bf16.msra.mxu0 %v4823
    %5998 = vmatpush.bf16.msra.mxu0 %v4815
    %5999 = vmatpush.bf16.msra.mxu0 %v4807
    %6000 = vmatmul.bf16.gmra.mxu0 %v5728
    %v6001 = vpop.f32.mrf.mxu0
    %v6002 = vadd.f32 %v5989, %v6001
    %v6003 = vpop.f32.mrf.mxu0
    %6004 = vdwg.mxu0
    %6005 = vmatpush.bf16.msra.mxu0 %v4927
    %6006 = vmatpush.bf16.msra.mxu0 %v4919
    %6007 = vmatpush.bf16.msra.mxu0 %v4911
    %6008 = vmatpush.bf16.msra.mxu0 %v4903
    %6009 = vmatpush.bf16.msra.mxu0 %v4895
    %6010 = vmatpush.bf16.msra.mxu0 %v4887
    %6011 = vmatpush.bf16.msra.mxu0 %v4879
    %6012 = vmatpush.bf16.msra.mxu0 %v4871
    %6013 = vmatmul.bf16.gmra.mxu0 %v5729
    %v6014 = vpop.f32.mrf.mxu0
    %v6015 = vadd.f32 %v6002, %v6014
    %v6016 = vpop.f32.mrf.mxu0
    %6017 = vdwg.mxu0
    %6018 = vmatpush.bf16.msra.mxu0 %v4991
    %6019 = vmatpush.bf16.msra.mxu0 %v4983
    %6020 = vmatpush.bf16.msra.mxu0 %v4975
    %6021 = vmatpush.bf16.msra.mxu0 %v4967
    %6022 = vmatpush.bf16.msra.mxu0 %v4959
    %6023 = vmatpush.bf16.msra.mxu0 %v4951
    %6024 = vmatpush.bf16.msra.mxu0 %v4943
    %6025 = vmatpush.bf16.msra.mxu0 %v4935
    %6026 = vmatmul.bf16.gmra.mxu0 %v5730
    %v6027 = vpop.f32.mrf.mxu0
    %v6028 = vadd.f32 %v6015, %v6027
    %v6029 = vpop.f32.mrf.mxu0
    %6030 = vdwg.mxu0
    %6031 = vmatpush.bf16.msra.mxu0 %v5055
    %6032 = vmatpush.bf16.msra.mxu0 %v5047
    %6033 = vmatpush.bf16.msra.mxu0 %v5039
    %6034 = vmatpush.bf16.msra.mxu0 %v5031
    %6035 = vmatpush.bf16.msra.mxu0 %v5023
    %6036 = vmatpush.bf16.msra.mxu0 %v5015
    %6037 = vmatpush.bf16.msra.mxu0 %v5007
    %6038 = vmatpush.bf16.msra.mxu0 %v4999
    %6039 = vmatmul.bf16.gmra.mxu0 %v5731
    %v6040 = vpop.f32.mrf.mxu0
    %v6041 = vadd.f32 %v6028, %v6040
    %v6042 = vpop.f32.mrf.mxu0
    %6043 = vdwg.mxu0
    %6044 = vmatpush.bf16.msra.mxu0 %v5119
    %6045 = vmatpush.bf16.msra.mxu0 %v5111
    %6046 = vmatpush.bf16.msra.mxu0 %v5103
    %6047 = vmatpush.bf16.msra.mxu0 %v5095
    %6048 = vmatpush.bf16.msra.mxu0 %v5087
    %6049 = vmatpush.bf16.msra.mxu0 %v5079
    %6050 = vmatpush.bf16.msra.mxu0 %v5071
    %6051 = vmatpush.bf16.msra.mxu0 %v5063
    %6052 = vmatmul.bf16.gmra.mxu0 %v5732
    %v6053 = vpop.f32.mrf.mxu0
    %v6054 = vadd.f32 %v6041, %v6053
    %v6055 = vpop.f32.mrf.mxu0
    %6056 = vdwg.mxu0
    %6057 = vmatpush.bf16.msra.mxu0 %v5183
    %6058 = vmatpush.bf16.msra.mxu0 %v5175
    %6059 = vmatpush.bf16.msra.mxu0 %v5167
    %6060 = vmatpush.bf16.msra.mxu0 %v5159
    %6061 = vmatpush.bf16.msra.mxu0 %v5151
    %6062 = vmatpush.bf16.msra.mxu0 %v5143
    %6063 = vmatpush.bf16.msra.mxu0 %v5135
    %6064 = vmatpush.bf16.msra.mxu0 %v5127
    %6065 = vmatmul.bf16.gmra.mxu0 %v5733
    %v6066 = vpop.f32.mrf.mxu0
    %v6067 = vadd.f32 %v6054, %v6066
    %v6068 = vpop.f32.mrf.mxu0
    %6069 = vdwg.mxu0
    %6070 = vmatpush.bf16.msra.mxu0 %v5247
    %6071 = vmatpush.bf16.msra.mxu0 %v5239
    %6072 = vmatpush.bf16.msra.mxu0 %v5231
    %6073 = vmatpush.bf16.msra.mxu0 %v5223
    %6074 = vmatpush.bf16.msra.mxu0 %v5215
    %6075 = vmatpush.bf16.msra.mxu0 %v5207
    %6076 = vmatpush.bf16.msra.mxu0 %v5199
    %6077 = vmatpush.bf16.msra.mxu0 %v5191
    %6078 = vmatmul.bf16.gmra.mxu0 %v5734
    %v6079 = vpop.f32.mrf.mxu0
    %v6080 = vadd.f32 %v6067, %v6079
    %v6081 = vpop.f32.mrf.mxu0
    %6082 = vdwg.mxu0
    %6083 = vmatpush.bf16.msra.mxu0 %v5311
    %6084 = vmatpush.bf16.msra.mxu0 %v5303
    %6085 = vmatpush.bf16.msra.mxu0 %v5295
    %6086 = vmatpush.bf16.msra.mxu0 %v5287
    %6087 = vmatpush.bf16.msra.mxu0 %v5279
    %6088 = vmatpush.bf16.msra.mxu0 %v5271
    %6089 = vmatpush.bf16.msra.mxu0 %v5263
    %6090 = vmatpush.bf16.msra.mxu0 %v5255
    %6091 = vmatmul.bf16.gmra.mxu0 %v5735
    %v6092 = vpop.f32.mrf.mxu0
    %v6093 = vadd.f32 %v6080, %v6092
    %v6094 = vpop.f32.mrf.mxu0
    %6095 = vdwg.mxu0
    %6096 = vmatpush.bf16.msra.mxu0 %v5375
    %6097 = vmatpush.bf16.msra.mxu0 %v5367
    %6098 = vmatpush.bf16.msra.mxu0 %v5359
    %6099 = vmatpush.bf16.msra.mxu0 %v5351
    %6100 = vmatpush.bf16.msra.mxu0 %v5343
    %6101 = vmatpush.bf16.msra.mxu0 %v5335
    %6102 = vmatpush.bf16.msra.mxu0 %v5327
    %6103 = vmatpush.bf16.msra.mxu0 %v5319
    %6104 = vmatmul.bf16.gmra.mxu0 %v5736
    %v6105 = vpop.f32.mrf.mxu0
    %v6106 = vadd.f32 %v6093, %v6105
    %v6107 = vpop.f32.mrf.mxu0
    %6108 = vdwg.mxu0
    %6109 = vmatpush.bf16.msra.mxu0 %v5439
    %6110 = vmatpush.bf16.msra.mxu0 %v5431
    %6111 = vmatpush.bf16.msra.mxu0 %v5423
    %6112 = vmatpush.bf16.msra.mxu0 %v5415
    %6113 = vmatpush.bf16.msra.mxu0 %v5407
    %6114 = vmatpush.bf16.msra.mxu0 %v5399
    %6115 = vmatpush.bf16.msra.mxu0 %v5391
    %6116 = vmatpush.bf16.msra.mxu0 %v5383
    %6117 = vmatmul.bf16.gmra.mxu0 %v5737
    %v6118 = vpop.f32.mrf.mxu0
    %v6119 = vadd.f32 %v6106, %v6118
    %v6120 = vpop.f32.mrf.mxu0
    %6121 = vdwg.mxu0
    %6122 = vmatpush.bf16.msra.mxu0 %v5503
    %6123 = vmatpush.bf16.msra.mxu0 %v5495
    %6124 = vmatpush.bf16.msra.mxu0 %v5487
    %6125 = vmatpush.bf16.msra.mxu0 %v5479
    %6126 = vmatpush.bf16.msra.mxu0 %v5471
    %6127 = vmatpush.bf16.msra.mxu0 %v5463
    %6128 = vmatpush.bf16.msra.mxu0 %v5455
    %6129 = vmatpush.bf16.msra.mxu0 %v5447
    %6130 = vmatmul.bf16.gmra.mxu0 %v5738
    %v6131 = vpop.f32.mrf.mxu0
    %v6132 = vadd.f32 %v6119, %v6131
    %v6133 = vpop.f32.mrf.mxu0
    %6134 = vdwg.mxu0
    %6135 = vmatpush.bf16.msra.mxu0 %v5567
    %6136 = vmatpush.bf16.msra.mxu0 %v5559
    %6137 = vmatpush.bf16.msra.mxu0 %v5551
    %6138 = vmatpush.bf16.msra.mxu0 %v5543
    %6139 = vmatpush.bf16.msra.mxu0 %v5535
    %6140 = vmatpush.bf16.msra.mxu0 %v5527
    %6141 = vmatpush.bf16.msra.mxu0 %v5519
    %6142 = vmatpush.bf16.msra.mxu0 %v5511
    %6143 = vmatmul.bf16.gmra.mxu0 %v5739
    %v6144 = vpop.f32.mrf.mxu0
    %v6145 = vadd.f32 %v6132, %v6144
    %v6146 = vpop.f32.mrf.mxu0
    %6147 = vdwg.mxu0
    %6148 = vmatpush.bf16.msra.mxu0 %v5631
    %6149 = vmatpush.bf16.msra.mxu0 %v5623
    %6150 = vmatpush.bf16.msra.mxu0 %v5615
    %6151 = vmatpush.bf16.msra.mxu0 %v5607
    %6152 = vmatpush.bf16.msra.mxu0 %v5599
    %6153 = vmatpush.bf16.msra.mxu0 %v5591
    %6154 = vmatpush.bf16.msra.mxu0 %v5583
    %6155 = vmatpush.bf16.msra.mxu0 %v5575
    %6156 = vmatmul.bf16.gmra.mxu0 %v5740
    %v6157 = vpop.f32.mrf.mxu0
    %v6158 = vadd.f32 %v6145, %v6157
    %v6159 = vpop.f32.mrf.mxu0
    %6160 = vdwg.mxu0
    %6161 = vmatpush.bf16.msra.mxu0 %v5695
    %6162 = vmatpush.bf16.msra.mxu0 %v5687
    %6163 = vmatpush.bf16.msra.mxu0 %v5679
    %6164 = vmatpush.bf16.msra.mxu0 %v5671
    %6165 = vmatpush.bf16.msra.mxu0 %v5663
    %6166 = vmatpush.bf16.msra.mxu0 %v5655
    %6167 = vmatpush.bf16.msra.mxu0 %v5647
    %6168 = vmatpush.bf16.msra.mxu0 %v5639
    %6169 = vmatmul.bf16.gmra.mxu0 %v5741
    %v6170 = vpop.f32.mrf.mxu0
    %v6171 = vadd.f32 %v6158, %v6170
    %v6172 = vpop.f32.mrf.mxu0
    %6173 = vdwg.mxu0
    %6174 = vmatpush.bf16.msra.mxu0 %v4736
    %6175 = vmatpush.bf16.msra.mxu0 %v4728
    %6176 = vmatpush.bf16.msra.mxu0 %v4720
    %6177 = vmatpush.bf16.msra.mxu0 %v4712
    %6178 = vmatpush.bf16.msra.mxu0 %v4704
    %6179 = vmatpush.bf16.msra.mxu0 %v4696
    %6180 = vmatpush.bf16.msra.mxu0 %v4688
    %6181 = vmatpush.bf16.msra.mxu0 %v4680
    %6182 = vmatmul.bf16.gmra.mxu0 %v5726
    %v6183 = vpop.f32.mrf.mxu0
    %v6184 = vadd.f32 0.0, %v6183
    %v6185 = vpop.f32.mrf.mxu0
    %6186 = vdwg.mxu0
    %6187 = vmatpush.bf16.msra.mxu0 %v4800
    %6188 = vmatpush.bf16.msra.mxu0 %v4792
    %6189 = vmatpush.bf16.msra.mxu0 %v4784
    %6190 = vmatpush.bf16.msra.mxu0 %v4776
    %6191 = vmatpush.bf16.msra.mxu0 %v4768
    %6192 = vmatpush.bf16.msra.mxu0 %v4760
    %6193 = vmatpush.bf16.msra.mxu0 %v4752
    %6194 = vmatpush.bf16.msra.mxu0 %v4744
    %6195 = vmatmul.bf16.gmra.mxu0 %v5727
    %v6196 = vpop.f32.mrf.mxu0
    %v6197 = vadd.f32 %v6184, %v6196
    %v6198 = vpop.f32.mrf.mxu0
    %6199 = vdwg.mxu0
    %6200 = vmatpush.bf16.msra.mxu0 %v4864
    %6201 = vmatpush.bf16.msra.mxu0 %v4856
    %6202 = vmatpush.bf16.msra.mxu0 %v4848
    %6203 = vmatpush.bf16.msra.mxu0 %v4840
    %6204 = vmatpush.bf16.msra.mxu0 %v4832
    %6205 = vmatpush.bf16.msra.mxu0 %v4824
    %6206 = vmatpush.bf16.msra.mxu0 %v4816
    %6207 = vmatpush.bf16.msra.mxu0 %v4808
    %6208 = vmatmul.bf16.gmra.mxu0 %v5728
    %v6209 = vpop.f32.mrf.mxu0
    %v6210 = vadd.f32 %v6197, %v6209
    %v6211 = vpop.f32.mrf.mxu0
    %6212 = vdwg.mxu0
    %6213 = vmatpush.bf16.msra.mxu0 %v4928
    %6214 = vmatpush.bf16.msra.mxu0 %v4920
    %6215 = vmatpush.bf16.msra.mxu0 %v4912
    %6216 = vmatpush.bf16.msra.mxu0 %v4904
    %6217 = vmatpush.bf16.msra.mxu0 %v4896
    %6218 = vmatpush.bf16.msra.mxu0 %v4888
    %6219 = vmatpush.bf16.msra.mxu0 %v4880
    %6220 = vmatpush.bf16.msra.mxu0 %v4872
    %6221 = vmatmul.bf16.gmra.mxu0 %v5729
    %v6222 = vpop.f32.mrf.mxu0
    %v6223 = vadd.f32 %v6210, %v6222
    %v6224 = vpop.f32.mrf.mxu0
    %6225 = vdwg.mxu0
    %6226 = vmatpush.bf16.msra.mxu0 %v4992
    %6227 = vmatpush.bf16.msra.mxu0 %v4984
    %6228 = vmatpush.bf16.msra.mxu0 %v4976
    %6229 = vmatpush.bf16.msra.mxu0 %v4968
    %6230 = vmatpush.bf16.msra.mxu0 %v4960
    %6231 = vmatpush.bf16.msra.mxu0 %v4952
    %6232 = vmatpush.bf16.msra.mxu0 %v4944
    %6233 = vmatpush.bf16.msra.mxu0 %v4936
    %6234 = vmatmul.bf16.gmra.mxu0 %v5730
    %v6235 = vpop.f32.mrf.mxu0
    %v6236 = vadd.f32 %v6223, %v6235
    %v6237 = vpop.f32.mrf.mxu0
    %6238 = vdwg.mxu0
    %6239 = vmatpush.bf16.msra.mxu0 %v5056
    %6240 = vmatpush.bf16.msra.mxu0 %v5048
    %6241 = vmatpush.bf16.msra.mxu0 %v5040
    %6242 = vmatpush.bf16.msra.mxu0 %v5032
    %6243 = vmatpush.bf16.msra.mxu0 %v5024
    %6244 = vmatpush.bf16.msra.mxu0 %v5016
    %6245 = vmatpush.bf16.msra.mxu0 %v5008
    %6246 = vmatpush.bf16.msra.mxu0 %v5000
    %6247 = vmatmul.bf16.gmra.mxu0 %v5731
    %v6248 = vpop.f32.mrf.mxu0
    %v6249 = vadd.f32 %v6236, %v6248
    %v6250 = vpop.f32.mrf.mxu0
    %6251 = vdwg.mxu0
    %6252 = vmatpush.bf16.msra.mxu0 %v5120
    %6253 = vmatpush.bf16.msra.mxu0 %v5112
    %6254 = vmatpush.bf16.msra.mxu0 %v5104
    %6255 = vmatpush.bf16.msra.mxu0 %v5096
    %6256 = vmatpush.bf16.msra.mxu0 %v5088
    %6257 = vmatpush.bf16.msra.mxu0 %v5080
    %6258 = vmatpush.bf16.msra.mxu0 %v5072
    %6259 = vmatpush.bf16.msra.mxu0 %v5064
    %6260 = vmatmul.bf16.gmra.mxu0 %v5732
    %v6261 = vpop.f32.mrf.mxu0
    %v6262 = vadd.f32 %v6249, %v6261
    %v6263 = vpop.f32.mrf.mxu0
    %6264 = vdwg.mxu0
    %6265 = vmatpush.bf16.msra.mxu0 %v5184
    %6266 = vmatpush.bf16.msra.mxu0 %v5176
    %6267 = vmatpush.bf16.msra.mxu0 %v5168
    %6268 = vmatpush.bf16.msra.mxu0 %v5160
    %6269 = vmatpush.bf16.msra.mxu0 %v5152
    %6270 = vmatpush.bf16.msra.mxu0 %v5144
    %6271 = vmatpush.bf16.msra.mxu0 %v5136
    %6272 = vmatpush.bf16.msra.mxu0 %v5128
    %6273 = vmatmul.bf16.gmra.mxu0 %v5733
    %v6274 = vpop.f32.mrf.mxu0
    %v6275 = vadd.f32 %v6262, %v6274
    %v6276 = vpop.f32.mrf.mxu0
    %6277 = vdwg.mxu0
    %6278 = vmatpush.bf16.msra.mxu0 %v5248
    %6279 = vmatpush.bf16.msra.mxu0 %v5240
    %6280 = vmatpush.bf16.msra.mxu0 %v5232
    %6281 = vmatpush.bf16.msra.mxu0 %v5224
    %6282 = vmatpush.bf16.msra.mxu0 %v5216
    %6283 = vmatpush.bf16.msra.mxu0 %v5208
    %6284 = vmatpush.bf16.msra.mxu0 %v5200
    %6285 = vmatpush.bf16.msra.mxu0 %v5192
    %6286 = vmatmul.bf16.gmra.mxu0 %v5734
    %v6287 = vpop.f32.mrf.mxu0
    %v6288 = vadd.f32 %v6275, %v6287
    %v6289 = vpop.f32.mrf.mxu0
    %6290 = vdwg.mxu0
    %6291 = vmatpush.bf16.msra.mxu0 %v5312
    %6292 = vmatpush.bf16.msra.mxu0 %v5304
    %6293 = vmatpush.bf16.msra.mxu0 %v5296
    %6294 = vmatpush.bf16.msra.mxu0 %v5288
    %6295 = vmatpush.bf16.msra.mxu0 %v5280
    %6296 = vmatpush.bf16.msra.mxu0 %v5272
    %6297 = vmatpush.bf16.msra.mxu0 %v5264
    %6298 = vmatpush.bf16.msra.mxu0 %v5256
    %6299 = vmatmul.bf16.gmra.mxu0 %v5735
    %v6300 = vpop.f32.mrf.mxu0
    %v6301 = vadd.f32 %v6288, %v6300
    %v6302 = vpop.f32.mrf.mxu0
    %6303 = vdwg.mxu0
    %6304 = vmatpush.bf16.msra.mxu0 %v5376
    %6305 = vmatpush.bf16.msra.mxu0 %v5368
    %6306 = vmatpush.bf16.msra.mxu0 %v5360
    %6307 = vmatpush.bf16.msra.mxu0 %v5352
    %6308 = vmatpush.bf16.msra.mxu0 %v5344
    %6309 = vmatpush.bf16.msra.mxu0 %v5336
    %6310 = vmatpush.bf16.msra.mxu0 %v5328
    %6311 = vmatpush.bf16.msra.mxu0 %v5320
    %6312 = vmatmul.bf16.gmra.mxu0 %v5736
    %v6313 = vpop.f32.mrf.mxu0
    %v6314 = vadd.f32 %v6301, %v6313
    %v6315 = vpop.f32.mrf.mxu0
    %6316 = vdwg.mxu0
    %6317 = vmatpush.bf16.msra.mxu0 %v5440
    %6318 = vmatpush.bf16.msra.mxu0 %v5432
    %6319 = vmatpush.bf16.msra.mxu0 %v5424
    %6320 = vmatpush.bf16.msra.mxu0 %v5416
    %6321 = vmatpush.bf16.msra.mxu0 %v5408
    %6322 = vmatpush.bf16.msra.mxu0 %v5400
    %6323 = vmatpush.bf16.msra.mxu0 %v5392
    %6324 = vmatpush.bf16.msra.mxu0 %v5384
    %6325 = vmatmul.bf16.gmra.mxu0 %v5737
    %v6326 = vpop.f32.mrf.mxu0
    %v6327 = vadd.f32 %v6314, %v6326
    %v6328 = vpop.f32.mrf.mxu0
    %6329 = vdwg.mxu0
    %6330 = vmatpush.bf16.msra.mxu0 %v5504
    %6331 = vmatpush.bf16.msra.mxu0 %v5496
    %6332 = vmatpush.bf16.msra.mxu0 %v5488
    %6333 = vmatpush.bf16.msra.mxu0 %v5480
    %6334 = vmatpush.bf16.msra.mxu0 %v5472
    %6335 = vmatpush.bf16.msra.mxu0 %v5464
    %6336 = vmatpush.bf16.msra.mxu0 %v5456
    %6337 = vmatpush.bf16.msra.mxu0 %v5448
    %6338 = vmatmul.bf16.gmra.mxu0 %v5738
    %v6339 = vpop.f32.mrf.mxu0
    %v6340 = vadd.f32 %v6327, %v6339
    %v6341 = vpop.f32.mrf.mxu0
    %6342 = vdwg.mxu0
    %6343 = vmatpush.bf16.msra.mxu0 %v5568
    %6344 = vmatpush.bf16.msra.mxu0 %v5560
    %6345 = vmatpush.bf16.msra.mxu0 %v5552
    %6346 = vmatpush.bf16.msra.mxu0 %v5544
    %6347 = vmatpush.bf16.msra.mxu0 %v5536
    %6348 = vmatpush.bf16.msra.mxu0 %v5528
    %6349 = vmatpush.bf16.msra.mxu0 %v5520
    %6350 = vmatpush.bf16.msra.mxu0 %v5512
    %6351 = vmatmul.bf16.gmra.mxu0 %v5739
    %v6352 = vpop.f32.mrf.mxu0
    %v6353 = vadd.f32 %v6340, %v6352
    %v6354 = vpop.f32.mrf.mxu0
    %6355 = vdwg.mxu0
    %6356 = vmatpush.bf16.msra.mxu0 %v5632
    %6357 = vmatpush.bf16.msra.mxu0 %v5624
    %6358 = vmatpush.bf16.msra.mxu0 %v5616
    %6359 = vmatpush.bf16.msra.mxu0 %v5608
    %6360 = vmatpush.bf16.msra.mxu0 %v5600
    %6361 = vmatpush.bf16.msra.mxu0 %v5592
    %6362 = vmatpush.bf16.msra.mxu0 %v5584
    %6363 = vmatpush.bf16.msra.mxu0 %v5576
    %6364 = vmatmul.bf16.gmra.mxu0 %v5740
    %v6365 = vpop.f32.mrf.mxu0
    %v6366 = vadd.f32 %v6353, %v6365
    %v6367 = vpop.f32.mrf.mxu0
    %6368 = vdwg.mxu0
    %6369 = vmatpush.bf16.msra.mxu0 %v5696
    %6370 = vmatpush.bf16.msra.mxu0 %v5688
    %6371 = vmatpush.bf16.msra.mxu0 %v5680
    %6372 = vmatpush.bf16.msra.mxu0 %v5672
    %6373 = vmatpush.bf16.msra.mxu0 %v5664
    %6374 = vmatpush.bf16.msra.mxu0 %v5656
    %6375 = vmatpush.bf16.msra.mxu0 %v5648
    %6376 = vmatpush.bf16.msra.mxu0 %v5640
    %6377 = vmatmul.bf16.gmra.mxu0 %v5741
    %v6378 = vpop.f32.mrf.mxu0
    %v6379 = vadd.f32 %v6366, %v6378
    %v6380 = vpop.f32.mrf.mxu0
    %6381 = vdwg.mxu0
    %6382 = vmatpush.bf16.msra.mxu0 %v4737
    %6383 = vmatpush.bf16.msra.mxu0 %v4729
    %6384 = vmatpush.bf16.msra.mxu0 %v4721
    %6385 = vmatpush.bf16.msra.mxu0 %v4713
    %6386 = vmatpush.bf16.msra.mxu0 %v4705
    %6387 = vmatpush.bf16.msra.mxu0 %v4697
    %6388 = vmatpush.bf16.msra.mxu0 %v4689
    %6389 = vmatpush.bf16.msra.mxu0 %v4681
    %6390 = vmatmul.bf16.gmra.mxu0 %v5726
    %v6391 = vpop.f32.mrf.mxu0
    %v6392 = vadd.f32 0.0, %v6391
    %v6393 = vpop.f32.mrf.mxu0
    %6394 = vdwg.mxu0
    %6395 = vmatpush.bf16.msra.mxu0 %v4801
    %6396 = vmatpush.bf16.msra.mxu0 %v4793
    %6397 = vmatpush.bf16.msra.mxu0 %v4785
    %6398 = vmatpush.bf16.msra.mxu0 %v4777
    %6399 = vmatpush.bf16.msra.mxu0 %v4769
    %6400 = vmatpush.bf16.msra.mxu0 %v4761
    %6401 = vmatpush.bf16.msra.mxu0 %v4753
    %6402 = vmatpush.bf16.msra.mxu0 %v4745
    %6403 = vmatmul.bf16.gmra.mxu0 %v5727
    %v6404 = vpop.f32.mrf.mxu0
    %v6405 = vadd.f32 %v6392, %v6404
    %v6406 = vpop.f32.mrf.mxu0
    %6407 = vdwg.mxu0
    %6408 = vmatpush.bf16.msra.mxu0 %v4865
    %6409 = vmatpush.bf16.msra.mxu0 %v4857
    %6410 = vmatpush.bf16.msra.mxu0 %v4849
    %6411 = vmatpush.bf16.msra.mxu0 %v4841
    %6412 = vmatpush.bf16.msra.mxu0 %v4833
    %6413 = vmatpush.bf16.msra.mxu0 %v4825
    %6414 = vmatpush.bf16.msra.mxu0 %v4817
    %6415 = vmatpush.bf16.msra.mxu0 %v4809
    %6416 = vmatmul.bf16.gmra.mxu0 %v5728
    %v6417 = vpop.f32.mrf.mxu0
    %v6418 = vadd.f32 %v6405, %v6417
    %v6419 = vpop.f32.mrf.mxu0
    %6420 = vdwg.mxu0
    %6421 = vmatpush.bf16.msra.mxu0 %v4929
    %6422 = vmatpush.bf16.msra.mxu0 %v4921
    %6423 = vmatpush.bf16.msra.mxu0 %v4913
    %6424 = vmatpush.bf16.msra.mxu0 %v4905
    %6425 = vmatpush.bf16.msra.mxu0 %v4897
    %6426 = vmatpush.bf16.msra.mxu0 %v4889
    %6427 = vmatpush.bf16.msra.mxu0 %v4881
    %6428 = vmatpush.bf16.msra.mxu0 %v4873
    %6429 = vmatmul.bf16.gmra.mxu0 %v5729
    %v6430 = vpop.f32.mrf.mxu0
    %v6431 = vadd.f32 %v6418, %v6430
    %v6432 = vpop.f32.mrf.mxu0
    %6433 = vdwg.mxu0
    %6434 = vmatpush.bf16.msra.mxu0 %v4993
    %6435 = vmatpush.bf16.msra.mxu0 %v4985
    %6436 = vmatpush.bf16.msra.mxu0 %v4977
    %6437 = vmatpush.bf16.msra.mxu0 %v4969
    %6438 = vmatpush.bf16.msra.mxu0 %v4961
    %6439 = vmatpush.bf16.msra.mxu0 %v4953
    %6440 = vmatpush.bf16.msra.mxu0 %v4945
    %6441 = vmatpush.bf16.msra.mxu0 %v4937
    %6442 = vmatmul.bf16.gmra.mxu0 %v5730
    %v6443 = vpop.f32.mrf.mxu0
    %v6444 = vadd.f32 %v6431, %v6443
    %v6445 = vpop.f32.mrf.mxu0
    %6446 = vdwg.mxu0
    %6447 = vmatpush.bf16.msra.mxu0 %v5057
    %6448 = vmatpush.bf16.msra.mxu0 %v5049
    %6449 = vmatpush.bf16.msra.mxu0 %v5041
    %6450 = vmatpush.bf16.msra.mxu0 %v5033
    %6451 = vmatpush.bf16.msra.mxu0 %v5025
    %6452 = vmatpush.bf16.msra.mxu0 %v5017
    %6453 = vmatpush.bf16.msra.mxu0 %v5009
    %6454 = vmatpush.bf16.msra.mxu0 %v5001
    %6455 = vmatmul.bf16.gmra.mxu0 %v5731
    %v6456 = vpop.f32.mrf.mxu0
    %v6457 = vadd.f32 %v6444, %v6456
    %v6458 = vpop.f32.mrf.mxu0
    %6459 = vdwg.mxu0
    %6460 = vmatpush.bf16.msra.mxu0 %v5121
    %6461 = vmatpush.bf16.msra.mxu0 %v5113
    %6462 = vmatpush.bf16.msra.mxu0 %v5105
    %6463 = vmatpush.bf16.msra.mxu0 %v5097
    %6464 = vmatpush.bf16.msra.mxu0 %v5089
    %6465 = vmatpush.bf16.msra.mxu0 %v5081
    %6466 = vmatpush.bf16.msra.mxu0 %v5073
    %6467 = vmatpush.bf16.msra.mxu0 %v5065
    %6468 = vmatmul.bf16.gmra.mxu0 %v5732
    %v6469 = vpop.f32.mrf.mxu0
    %v6470 = vadd.f32 %v6457, %v6469
    %v6471 = vpop.f32.mrf.mxu0
    %6472 = vdwg.mxu0
    %6473 = vmatpush.bf16.msra.mxu0 %v5185
    %6474 = vmatpush.bf16.msra.mxu0 %v5177
    %6475 = vmatpush.bf16.msra.mxu0 %v5169
    %6476 = vmatpush.bf16.msra.mxu0 %v5161
    %6477 = vmatpush.bf16.msra.mxu0 %v5153
    %6478 = vmatpush.bf16.msra.mxu0 %v5145
    %6479 = vmatpush.bf16.msra.mxu0 %v5137
    %6480 = vmatpush.bf16.msra.mxu0 %v5129
    %6481 = vmatmul.bf16.gmra.mxu0 %v5733
    %v6482 = vpop.f32.mrf.mxu0
    %v6483 = vadd.f32 %v6470, %v6482
    %v6484 = vpop.f32.mrf.mxu0
    %6485 = vdwg.mxu0
    %6486 = vmatpush.bf16.msra.mxu0 %v5249
    %6487 = vmatpush.bf16.msra.mxu0 %v5241
    %6488 = vmatpush.bf16.msra.mxu0 %v5233
    %6489 = vmatpush.bf16.msra.mxu0 %v5225
    %6490 = vmatpush.bf16.msra.mxu0 %v5217
    %6491 = vmatpush.bf16.msra.mxu0 %v5209
    %6492 = vmatpush.bf16.msra.mxu0 %v5201
    %6493 = vmatpush.bf16.msra.mxu0 %v5193
    %6494 = vmatmul.bf16.gmra.mxu0 %v5734
    %v6495 = vpop.f32.mrf.mxu0
    %v6496 = vadd.f32 %v6483, %v6495
    %v6497 = vpop.f32.mrf.mxu0
    %6498 = vdwg.mxu0
    %6499 = vmatpush.bf16.msra.mxu0 %v5313
    %6500 = vmatpush.bf16.msra.mxu0 %v5305
    %6501 = vmatpush.bf16.msra.mxu0 %v5297
    %6502 = vmatpush.bf16.msra.mxu0 %v5289
    %6503 = vmatpush.bf16.msra.mxu0 %v5281
    %6504 = vmatpush.bf16.msra.mxu0 %v5273
    %6505 = vmatpush.bf16.msra.mxu0 %v5265
    %6506 = vmatpush.bf16.msra.mxu0 %v5257
    %6507 = vmatmul.bf16.gmra.mxu0 %v5735
    %v6508 = vpop.f32.mrf.mxu0
    %v6509 = vadd.f32 %v6496, %v6508
    %v6510 = vpop.f32.mrf.mxu0
    %6511 = vdwg.mxu0
    %6512 = vmatpush.bf16.msra.mxu0 %v5377
    %6513 = vmatpush.bf16.msra.mxu0 %v5369
    %6514 = vmatpush.bf16.msra.mxu0 %v5361
    %6515 = vmatpush.bf16.msra.mxu0 %v5353
    %6516 = vmatpush.bf16.msra.mxu0 %v5345
    %6517 = vmatpush.bf16.msra.mxu0 %v5337
    %6518 = vmatpush.bf16.msra.mxu0 %v5329
    %6519 = vmatpush.bf16.msra.mxu0 %v5321
    %6520 = vmatmul.bf16.gmra.mxu0 %v5736
    %v6521 = vpop.f32.mrf.mxu0
    %v6522 = vadd.f32 %v6509, %v6521
    %v6523 = vpop.f32.mrf.mxu0
    %6524 = vdwg.mxu0
    %6525 = vmatpush.bf16.msra.mxu0 %v5441
    %6526 = vmatpush.bf16.msra.mxu0 %v5433
    %6527 = vmatpush.bf16.msra.mxu0 %v5425
    %6528 = vmatpush.bf16.msra.mxu0 %v5417
    %6529 = vmatpush.bf16.msra.mxu0 %v5409
    %6530 = vmatpush.bf16.msra.mxu0 %v5401
    %6531 = vmatpush.bf16.msra.mxu0 %v5393
    %6532 = vmatpush.bf16.msra.mxu0 %v5385
    %6533 = vmatmul.bf16.gmra.mxu0 %v5737
    %v6534 = vpop.f32.mrf.mxu0
    %v6535 = vadd.f32 %v6522, %v6534
    %v6536 = vpop.f32.mrf.mxu0
    %6537 = vdwg.mxu0
    %6538 = vmatpush.bf16.msra.mxu0 %v5505
    %6539 = vmatpush.bf16.msra.mxu0 %v5497
    %6540 = vmatpush.bf16.msra.mxu0 %v5489
    %6541 = vmatpush.bf16.msra.mxu0 %v5481
    %6542 = vmatpush.bf16.msra.mxu0 %v5473
    %6543 = vmatpush.bf16.msra.mxu0 %v5465
    %6544 = vmatpush.bf16.msra.mxu0 %v5457
    %6545 = vmatpush.bf16.msra.mxu0 %v5449
    %6546 = vmatmul.bf16.gmra.mxu0 %v5738
    %v6547 = vpop.f32.mrf.mxu0
    %v6548 = vadd.f32 %v6535, %v6547
    %v6549 = vpop.f32.mrf.mxu0
    %6550 = vdwg.mxu0
    %6551 = vmatpush.bf16.msra.mxu0 %v5569
    %6552 = vmatpush.bf16.msra.mxu0 %v5561
    %6553 = vmatpush.bf16.msra.mxu0 %v5553
    %6554 = vmatpush.bf16.msra.mxu0 %v5545
    %6555 = vmatpush.bf16.msra.mxu0 %v5537
    %6556 = vmatpush.bf16.msra.mxu0 %v5529
    %6557 = vmatpush.bf16.msra.mxu0 %v5521
    %6558 = vmatpush.bf16.msra.mxu0 %v5513
    %6559 = vmatmul.bf16.gmra.mxu0 %v5739
    %v6560 = vpop.f32.mrf.mxu0
    %v6561 = vadd.f32 %v6548, %v6560
    %v6562 = vpop.f32.mrf.mxu0
    %6563 = vdwg.mxu0
    %6564 = vmatpush.bf16.msra.mxu0 %v5633
    %6565 = vmatpush.bf16.msra.mxu0 %v5625
    %6566 = vmatpush.bf16.msra.mxu0 %v5617
    %6567 = vmatpush.bf16.msra.mxu0 %v5609
    %6568 = vmatpush.bf16.msra.mxu0 %v5601
    %6569 = vmatpush.bf16.msra.mxu0 %v5593
    %6570 = vmatpush.bf16.msra.mxu0 %v5585
    %6571 = vmatpush.bf16.msra.mxu0 %v5577
    %6572 = vmatmul.bf16.gmra.mxu0 %v5740
    %v6573 = vpop.f32.mrf.mxu0
    %v6574 = vadd.f32 %v6561, %v6573
    %v6575 = vpop.f32.mrf.mxu0
    %6576 = vdwg.mxu0
    %6577 = vmatpush.bf16.msra.mxu0 %v5697
    %6578 = vmatpush.bf16.msra.mxu0 %v5689
    %6579 = vmatpush.bf16.msra.mxu0 %v5681
    %6580 = vmatpush.bf16.msra.mxu0 %v5673
    %6581 = vmatpush.bf16.msra.mxu0 %v5665
    %6582 = vmatpush.bf16.msra.mxu0 %v5657
    %6583 = vmatpush.bf16.msra.mxu0 %v5649
    %6584 = vmatpush.bf16.msra.mxu0 %v5641
    %6585 = vmatmul.bf16.gmra.mxu0 %v5741
    %v6586 = vpop.f32.mrf.mxu0
    %v6587 = vadd.f32 %v6574, %v6586
    %v6588 = vpop.f32.mrf.mxu0
    %6589 = vdwg.mxu0
    %6590 = vmatpush.bf16.msra.mxu0 %v4738
    %6591 = vmatpush.bf16.msra.mxu0 %v4730
    %6592 = vmatpush.bf16.msra.mxu0 %v4722
    %6593 = vmatpush.bf16.msra.mxu0 %v4714
    %6594 = vmatpush.bf16.msra.mxu0 %v4706
    %6595 = vmatpush.bf16.msra.mxu0 %v4698
    %6596 = vmatpush.bf16.msra.mxu0 %v4690
    %6597 = vmatpush.bf16.msra.mxu0 %v4682
    %6598 = vmatmul.bf16.gmra.mxu0 %v5726
    %v6599 = vpop.f32.mrf.mxu0
    %v6600 = vadd.f32 0.0, %v6599
    %v6601 = vpop.f32.mrf.mxu0
    %6602 = vdwg.mxu0
    %6603 = vmatpush.bf16.msra.mxu0 %v4802
    %6604 = vmatpush.bf16.msra.mxu0 %v4794
    %6605 = vmatpush.bf16.msra.mxu0 %v4786
    %6606 = vmatpush.bf16.msra.mxu0 %v4778
    %6607 = vmatpush.bf16.msra.mxu0 %v4770
    %6608 = vmatpush.bf16.msra.mxu0 %v4762
    %6609 = vmatpush.bf16.msra.mxu0 %v4754
    %6610 = vmatpush.bf16.msra.mxu0 %v4746
    %6611 = vmatmul.bf16.gmra.mxu0 %v5727
    %v6612 = vpop.f32.mrf.mxu0
    %v6613 = vadd.f32 %v6600, %v6612
    %v6614 = vpop.f32.mrf.mxu0
    %6615 = vdwg.mxu0
    %6616 = vmatpush.bf16.msra.mxu0 %v4866
    %6617 = vmatpush.bf16.msra.mxu0 %v4858
    %6618 = vmatpush.bf16.msra.mxu0 %v4850
    %6619 = vmatpush.bf16.msra.mxu0 %v4842
    %6620 = vmatpush.bf16.msra.mxu0 %v4834
    %6621 = vmatpush.bf16.msra.mxu0 %v4826
    %6622 = vmatpush.bf16.msra.mxu0 %v4818
    %6623 = vmatpush.bf16.msra.mxu0 %v4810
    %6624 = vmatmul.bf16.gmra.mxu0 %v5728
    %v6625 = vpop.f32.mrf.mxu0
    %v6626 = vadd.f32 %v6613, %v6625
    %v6627 = vpop.f32.mrf.mxu0
    %6628 = vdwg.mxu0
    %6629 = vmatpush.bf16.msra.mxu0 %v4930
    %6630 = vmatpush.bf16.msra.mxu0 %v4922
    %6631 = vmatpush.bf16.msra.mxu0 %v4914
    %6632 = vmatpush.bf16.msra.mxu0 %v4906
    %6633 = vmatpush.bf16.msra.mxu0 %v4898
    %6634 = vmatpush.bf16.msra.mxu0 %v4890
    %6635 = vmatpush.bf16.msra.mxu0 %v4882
    %6636 = vmatpush.bf16.msra.mxu0 %v4874
    %6637 = vmatmul.bf16.gmra.mxu0 %v5729
    %v6638 = vpop.f32.mrf.mxu0
    %v6639 = vadd.f32 %v6626, %v6638
    %v6640 = vpop.f32.mrf.mxu0
    %6641 = vdwg.mxu0
    %6642 = vmatpush.bf16.msra.mxu0 %v4994
    %6643 = vmatpush.bf16.msra.mxu0 %v4986
    %6644 = vmatpush.bf16.msra.mxu0 %v4978
    %6645 = vmatpush.bf16.msra.mxu0 %v4970
    %6646 = vmatpush.bf16.msra.mxu0 %v4962
    %6647 = vmatpush.bf16.msra.mxu0 %v4954
    %6648 = vmatpush.bf16.msra.mxu0 %v4946
    %6649 = vmatpush.bf16.msra.mxu0 %v4938
    %6650 = vmatmul.bf16.gmra.mxu0 %v5730
    %v6651 = vpop.f32.mrf.mxu0
    %v6652 = vadd.f32 %v6639, %v6651
    %v6653 = vpop.f32.mrf.mxu0
    %6654 = vdwg.mxu0
    %6655 = vmatpush.bf16.msra.mxu0 %v5058
    %6656 = vmatpush.bf16.msra.mxu0 %v5050
    %6657 = vmatpush.bf16.msra.mxu0 %v5042
    %6658 = vmatpush.bf16.msra.mxu0 %v5034
    %6659 = vmatpush.bf16.msra.mxu0 %v5026
    %6660 = vmatpush.bf16.msra.mxu0 %v5018
    %6661 = vmatpush.bf16.msra.mxu0 %v5010
    %6662 = vmatpush.bf16.msra.mxu0 %v5002
    %6663 = vmatmul.bf16.gmra.mxu0 %v5731
    %v6664 = vpop.f32.mrf.mxu0
    %v6665 = vadd.f32 %v6652, %v6664
    %v6666 = vpop.f32.mrf.mxu0
    %6667 = vdwg.mxu0
    %6668 = vmatpush.bf16.msra.mxu0 %v5122
    %6669 = vmatpush.bf16.msra.mxu0 %v5114
    %6670 = vmatpush.bf16.msra.mxu0 %v5106
    %6671 = vmatpush.bf16.msra.mxu0 %v5098
    %6672 = vmatpush.bf16.msra.mxu0 %v5090
    %6673 = vmatpush.bf16.msra.mxu0 %v5082
    %6674 = vmatpush.bf16.msra.mxu0 %v5074
    %6675 = vmatpush.bf16.msra.mxu0 %v5066
    %6676 = vmatmul.bf16.gmra.mxu0 %v5732
    %v6677 = vpop.f32.mrf.mxu0
    %v6678 = vadd.f32 %v6665, %v6677
    %v6679 = vpop.f32.mrf.mxu0
    %6680 = vdwg.mxu0
    %6681 = vmatpush.bf16.msra.mxu0 %v5186
    %6682 = vmatpush.bf16.msra.mxu0 %v5178
    %6683 = vmatpush.bf16.msra.mxu0 %v5170
    %6684 = vmatpush.bf16.msra.mxu0 %v5162
    %6685 = vmatpush.bf16.msra.mxu0 %v5154
    %6686 = vmatpush.bf16.msra.mxu0 %v5146
    %6687 = vmatpush.bf16.msra.mxu0 %v5138
    %6688 = vmatpush.bf16.msra.mxu0 %v5130
    %6689 = vmatmul.bf16.gmra.mxu0 %v5733
    %v6690 = vpop.f32.mrf.mxu0
    %v6691 = vadd.f32 %v6678, %v6690
    %v6692 = vpop.f32.mrf.mxu0
    %6693 = vdwg.mxu0
    %6694 = vmatpush.bf16.msra.mxu0 %v5250
    %6695 = vmatpush.bf16.msra.mxu0 %v5242
    %6696 = vmatpush.bf16.msra.mxu0 %v5234
    %6697 = vmatpush.bf16.msra.mxu0 %v5226
    %6698 = vmatpush.bf16.msra.mxu0 %v5218
    %6699 = vmatpush.bf16.msra.mxu0 %v5210
    %6700 = vmatpush.bf16.msra.mxu0 %v5202
    %6701 = vmatpush.bf16.msra.mxu0 %v5194
    %6702 = vmatmul.bf16.gmra.mxu0 %v5734
    %v6703 = vpop.f32.mrf.mxu0
    %v6704 = vadd.f32 %v6691, %v6703
    %v6705 = vpop.f32.mrf.mxu0
    %6706 = vdwg.mxu0
    %6707 = vmatpush.bf16.msra.mxu0 %v5314
    %6708 = vmatpush.bf16.msra.mxu0 %v5306
    %6709 = vmatpush.bf16.msra.mxu0 %v5298
    %6710 = vmatpush.bf16.msra.mxu0 %v5290
    %6711 = vmatpush.bf16.msra.mxu0 %v5282
    %6712 = vmatpush.bf16.msra.mxu0 %v5274
    %6713 = vmatpush.bf16.msra.mxu0 %v5266
    %6714 = vmatpush.bf16.msra.mxu0 %v5258
    %6715 = vmatmul.bf16.gmra.mxu0 %v5735
    %v6716 = vpop.f32.mrf.mxu0
    %v6717 = vadd.f32 %v6704, %v6716
    %v6718 = vpop.f32.mrf.mxu0
    %6719 = vdwg.mxu0
    %6720 = vmatpush.bf16.msra.mxu0 %v5378
    %6721 = vmatpush.bf16.msra.mxu0 %v5370
    %6722 = vmatpush.bf16.msra.mxu0 %v5362
    %6723 = vmatpush.bf16.msra.mxu0 %v5354
    %6724 = vmatpush.bf16.msra.mxu0 %v5346
    %6725 = vmatpush.bf16.msra.mxu0 %v5338
    %6726 = vmatpush.bf16.msra.mxu0 %v5330
    %6727 = vmatpush.bf16.msra.mxu0 %v5322
    %6728 = vmatmul.bf16.gmra.mxu0 %v5736
    %v6729 = vpop.f32.mrf.mxu0
    %v6730 = vadd.f32 %v6717, %v6729
    %v6731 = vpop.f32.mrf.mxu0
    %6732 = vdwg.mxu0
    %6733 = vmatpush.bf16.msra.mxu0 %v5442
    %6734 = vmatpush.bf16.msra.mxu0 %v5434
    %6735 = vmatpush.bf16.msra.mxu0 %v5426
    %6736 = vmatpush.bf16.msra.mxu0 %v5418
    %6737 = vmatpush.bf16.msra.mxu0 %v5410
    %6738 = vmatpush.bf16.msra.mxu0 %v5402
    %6739 = vmatpush.bf16.msra.mxu0 %v5394
    %6740 = vmatpush.bf16.msra.mxu0 %v5386
    %6741 = vmatmul.bf16.gmra.mxu0 %v5737
    %v6742 = vpop.f32.mrf.mxu0
    %v6743 = vadd.f32 %v6730, %v6742
    %v6744 = vpop.f32.mrf.mxu0
    %6745 = vdwg.mxu0
    %6746 = vmatpush.bf16.msra.mxu0 %v5506
    %6747 = vmatpush.bf16.msra.mxu0 %v5498
    %6748 = vmatpush.bf16.msra.mxu0 %v5490
    %6749 = vmatpush.bf16.msra.mxu0 %v5482
    %6750 = vmatpush.bf16.msra.mxu0 %v5474
    %6751 = vmatpush.bf16.msra.mxu0 %v5466
    %6752 = vmatpush.bf16.msra.mxu0 %v5458
    %6753 = vmatpush.bf16.msra.mxu0 %v5450
    %6754 = vmatmul.bf16.gmra.mxu0 %v5738
    %v6755 = vpop.f32.mrf.mxu0
    %v6756 = vadd.f32 %v6743, %v6755
    %v6757 = vpop.f32.mrf.mxu0
    %6758 = vdwg.mxu0
    %6759 = vmatpush.bf16.msra.mxu0 %v5570
    %6760 = vmatpush.bf16.msra.mxu0 %v5562
    %6761 = vmatpush.bf16.msra.mxu0 %v5554
    %6762 = vmatpush.bf16.msra.mxu0 %v5546
    %6763 = vmatpush.bf16.msra.mxu0 %v5538
    %6764 = vmatpush.bf16.msra.mxu0 %v5530
    %6765 = vmatpush.bf16.msra.mxu0 %v5522
    %6766 = vmatpush.bf16.msra.mxu0 %v5514
    %6767 = vmatmul.bf16.gmra.mxu0 %v5739
    %v6768 = vpop.f32.mrf.mxu0
    %v6769 = vadd.f32 %v6756, %v6768
    %v6770 = vpop.f32.mrf.mxu0
    %6771 = vdwg.mxu0
    %6772 = vmatpush.bf16.msra.mxu0 %v5634
    %6773 = vmatpush.bf16.msra.mxu0 %v5626
    %6774 = vmatpush.bf16.msra.mxu0 %v5618
    %6775 = vmatpush.bf16.msra.mxu0 %v5610
    %6776 = vmatpush.bf16.msra.mxu0 %v5602
    %6777 = vmatpush.bf16.msra.mxu0 %v5594
    %6778 = vmatpush.bf16.msra.mxu0 %v5586
    %6779 = vmatpush.bf16.msra.mxu0 %v5578
    %6780 = vmatmul.bf16.gmra.mxu0 %v5740
    %v6781 = vpop.f32.mrf.mxu0
    %v6782 = vadd.f32 %v6769, %v6781
    %v6783 = vpop.f32.mrf.mxu0
    %6784 = vdwg.mxu0
    %6785 = vmatpush.bf16.msra.mxu0 %v5698
    %6786 = vmatpush.bf16.msra.mxu0 %v5690
    %6787 = vmatpush.bf16.msra.mxu0 %v5682
    %6788 = vmatpush.bf16.msra.mxu0 %v5674
    %6789 = vmatpush.bf16.msra.mxu0 %v5666
    %6790 = vmatpush.bf16.msra.mxu0 %v5658
    %6791 = vmatpush.bf16.msra.mxu0 %v5650
    %6792 = vmatpush.bf16.msra.mxu0 %v5642
    %6793 = vmatmul.bf16.gmra.mxu0 %v5741
    %v6794 = vpop.f32.mrf.mxu0
    %v6795 = vadd.f32 %v6782, %v6794
    %v6796 = vpop.f32.mrf.mxu0
    %6797 = vdwg.mxu0
    %6798 = vmatpush.bf16.msra.mxu0 %v4739
    %6799 = vmatpush.bf16.msra.mxu0 %v4731
    %6800 = vmatpush.bf16.msra.mxu0 %v4723
    %6801 = vmatpush.bf16.msra.mxu0 %v4715
    %6802 = vmatpush.bf16.msra.mxu0 %v4707
    %6803 = vmatpush.bf16.msra.mxu0 %v4699
    %6804 = vmatpush.bf16.msra.mxu0 %v4691
    %6805 = vmatpush.bf16.msra.mxu0 %v4683
    %6806 = vmatmul.bf16.gmra.mxu0 %v5726
    %v6807 = vpop.f32.mrf.mxu0
    %v6808 = vadd.f32 0.0, %v6807
    %v6809 = vpop.f32.mrf.mxu0
    %6810 = vdwg.mxu0
    %6811 = vmatpush.bf16.msra.mxu0 %v4803
    %6812 = vmatpush.bf16.msra.mxu0 %v4795
    %6813 = vmatpush.bf16.msra.mxu0 %v4787
    %6814 = vmatpush.bf16.msra.mxu0 %v4779
    %6815 = vmatpush.bf16.msra.mxu0 %v4771
    %6816 = vmatpush.bf16.msra.mxu0 %v4763
    %6817 = vmatpush.bf16.msra.mxu0 %v4755
    %6818 = vmatpush.bf16.msra.mxu0 %v4747
    %6819 = vmatmul.bf16.gmra.mxu0 %v5727
    %v6820 = vpop.f32.mrf.mxu0
    %v6821 = vadd.f32 %v6808, %v6820
    %v6822 = vpop.f32.mrf.mxu0
    %6823 = vdwg.mxu0
    %6824 = vmatpush.bf16.msra.mxu0 %v4867
    %6825 = vmatpush.bf16.msra.mxu0 %v4859
    %6826 = vmatpush.bf16.msra.mxu0 %v4851
    %6827 = vmatpush.bf16.msra.mxu0 %v4843
    %6828 = vmatpush.bf16.msra.mxu0 %v4835
    %6829 = vmatpush.bf16.msra.mxu0 %v4827
    %6830 = vmatpush.bf16.msra.mxu0 %v4819
    %6831 = vmatpush.bf16.msra.mxu0 %v4811
    %6832 = vmatmul.bf16.gmra.mxu0 %v5728
    %v6833 = vpop.f32.mrf.mxu0
    %v6834 = vadd.f32 %v6821, %v6833
    %v6835 = vpop.f32.mrf.mxu0
    %6836 = vdwg.mxu0
    %6837 = vmatpush.bf16.msra.mxu0 %v4931
    %6838 = vmatpush.bf16.msra.mxu0 %v4923
    %6839 = vmatpush.bf16.msra.mxu0 %v4915
    %6840 = vmatpush.bf16.msra.mxu0 %v4907
    %6841 = vmatpush.bf16.msra.mxu0 %v4899
    %6842 = vmatpush.bf16.msra.mxu0 %v4891
    %6843 = vmatpush.bf16.msra.mxu0 %v4883
    %6844 = vmatpush.bf16.msra.mxu0 %v4875
    %6845 = vmatmul.bf16.gmra.mxu0 %v5729
    %v6846 = vpop.f32.mrf.mxu0
    %v6847 = vadd.f32 %v6834, %v6846
    %v6848 = vpop.f32.mrf.mxu0
    %6849 = vdwg.mxu0
    %6850 = vmatpush.bf16.msra.mxu0 %v4995
    %6851 = vmatpush.bf16.msra.mxu0 %v4987
    %6852 = vmatpush.bf16.msra.mxu0 %v4979
    %6853 = vmatpush.bf16.msra.mxu0 %v4971
    %6854 = vmatpush.bf16.msra.mxu0 %v4963
    %6855 = vmatpush.bf16.msra.mxu0 %v4955
    %6856 = vmatpush.bf16.msra.mxu0 %v4947
    %6857 = vmatpush.bf16.msra.mxu0 %v4939
    %6858 = vmatmul.bf16.gmra.mxu0 %v5730
    %v6859 = vpop.f32.mrf.mxu0
    %v6860 = vadd.f32 %v6847, %v6859
    %v6861 = vpop.f32.mrf.mxu0
    %6862 = vdwg.mxu0
    %6863 = vmatpush.bf16.msra.mxu0 %v5059
    %6864 = vmatpush.bf16.msra.mxu0 %v5051
    %6865 = vmatpush.bf16.msra.mxu0 %v5043
    %6866 = vmatpush.bf16.msra.mxu0 %v5035
    %6867 = vmatpush.bf16.msra.mxu0 %v5027
    %6868 = vmatpush.bf16.msra.mxu0 %v5019
    %6869 = vmatpush.bf16.msra.mxu0 %v5011
    %6870 = vmatpush.bf16.msra.mxu0 %v5003
    %6871 = vmatmul.bf16.gmra.mxu0 %v5731
    %v6872 = vpop.f32.mrf.mxu0
    %v6873 = vadd.f32 %v6860, %v6872
    %v6874 = vpop.f32.mrf.mxu0
    %6875 = vdwg.mxu0
    %6876 = vmatpush.bf16.msra.mxu0 %v5123
    %6877 = vmatpush.bf16.msra.mxu0 %v5115
    %6878 = vmatpush.bf16.msra.mxu0 %v5107
    %6879 = vmatpush.bf16.msra.mxu0 %v5099
    %6880 = vmatpush.bf16.msra.mxu0 %v5091
    %6881 = vmatpush.bf16.msra.mxu0 %v5083
    %6882 = vmatpush.bf16.msra.mxu0 %v5075
    %6883 = vmatpush.bf16.msra.mxu0 %v5067
    %6884 = vmatmul.bf16.gmra.mxu0 %v5732
    %v6885 = vpop.f32.mrf.mxu0
    %v6886 = vadd.f32 %v6873, %v6885
    %v6887 = vpop.f32.mrf.mxu0
    %6888 = vdwg.mxu0
    %6889 = vmatpush.bf16.msra.mxu0 %v5187
    %6890 = vmatpush.bf16.msra.mxu0 %v5179
    %6891 = vmatpush.bf16.msra.mxu0 %v5171
    %6892 = vmatpush.bf16.msra.mxu0 %v5163
    %6893 = vmatpush.bf16.msra.mxu0 %v5155
    %6894 = vmatpush.bf16.msra.mxu0 %v5147
    %6895 = vmatpush.bf16.msra.mxu0 %v5139
    %6896 = vmatpush.bf16.msra.mxu0 %v5131
    %6897 = vmatmul.bf16.gmra.mxu0 %v5733
    %v6898 = vpop.f32.mrf.mxu0
    %v6899 = vadd.f32 %v6886, %v6898
    %v6900 = vpop.f32.mrf.mxu0
    %6901 = vdwg.mxu0
    %6902 = vmatpush.bf16.msra.mxu0 %v5251
    %6903 = vmatpush.bf16.msra.mxu0 %v5243
    %6904 = vmatpush.bf16.msra.mxu0 %v5235
    %6905 = vmatpush.bf16.msra.mxu0 %v5227
    %6906 = vmatpush.bf16.msra.mxu0 %v5219
    %6907 = vmatpush.bf16.msra.mxu0 %v5211
    %6908 = vmatpush.bf16.msra.mxu0 %v5203
    %6909 = vmatpush.bf16.msra.mxu0 %v5195
    %6910 = vmatmul.bf16.gmra.mxu0 %v5734
    %v6911 = vpop.f32.mrf.mxu0
    %v6912 = vadd.f32 %v6899, %v6911
    %v6913 = vpop.f32.mrf.mxu0
    %6914 = vdwg.mxu0
    %6915 = vmatpush.bf16.msra.mxu0 %v5315
    %6916 = vmatpush.bf16.msra.mxu0 %v5307
    %6917 = vmatpush.bf16.msra.mxu0 %v5299
    %6918 = vmatpush.bf16.msra.mxu0 %v5291
    %6919 = vmatpush.bf16.msra.mxu0 %v5283
    %6920 = vmatpush.bf16.msra.mxu0 %v5275
    %6921 = vmatpush.bf16.msra.mxu0 %v5267
    %6922 = vmatpush.bf16.msra.mxu0 %v5259
    %6923 = vmatmul.bf16.gmra.mxu0 %v5735
    %v6924 = vpop.f32.mrf.mxu0
    %v6925 = vadd.f32 %v6912, %v6924
    %v6926 = vpop.f32.mrf.mxu0
    %6927 = vdwg.mxu0
    %6928 = vmatpush.bf16.msra.mxu0 %v5379
    %6929 = vmatpush.bf16.msra.mxu0 %v5371
    %6930 = vmatpush.bf16.msra.mxu0 %v5363
    %6931 = vmatpush.bf16.msra.mxu0 %v5355
    %6932 = vmatpush.bf16.msra.mxu0 %v5347
    %6933 = vmatpush.bf16.msra.mxu0 %v5339
    %6934 = vmatpush.bf16.msra.mxu0 %v5331
    %6935 = vmatpush.bf16.msra.mxu0 %v5323
    %6936 = vmatmul.bf16.gmra.mxu0 %v5736
    %v6937 = vpop.f32.mrf.mxu0
    %v6938 = vadd.f32 %v6925, %v6937
    %v6939 = vpop.f32.mrf.mxu0
    %6940 = vdwg.mxu0
    %6941 = vmatpush.bf16.msra.mxu0 %v5443
    %6942 = vmatpush.bf16.msra.mxu0 %v5435
    %6943 = vmatpush.bf16.msra.mxu0 %v5427
    %6944 = vmatpush.bf16.msra.mxu0 %v5419
    %6945 = vmatpush.bf16.msra.mxu0 %v5411
    %6946 = vmatpush.bf16.msra.mxu0 %v5403
    %6947 = vmatpush.bf16.msra.mxu0 %v5395
    %6948 = vmatpush.bf16.msra.mxu0 %v5387
    %6949 = vmatmul.bf16.gmra.mxu0 %v5737
    %v6950 = vpop.f32.mrf.mxu0
    %v6951 = vadd.f32 %v6938, %v6950
    %v6952 = vpop.f32.mrf.mxu0
    %6953 = vdwg.mxu0
    %6954 = vmatpush.bf16.msra.mxu0 %v5507
    %6955 = vmatpush.bf16.msra.mxu0 %v5499
    %6956 = vmatpush.bf16.msra.mxu0 %v5491
    %6957 = vmatpush.bf16.msra.mxu0 %v5483
    %6958 = vmatpush.bf16.msra.mxu0 %v5475
    %6959 = vmatpush.bf16.msra.mxu0 %v5467
    %6960 = vmatpush.bf16.msra.mxu0 %v5459
    %6961 = vmatpush.bf16.msra.mxu0 %v5451
    %6962 = vmatmul.bf16.gmra.mxu0 %v5738
    %v6963 = vpop.f32.mrf.mxu0
    %v6964 = vadd.f32 %v6951, %v6963
    %v6965 = vpop.f32.mrf.mxu0
    %6966 = vdwg.mxu0
    %6967 = vmatpush.bf16.msra.mxu0 %v5571
    %6968 = vmatpush.bf16.msra.mxu0 %v5563
    %6969 = vmatpush.bf16.msra.mxu0 %v5555
    %6970 = vmatpush.bf16.msra.mxu0 %v5547
    %6971 = vmatpush.bf16.msra.mxu0 %v5539
    %6972 = vmatpush.bf16.msra.mxu0 %v5531
    %6973 = vmatpush.bf16.msra.mxu0 %v5523
    %6974 = vmatpush.bf16.msra.mxu0 %v5515
    %6975 = vmatmul.bf16.gmra.mxu0 %v5739
    %v6976 = vpop.f32.mrf.mxu0
    %v6977 = vadd.f32 %v6964, %v6976
    %v6978 = vpop.f32.mrf.mxu0
    %6979 = vdwg.mxu0
    %6980 = vmatpush.bf16.msra.mxu0 %v5635
    %6981 = vmatpush.bf16.msra.mxu0 %v5627
    %6982 = vmatpush.bf16.msra.mxu0 %v5619
    %6983 = vmatpush.bf16.msra.mxu0 %v5611
    %6984 = vmatpush.bf16.msra.mxu0 %v5603
    %6985 = vmatpush.bf16.msra.mxu0 %v5595
    %6986 = vmatpush.bf16.msra.mxu0 %v5587
    %6987 = vmatpush.bf16.msra.mxu0 %v5579
    %6988 = vmatmul.bf16.gmra.mxu0 %v5740
    %v6989 = vpop.f32.mrf.mxu0
    %v6990 = vadd.f32 %v6977, %v6989
    %v6991 = vpop.f32.mrf.mxu0
    %6992 = vdwg.mxu0
    %6993 = vmatpush.bf16.msra.mxu0 %v5699
    %6994 = vmatpush.bf16.msra.mxu0 %v5691
    %6995 = vmatpush.bf16.msra.mxu0 %v5683
    %6996 = vmatpush.bf16.msra.mxu0 %v5675
    %6997 = vmatpush.bf16.msra.mxu0 %v5667
    %6998 = vmatpush.bf16.msra.mxu0 %v5659
    %6999 = vmatpush.bf16.msra.mxu0 %v5651
    %7000 = vmatpush.bf16.msra.mxu0 %v5643
    %7001 = vmatmul.bf16.gmra.mxu0 %v5741
    %v7002 = vpop.f32.mrf.mxu0
    %v7003 = vadd.f32 %v6990, %v7002
    %v7004 = vpop.f32.mrf.mxu0
    %7005 = vdwg.mxu0
    %7006 = vmatpush.bf16.msra.mxu0 %v4740
    %7007 = vmatpush.bf16.msra.mxu0 %v4732
    %7008 = vmatpush.bf16.msra.mxu0 %v4724
    %7009 = vmatpush.bf16.msra.mxu0 %v4716
    %7010 = vmatpush.bf16.msra.mxu0 %v4708
    %7011 = vmatpush.bf16.msra.mxu0 %v4700
    %7012 = vmatpush.bf16.msra.mxu0 %v4692
    %7013 = vmatpush.bf16.msra.mxu0 %v4684
    %7014 = vmatmul.bf16.gmra.mxu0 %v5726
    %v7015 = vpop.f32.mrf.mxu0
    %v7016 = vadd.f32 0.0, %v7015
    %v7017 = vpop.f32.mrf.mxu0
    %7018 = vdwg.mxu0
    %7019 = vmatpush.bf16.msra.mxu0 %v4804
    %7020 = vmatpush.bf16.msra.mxu0 %v4796
    %7021 = vmatpush.bf16.msra.mxu0 %v4788
    %7022 = vmatpush.bf16.msra.mxu0 %v4780
    %7023 = vmatpush.bf16.msra.mxu0 %v4772
    %7024 = vmatpush.bf16.msra.mxu0 %v4764
    %7025 = vmatpush.bf16.msra.mxu0 %v4756
    %7026 = vmatpush.bf16.msra.mxu0 %v4748
    %7027 = vmatmul.bf16.gmra.mxu0 %v5727
    %v7028 = vpop.f32.mrf.mxu0
    %v7029 = vadd.f32 %v7016, %v7028
    %v7030 = vpop.f32.mrf.mxu0
    %7031 = vdwg.mxu0
    %7032 = vmatpush.bf16.msra.mxu0 %v4868
    %7033 = vmatpush.bf16.msra.mxu0 %v4860
    %7034 = vmatpush.bf16.msra.mxu0 %v4852
    %7035 = vmatpush.bf16.msra.mxu0 %v4844
    %7036 = vmatpush.bf16.msra.mxu0 %v4836
    %7037 = vmatpush.bf16.msra.mxu0 %v4828
    %7038 = vmatpush.bf16.msra.mxu0 %v4820
    %7039 = vmatpush.bf16.msra.mxu0 %v4812
    %7040 = vmatmul.bf16.gmra.mxu0 %v5728
    %v7041 = vpop.f32.mrf.mxu0
    %v7042 = vadd.f32 %v7029, %v7041
    %v7043 = vpop.f32.mrf.mxu0
    %7044 = vdwg.mxu0
    %7045 = vmatpush.bf16.msra.mxu0 %v4932
    %7046 = vmatpush.bf16.msra.mxu0 %v4924
    %7047 = vmatpush.bf16.msra.mxu0 %v4916
    %7048 = vmatpush.bf16.msra.mxu0 %v4908
    %7049 = vmatpush.bf16.msra.mxu0 %v4900
    %7050 = vmatpush.bf16.msra.mxu0 %v4892
    %7051 = vmatpush.bf16.msra.mxu0 %v4884
    %7052 = vmatpush.bf16.msra.mxu0 %v4876
    %7053 = vmatmul.bf16.gmra.mxu0 %v5729
    %v7054 = vpop.f32.mrf.mxu0
    %v7055 = vadd.f32 %v7042, %v7054
    %v7056 = vpop.f32.mrf.mxu0
    %7057 = vdwg.mxu0
    %7058 = vmatpush.bf16.msra.mxu0 %v4996
    %7059 = vmatpush.bf16.msra.mxu0 %v4988
    %7060 = vmatpush.bf16.msra.mxu0 %v4980
    %7061 = vmatpush.bf16.msra.mxu0 %v4972
    %7062 = vmatpush.bf16.msra.mxu0 %v4964
    %7063 = vmatpush.bf16.msra.mxu0 %v4956
    %7064 = vmatpush.bf16.msra.mxu0 %v4948
    %7065 = vmatpush.bf16.msra.mxu0 %v4940
    %7066 = vmatmul.bf16.gmra.mxu0 %v5730
    %v7067 = vpop.f32.mrf.mxu0
    %v7068 = vadd.f32 %v7055, %v7067
    %v7069 = vpop.f32.mrf.mxu0
    %7070 = vdwg.mxu0
    %7071 = vmatpush.bf16.msra.mxu0 %v5060
    %7072 = vmatpush.bf16.msra.mxu0 %v5052
    %7073 = vmatpush.bf16.msra.mxu0 %v5044
    %7074 = vmatpush.bf16.msra.mxu0 %v5036
    %7075 = vmatpush.bf16.msra.mxu0 %v5028
    %7076 = vmatpush.bf16.msra.mxu0 %v5020
    %7077 = vmatpush.bf16.msra.mxu0 %v5012
    %7078 = vmatpush.bf16.msra.mxu0 %v5004
    %7079 = vmatmul.bf16.gmra.mxu0 %v5731
    %v7080 = vpop.f32.mrf.mxu0
    %v7081 = vadd.f32 %v7068, %v7080
    %v7082 = vpop.f32.mrf.mxu0
    %7083 = vdwg.mxu0
    %7084 = vmatpush.bf16.msra.mxu0 %v5124
    %7085 = vmatpush.bf16.msra.mxu0 %v5116
    %7086 = vmatpush.bf16.msra.mxu0 %v5108
    %7087 = vmatpush.bf16.msra.mxu0 %v5100
    %7088 = vmatpush.bf16.msra.mxu0 %v5092
    %7089 = vmatpush.bf16.msra.mxu0 %v5084
    %7090 = vmatpush.bf16.msra.mxu0 %v5076
    %7091 = vmatpush.bf16.msra.mxu0 %v5068
    %7092 = vmatmul.bf16.gmra.mxu0 %v5732
    %v7093 = vpop.f32.mrf.mxu0
    %v7094 = vadd.f32 %v7081, %v7093
    %v7095 = vpop.f32.mrf.mxu0
    %7096 = vdwg.mxu0
    %7097 = vmatpush.bf16.msra.mxu0 %v5188
    %7098 = vmatpush.bf16.msra.mxu0 %v5180
    %7099 = vmatpush.bf16.msra.mxu0 %v5172
    %7100 = vmatpush.bf16.msra.mxu0 %v5164
    %7101 = vmatpush.bf16.msra.mxu0 %v5156
    %7102 = vmatpush.bf16.msra.mxu0 %v5148
    %7103 = vmatpush.bf16.msra.mxu0 %v5140
    %7104 = vmatpush.bf16.msra.mxu0 %v5132
    %7105 = vmatmul.bf16.gmra.mxu0 %v5733
    %v7106 = vpop.f32.mrf.mxu0
    %v7107 = vadd.f32 %v7094, %v7106
    %v7108 = vpop.f32.mrf.mxu0
    %7109 = vdwg.mxu0
    %7110 = vmatpush.bf16.msra.mxu0 %v5252
    %7111 = vmatpush.bf16.msra.mxu0 %v5244
    %7112 = vmatpush.bf16.msra.mxu0 %v5236
    %7113 = vmatpush.bf16.msra.mxu0 %v5228
    %7114 = vmatpush.bf16.msra.mxu0 %v5220
    %7115 = vmatpush.bf16.msra.mxu0 %v5212
    %7116 = vmatpush.bf16.msra.mxu0 %v5204
    %7117 = vmatpush.bf16.msra.mxu0 %v5196
    %7118 = vmatmul.bf16.gmra.mxu0 %v5734
    %v7119 = vpop.f32.mrf.mxu0
    %v7120 = vadd.f32 %v7107, %v7119
    %v7121 = vpop.f32.mrf.mxu0
    %7122 = vdwg.mxu0
    %7123 = vmatpush.bf16.msra.mxu0 %v5316
    %7124 = vmatpush.bf16.msra.mxu0 %v5308
    %7125 = vmatpush.bf16.msra.mxu0 %v5300
    %7126 = vmatpush.bf16.msra.mxu0 %v5292
    %7127 = vmatpush.bf16.msra.mxu0 %v5284
    %7128 = vmatpush.bf16.msra.mxu0 %v5276
    %7129 = vmatpush.bf16.msra.mxu0 %v5268
    %7130 = vmatpush.bf16.msra.mxu0 %v5260
    %7131 = vmatmul.bf16.gmra.mxu0 %v5735
    %v7132 = vpop.f32.mrf.mxu0
    %v7133 = vadd.f32 %v7120, %v7132
    %v7134 = vpop.f32.mrf.mxu0
    %7135 = vdwg.mxu0
    %7136 = vmatpush.bf16.msra.mxu0 %v5380
    %7137 = vmatpush.bf16.msra.mxu0 %v5372
    %7138 = vmatpush.bf16.msra.mxu0 %v5364
    %7139 = vmatpush.bf16.msra.mxu0 %v5356
    %7140 = vmatpush.bf16.msra.mxu0 %v5348
    %7141 = vmatpush.bf16.msra.mxu0 %v5340
    %7142 = vmatpush.bf16.msra.mxu0 %v5332
    %7143 = vmatpush.bf16.msra.mxu0 %v5324
    %7144 = vmatmul.bf16.gmra.mxu0 %v5736
    %v7145 = vpop.f32.mrf.mxu0
    %v7146 = vadd.f32 %v7133, %v7145
    %v7147 = vpop.f32.mrf.mxu0
    %7148 = vdwg.mxu0
    %7149 = vmatpush.bf16.msra.mxu0 %v5444
    %7150 = vmatpush.bf16.msra.mxu0 %v5436
    %7151 = vmatpush.bf16.msra.mxu0 %v5428
    %7152 = vmatpush.bf16.msra.mxu0 %v5420
    %7153 = vmatpush.bf16.msra.mxu0 %v5412
    %7154 = vmatpush.bf16.msra.mxu0 %v5404
    %7155 = vmatpush.bf16.msra.mxu0 %v5396
    %7156 = vmatpush.bf16.msra.mxu0 %v5388
    %7157 = vmatmul.bf16.gmra.mxu0 %v5737
    %v7158 = vpop.f32.mrf.mxu0
    %v7159 = vadd.f32 %v7146, %v7158
    %v7160 = vpop.f32.mrf.mxu0
    %7161 = vdwg.mxu0
    %7162 = vmatpush.bf16.msra.mxu0 %v5508
    %7163 = vmatpush.bf16.msra.mxu0 %v5500
    %7164 = vmatpush.bf16.msra.mxu0 %v5492
    %7165 = vmatpush.bf16.msra.mxu0 %v5484
    %7166 = vmatpush.bf16.msra.mxu0 %v5476
    %7167 = vmatpush.bf16.msra.mxu0 %v5468
    %7168 = vmatpush.bf16.msra.mxu0 %v5460
    %7169 = vmatpush.bf16.msra.mxu0 %v5452
    %7170 = vmatmul.bf16.gmra.mxu0 %v5738
    %v7171 = vpop.f32.mrf.mxu0
    %v7172 = vadd.f32 %v7159, %v7171
    %v7173 = vpop.f32.mrf.mxu0
    %7174 = vdwg.mxu0
    %7175 = vmatpush.bf16.msra.mxu0 %v5572
    %7176 = vmatpush.bf16.msra.mxu0 %v5564
    %7177 = vmatpush.bf16.msra.mxu0 %v5556
    %7178 = vmatpush.bf16.msra.mxu0 %v5548
    %7179 = vmatpush.bf16.msra.mxu0 %v5540
    %7180 = vmatpush.bf16.msra.mxu0 %v5532
    %7181 = vmatpush.bf16.msra.mxu0 %v5524
    %7182 = vmatpush.bf16.msra.mxu0 %v5516
    %7183 = vmatmul.bf16.gmra.mxu0 %v5739
    %v7184 = vpop.f32.mrf.mxu0
    %v7185 = vadd.f32 %v7172, %v7184
    %v7186 = vpop.f32.mrf.mxu0
    %7187 = vdwg.mxu0
    %7188 = vmatpush.bf16.msra.mxu0 %v5636
    %7189 = vmatpush.bf16.msra.mxu0 %v5628
    %7190 = vmatpush.bf16.msra.mxu0 %v5620
    %7191 = vmatpush.bf16.msra.mxu0 %v5612
    %7192 = vmatpush.bf16.msra.mxu0 %v5604
    %7193 = vmatpush.bf16.msra.mxu0 %v5596
    %7194 = vmatpush.bf16.msra.mxu0 %v5588
    %7195 = vmatpush.bf16.msra.mxu0 %v5580
    %7196 = vmatmul.bf16.gmra.mxu0 %v5740
    %v7197 = vpop.f32.mrf.mxu0
    %v7198 = vadd.f32 %v7185, %v7197
    %v7199 = vpop.f32.mrf.mxu0
    %7200 = vdwg.mxu0
    %7201 = vmatpush.bf16.msra.mxu0 %v5700
    %7202 = vmatpush.bf16.msra.mxu0 %v5692
    %7203 = vmatpush.bf16.msra.mxu0 %v5684
    %7204 = vmatpush.bf16.msra.mxu0 %v5676
    %7205 = vmatpush.bf16.msra.mxu0 %v5668
    %7206 = vmatpush.bf16.msra.mxu0 %v5660
    %7207 = vmatpush.bf16.msra.mxu0 %v5652
    %7208 = vmatpush.bf16.msra.mxu0 %v5644
    %7209 = vmatmul.bf16.gmra.mxu0 %v5741
    %v7210 = vpop.f32.mrf.mxu0
    %v7211 = vadd.f32 %v7198, %v7210
    %v7212 = vpop.f32.mrf.mxu0
    %7213 = vdwg.mxu0
    %7214 = vmatpush.bf16.msra.mxu0 %v4741
    %7215 = vmatpush.bf16.msra.mxu0 %v4733
    %7216 = vmatpush.bf16.msra.mxu0 %v4725
    %7217 = vmatpush.bf16.msra.mxu0 %v4717
    %7218 = vmatpush.bf16.msra.mxu0 %v4709
    %7219 = vmatpush.bf16.msra.mxu0 %v4701
    %7220 = vmatpush.bf16.msra.mxu0 %v4693
    %7221 = vmatpush.bf16.msra.mxu0 %v4685
    %7222 = vmatmul.bf16.gmra.mxu0 %v5726
    %v7223 = vpop.f32.mrf.mxu0
    %v7224 = vadd.f32 0.0, %v7223
    %v7225 = vpop.f32.mrf.mxu0
    %7226 = vdwg.mxu0
    %7227 = vmatpush.bf16.msra.mxu0 %v4805
    %7228 = vmatpush.bf16.msra.mxu0 %v4797
    %7229 = vmatpush.bf16.msra.mxu0 %v4789
    %7230 = vmatpush.bf16.msra.mxu0 %v4781
    %7231 = vmatpush.bf16.msra.mxu0 %v4773
    %7232 = vmatpush.bf16.msra.mxu0 %v4765
    %7233 = vmatpush.bf16.msra.mxu0 %v4757
    %7234 = vmatpush.bf16.msra.mxu0 %v4749
    %7235 = vmatmul.bf16.gmra.mxu0 %v5727
    %v7236 = vpop.f32.mrf.mxu0
    %v7237 = vadd.f32 %v7224, %v7236
    %v7238 = vpop.f32.mrf.mxu0
    %7239 = vdwg.mxu0
    %7240 = vmatpush.bf16.msra.mxu0 %v4869
    %7241 = vmatpush.bf16.msra.mxu0 %v4861
    %7242 = vmatpush.bf16.msra.mxu0 %v4853
    %7243 = vmatpush.bf16.msra.mxu0 %v4845
    %7244 = vmatpush.bf16.msra.mxu0 %v4837
    %7245 = vmatpush.bf16.msra.mxu0 %v4829
    %7246 = vmatpush.bf16.msra.mxu0 %v4821
    %7247 = vmatpush.bf16.msra.mxu0 %v4813
    %7248 = vmatmul.bf16.gmra.mxu0 %v5728
    %v7249 = vpop.f32.mrf.mxu0
    %v7250 = vadd.f32 %v7237, %v7249
    %v7251 = vpop.f32.mrf.mxu0
    %7252 = vdwg.mxu0
    %7253 = vmatpush.bf16.msra.mxu0 %v4933
    %7254 = vmatpush.bf16.msra.mxu0 %v4925
    %7255 = vmatpush.bf16.msra.mxu0 %v4917
    %7256 = vmatpush.bf16.msra.mxu0 %v4909
    %7257 = vmatpush.bf16.msra.mxu0 %v4901
    %7258 = vmatpush.bf16.msra.mxu0 %v4893
    %7259 = vmatpush.bf16.msra.mxu0 %v4885
    %7260 = vmatpush.bf16.msra.mxu0 %v4877
    %7261 = vmatmul.bf16.gmra.mxu0 %v5729
    %v7262 = vpop.f32.mrf.mxu0
    %v7263 = vadd.f32 %v7250, %v7262
    %v7264 = vpop.f32.mrf.mxu0
    %7265 = vdwg.mxu0
    %7266 = vmatpush.bf16.msra.mxu0 %v4997
    %7267 = vmatpush.bf16.msra.mxu0 %v4989
    %7268 = vmatpush.bf16.msra.mxu0 %v4981
    %7269 = vmatpush.bf16.msra.mxu0 %v4973
    %7270 = vmatpush.bf16.msra.mxu0 %v4965
    %7271 = vmatpush.bf16.msra.mxu0 %v4957
    %7272 = vmatpush.bf16.msra.mxu0 %v4949
    %7273 = vmatpush.bf16.msra.mxu0 %v4941
    %7274 = vmatmul.bf16.gmra.mxu0 %v5730
    %v7275 = vpop.f32.mrf.mxu0
    %v7276 = vadd.f32 %v7263, %v7275
    %v7277 = vpop.f32.mrf.mxu0
    %7278 = vdwg.mxu0
    %7279 = vmatpush.bf16.msra.mxu0 %v5061
    %7280 = vmatpush.bf16.msra.mxu0 %v5053
    %7281 = vmatpush.bf16.msra.mxu0 %v5045
    %7282 = vmatpush.bf16.msra.mxu0 %v5037
    %7283 = vmatpush.bf16.msra.mxu0 %v5029
    %7284 = vmatpush.bf16.msra.mxu0 %v5021
    %7285 = vmatpush.bf16.msra.mxu0 %v5013
    %7286 = vmatpush.bf16.msra.mxu0 %v5005
    %7287 = vmatmul.bf16.gmra.mxu0 %v5731
    %v7288 = vpop.f32.mrf.mxu0
    %v7289 = vadd.f32 %v7276, %v7288
    %v7290 = vpop.f32.mrf.mxu0
    %7291 = vdwg.mxu0
    %7292 = vmatpush.bf16.msra.mxu0 %v5125
    %7293 = vmatpush.bf16.msra.mxu0 %v5117
    %7294 = vmatpush.bf16.msra.mxu0 %v5109
    %7295 = vmatpush.bf16.msra.mxu0 %v5101
    %7296 = vmatpush.bf16.msra.mxu0 %v5093
    %7297 = vmatpush.bf16.msra.mxu0 %v5085
    %7298 = vmatpush.bf16.msra.mxu0 %v5077
    %7299 = vmatpush.bf16.msra.mxu0 %v5069
    %7300 = vmatmul.bf16.gmra.mxu0 %v5732
    %v7301 = vpop.f32.mrf.mxu0
    %v7302 = vadd.f32 %v7289, %v7301
    %v7303 = vpop.f32.mrf.mxu0
    %7304 = vdwg.mxu0
    %7305 = vmatpush.bf16.msra.mxu0 %v5189
    %7306 = vmatpush.bf16.msra.mxu0 %v5181
    %7307 = vmatpush.bf16.msra.mxu0 %v5173
    %7308 = vmatpush.bf16.msra.mxu0 %v5165
    %7309 = vmatpush.bf16.msra.mxu0 %v5157
    %7310 = vmatpush.bf16.msra.mxu0 %v5149
    %7311 = vmatpush.bf16.msra.mxu0 %v5141
    %7312 = vmatpush.bf16.msra.mxu0 %v5133
    %7313 = vmatmul.bf16.gmra.mxu0 %v5733
    %v7314 = vpop.f32.mrf.mxu0
    %v7315 = vadd.f32 %v7302, %v7314
    %v7316 = vpop.f32.mrf.mxu0
    %7317 = vdwg.mxu0
    %7318 = vmatpush.bf16.msra.mxu0 %v5253
    %7319 = vmatpush.bf16.msra.mxu0 %v5245
    %7320 = vmatpush.bf16.msra.mxu0 %v5237
    %7321 = vmatpush.bf16.msra.mxu0 %v5229
    %7322 = vmatpush.bf16.msra.mxu0 %v5221
    %7323 = vmatpush.bf16.msra.mxu0 %v5213
    %7324 = vmatpush.bf16.msra.mxu0 %v5205
    %7325 = vmatpush.bf16.msra.mxu0 %v5197
    %7326 = vmatmul.bf16.gmra.mxu0 %v5734
    %v7327 = vpop.f32.mrf.mxu0
    %v7328 = vadd.f32 %v7315, %v7327
    %v7329 = vpop.f32.mrf.mxu0
    %7330 = vdwg.mxu0
    %7331 = vmatpush.bf16.msra.mxu0 %v5317
    %7332 = vmatpush.bf16.msra.mxu0 %v5309
    %7333 = vmatpush.bf16.msra.mxu0 %v5301
    %7334 = vmatpush.bf16.msra.mxu0 %v5293
    %7335 = vmatpush.bf16.msra.mxu0 %v5285
    %7336 = vmatpush.bf16.msra.mxu0 %v5277
    %7337 = vmatpush.bf16.msra.mxu0 %v5269
    %7338 = vmatpush.bf16.msra.mxu0 %v5261
    %7339 = vmatmul.bf16.gmra.mxu0 %v5735
    %v7340 = vpop.f32.mrf.mxu0
    %v7341 = vadd.f32 %v7328, %v7340
    %v7342 = vpop.f32.mrf.mxu0
    %7343 = vdwg.mxu0
    %7344 = vmatpush.bf16.msra.mxu0 %v5381
    %7345 = vmatpush.bf16.msra.mxu0 %v5373
    %7346 = vmatpush.bf16.msra.mxu0 %v5365
    %7347 = vmatpush.bf16.msra.mxu0 %v5357
    %7348 = vmatpush.bf16.msra.mxu0 %v5349
    %7349 = vmatpush.bf16.msra.mxu0 %v5341
    %7350 = vmatpush.bf16.msra.mxu0 %v5333
    %7351 = vmatpush.bf16.msra.mxu0 %v5325
    %7352 = vmatmul.bf16.gmra.mxu0 %v5736
    %v7353 = vpop.f32.mrf.mxu0
    %v7354 = vadd.f32 %v7341, %v7353
    %v7355 = vpop.f32.mrf.mxu0
    %7356 = vdwg.mxu0
    %7357 = vmatpush.bf16.msra.mxu0 %v5445
    %7358 = vmatpush.bf16.msra.mxu0 %v5437
    %7359 = vmatpush.bf16.msra.mxu0 %v5429
    %7360 = vmatpush.bf16.msra.mxu0 %v5421
    %7361 = vmatpush.bf16.msra.mxu0 %v5413
    %7362 = vmatpush.bf16.msra.mxu0 %v5405
    %7363 = vmatpush.bf16.msra.mxu0 %v5397
    %7364 = vmatpush.bf16.msra.mxu0 %v5389
    %7365 = vmatmul.bf16.gmra.mxu0 %v5737
    %v7366 = vpop.f32.mrf.mxu0
    %v7367 = vadd.f32 %v7354, %v7366
    %v7368 = vpop.f32.mrf.mxu0
    %7369 = vdwg.mxu0
    %7370 = vmatpush.bf16.msra.mxu0 %v5509
    %7371 = vmatpush.bf16.msra.mxu0 %v5501
    %7372 = vmatpush.bf16.msra.mxu0 %v5493
    %7373 = vmatpush.bf16.msra.mxu0 %v5485
    %7374 = vmatpush.bf16.msra.mxu0 %v5477
    %7375 = vmatpush.bf16.msra.mxu0 %v5469
    %7376 = vmatpush.bf16.msra.mxu0 %v5461
    %7377 = vmatpush.bf16.msra.mxu0 %v5453
    %7378 = vmatmul.bf16.gmra.mxu0 %v5738
    %v7379 = vpop.f32.mrf.mxu0
    %v7380 = vadd.f32 %v7367, %v7379
    %v7381 = vpop.f32.mrf.mxu0
    %7382 = vdwg.mxu0
    %7383 = vmatpush.bf16.msra.mxu0 %v5573
    %7384 = vmatpush.bf16.msra.mxu0 %v5565
    %7385 = vmatpush.bf16.msra.mxu0 %v5557
    %7386 = vmatpush.bf16.msra.mxu0 %v5549
    %7387 = vmatpush.bf16.msra.mxu0 %v5541
    %7388 = vmatpush.bf16.msra.mxu0 %v5533
    %7389 = vmatpush.bf16.msra.mxu0 %v5525
    %7390 = vmatpush.bf16.msra.mxu0 %v5517
    %7391 = vmatmul.bf16.gmra.mxu0 %v5739
    %v7392 = vpop.f32.mrf.mxu0
    %v7393 = vadd.f32 %v7380, %v7392
    %v7394 = vpop.f32.mrf.mxu0
    %7395 = vdwg.mxu0
    %7396 = vmatpush.bf16.msra.mxu0 %v5637
    %7397 = vmatpush.bf16.msra.mxu0 %v5629
    %7398 = vmatpush.bf16.msra.mxu0 %v5621
    %7399 = vmatpush.bf16.msra.mxu0 %v5613
    %7400 = vmatpush.bf16.msra.mxu0 %v5605
    %7401 = vmatpush.bf16.msra.mxu0 %v5597
    %7402 = vmatpush.bf16.msra.mxu0 %v5589
    %7403 = vmatpush.bf16.msra.mxu0 %v5581
    %7404 = vmatmul.bf16.gmra.mxu0 %v5740
    %v7405 = vpop.f32.mrf.mxu0
    %v7406 = vadd.f32 %v7393, %v7405
    %v7407 = vpop.f32.mrf.mxu0
    %7408 = vdwg.mxu0
    %7409 = vmatpush.bf16.msra.mxu0 %v5701
    %7410 = vmatpush.bf16.msra.mxu0 %v5693
    %7411 = vmatpush.bf16.msra.mxu0 %v5685
    %7412 = vmatpush.bf16.msra.mxu0 %v5677
    %7413 = vmatpush.bf16.msra.mxu0 %v5669
    %7414 = vmatpush.bf16.msra.mxu0 %v5661
    %7415 = vmatpush.bf16.msra.mxu0 %v5653
    %7416 = vmatpush.bf16.msra.mxu0 %v5645
    %7417 = vmatmul.bf16.gmra.mxu0 %v5741
    %v7418 = vpop.f32.mrf.mxu0
    %v7419 = vadd.f32 %v7406, %v7418
    %v7420 = vpop.f32.mrf.mxu0
    %7421 = vdwg.mxu0
    %v7422 = vld [vmem:[#allocation6] ss:$8 sm:$0xf]
    %v7423 = vld [vmem:[#allocation6] ss:$8 sm:$0xf0]
    %v7424 = vor.u32 %v7422, %v7423
    %v7426 = vperm.slane %v7424, 0
    %v7427 = vperm.slane %v7424, 1
    %v7428 = vperm.slane %v7424, 2
    %v7429 = vperm.slane %v7424, 3
    %v7430 = vperm.slane %v7424, 4
    %v7431 = vperm.slane %v7424, 5
    %v7432 = vperm.slane %v7424, 6
    %v7433 = vperm.slane %v7424, 7
    %v7442 = vmul.f32 %v5963, %v7426
    %v7443 = vmul.f32 %v6171, %v7427
    %v7444 = vmul.f32 %v6379, %v7428
    %v7445 = vmul.f32 %v6587, %v7429
    %v7446 = vmul.f32 %v6795, %v7430
    %v7447 = vmul.f32 %v7003, %v7431
    %v7448 = vmul.f32 %v7211, %v7432
    %v7449 = vmul.f32 %v7419, %v7433
    %s7450 = scalar_lea.vmem [#allocation6], 1
    %v7451 = vld [vmem:[%s7450] ss:$8 sm:$0xf]
    %v7452 = vld [vmem:[%s7450] ss:$8 sm:$0xf0]
    %v7453 = vor.u32 %v7451, %v7452
    %v7455 = vperm.slane %v7453, 0
    %v7456 = vperm.slane %v7453, 1
    %v7457 = vperm.slane %v7453, 2
    %v7458 = vperm.slane %v7453, 3
    %v7459 = vperm.slane %v7453, 4
    %v7460 = vperm.slane %v7453, 5
    %v7461 = vperm.slane %v7453, 6
    %v7462 = vperm.slane %v7453, 7
    %v7471 = vadd.f32 %v7442, %v7455
    %v7472 = vadd.f32 %v7443, %v7456
    %v7473 = vadd.f32 %v7444, %v7457
    %v7474 = vadd.f32 %v7445, %v7458
    %v7475 = vadd.f32 %v7446, %v7459
    %v7476 = vadd.f32 %v7447, %v7460
    %v7477 = vadd.f32 %v7448, %v7461
    %v7478 = vadd.f32 %v7449, %v7462
    %v7479 = vmax.f32 %v7471, 0.0
    %v7480 = vmax.f32 %v7472, 0.0
    %v7481 = vmax.f32 %v7473, 0.0
    %v7482 = vmax.f32 %v7474, 0.0
    %v7483 = vmax.f32 %v7475, 0.0
    %v7484 = vmax.f32 %v7476, 0.0
    %v7485 = vmax.f32 %v7477, 0.0
    %v7486 = vmax.f32 %v7478, 0.0
    %v7487 = vld [vmem:[#allocation4] sm:$0xff]
    %v7488 = vld [vmem:[#allocation4 + $0x8] sm:$0xff]
    %v7489 = vld [vmem:[#allocation4 + $0x10] sm:$0xff]
    %v7490 = vld [vmem:[#allocation4 + $0x18] sm:$0xff]
    %v7491 = vld [vmem:[#allocation4 + $0x20] sm:$0xff]
    %v7492 = vld [vmem:[#allocation4 + $0x28] sm:$0xff]
    %v7493 = vld [vmem:[#allocation4 + $0x30] sm:$0xff]
    %v7494 = vld [vmem:[#allocation4 + $0x38] sm:$0xff]
    %v7495 = vld [vmem:[#allocation4 + $0x40] sm:$0xff]
    %v7496 = vld [vmem:[#allocation4 + $0x48] sm:$0xff]
    %v7497 = vld [vmem:[#allocation4 + $0x50] sm:$0xff]
    %v7498 = vld [vmem:[#allocation4 + $0x58] sm:$0xff]
    %v7499 = vld [vmem:[#allocation4 + $0x60] sm:$0xff]
    %v7500 = vld [vmem:[#allocation4 + $0x68] sm:$0xff]
    %v7501 = vld [vmem:[#allocation4 + $0x70] sm:$0xff]
    %v7502 = vld [vmem:[#allocation4 + $0x78] sm:$0xff]
    %v7503 = vld [vmem:[#allocation4 + $0x80] sm:$0xff]
    %v7504 = vld [vmem:[#allocation4 + $0x88] sm:$0xff]
    %v7505 = vld [vmem:[#allocation4 + $0x90] sm:$0xff]
    %v7506 = vld [vmem:[#allocation4 + $0x98] sm:$0xff]
    %v7507 = vld [vmem:[#allocation4 + $0xa0] sm:$0xff]
    %v7508 = vld [vmem:[#allocation4 + $0xa8] sm:$0xff]
    %v7509 = vld [vmem:[#allocation4 + $0xb0] sm:$0xff]
    %v7510 = vld [vmem:[#allocation4 + $0xb8] sm:$0xff]
    %v7511 = vld [vmem:[#allocation4 + $0xc0] sm:$0xff]
    %v7512 = vld [vmem:[#allocation4 + $0xc8] sm:$0xff]
    %v7513 = vld [vmem:[#allocation4 + $0xd0] sm:$0xff]
    %v7514 = vld [vmem:[#allocation4 + $0xd8] sm:$0xff]
    %v7515 = vld [vmem:[#allocation4 + $0xe0] sm:$0xff]
    %v7516 = vld [vmem:[#allocation4 + $0xe8] sm:$0xff]
    %v7517 = vld [vmem:[#allocation4 + $0xf0] sm:$0xff]
    %v7518 = vld [vmem:[#allocation4 + $0xf8] sm:$0xff]
    %v7519 = vld [vmem:[#allocation4 + $0x100] sm:$0xff]
    %v7520 = vld [vmem:[#allocation4 + $0x108] sm:$0xff]
    %v7521 = vld [vmem:[#allocation4 + $0x110] sm:$0xff]
    %v7522 = vld [vmem:[#allocation4 + $0x118] sm:$0xff]
    %v7523 = vld [vmem:[#allocation4 + $0x120] sm:$0xff]
    %v7524 = vld [vmem:[#allocation4 + $0x128] sm:$0xff]
    %v7525 = vld [vmem:[#allocation4 + $0x130] sm:$0xff]
    %v7526 = vld [vmem:[#allocation4 + $0x138] sm:$0xff]
    %v7527 = vld [vmem:[#allocation4 + $0x140] sm:$0xff]
    %v7528 = vld [vmem:[#allocation4 + $0x148] sm:$0xff]
    %v7529 = vld [vmem:[#allocation4 + $0x150] sm:$0xff]
    %v7530 = vld [vmem:[#allocation4 + $0x158] sm:$0xff]
    %v7531 = vld [vmem:[#allocation4 + $0x160] sm:$0xff]
    %v7532 = vld [vmem:[#allocation4 + $0x168] sm:$0xff]
    %v7533 = vld [vmem:[#allocation4 + $0x170] sm:$0xff]
    %v7534 = vld [vmem:[#allocation4 + $0x178] sm:$0xff]
    %v7535 = vld [vmem:[#allocation4 + $0x180] sm:$0xff]
    %v7536 = vld [vmem:[#allocation4 + $0x188] sm:$0xff]
    %v7537 = vld [vmem:[#allocation4 + $0x190] sm:$0xff]
    %v7538 = vld [vmem:[#allocation4 + $0x198] sm:$0xff]
    %v7539 = vld [vmem:[#allocation4 + $0x1a0] sm:$0xff]
    %v7540 = vld [vmem:[#allocation4 + $0x1a8] sm:$0xff]
    %v7541 = vld [vmem:[#allocation4 + $0x1b0] sm:$0xff]
    %v7542 = vld [vmem:[#allocation4 + $0x1b8] sm:$0xff]
    %v7543 = vld [vmem:[#allocation4 + $0x1c0] sm:$0xff]
    %v7544 = vld [vmem:[#allocation4 + $0x1c8] sm:$0xff]
    %v7545 = vld [vmem:[#allocation4 + $0x1d0] sm:$0xff]
    %v7546 = vld [vmem:[#allocation4 + $0x1d8] sm:$0xff]
    %v7547 = vld [vmem:[#allocation4 + $0x1e0] sm:$0xff]
    %v7548 = vld [vmem:[#allocation4 + $0x1e8] sm:$0xff]
    %v7549 = vld [vmem:[#allocation4 + $0x1f0] sm:$0xff]
    %v7550 = vld [vmem:[#allocation4 + $0x1f8] sm:$0xff]
    %v7551 = vld [vmem:[#allocation4 + $0x200] sm:$0xff]
    %v7552 = vld [vmem:[#allocation4 + $0x208] sm:$0xff]
    %v7553 = vld [vmem:[#allocation4 + $0x210] sm:$0xff]
    %v7554 = vld [vmem:[#allocation4 + $0x218] sm:$0xff]
    %v7555 = vld [vmem:[#allocation4 + $0x220] sm:$0xff]
    %v7556 = vld [vmem:[#allocation4 + $0x228] sm:$0xff]
    %v7557 = vld [vmem:[#allocation4 + $0x230] sm:$0xff]
    %v7558 = vld [vmem:[#allocation4 + $0x238] sm:$0xff]
    %v7559 = vld [vmem:[#allocation4 + $0x240] sm:$0xff]
    %v7560 = vld [vmem:[#allocation4 + $0x248] sm:$0xff]
    %v7561 = vld [vmem:[#allocation4 + $0x250] sm:$0xff]
    %v7562 = vld [vmem:[#allocation4 + $0x258] sm:$0xff]
    %v7563 = vld [vmem:[#allocation4 + $0x260] sm:$0xff]
    %v7564 = vld [vmem:[#allocation4 + $0x268] sm:$0xff]
    %v7565 = vld [vmem:[#allocation4 + $0x270] sm:$0xff]
    %v7566 = vld [vmem:[#allocation4 + $0x278] sm:$0xff]
    %v7567 = vld [vmem:[#allocation4 + $0x280] sm:$0xff]
    %v7568 = vld [vmem:[#allocation4 + $0x288] sm:$0xff]
    %v7569 = vld [vmem:[#allocation4 + $0x290] sm:$0xff]
    %v7570 = vld [vmem:[#allocation4 + $0x298] sm:$0xff]
    %v7571 = vld [vmem:[#allocation4 + $0x2a0] sm:$0xff]
    %v7572 = vld [vmem:[#allocation4 + $0x2a8] sm:$0xff]
    %v7573 = vld [vmem:[#allocation4 + $0x2b0] sm:$0xff]
    %v7574 = vld [vmem:[#allocation4 + $0x2b8] sm:$0xff]
    %v7575 = vld [vmem:[#allocation4 + $0x2c0] sm:$0xff]
    %v7576 = vld [vmem:[#allocation4 + $0x2c8] sm:$0xff]
    %v7577 = vld [vmem:[#allocation4 + $0x2d0] sm:$0xff]
    %v7578 = vld [vmem:[#allocation4 + $0x2d8] sm:$0xff]
    %v7579 = vld [vmem:[#allocation4 + $0x2e0] sm:$0xff]
    %v7580 = vld [vmem:[#allocation4 + $0x2e8] sm:$0xff]
    %v7581 = vld [vmem:[#allocation4 + $0x2f0] sm:$0xff]
    %v7582 = vld [vmem:[#allocation4 + $0x2f8] sm:$0xff]
    %v7583 = vld [vmem:[#allocation4 + $0x300] sm:$0xff]
    %v7584 = vld [vmem:[#allocation4 + $0x308] sm:$0xff]
    %v7585 = vld [vmem:[#allocation4 + $0x310] sm:$0xff]
    %v7586 = vld [vmem:[#allocation4 + $0x318] sm:$0xff]
    %v7587 = vld [vmem:[#allocation4 + $0x320] sm:$0xff]
    %v7588 = vld [vmem:[#allocation4 + $0x328] sm:$0xff]
    %v7589 = vld [vmem:[#allocation4 + $0x330] sm:$0xff]
    %v7590 = vld [vmem:[#allocation4 + $0x338] sm:$0xff]
    %v7591 = vld [vmem:[#allocation4 + $0x340] sm:$0xff]
    %v7592 = vld [vmem:[#allocation4 + $0x348] sm:$0xff]
    %v7593 = vld [vmem:[#allocation4 + $0x350] sm:$0xff]
    %v7594 = vld [vmem:[#allocation4 + $0x358] sm:$0xff]
    %v7595 = vld [vmem:[#allocation4 + $0x360] sm:$0xff]
    %v7596 = vld [vmem:[#allocation4 + $0x368] sm:$0xff]
    %v7597 = vld [vmem:[#allocation4 + $0x370] sm:$0xff]
    %v7598 = vld [vmem:[#allocation4 + $0x378] sm:$0xff]
    %v7599 = vld [vmem:[#allocation4 + $0x380] sm:$0xff]
    %v7600 = vld [vmem:[#allocation4 + $0x388] sm:$0xff]
    %v7601 = vld [vmem:[#allocation4 + $0x390] sm:$0xff]
    %v7602 = vld [vmem:[#allocation4 + $0x398] sm:$0xff]
    %v7603 = vld [vmem:[#allocation4 + $0x3a0] sm:$0xff]
    %v7604 = vld [vmem:[#allocation4 + $0x3a8] sm:$0xff]
    %v7605 = vld [vmem:[#allocation4 + $0x3b0] sm:$0xff]
    %v7606 = vld [vmem:[#allocation4 + $0x3b8] sm:$0xff]
    %v7607 = vld [vmem:[#allocation4 + $0x3c0] sm:$0xff]
    %v7608 = vld [vmem:[#allocation4 + $0x3c8] sm:$0xff]
    %v7609 = vld [vmem:[#allocation4 + $0x3d0] sm:$0xff]
    %v7610 = vld [vmem:[#allocation4 + $0x3d8] sm:$0xff]
    %v7611 = vld [vmem:[#allocation4 + $0x3e0] sm:$0xff]
    %v7612 = vld [vmem:[#allocation4 + $0x3e8] sm:$0xff]
    %v7613 = vld [vmem:[#allocation4 + $0x3f0] sm:$0xff]
    %v7614 = vld [vmem:[#allocation4 + $0x3f8] sm:$0xff]
    %v7615 = vld [vmem:[#allocation4 + $0x400] sm:$0xff]
    %v7616 = vld [vmem:[#allocation4 + $0x408] sm:$0xff]
    %v7617 = vld [vmem:[#allocation4 + $0x410] sm:$0xff]
    %v7618 = vld [vmem:[#allocation4 + $0x418] sm:$0xff]
    %v7619 = vld [vmem:[#allocation4 + $0x420] sm:$0xff]
    %v7620 = vld [vmem:[#allocation4 + $0x428] sm:$0xff]
    %v7621 = vld [vmem:[#allocation4 + $0x430] sm:$0xff]
    %v7622 = vld [vmem:[#allocation4 + $0x438] sm:$0xff]
    %v7623 = vld [vmem:[#allocation4 + $0x440] sm:$0xff]
    %v7624 = vld [vmem:[#allocation4 + $0x448] sm:$0xff]
    %v7625 = vld [vmem:[#allocation4 + $0x450] sm:$0xff]
    %v7626 = vld [vmem:[#allocation4 + $0x458] sm:$0xff]
    %v7627 = vld [vmem:[#allocation4 + $0x460] sm:$0xff]
    %v7628 = vld [vmem:[#allocation4 + $0x468] sm:$0xff]
    %v7629 = vld [vmem:[#allocation4 + $0x470] sm:$0xff]
    %v7630 = vld [vmem:[#allocation4 + $0x478] sm:$0xff]
    %v7631 = vld [vmem:[#allocation4 + $0x480] sm:$0xff]
    %v7632 = vld [vmem:[#allocation4 + $0x488] sm:$0xff]
    %v7633 = vld [vmem:[#allocation4 + $0x490] sm:$0xff]
    %v7634 = vld [vmem:[#allocation4 + $0x498] sm:$0xff]
    %v7635 = vld [vmem:[#allocation4 + $0x4a0] sm:$0xff]
    %v7636 = vld [vmem:[#allocation4 + $0x4a8] sm:$0xff]
    %v7637 = vld [vmem:[#allocation4 + $0x4b0] sm:$0xff]
    %v7638 = vld [vmem:[#allocation4 + $0x4b8] sm:$0xff]
    %v7639 = vld [vmem:[#allocation4 + $0x4c0] sm:$0xff]
    %v7640 = vld [vmem:[#allocation4 + $0x4c8] sm:$0xff]
    %v7641 = vld [vmem:[#allocation4 + $0x4d0] sm:$0xff]
    %v7642 = vld [vmem:[#allocation4 + $0x4d8] sm:$0xff]
    %v7643 = vld [vmem:[#allocation4 + $0x4e0] sm:$0xff]
    %v7644 = vld [vmem:[#allocation4 + $0x4e8] sm:$0xff]
    %v7645 = vld [vmem:[#allocation4 + $0x4f0] sm:$0xff]
    %v7646 = vld [vmem:[#allocation4 + $0x4f8] sm:$0xff]
    %v7647 = vld [vmem:[#allocation4 + $0x500] sm:$0xff]
    %v7648 = vld [vmem:[#allocation4 + $0x508] sm:$0xff]
    %v7649 = vld [vmem:[#allocation4 + $0x510] sm:$0xff]
    %v7650 = vld [vmem:[#allocation4 + $0x518] sm:$0xff]
    %v7651 = vld [vmem:[#allocation4 + $0x520] sm:$0xff]
    %v7652 = vld [vmem:[#allocation4 + $0x528] sm:$0xff]
    %v7653 = vld [vmem:[#allocation4 + $0x530] sm:$0xff]
    %v7654 = vld [vmem:[#allocation4 + $0x538] sm:$0xff]
    %v7655 = vld [vmem:[#allocation4 + $0x540] sm:$0xff]
    %v7656 = vld [vmem:[#allocation4 + $0x548] sm:$0xff]
    %v7657 = vld [vmem:[#allocation4 + $0x550] sm:$0xff]
    %v7658 = vld [vmem:[#allocation4 + $0x558] sm:$0xff]
    %v7659 = vld [vmem:[#allocation4 + $0x560] sm:$0xff]
    %v7660 = vld [vmem:[#allocation4 + $0x568] sm:$0xff]
    %v7661 = vld [vmem:[#allocation4 + $0x570] sm:$0xff]
    %v7662 = vld [vmem:[#allocation4 + $0x578] sm:$0xff]
    %v7663 = vld [vmem:[#allocation4 + $0x580] sm:$0xff]
    %v7664 = vld [vmem:[#allocation4 + $0x588] sm:$0xff]
    %v7665 = vld [vmem:[#allocation4 + $0x590] sm:$0xff]
    %v7666 = vld [vmem:[#allocation4 + $0x598] sm:$0xff]
    %v7667 = vld [vmem:[#allocation4 + $0x5a0] sm:$0xff]
    %v7668 = vld [vmem:[#allocation4 + $0x5a8] sm:$0xff]
    %v7669 = vld [vmem:[#allocation4 + $0x5b0] sm:$0xff]
    %v7670 = vld [vmem:[#allocation4 + $0x5b8] sm:$0xff]
    %v7671 = vld [vmem:[#allocation4 + $0x5c0] sm:$0xff]
    %v7672 = vld [vmem:[#allocation4 + $0x5c8] sm:$0xff]
    %v7673 = vld [vmem:[#allocation4 + $0x5d0] sm:$0xff]
    %v7674 = vld [vmem:[#allocation4 + $0x5d8] sm:$0xff]
    %v7675 = vld [vmem:[#allocation4 + $0x5e0] sm:$0xff]
    %v7676 = vld [vmem:[#allocation4 + $0x5e8] sm:$0xff]
    %v7677 = vld [vmem:[#allocation4 + $0x5f0] sm:$0xff]
    %v7678 = vld [vmem:[#allocation4 + $0x5f8] sm:$0xff]
    %v7679 = vld [vmem:[#allocation4 + $0x600] sm:$0xff]
    %v7680 = vld [vmem:[#allocation4 + $0x608] sm:$0xff]
    %v7681 = vld [vmem:[#allocation4 + $0x610] sm:$0xff]
    %v7682 = vld [vmem:[#allocation4 + $0x618] sm:$0xff]
    %v7683 = vld [vmem:[#allocation4 + $0x620] sm:$0xff]
    %v7684 = vld [vmem:[#allocation4 + $0x628] sm:$0xff]
    %v7685 = vld [vmem:[#allocation4 + $0x630] sm:$0xff]
    %v7686 = vld [vmem:[#allocation4 + $0x638] sm:$0xff]
    %v7687 = vld [vmem:[#allocation4 + $0x640] sm:$0xff]
    %v7688 = vld [vmem:[#allocation4 + $0x648] sm:$0xff]
    %v7689 = vld [vmem:[#allocation4 + $0x650] sm:$0xff]
    %v7690 = vld [vmem:[#allocation4 + $0x658] sm:$0xff]
    %v7691 = vld [vmem:[#allocation4 + $0x660] sm:$0xff]
    %v7692 = vld [vmem:[#allocation4 + $0x668] sm:$0xff]
    %v7693 = vld [vmem:[#allocation4 + $0x670] sm:$0xff]
    %v7694 = vld [vmem:[#allocation4 + $0x678] sm:$0xff]
    %v7695 = vld [vmem:[#allocation4 + $0x680] sm:$0xff]
    %v7696 = vld [vmem:[#allocation4 + $0x688] sm:$0xff]
    %v7697 = vld [vmem:[#allocation4 + $0x690] sm:$0xff]
    %v7698 = vld [vmem:[#allocation4 + $0x698] sm:$0xff]
    %v7699 = vld [vmem:[#allocation4 + $0x6a0] sm:$0xff]
    %v7700 = vld [vmem:[#allocation4 + $0x6a8] sm:$0xff]
    %v7701 = vld [vmem:[#allocation4 + $0x6b0] sm:$0xff]
    %v7702 = vld [vmem:[#allocation4 + $0x6b8] sm:$0xff]
    %v7703 = vld [vmem:[#allocation4 + $0x6c0] sm:$0xff]
    %v7704 = vld [vmem:[#allocation4 + $0x6c8] sm:$0xff]
    %v7705 = vld [vmem:[#allocation4 + $0x6d0] sm:$0xff]
    %v7706 = vld [vmem:[#allocation4 + $0x6d8] sm:$0xff]
    %v7707 = vld [vmem:[#allocation4 + $0x6e0] sm:$0xff]
    %v7708 = vld [vmem:[#allocation4 + $0x6e8] sm:$0xff]
    %v7709 = vld [vmem:[#allocation4 + $0x6f0] sm:$0xff]
    %v7710 = vld [vmem:[#allocation4 + $0x6f8] sm:$0xff]
    %v7711 = vld [vmem:[#allocation4 + $0x700] sm:$0xff]
    %v7712 = vld [vmem:[#allocation4 + $0x708] sm:$0xff]
    %v7713 = vld [vmem:[#allocation4 + $0x710] sm:$0xff]
    %v7714 = vld [vmem:[#allocation4 + $0x718] sm:$0xff]
    %v7715 = vld [vmem:[#allocation4 + $0x720] sm:$0xff]
    %v7716 = vld [vmem:[#allocation4 + $0x728] sm:$0xff]
    %v7717 = vld [vmem:[#allocation4 + $0x730] sm:$0xff]
    %v7718 = vld [vmem:[#allocation4 + $0x738] sm:$0xff]
    %v7719 = vld [vmem:[#allocation4 + $0x740] sm:$0xff]
    %v7720 = vld [vmem:[#allocation4 + $0x748] sm:$0xff]
    %v7721 = vld [vmem:[#allocation4 + $0x750] sm:$0xff]
    %v7722 = vld [vmem:[#allocation4 + $0x758] sm:$0xff]
    %v7723 = vld [vmem:[#allocation4 + $0x760] sm:$0xff]
    %v7724 = vld [vmem:[#allocation4 + $0x768] sm:$0xff]
    %v7725 = vld [vmem:[#allocation4 + $0x770] sm:$0xff]
    %v7726 = vld [vmem:[#allocation4 + $0x778] sm:$0xff]
    %v7727 = vld [vmem:[#allocation4 + $0x780] sm:$0xff]
    %v7728 = vld [vmem:[#allocation4 + $0x788] sm:$0xff]
    %v7729 = vld [vmem:[#allocation4 + $0x790] sm:$0xff]
    %v7730 = vld [vmem:[#allocation4 + $0x798] sm:$0xff]
    %v7731 = vld [vmem:[#allocation4 + $0x7a0] sm:$0xff]
    %v7732 = vld [vmem:[#allocation4 + $0x7a8] sm:$0xff]
    %v7733 = vld [vmem:[#allocation4 + $0x7b0] sm:$0xff]
    %v7734 = vld [vmem:[#allocation4 + $0x7b8] sm:$0xff]
    %v7735 = vld [vmem:[#allocation4 + $0x7c0] sm:$0xff]
    %v7736 = vld [vmem:[#allocation4 + $0x7c8] sm:$0xff]
    %v7737 = vld [vmem:[#allocation4 + $0x7d0] sm:$0xff]
    %v7738 = vld [vmem:[#allocation4 + $0x7d8] sm:$0xff]
    %v7739 = vld [vmem:[#allocation4 + $0x7e0] sm:$0xff]
    %v7740 = vld [vmem:[#allocation4 + $0x7e8] sm:$0xff]
    %v7741 = vld [vmem:[#allocation4 + $0x7f0] sm:$0xff]
    %v7742 = vld [vmem:[#allocation4 + $0x7f8] sm:$0xff]
    %v7743 = vunpack.c.0.s8 %v7487
    %v7744 = vunpack.c.0.s8 %v7488
    %v7745 = vunpack.c.0.s8 %v7489
    %v7746 = vunpack.c.0.s8 %v7490
    %v7747 = vunpack.c.0.s8 %v7491
    %v7748 = vunpack.c.0.s8 %v7492
    %v7749 = vunpack.c.0.s8 %v7493
    %v7750 = vunpack.c.0.s8 %v7494
    %v7751 = vunpack.c.1.s8 %v7487
    %v7752 = vunpack.c.1.s8 %v7488
    %v7753 = vunpack.c.1.s8 %v7489
    %v7754 = vunpack.c.1.s8 %v7490
    %v7755 = vunpack.c.1.s8 %v7491
    %v7756 = vunpack.c.1.s8 %v7492
    %v7757 = vunpack.c.1.s8 %v7493
    %v7758 = vunpack.c.1.s8 %v7494
    %v7759 = vunpack.c.2.s8 %v7487
    %v7760 = vunpack.c.2.s8 %v7488
    %v7761 = vunpack.c.2.s8 %v7489
    %v7762 = vunpack.c.2.s8 %v7490
    %v7763 = vunpack.c.2.s8 %v7491
    %v7764 = vunpack.c.2.s8 %v7492
    %v7765 = vunpack.c.2.s8 %v7493
    %v7766 = vunpack.c.2.s8 %v7494
    %v7767 = vunpack.c.3.s8 %v7487
    %v7768 = vunpack.c.3.s8 %v7488
    %v7769 = vunpack.c.3.s8 %v7489
    %v7770 = vunpack.c.3.s8 %v7490
    %v7771 = vunpack.c.3.s8 %v7491
    %v7772 = vunpack.c.3.s8 %v7492
    %v7773 = vunpack.c.3.s8 %v7493
    %v7774 = vunpack.c.3.s8 %v7494
    %v7775 = vunpack.c.0.s8 %v7495
    %v7776 = vunpack.c.0.s8 %v7496
    %v7777 = vunpack.c.0.s8 %v7497
    %v7778 = vunpack.c.0.s8 %v7498
    %v7779 = vunpack.c.0.s8 %v7499
    %v7780 = vunpack.c.0.s8 %v7500
    %v7781 = vunpack.c.0.s8 %v7501
    %v7782 = vunpack.c.0.s8 %v7502
    %v7783 = vunpack.c.1.s8 %v7495
    %v7784 = vunpack.c.1.s8 %v7496
    %v7785 = vunpack.c.1.s8 %v7497
    %v7786 = vunpack.c.1.s8 %v7498
    %v7787 = vunpack.c.1.s8 %v7499
    %v7788 = vunpack.c.1.s8 %v7500
    %v7789 = vunpack.c.1.s8 %v7501
    %v7790 = vunpack.c.1.s8 %v7502
    %v7791 = vunpack.c.2.s8 %v7495
    %v7792 = vunpack.c.2.s8 %v7496
    %v7793 = vunpack.c.2.s8 %v7497
    %v7794 = vunpack.c.2.s8 %v7498
    %v7795 = vunpack.c.2.s8 %v7499
    %v7796 = vunpack.c.2.s8 %v7500
    %v7797 = vunpack.c.2.s8 %v7501
    %v7798 = vunpack.c.2.s8 %v7502
    %v7799 = vunpack.c.3.s8 %v7495
    %v7800 = vunpack.c.3.s8 %v7496
    %v7801 = vunpack.c.3.s8 %v7497
    %v7802 = vunpack.c.3.s8 %v7498
    %v7803 = vunpack.c.3.s8 %v7499
    %v7804 = vunpack.c.3.s8 %v7500
    %v7805 = vunpack.c.3.s8 %v7501
    %v7806 = vunpack.c.3.s8 %v7502
    %v7807 = vunpack.c.0.s8 %v7503
    %v7808 = vunpack.c.0.s8 %v7504
    %v7809 = vunpack.c.0.s8 %v7505
    %v7810 = vunpack.c.0.s8 %v7506
    %v7811 = vunpack.c.0.s8 %v7507
    %v7812 = vunpack.c.0.s8 %v7508
    %v7813 = vunpack.c.0.s8 %v7509
    %v7814 = vunpack.c.0.s8 %v7510
    %v7815 = vunpack.c.1.s8 %v7503
    %v7816 = vunpack.c.1.s8 %v7504
    %v7817 = vunpack.c.1.s8 %v7505
    %v7818 = vunpack.c.1.s8 %v7506
    %v7819 = vunpack.c.1.s8 %v7507
    %v7820 = vunpack.c.1.s8 %v7508
    %v7821 = vunpack.c.1.s8 %v7509
    %v7822 = vunpack.c.1.s8 %v7510
    %v7823 = vunpack.c.2.s8 %v7503
    %v7824 = vunpack.c.2.s8 %v7504
    %v7825 = vunpack.c.2.s8 %v7505
    %v7826 = vunpack.c.2.s8 %v7506
    %v7827 = vunpack.c.2.s8 %v7507
    %v7828 = vunpack.c.2.s8 %v7508
    %v7829 = vunpack.c.2.s8 %v7509
    %v7830 = vunpack.c.2.s8 %v7510
    %v7831 = vunpack.c.3.s8 %v7503
    %v7832 = vunpack.c.3.s8 %v7504
    %v7833 = vunpack.c.3.s8 %v7505
    %v7834 = vunpack.c.3.s8 %v7506
    %v7835 = vunpack.c.3.s8 %v7507
    %v7836 = vunpack.c.3.s8 %v7508
    %v7837 = vunpack.c.3.s8 %v7509
    %v7838 = vunpack.c.3.s8 %v7510
    %v7839 = vunpack.c.0.s8 %v7511
    %v7840 = vunpack.c.0.s8 %v7512
    %v7841 = vunpack.c.0.s8 %v7513
    %v7842 = vunpack.c.0.s8 %v7514
    %v7843 = vunpack.c.0.s8 %v7515
    %v7844 = vunpack.c.0.s8 %v7516
    %v7845 = vunpack.c.0.s8 %v7517
    %v7846 = vunpack.c.0.s8 %v7518
    %v7847 = vunpack.c.1.s8 %v7511
    %v7848 = vunpack.c.1.s8 %v7512
    %v7849 = vunpack.c.1.s8 %v7513
    %v7850 = vunpack.c.1.s8 %v7514
    %v7851 = vunpack.c.1.s8 %v7515
    %v7852 = vunpack.c.1.s8 %v7516
    %v7853 = vunpack.c.1.s8 %v7517
    %v7854 = vunpack.c.1.s8 %v7518
    %v7855 = vunpack.c.2.s8 %v7511
    %v7856 = vunpack.c.2.s8 %v7512
    %v7857 = vunpack.c.2.s8 %v7513
    %v7858 = vunpack.c.2.s8 %v7514
    %v7859 = vunpack.c.2.s8 %v7515
    %v7860 = vunpack.c.2.s8 %v7516
    %v7861 = vunpack.c.2.s8 %v7517
    %v7862 = vunpack.c.2.s8 %v7518
    %v7863 = vunpack.c.3.s8 %v7511
    %v7864 = vunpack.c.3.s8 %v7512
    %v7865 = vunpack.c.3.s8 %v7513
    %v7866 = vunpack.c.3.s8 %v7514
    %v7867 = vunpack.c.3.s8 %v7515
    %v7868 = vunpack.c.3.s8 %v7516
    %v7869 = vunpack.c.3.s8 %v7517
    %v7870 = vunpack.c.3.s8 %v7518
    %v7871 = vunpack.c.0.s8 %v7519
    %v7872 = vunpack.c.0.s8 %v7520
    %v7873 = vunpack.c.0.s8 %v7521
    %v7874 = vunpack.c.0.s8 %v7522
    %v7875 = vunpack.c.0.s8 %v7523
    %v7876 = vunpack.c.0.s8 %v7524
    %v7877 = vunpack.c.0.s8 %v7525
    %v7878 = vunpack.c.0.s8 %v7526
    %v7879 = vunpack.c.1.s8 %v7519
    %v7880 = vunpack.c.1.s8 %v7520
    %v7881 = vunpack.c.1.s8 %v7521
    %v7882 = vunpack.c.1.s8 %v7522
    %v7883 = vunpack.c.1.s8 %v7523
    %v7884 = vunpack.c.1.s8 %v7524
    %v7885 = vunpack.c.1.s8 %v7525
    %v7886 = vunpack.c.1.s8 %v7526
    %v7887 = vunpack.c.2.s8 %v7519
    %v7888 = vunpack.c.2.s8 %v7520
    %v7889 = vunpack.c.2.s8 %v7521
    %v7890 = vunpack.c.2.s8 %v7522
    %v7891 = vunpack.c.2.s8 %v7523
    %v7892 = vunpack.c.2.s8 %v7524
    %v7893 = vunpack.c.2.s8 %v7525
    %v7894 = vunpack.c.2.s8 %v7526
    %v7895 = vunpack.c.3.s8 %v7519
    %v7896 = vunpack.c.3.s8 %v7520
    %v7897 = vunpack.c.3.s8 %v7521
    %v7898 = vunpack.c.3.s8 %v7522
    %v7899 = vunpack.c.3.s8 %v7523
    %v7900 = vunpack.c.3.s8 %v7524
    %v7901 = vunpack.c.3.s8 %v7525
    %v7902 = vunpack.c.3.s8 %v7526
    %v7903 = vunpack.c.0.s8 %v7527
    %v7904 = vunpack.c.0.s8 %v7528
    %v7905 = vunpack.c.0.s8 %v7529
    %v7906 = vunpack.c.0.s8 %v7530
    %v7907 = vunpack.c.0.s8 %v7531
    %v7908 = vunpack.c.0.s8 %v7532
    %v7909 = vunpack.c.0.s8 %v7533
    %v7910 = vunpack.c.0.s8 %v7534
    %v7911 = vunpack.c.1.s8 %v7527
    %v7912 = vunpack.c.1.s8 %v7528
    %v7913 = vunpack.c.1.s8 %v7529
    %v7914 = vunpack.c.1.s8 %v7530
    %v7915 = vunpack.c.1.s8 %v7531
    %v7916 = vunpack.c.1.s8 %v7532
    %v7917 = vunpack.c.1.s8 %v7533
    %v7918 = vunpack.c.1.s8 %v7534
    %v7919 = vunpack.c.2.s8 %v7527
    %v7920 = vunpack.c.2.s8 %v7528
    %v7921 = vunpack.c.2.s8 %v7529
    %v7922 = vunpack.c.2.s8 %v7530
    %v7923 = vunpack.c.2.s8 %v7531
    %v7924 = vunpack.c.2.s8 %v7532
    %v7925 = vunpack.c.2.s8 %v7533
    %v7926 = vunpack.c.2.s8 %v7534
    %v7927 = vunpack.c.3.s8 %v7527
    %v7928 = vunpack.c.3.s8 %v7528
    %v7929 = vunpack.c.3.s8 %v7529
    %v7930 = vunpack.c.3.s8 %v7530
    %v7931 = vunpack.c.3.s8 %v7531
    %v7932 = vunpack.c.3.s8 %v7532
    %v7933 = vunpack.c.3.s8 %v7533
    %v7934 = vunpack.c.3.s8 %v7534
    %v7935 = vunpack.c.0.s8 %v7535
    %v7936 = vunpack.c.0.s8 %v7536
    %v7937 = vunpack.c.0.s8 %v7537
    %v7938 = vunpack.c.0.s8 %v7538
    %v7939 = vunpack.c.0.s8 %v7539
    %v7940 = vunpack.c.0.s8 %v7540
    %v7941 = vunpack.c.0.s8 %v7541
    %v7942 = vunpack.c.0.s8 %v7542
    %v7943 = vunpack.c.1.s8 %v7535
    %v7944 = vunpack.c.1.s8 %v7536
    %v7945 = vunpack.c.1.s8 %v7537
    %v7946 = vunpack.c.1.s8 %v7538
    %v7947 = vunpack.c.1.s8 %v7539
    %v7948 = vunpack.c.1.s8 %v7540
    %v7949 = vunpack.c.1.s8 %v7541
    %v7950 = vunpack.c.1.s8 %v7542
    %v7951 = vunpack.c.2.s8 %v7535
    %v7952 = vunpack.c.2.s8 %v7536
    %v7953 = vunpack.c.2.s8 %v7537
    %v7954 = vunpack.c.2.s8 %v7538
    %v7955 = vunpack.c.2.s8 %v7539
    %v7956 = vunpack.c.2.s8 %v7540
    %v7957 = vunpack.c.2.s8 %v7541
    %v7958 = vunpack.c.2.s8 %v7542
    %v7959 = vunpack.c.3.s8 %v7535
    %v7960 = vunpack.c.3.s8 %v7536
    %v7961 = vunpack.c.3.s8 %v7537
    %v7962 = vunpack.c.3.s8 %v7538
    %v7963 = vunpack.c.3.s8 %v7539
    %v7964 = vunpack.c.3.s8 %v7540
    %v7965 = vunpack.c.3.s8 %v7541
    %v7966 = vunpack.c.3.s8 %v7542
    %v7967 = vunpack.c.0.s8 %v7543
    %v7968 = vunpack.c.0.s8 %v7544
    %v7969 = vunpack.c.0.s8 %v7545
    %v7970 = vunpack.c.0.s8 %v7546
    %v7971 = vunpack.c.0.s8 %v7547
    %v7972 = vunpack.c.0.s8 %v7548
    %v7973 = vunpack.c.0.s8 %v7549
    %v7974 = vunpack.c.0.s8 %v7550
    %v7975 = vunpack.c.1.s8 %v7543
    %v7976 = vunpack.c.1.s8 %v7544
    %v7977 = vunpack.c.1.s8 %v7545
    %v7978 = vunpack.c.1.s8 %v7546
    %v7979 = vunpack.c.1.s8 %v7547
    %v7980 = vunpack.c.1.s8 %v7548
    %v7981 = vunpack.c.1.s8 %v7549
    %v7982 = vunpack.c.1.s8 %v7550
    %v7983 = vunpack.c.2.s8 %v7543
    %v7984 = vunpack.c.2.s8 %v7544
    %v7985 = vunpack.c.2.s8 %v7545
    %v7986 = vunpack.c.2.s8 %v7546
    %v7987 = vunpack.c.2.s8 %v7547
    %v7988 = vunpack.c.2.s8 %v7548
    %v7989 = vunpack.c.2.s8 %v7549
    %v7990 = vunpack.c.2.s8 %v7550
    %v7991 = vunpack.c.3.s8 %v7543
    %v7992 = vunpack.c.3.s8 %v7544
    %v7993 = vunpack.c.3.s8 %v7545
    %v7994 = vunpack.c.3.s8 %v7546
    %v7995 = vunpack.c.3.s8 %v7547
    %v7996 = vunpack.c.3.s8 %v7548
    %v7997 = vunpack.c.3.s8 %v7549
    %v7998 = vunpack.c.3.s8 %v7550
    %v7999 = vunpack.c.0.s8 %v7551
    %v8000 = vunpack.c.0.s8 %v7552
    %v8001 = vunpack.c.0.s8 %v7553
    %v8002 = vunpack.c.0.s8 %v7554
    %v8003 = vunpack.c.0.s8 %v7555
    %v8004 = vunpack.c.0.s8 %v7556
    %v8005 = vunpack.c.0.s8 %v7557
    %v8006 = vunpack.c.0.s8 %v7558
    %v8007 = vunpack.c.1.s8 %v7551
    %v8008 = vunpack.c.1.s8 %v7552
    %v8009 = vunpack.c.1.s8 %v7553
    %v8010 = vunpack.c.1.s8 %v7554
    %v8011 = vunpack.c.1.s8 %v7555
    %v8012 = vunpack.c.1.s8 %v7556
    %v8013 = vunpack.c.1.s8 %v7557
    %v8014 = vunpack.c.1.s8 %v7558
    %v8015 = vunpack.c.2.s8 %v7551
    %v8016 = vunpack.c.2.s8 %v7552
    %v8017 = vunpack.c.2.s8 %v7553
    %v8018 = vunpack.c.2.s8 %v7554
    %v8019 = vunpack.c.2.s8 %v7555
    %v8020 = vunpack.c.2.s8 %v7556
    %v8021 = vunpack.c.2.s8 %v7557
    %v8022 = vunpack.c.2.s8 %v7558
    %v8023 = vunpack.c.3.s8 %v7551
    %v8024 = vunpack.c.3.s8 %v7552
    %v8025 = vunpack.c.3.s8 %v7553
    %v8026 = vunpack.c.3.s8 %v7554
    %v8027 = vunpack.c.3.s8 %v7555
    %v8028 = vunpack.c.3.s8 %v7556
    %v8029 = vunpack.c.3.s8 %v7557
    %v8030 = vunpack.c.3.s8 %v7558
    %v8031 = vunpack.c.0.s8 %v7559
    %v8032 = vunpack.c.0.s8 %v7560
    %v8033 = vunpack.c.0.s8 %v7561
    %v8034 = vunpack.c.0.s8 %v7562
    %v8035 = vunpack.c.0.s8 %v7563
    %v8036 = vunpack.c.0.s8 %v7564
    %v8037 = vunpack.c.0.s8 %v7565
    %v8038 = vunpack.c.0.s8 %v7566
    %v8039 = vunpack.c.1.s8 %v7559
    %v8040 = vunpack.c.1.s8 %v7560
    %v8041 = vunpack.c.1.s8 %v7561
    %v8042 = vunpack.c.1.s8 %v7562
    %v8043 = vunpack.c.1.s8 %v7563
    %v8044 = vunpack.c.1.s8 %v7564
    %v8045 = vunpack.c.1.s8 %v7565
    %v8046 = vunpack.c.1.s8 %v7566
    %v8047 = vunpack.c.2.s8 %v7559
    %v8048 = vunpack.c.2.s8 %v7560
    %v8049 = vunpack.c.2.s8 %v7561
    %v8050 = vunpack.c.2.s8 %v7562
    %v8051 = vunpack.c.2.s8 %v7563
    %v8052 = vunpack.c.2.s8 %v7564
    %v8053 = vunpack.c.2.s8 %v7565
    %v8054 = vunpack.c.2.s8 %v7566
    %v8055 = vunpack.c.3.s8 %v7559
    %v8056 = vunpack.c.3.s8 %v7560
    %v8057 = vunpack.c.3.s8 %v7561
    %v8058 = vunpack.c.3.s8 %v7562
    %v8059 = vunpack.c.3.s8 %v7563
    %v8060 = vunpack.c.3.s8 %v7564
    %v8061 = vunpack.c.3.s8 %v7565
    %v8062 = vunpack.c.3.s8 %v7566
    %v8063 = vunpack.c.0.s8 %v7567
    %v8064 = vunpack.c.0.s8 %v7568
    %v8065 = vunpack.c.0.s8 %v7569
    %v8066 = vunpack.c.0.s8 %v7570
    %v8067 = vunpack.c.0.s8 %v7571
    %v8068 = vunpack.c.0.s8 %v7572
    %v8069 = vunpack.c.0.s8 %v7573
    %v8070 = vunpack.c.0.s8 %v7574
    %v8071 = vunpack.c.1.s8 %v7567
    %v8072 = vunpack.c.1.s8 %v7568
    %v8073 = vunpack.c.1.s8 %v7569
    %v8074 = vunpack.c.1.s8 %v7570
    %v8075 = vunpack.c.1.s8 %v7571
    %v8076 = vunpack.c.1.s8 %v7572
    %v8077 = vunpack.c.1.s8 %v7573
    %v8078 = vunpack.c.1.s8 %v7574
    %v8079 = vunpack.c.2.s8 %v7567
    %v8080 = vunpack.c.2.s8 %v7568
    %v8081 = vunpack.c.2.s8 %v7569
    %v8082 = vunpack.c.2.s8 %v7570
    %v8083 = vunpack.c.2.s8 %v7571
    %v8084 = vunpack.c.2.s8 %v7572
    %v8085 = vunpack.c.2.s8 %v7573
    %v8086 = vunpack.c.2.s8 %v7574
    %v8087 = vunpack.c.3.s8 %v7567
    %v8088 = vunpack.c.3.s8 %v7568
    %v8089 = vunpack.c.3.s8 %v7569
    %v8090 = vunpack.c.3.s8 %v7570
    %v8091 = vunpack.c.3.s8 %v7571
    %v8092 = vunpack.c.3.s8 %v7572
    %v8093 = vunpack.c.3.s8 %v7573
    %v8094 = vunpack.c.3.s8 %v7574
    %v8095 = vunpack.c.0.s8 %v7575
    %v8096 = vunpack.c.0.s8 %v7576
    %v8097 = vunpack.c.0.s8 %v7577
    %v8098 = vunpack.c.0.s8 %v7578
    %v8099 = vunpack.c.0.s8 %v7579
    %v8100 = vunpack.c.0.s8 %v7580
    %v8101 = vunpack.c.0.s8 %v7581
    %v8102 = vunpack.c.0.s8 %v7582
    %v8103 = vunpack.c.1.s8 %v7575
    %v8104 = vunpack.c.1.s8 %v7576
    %v8105 = vunpack.c.1.s8 %v7577
    %v8106 = vunpack.c.1.s8 %v7578
    %v8107 = vunpack.c.1.s8 %v7579
    %v8108 = vunpack.c.1.s8 %v7580
    %v8109 = vunpack.c.1.s8 %v7581
    %v8110 = vunpack.c.1.s8 %v7582
    %v8111 = vunpack.c.2.s8 %v7575
    %v8112 = vunpack.c.2.s8 %v7576
    %v8113 = vunpack.c.2.s8 %v7577
    %v8114 = vunpack.c.2.s8 %v7578
    %v8115 = vunpack.c.2.s8 %v7579
    %v8116 = vunpack.c.2.s8 %v7580
    %v8117 = vunpack.c.2.s8 %v7581
    %v8118 = vunpack.c.2.s8 %v7582
    %v8119 = vunpack.c.3.s8 %v7575
    %v8120 = vunpack.c.3.s8 %v7576
    %v8121 = vunpack.c.3.s8 %v7577
    %v8122 = vunpack.c.3.s8 %v7578
    %v8123 = vunpack.c.3.s8 %v7579
    %v8124 = vunpack.c.3.s8 %v7580
    %v8125 = vunpack.c.3.s8 %v7581
    %v8126 = vunpack.c.3.s8 %v7582
    %v8127 = vunpack.c.0.s8 %v7583
    %v8128 = vunpack.c.0.s8 %v7584
    %v8129 = vunpack.c.0.s8 %v7585
    %v8130 = vunpack.c.0.s8 %v7586
    %v8131 = vunpack.c.0.s8 %v7587
    %v8132 = vunpack.c.0.s8 %v7588
    %v8133 = vunpack.c.0.s8 %v7589
    %v8134 = vunpack.c.0.s8 %v7590
    %v8135 = vunpack.c.1.s8 %v7583
    %v8136 = vunpack.c.1.s8 %v7584
    %v8137 = vunpack.c.1.s8 %v7585
    %v8138 = vunpack.c.1.s8 %v7586
    %v8139 = vunpack.c.1.s8 %v7587
    %v8140 = vunpack.c.1.s8 %v7588
    %v8141 = vunpack.c.1.s8 %v7589
    %v8142 = vunpack.c.1.s8 %v7590
    %v8143 = vunpack.c.2.s8 %v7583
    %v8144 = vunpack.c.2.s8 %v7584
    %v8145 = vunpack.c.2.s8 %v7585
    %v8146 = vunpack.c.2.s8 %v7586
    %v8147 = vunpack.c.2.s8 %v7587
    %v8148 = vunpack.c.2.s8 %v7588
    %v8149 = vunpack.c.2.s8 %v7589
    %v8150 = vunpack.c.2.s8 %v7590
    %v8151 = vunpack.c.3.s8 %v7583
    %v8152 = vunpack.c.3.s8 %v7584
    %v8153 = vunpack.c.3.s8 %v7585
    %v8154 = vunpack.c.3.s8 %v7586
    %v8155 = vunpack.c.3.s8 %v7587
    %v8156 = vunpack.c.3.s8 %v7588
    %v8157 = vunpack.c.3.s8 %v7589
    %v8158 = vunpack.c.3.s8 %v7590
    %v8159 = vunpack.c.0.s8 %v7591
    %v8160 = vunpack.c.0.s8 %v7592
    %v8161 = vunpack.c.0.s8 %v7593
    %v8162 = vunpack.c.0.s8 %v7594
    %v8163 = vunpack.c.0.s8 %v7595
    %v8164 = vunpack.c.0.s8 %v7596
    %v8165 = vunpack.c.0.s8 %v7597
    %v8166 = vunpack.c.0.s8 %v7598
    %v8167 = vunpack.c.1.s8 %v7591
    %v8168 = vunpack.c.1.s8 %v7592
    %v8169 = vunpack.c.1.s8 %v7593
    %v8170 = vunpack.c.1.s8 %v7594
    %v8171 = vunpack.c.1.s8 %v7595
    %v8172 = vunpack.c.1.s8 %v7596
    %v8173 = vunpack.c.1.s8 %v7597
    %v8174 = vunpack.c.1.s8 %v7598
    %v8175 = vunpack.c.2.s8 %v7591
    %v8176 = vunpack.c.2.s8 %v7592
    %v8177 = vunpack.c.2.s8 %v7593
    %v8178 = vunpack.c.2.s8 %v7594
    %v8179 = vunpack.c.2.s8 %v7595
    %v8180 = vunpack.c.2.s8 %v7596
    %v8181 = vunpack.c.2.s8 %v7597
    %v8182 = vunpack.c.2.s8 %v7598
    %v8183 = vunpack.c.3.s8 %v7591
    %v8184 = vunpack.c.3.s8 %v7592
    %v8185 = vunpack.c.3.s8 %v7593
    %v8186 = vunpack.c.3.s8 %v7594
    %v8187 = vunpack.c.3.s8 %v7595
    %v8188 = vunpack.c.3.s8 %v7596
    %v8189 = vunpack.c.3.s8 %v7597
    %v8190 = vunpack.c.3.s8 %v7598
    %v8191 = vunpack.c.0.s8 %v7599
    %v8192 = vunpack.c.0.s8 %v7600
    %v8193 = vunpack.c.0.s8 %v7601
    %v8194 = vunpack.c.0.s8 %v7602
    %v8195 = vunpack.c.0.s8 %v7603
    %v8196 = vunpack.c.0.s8 %v7604
    %v8197 = vunpack.c.0.s8 %v7605
    %v8198 = vunpack.c.0.s8 %v7606
    %v8199 = vunpack.c.1.s8 %v7599
    %v8200 = vunpack.c.1.s8 %v7600
    %v8201 = vunpack.c.1.s8 %v7601
    %v8202 = vunpack.c.1.s8 %v7602
    %v8203 = vunpack.c.1.s8 %v7603
    %v8204 = vunpack.c.1.s8 %v7604
    %v8205 = vunpack.c.1.s8 %v7605
    %v8206 = vunpack.c.1.s8 %v7606
    %v8207 = vunpack.c.2.s8 %v7599
    %v8208 = vunpack.c.2.s8 %v7600
    %v8209 = vunpack.c.2.s8 %v7601
    %v8210 = vunpack.c.2.s8 %v7602
    %v8211 = vunpack.c.2.s8 %v7603
    %v8212 = vunpack.c.2.s8 %v7604
    %v8213 = vunpack.c.2.s8 %v7605
    %v8214 = vunpack.c.2.s8 %v7606
    %v8215 = vunpack.c.3.s8 %v7599
    %v8216 = vunpack.c.3.s8 %v7600
    %v8217 = vunpack.c.3.s8 %v7601
    %v8218 = vunpack.c.3.s8 %v7602
    %v8219 = vunpack.c.3.s8 %v7603
    %v8220 = vunpack.c.3.s8 %v7604
    %v8221 = vunpack.c.3.s8 %v7605
    %v8222 = vunpack.c.3.s8 %v7606
    %v8223 = vunpack.c.0.s8 %v7607
    %v8224 = vunpack.c.0.s8 %v7608
    %v8225 = vunpack.c.0.s8 %v7609
    %v8226 = vunpack.c.0.s8 %v7610
    %v8227 = vunpack.c.0.s8 %v7611
    %v8228 = vunpack.c.0.s8 %v7612
    %v8229 = vunpack.c.0.s8 %v7613
    %v8230 = vunpack.c.0.s8 %v7614
    %v8231 = vunpack.c.1.s8 %v7607
    %v8232 = vunpack.c.1.s8 %v7608
    %v8233 = vunpack.c.1.s8 %v7609
    %v8234 = vunpack.c.1.s8 %v7610
    %v8235 = vunpack.c.1.s8 %v7611
    %v8236 = vunpack.c.1.s8 %v7612
    %v8237 = vunpack.c.1.s8 %v7613
    %v8238 = vunpack.c.1.s8 %v7614
    %v8239 = vunpack.c.2.s8 %v7607
    %v8240 = vunpack.c.2.s8 %v7608
    %v8241 = vunpack.c.2.s8 %v7609
    %v8242 = vunpack.c.2.s8 %v7610
    %v8243 = vunpack.c.2.s8 %v7611
    %v8244 = vunpack.c.2.s8 %v7612
    %v8245 = vunpack.c.2.s8 %v7613
    %v8246 = vunpack.c.2.s8 %v7614
    %v8247 = vunpack.c.3.s8 %v7607
    %v8248 = vunpack.c.3.s8 %v7608
    %v8249 = vunpack.c.3.s8 %v7609
    %v8250 = vunpack.c.3.s8 %v7610
    %v8251 = vunpack.c.3.s8 %v7611
    %v8252 = vunpack.c.3.s8 %v7612
    %v8253 = vunpack.c.3.s8 %v7613
    %v8254 = vunpack.c.3.s8 %v7614
    %v8255 = vunpack.c.0.s8 %v7615
    %v8256 = vunpack.c.0.s8 %v7616
    %v8257 = vunpack.c.0.s8 %v7617
    %v8258 = vunpack.c.0.s8 %v7618
    %v8259 = vunpack.c.0.s8 %v7619
    %v8260 = vunpack.c.0.s8 %v7620
    %v8261 = vunpack.c.0.s8 %v7621
    %v8262 = vunpack.c.0.s8 %v7622
    %v8263 = vunpack.c.1.s8 %v7615
    %v8264 = vunpack.c.1.s8 %v7616
    %v8265 = vunpack.c.1.s8 %v7617
    %v8266 = vunpack.c.1.s8 %v7618
    %v8267 = vunpack.c.1.s8 %v7619
    %v8268 = vunpack.c.1.s8 %v7620
    %v8269 = vunpack.c.1.s8 %v7621
    %v8270 = vunpack.c.1.s8 %v7622
    %v8271 = vunpack.c.2.s8 %v7615
    %v8272 = vunpack.c.2.s8 %v7616
    %v8273 = vunpack.c.2.s8 %v7617
    %v8274 = vunpack.c.2.s8 %v7618
    %v8275 = vunpack.c.2.s8 %v7619
    %v8276 = vunpack.c.2.s8 %v7620
    %v8277 = vunpack.c.2.s8 %v7621
    %v8278 = vunpack.c.2.s8 %v7622
    %v8279 = vunpack.c.3.s8 %v7615
    %v8280 = vunpack.c.3.s8 %v7616
    %v8281 = vunpack.c.3.s8 %v7617
    %v8282 = vunpack.c.3.s8 %v7618
    %v8283 = vunpack.c.3.s8 %v7619
    %v8284 = vunpack.c.3.s8 %v7620
    %v8285 = vunpack.c.3.s8 %v7621
    %v8286 = vunpack.c.3.s8 %v7622
    %v8287 = vunpack.c.0.s8 %v7623
    %v8288 = vunpack.c.0.s8 %v7624
    %v8289 = vunpack.c.0.s8 %v7625
    %v8290 = vunpack.c.0.s8 %v7626
    %v8291 = vunpack.c.0.s8 %v7627
    %v8292 = vunpack.c.0.s8 %v7628
    %v8293 = vunpack.c.0.s8 %v7629
    %v8294 = vunpack.c.0.s8 %v7630
    %v8295 = vunpack.c.1.s8 %v7623
    %v8296 = vunpack.c.1.s8 %v7624
    %v8297 = vunpack.c.1.s8 %v7625
    %v8298 = vunpack.c.1.s8 %v7626
    %v8299 = vunpack.c.1.s8 %v7627
    %v8300 = vunpack.c.1.s8 %v7628
    %v8301 = vunpack.c.1.s8 %v7629
    %v8302 = vunpack.c.1.s8 %v7630
    %v8303 = vunpack.c.2.s8 %v7623
    %v8304 = vunpack.c.2.s8 %v7624
    %v8305 = vunpack.c.2.s8 %v7625
    %v8306 = vunpack.c.2.s8 %v7626
    %v8307 = vunpack.c.2.s8 %v7627
    %v8308 = vunpack.c.2.s8 %v7628
    %v8309 = vunpack.c.2.s8 %v7629
    %v8310 = vunpack.c.2.s8 %v7630
    %v8311 = vunpack.c.3.s8 %v7623
    %v8312 = vunpack.c.3.s8 %v7624
    %v8313 = vunpack.c.3.s8 %v7625
    %v8314 = vunpack.c.3.s8 %v7626
    %v8315 = vunpack.c.3.s8 %v7627
    %v8316 = vunpack.c.3.s8 %v7628
    %v8317 = vunpack.c.3.s8 %v7629
    %v8318 = vunpack.c.3.s8 %v7630
    %v8319 = vunpack.c.0.s8 %v7631
    %v8320 = vunpack.c.0.s8 %v7632
    %v8321 = vunpack.c.0.s8 %v7633
    %v8322 = vunpack.c.0.s8 %v7634
    %v8323 = vunpack.c.0.s8 %v7635
    %v8324 = vunpack.c.0.s8 %v7636
    %v8325 = vunpack.c.0.s8 %v7637
    %v8326 = vunpack.c.0.s8 %v7638
    %v8327 = vunpack.c.1.s8 %v7631
    %v8328 = vunpack.c.1.s8 %v7632
    %v8329 = vunpack.c.1.s8 %v7633
    %v8330 = vunpack.c.1.s8 %v7634
    %v8331 = vunpack.c.1.s8 %v7635
    %v8332 = vunpack.c.1.s8 %v7636
    %v8333 = vunpack.c.1.s8 %v7637
    %v8334 = vunpack.c.1.s8 %v7638
    %v8335 = vunpack.c.2.s8 %v7631
    %v8336 = vunpack.c.2.s8 %v7632
    %v8337 = vunpack.c.2.s8 %v7633
    %v8338 = vunpack.c.2.s8 %v7634
    %v8339 = vunpack.c.2.s8 %v7635
    %v8340 = vunpack.c.2.s8 %v7636
    %v8341 = vunpack.c.2.s8 %v7637
    %v8342 = vunpack.c.2.s8 %v7638
    %v8343 = vunpack.c.3.s8 %v7631
    %v8344 = vunpack.c.3.s8 %v7632
    %v8345 = vunpack.c.3.s8 %v7633
    %v8346 = vunpack.c.3.s8 %v7634
    %v8347 = vunpack.c.3.s8 %v7635
    %v8348 = vunpack.c.3.s8 %v7636
    %v8349 = vunpack.c.3.s8 %v7637
    %v8350 = vunpack.c.3.s8 %v7638
    %v8351 = vunpack.c.0.s8 %v7639
    %v8352 = vunpack.c.0.s8 %v7640
    %v8353 = vunpack.c.0.s8 %v7641
    %v8354 = vunpack.c.0.s8 %v7642
    %v8355 = vunpack.c.0.s8 %v7643
    %v8356 = vunpack.c.0.s8 %v7644
    %v8357 = vunpack.c.0.s8 %v7645
    %v8358 = vunpack.c.0.s8 %v7646
    %v8359 = vunpack.c.1.s8 %v7639
    %v8360 = vunpack.c.1.s8 %v7640
    %v8361 = vunpack.c.1.s8 %v7641
    %v8362 = vunpack.c.1.s8 %v7642
    %v8363 = vunpack.c.1.s8 %v7643
    %v8364 = vunpack.c.1.s8 %v7644
    %v8365 = vunpack.c.1.s8 %v7645
    %v8366 = vunpack.c.1.s8 %v7646
    %v8367 = vunpack.c.2.s8 %v7639
    %v8368 = vunpack.c.2.s8 %v7640
    %v8369 = vunpack.c.2.s8 %v7641
    %v8370 = vunpack.c.2.s8 %v7642
    %v8371 = vunpack.c.2.s8 %v7643
    %v8372 = vunpack.c.2.s8 %v7644
    %v8373 = vunpack.c.2.s8 %v7645
    %v8374 = vunpack.c.2.s8 %v7646
    %v8375 = vunpack.c.3.s8 %v7639
    %v8376 = vunpack.c.3.s8 %v7640
    %v8377 = vunpack.c.3.s8 %v7641
    %v8378 = vunpack.c.3.s8 %v7642
    %v8379 = vunpack.c.3.s8 %v7643
    %v8380 = vunpack.c.3.s8 %v7644
    %v8381 = vunpack.c.3.s8 %v7645
    %v8382 = vunpack.c.3.s8 %v7646
    %v8383 = vunpack.c.0.s8 %v7647
    %v8384 = vunpack.c.0.s8 %v7648
    %v8385 = vunpack.c.0.s8 %v7649
    %v8386 = vunpack.c.0.s8 %v7650
    %v8387 = vunpack.c.0.s8 %v7651
    %v8388 = vunpack.c.0.s8 %v7652
    %v8389 = vunpack.c.0.s8 %v7653
    %v8390 = vunpack.c.0.s8 %v7654
    %v8391 = vunpack.c.1.s8 %v7647
    %v8392 = vunpack.c.1.s8 %v7648
    %v8393 = vunpack.c.1.s8 %v7649
    %v8394 = vunpack.c.1.s8 %v7650
    %v8395 = vunpack.c.1.s8 %v7651
    %v8396 = vunpack.c.1.s8 %v7652
    %v8397 = vunpack.c.1.s8 %v7653
    %v8398 = vunpack.c.1.s8 %v7654
    %v8399 = vunpack.c.2.s8 %v7647
    %v8400 = vunpack.c.2.s8 %v7648
    %v8401 = vunpack.c.2.s8 %v7649
    %v8402 = vunpack.c.2.s8 %v7650
    %v8403 = vunpack.c.2.s8 %v7651
    %v8404 = vunpack.c.2.s8 %v7652
    %v8405 = vunpack.c.2.s8 %v7653
    %v8406 = vunpack.c.2.s8 %v7654
    %v8407 = vunpack.c.3.s8 %v7647
    %v8408 = vunpack.c.3.s8 %v7648
    %v8409 = vunpack.c.3.s8 %v7649
    %v8410 = vunpack.c.3.s8 %v7650
    %v8411 = vunpack.c.3.s8 %v7651
    %v8412 = vunpack.c.3.s8 %v7652
    %v8413 = vunpack.c.3.s8 %v7653
    %v8414 = vunpack.c.3.s8 %v7654
    %v8415 = vunpack.c.0.s8 %v7655
    %v8416 = vunpack.c.0.s8 %v7656
    %v8417 = vunpack.c.0.s8 %v7657
    %v8418 = vunpack.c.0.s8 %v7658
    %v8419 = vunpack.c.0.s8 %v7659
    %v8420 = vunpack.c.0.s8 %v7660
    %v8421 = vunpack.c.0.s8 %v7661
    %v8422 = vunpack.c.0.s8 %v7662
    %v8423 = vunpack.c.1.s8 %v7655
    %v8424 = vunpack.c.1.s8 %v7656
    %v8425 = vunpack.c.1.s8 %v7657
    %v8426 = vunpack.c.1.s8 %v7658
    %v8427 = vunpack.c.1.s8 %v7659
    %v8428 = vunpack.c.1.s8 %v7660
    %v8429 = vunpack.c.1.s8 %v7661
    %v8430 = vunpack.c.1.s8 %v7662
    %v8431 = vunpack.c.2.s8 %v7655
    %v8432 = vunpack.c.2.s8 %v7656
    %v8433 = vunpack.c.2.s8 %v7657
    %v8434 = vunpack.c.2.s8 %v7658
    %v8435 = vunpack.c.2.s8 %v7659
    %v8436 = vunpack.c.2.s8 %v7660
    %v8437 = vunpack.c.2.s8 %v7661
    %v8438 = vunpack.c.2.s8 %v7662
    %v8439 = vunpack.c.3.s8 %v7655
    %v8440 = vunpack.c.3.s8 %v7656
    %v8441 = vunpack.c.3.s8 %v7657
    %v8442 = vunpack.c.3.s8 %v7658
    %v8443 = vunpack.c.3.s8 %v7659
    %v8444 = vunpack.c.3.s8 %v7660
    %v8445 = vunpack.c.3.s8 %v7661
    %v8446 = vunpack.c.3.s8 %v7662
    %v8447 = vunpack.c.0.s8 %v7663
    %v8448 = vunpack.c.0.s8 %v7664
    %v8449 = vunpack.c.0.s8 %v7665
    %v8450 = vunpack.c.0.s8 %v7666
    %v8451 = vunpack.c.0.s8 %v7667
    %v8452 = vunpack.c.0.s8 %v7668
    %v8453 = vunpack.c.0.s8 %v7669
    %v8454 = vunpack.c.0.s8 %v7670
    %v8455 = vunpack.c.1.s8 %v7663
    %v8456 = vunpack.c.1.s8 %v7664
    %v8457 = vunpack.c.1.s8 %v7665
    %v8458 = vunpack.c.1.s8 %v7666
    %v8459 = vunpack.c.1.s8 %v7667
    %v8460 = vunpack.c.1.s8 %v7668
    %v8461 = vunpack.c.1.s8 %v7669
    %v8462 = vunpack.c.1.s8 %v7670
    %v8463 = vunpack.c.2.s8 %v7663
    %v8464 = vunpack.c.2.s8 %v7664
    %v8465 = vunpack.c.2.s8 %v7665
    %v8466 = vunpack.c.2.s8 %v7666
    %v8467 = vunpack.c.2.s8 %v7667
    %v8468 = vunpack.c.2.s8 %v7668
    %v8469 = vunpack.c.2.s8 %v7669
    %v8470 = vunpack.c.2.s8 %v7670
    %v8471 = vunpack.c.3.s8 %v7663
    %v8472 = vunpack.c.3.s8 %v7664
    %v8473 = vunpack.c.3.s8 %v7665
    %v8474 = vunpack.c.3.s8 %v7666
    %v8475 = vunpack.c.3.s8 %v7667
    %v8476 = vunpack.c.3.s8 %v7668
    %v8477 = vunpack.c.3.s8 %v7669
    %v8478 = vunpack.c.3.s8 %v7670
    %v8479 = vunpack.c.0.s8 %v7671
    %v8480 = vunpack.c.0.s8 %v7672
    %v8481 = vunpack.c.0.s8 %v7673
    %v8482 = vunpack.c.0.s8 %v7674
    %v8483 = vunpack.c.0.s8 %v7675
    %v8484 = vunpack.c.0.s8 %v7676
    %v8485 = vunpack.c.0.s8 %v7677
    %v8486 = vunpack.c.0.s8 %v7678
    %v8487 = vunpack.c.1.s8 %v7671
    %v8488 = vunpack.c.1.s8 %v7672
    %v8489 = vunpack.c.1.s8 %v7673
    %v8490 = vunpack.c.1.s8 %v7674
    %v8491 = vunpack.c.1.s8 %v7675
    %v8492 = vunpack.c.1.s8 %v7676
    %v8493 = vunpack.c.1.s8 %v7677
    %v8494 = vunpack.c.1.s8 %v7678
    %v8495 = vunpack.c.2.s8 %v7671
    %v8496 = vunpack.c.2.s8 %v7672
    %v8497 = vunpack.c.2.s8 %v7673
    %v8498 = vunpack.c.2.s8 %v7674
    %v8499 = vunpack.c.2.s8 %v7675
    %v8500 = vunpack.c.2.s8 %v7676
    %v8501 = vunpack.c.2.s8 %v7677
    %v8502 = vunpack.c.2.s8 %v7678
    %v8503 = vunpack.c.3.s8 %v7671
    %v8504 = vunpack.c.3.s8 %v7672
    %v8505 = vunpack.c.3.s8 %v7673
    %v8506 = vunpack.c.3.s8 %v7674
    %v8507 = vunpack.c.3.s8 %v7675
    %v8508 = vunpack.c.3.s8 %v7676
    %v8509 = vunpack.c.3.s8 %v7677
    %v8510 = vunpack.c.3.s8 %v7678
    %v8511 = vunpack.c.0.s8 %v7679
    %v8512 = vunpack.c.0.s8 %v7680
    %v8513 = vunpack.c.0.s8 %v7681
    %v8514 = vunpack.c.0.s8 %v7682
    %v8515 = vunpack.c.0.s8 %v7683
    %v8516 = vunpack.c.0.s8 %v7684
    %v8517 = vunpack.c.0.s8 %v7685
    %v8518 = vunpack.c.0.s8 %v7686
    %v8519 = vunpack.c.1.s8 %v7679
    %v8520 = vunpack.c.1.s8 %v7680
    %v8521 = vunpack.c.1.s8 %v7681
    %v8522 = vunpack.c.1.s8 %v7682
    %v8523 = vunpack.c.1.s8 %v7683
    %v8524 = vunpack.c.1.s8 %v7684
    %v8525 = vunpack.c.1.s8 %v7685
    %v8526 = vunpack.c.1.s8 %v7686
    %v8527 = vunpack.c.2.s8 %v7679
    %v8528 = vunpack.c.2.s8 %v7680
    %v8529 = vunpack.c.2.s8 %v7681
    %v8530 = vunpack.c.2.s8 %v7682
    %v8531 = vunpack.c.2.s8 %v7683
    %v8532 = vunpack.c.2.s8 %v7684
    %v8533 = vunpack.c.2.s8 %v7685
    %v8534 = vunpack.c.2.s8 %v7686
    %v8535 = vunpack.c.3.s8 %v7679
    %v8536 = vunpack.c.3.s8 %v7680
    %v8537 = vunpack.c.3.s8 %v7681
    %v8538 = vunpack.c.3.s8 %v7682
    %v8539 = vunpack.c.3.s8 %v7683
    %v8540 = vunpack.c.3.s8 %v7684
    %v8541 = vunpack.c.3.s8 %v7685
    %v8542 = vunpack.c.3.s8 %v7686
    %v8543 = vunpack.c.0.s8 %v7687
    %v8544 = vunpack.c.0.s8 %v7688
    %v8545 = vunpack.c.0.s8 %v7689
    %v8546 = vunpack.c.0.s8 %v7690
    %v8547 = vunpack.c.0.s8 %v7691
    %v8548 = vunpack.c.0.s8 %v7692
    %v8549 = vunpack.c.0.s8 %v7693
    %v8550 = vunpack.c.0.s8 %v7694
    %v8551 = vunpack.c.1.s8 %v7687
    %v8552 = vunpack.c.1.s8 %v7688
    %v8553 = vunpack.c.1.s8 %v7689
    %v8554 = vunpack.c.1.s8 %v7690
    %v8555 = vunpack.c.1.s8 %v7691
    %v8556 = vunpack.c.1.s8 %v7692
    %v8557 = vunpack.c.1.s8 %v7693
    %v8558 = vunpack.c.1.s8 %v7694
    %v8559 = vunpack.c.2.s8 %v7687
    %v8560 = vunpack.c.2.s8 %v7688
    %v8561 = vunpack.c.2.s8 %v7689
    %v8562 = vunpack.c.2.s8 %v7690
    %v8563 = vunpack.c.2.s8 %v7691
    %v8564 = vunpack.c.2.s8 %v7692
    %v8565 = vunpack.c.2.s8 %v7693
    %v8566 = vunpack.c.2.s8 %v7694
    %v8567 = vunpack.c.3.s8 %v7687
    %v8568 = vunpack.c.3.s8 %v7688
    %v8569 = vunpack.c.3.s8 %v7689
    %v8570 = vunpack.c.3.s8 %v7690
    %v8571 = vunpack.c.3.s8 %v7691
    %v8572 = vunpack.c.3.s8 %v7692
    %v8573 = vunpack.c.3.s8 %v7693
    %v8574 = vunpack.c.3.s8 %v7694
    %v8575 = vunpack.c.0.s8 %v7695
    %v8576 = vunpack.c.0.s8 %v7696
    %v8577 = vunpack.c.0.s8 %v7697
    %v8578 = vunpack.c.0.s8 %v7698
    %v8579 = vunpack.c.0.s8 %v7699
    %v8580 = vunpack.c.0.s8 %v7700
    %v8581 = vunpack.c.0.s8 %v7701
    %v8582 = vunpack.c.0.s8 %v7702
    %v8583 = vunpack.c.1.s8 %v7695
    %v8584 = vunpack.c.1.s8 %v7696
    %v8585 = vunpack.c.1.s8 %v7697
    %v8586 = vunpack.c.1.s8 %v7698
    %v8587 = vunpack.c.1.s8 %v7699
    %v8588 = vunpack.c.1.s8 %v7700
    %v8589 = vunpack.c.1.s8 %v7701
    %v8590 = vunpack.c.1.s8 %v7702
    %v8591 = vunpack.c.2.s8 %v7695
    %v8592 = vunpack.c.2.s8 %v7696
    %v8593 = vunpack.c.2.s8 %v7697
    %v8594 = vunpack.c.2.s8 %v7698
    %v8595 = vunpack.c.2.s8 %v7699
    %v8596 = vunpack.c.2.s8 %v7700
    %v8597 = vunpack.c.2.s8 %v7701
    %v8598 = vunpack.c.2.s8 %v7702
    %v8599 = vunpack.c.3.s8 %v7695
    %v8600 = vunpack.c.3.s8 %v7696
    %v8601 = vunpack.c.3.s8 %v7697
    %v8602 = vunpack.c.3.s8 %v7698
    %v8603 = vunpack.c.3.s8 %v7699
    %v8604 = vunpack.c.3.s8 %v7700
    %v8605 = vunpack.c.3.s8 %v7701
    %v8606 = vunpack.c.3.s8 %v7702
    %v8607 = vunpack.c.0.s8 %v7703
    %v8608 = vunpack.c.0.s8 %v7704
    %v8609 = vunpack.c.0.s8 %v7705
    %v8610 = vunpack.c.0.s8 %v7706
    %v8611 = vunpack.c.0.s8 %v7707
    %v8612 = vunpack.c.0.s8 %v7708
    %v8613 = vunpack.c.0.s8 %v7709
    %v8614 = vunpack.c.0.s8 %v7710
    %v8615 = vunpack.c.1.s8 %v7703
    %v8616 = vunpack.c.1.s8 %v7704
    %v8617 = vunpack.c.1.s8 %v7705
    %v8618 = vunpack.c.1.s8 %v7706
    %v8619 = vunpack.c.1.s8 %v7707
    %v8620 = vunpack.c.1.s8 %v7708
    %v8621 = vunpack.c.1.s8 %v7709
    %v8622 = vunpack.c.1.s8 %v7710
    %v8623 = vunpack.c.2.s8 %v7703
    %v8624 = vunpack.c.2.s8 %v7704
    %v8625 = vunpack.c.2.s8 %v7705
    %v8626 = vunpack.c.2.s8 %v7706
    %v8627 = vunpack.c.2.s8 %v7707
    %v8628 = vunpack.c.2.s8 %v7708
    %v8629 = vunpack.c.2.s8 %v7709
    %v8630 = vunpack.c.2.s8 %v7710
    %v8631 = vunpack.c.3.s8 %v7703
    %v8632 = vunpack.c.3.s8 %v7704
    %v8633 = vunpack.c.3.s8 %v7705
    %v8634 = vunpack.c.3.s8 %v7706
    %v8635 = vunpack.c.3.s8 %v7707
    %v8636 = vunpack.c.3.s8 %v7708
    %v8637 = vunpack.c.3.s8 %v7709
    %v8638 = vunpack.c.3.s8 %v7710
    %v8639 = vunpack.c.0.s8 %v7711
    %v8640 = vunpack.c.0.s8 %v7712
    %v8641 = vunpack.c.0.s8 %v7713
    %v8642 = vunpack.c.0.s8 %v7714
    %v8643 = vunpack.c.0.s8 %v7715
    %v8644 = vunpack.c.0.s8 %v7716
    %v8645 = vunpack.c.0.s8 %v7717
    %v8646 = vunpack.c.0.s8 %v7718
    %v8647 = vunpack.c.1.s8 %v7711
    %v8648 = vunpack.c.1.s8 %v7712
    %v8649 = vunpack.c.1.s8 %v7713
    %v8650 = vunpack.c.1.s8 %v7714
    %v8651 = vunpack.c.1.s8 %v7715
    %v8652 = vunpack.c.1.s8 %v7716
    %v8653 = vunpack.c.1.s8 %v7717
    %v8654 = vunpack.c.1.s8 %v7718
    %v8655 = vunpack.c.2.s8 %v7711
    %v8656 = vunpack.c.2.s8 %v7712
    %v8657 = vunpack.c.2.s8 %v7713
    %v8658 = vunpack.c.2.s8 %v7714
    %v8659 = vunpack.c.2.s8 %v7715
    %v8660 = vunpack.c.2.s8 %v7716
    %v8661 = vunpack.c.2.s8 %v7717
    %v8662 = vunpack.c.2.s8 %v7718
    %v8663 = vunpack.c.3.s8 %v7711
    %v8664 = vunpack.c.3.s8 %v7712
    %v8665 = vunpack.c.3.s8 %v7713
    %v8666 = vunpack.c.3.s8 %v7714
    %v8667 = vunpack.c.3.s8 %v7715
    %v8668 = vunpack.c.3.s8 %v7716
    %v8669 = vunpack.c.3.s8 %v7717
    %v8670 = vunpack.c.3.s8 %v7718
    %v8671 = vunpack.c.0.s8 %v7719
    %v8672 = vunpack.c.0.s8 %v7720
    %v8673 = vunpack.c.0.s8 %v7721
    %v8674 = vunpack.c.0.s8 %v7722
    %v8675 = vunpack.c.0.s8 %v7723
    %v8676 = vunpack.c.0.s8 %v7724
    %v8677 = vunpack.c.0.s8 %v7725
    %v8678 = vunpack.c.0.s8 %v7726
    %v8679 = vunpack.c.1.s8 %v7719
    %v8680 = vunpack.c.1.s8 %v7720
    %v8681 = vunpack.c.1.s8 %v7721
    %v8682 = vunpack.c.1.s8 %v7722
    %v8683 = vunpack.c.1.s8 %v7723
    %v8684 = vunpack.c.1.s8 %v7724
    %v8685 = vunpack.c.1.s8 %v7725
    %v8686 = vunpack.c.1.s8 %v7726
    %v8687 = vunpack.c.2.s8 %v7719
    %v8688 = vunpack.c.2.s8 %v7720
    %v8689 = vunpack.c.2.s8 %v7721
    %v8690 = vunpack.c.2.s8 %v7722
    %v8691 = vunpack.c.2.s8 %v7723
    %v8692 = vunpack.c.2.s8 %v7724
    %v8693 = vunpack.c.2.s8 %v7725
    %v8694 = vunpack.c.2.s8 %v7726
    %v8695 = vunpack.c.3.s8 %v7719
    %v8696 = vunpack.c.3.s8 %v7720
    %v8697 = vunpack.c.3.s8 %v7721
    %v8698 = vunpack.c.3.s8 %v7722
    %v8699 = vunpack.c.3.s8 %v7723
    %v8700 = vunpack.c.3.s8 %v7724
    %v8701 = vunpack.c.3.s8 %v7725
    %v8702 = vunpack.c.3.s8 %v7726
    %v8703 = vunpack.c.0.s8 %v7727
    %v8704 = vunpack.c.0.s8 %v7728
    %v8705 = vunpack.c.0.s8 %v7729
    %v8706 = vunpack.c.0.s8 %v7730
    %v8707 = vunpack.c.0.s8 %v7731
    %v8708 = vunpack.c.0.s8 %v7732
    %v8709 = vunpack.c.0.s8 %v7733
    %v8710 = vunpack.c.0.s8 %v7734
    %v8711 = vunpack.c.1.s8 %v7727
    %v8712 = vunpack.c.1.s8 %v7728
    %v8713 = vunpack.c.1.s8 %v7729
    %v8714 = vunpack.c.1.s8 %v7730
    %v8715 = vunpack.c.1.s8 %v7731
    %v8716 = vunpack.c.1.s8 %v7732
    %v8717 = vunpack.c.1.s8 %v7733
    %v8718 = vunpack.c.1.s8 %v7734
    %v8719 = vunpack.c.2.s8 %v7727
    %v8720 = vunpack.c.2.s8 %v7728
    %v8721 = vunpack.c.2.s8 %v7729
    %v8722 = vunpack.c.2.s8 %v7730
    %v8723 = vunpack.c.2.s8 %v7731
    %v8724 = vunpack.c.2.s8 %v7732
    %v8725 = vunpack.c.2.s8 %v7733
    %v8726 = vunpack.c.2.s8 %v7734
    %v8727 = vunpack.c.3.s8 %v7727
    %v8728 = vunpack.c.3.s8 %v7728
    %v8729 = vunpack.c.3.s8 %v7729
    %v8730 = vunpack.c.3.s8 %v7730
    %v8731 = vunpack.c.3.s8 %v7731
    %v8732 = vunpack.c.3.s8 %v7732
    %v8733 = vunpack.c.3.s8 %v7733
    %v8734 = vunpack.c.3.s8 %v7734
    %v8735 = vunpack.c.0.s8 %v7735
    %v8736 = vunpack.c.0.s8 %v7736
    %v8737 = vunpack.c.0.s8 %v7737
    %v8738 = vunpack.c.0.s8 %v7738
    %v8739 = vunpack.c.0.s8 %v7739
    %v8740 = vunpack.c.0.s8 %v7740
    %v8741 = vunpack.c.0.s8 %v7741
    %v8742 = vunpack.c.0.s8 %v7742
    %v8743 = vunpack.c.1.s8 %v7735
    %v8744 = vunpack.c.1.s8 %v7736
    %v8745 = vunpack.c.1.s8 %v7737
    %v8746 = vunpack.c.1.s8 %v7738
    %v8747 = vunpack.c.1.s8 %v7739
    %v8748 = vunpack.c.1.s8 %v7740
    %v8749 = vunpack.c.1.s8 %v7741
    %v8750 = vunpack.c.1.s8 %v7742
    %v8751 = vunpack.c.2.s8 %v7735
    %v8752 = vunpack.c.2.s8 %v7736
    %v8753 = vunpack.c.2.s8 %v7737
    %v8754 = vunpack.c.2.s8 %v7738
    %v8755 = vunpack.c.2.s8 %v7739
    %v8756 = vunpack.c.2.s8 %v7740
    %v8757 = vunpack.c.2.s8 %v7741
    %v8758 = vunpack.c.2.s8 %v7742
    %v8759 = vunpack.c.3.s8 %v7735
    %v8760 = vunpack.c.3.s8 %v7736
    %v8761 = vunpack.c.3.s8 %v7737
    %v8762 = vunpack.c.3.s8 %v7738
    %v8763 = vunpack.c.3.s8 %v7739
    %v8764 = vunpack.c.3.s8 %v7740
    %v8765 = vunpack.c.3.s8 %v7741
    %v8766 = vunpack.c.3.s8 %v7742
    %v8767 = vcvt.s32.f32 %v7743
    %v8768 = vcvt.s32.f32 %v7744
    %v8769 = vcvt.s32.f32 %v7745
    %v8770 = vcvt.s32.f32 %v7746
    %v8771 = vcvt.s32.f32 %v7747
    %v8772 = vcvt.s32.f32 %v7748
    %v8773 = vcvt.s32.f32 %v7749
    %v8774 = vcvt.s32.f32 %v7750
    %v8775 = vcvt.s32.f32 %v7751
    %v8776 = vcvt.s32.f32 %v7752
    %v8777 = vcvt.s32.f32 %v7753
    %v8778 = vcvt.s32.f32 %v7754
    %v8779 = vcvt.s32.f32 %v7755
    %v8780 = vcvt.s32.f32 %v7756
    %v8781 = vcvt.s32.f32 %v7757
    %v8782 = vcvt.s32.f32 %v7758
    %v8783 = vcvt.s32.f32 %v7759
    %v8784 = vcvt.s32.f32 %v7760
    %v8785 = vcvt.s32.f32 %v7761
    %v8786 = vcvt.s32.f32 %v7762
    %v8787 = vcvt.s32.f32 %v7763
    %v8788 = vcvt.s32.f32 %v7764
    %v8789 = vcvt.s32.f32 %v7765
    %v8790 = vcvt.s32.f32 %v7766
    %v8791 = vcvt.s32.f32 %v7767
    %v8792 = vcvt.s32.f32 %v7768
    %v8793 = vcvt.s32.f32 %v7769
    %v8794 = vcvt.s32.f32 %v7770
    %v8795 = vcvt.s32.f32 %v7771
    %v8796 = vcvt.s32.f32 %v7772
    %v8797 = vcvt.s32.f32 %v7773
    %v8798 = vcvt.s32.f32 %v7774
    %v8799 = vcvt.s32.f32 %v7775
    %v8800 = vcvt.s32.f32 %v7776
    %v8801 = vcvt.s32.f32 %v7777
    %v8802 = vcvt.s32.f32 %v7778
    %v8803 = vcvt.s32.f32 %v7779
    %v8804 = vcvt.s32.f32 %v7780
    %v8805 = vcvt.s32.f32 %v7781
    %v8806 = vcvt.s32.f32 %v7782
    %v8807 = vcvt.s32.f32 %v7783
    %v8808 = vcvt.s32.f32 %v7784
    %v8809 = vcvt.s32.f32 %v7785
    %v8810 = vcvt.s32.f32 %v7786
    %v8811 = vcvt.s32.f32 %v7787
    %v8812 = vcvt.s32.f32 %v7788
    %v8813 = vcvt.s32.f32 %v7789
    %v8814 = vcvt.s32.f32 %v7790
    %v8815 = vcvt.s32.f32 %v7791
    %v8816 = vcvt.s32.f32 %v7792
    %v8817 = vcvt.s32.f32 %v7793
    %v8818 = vcvt.s32.f32 %v7794
    %v8819 = vcvt.s32.f32 %v7795
    %v8820 = vcvt.s32.f32 %v7796
    %v8821 = vcvt.s32.f32 %v7797
    %v8822 = vcvt.s32.f32 %v7798
    %v8823 = vcvt.s32.f32 %v7799
    %v8824 = vcvt.s32.f32 %v7800
    %v8825 = vcvt.s32.f32 %v7801
    %v8826 = vcvt.s32.f32 %v7802
    %v8827 = vcvt.s32.f32 %v7803
    %v8828 = vcvt.s32.f32 %v7804
    %v8829 = vcvt.s32.f32 %v7805
    %v8830 = vcvt.s32.f32 %v7806
    %v8831 = vcvt.s32.f32 %v7807
    %v8832 = vcvt.s32.f32 %v7808
    %v8833 = vcvt.s32.f32 %v7809
    %v8834 = vcvt.s32.f32 %v7810
    %v8835 = vcvt.s32.f32 %v7811
    %v8836 = vcvt.s32.f32 %v7812
    %v8837 = vcvt.s32.f32 %v7813
    %v8838 = vcvt.s32.f32 %v7814
    %v8839 = vcvt.s32.f32 %v7815
    %v8840 = vcvt.s32.f32 %v7816
    %v8841 = vcvt.s32.f32 %v7817
    %v8842 = vcvt.s32.f32 %v7818
    %v8843 = vcvt.s32.f32 %v7819
    %v8844 = vcvt.s32.f32 %v7820
    %v8845 = vcvt.s32.f32 %v7821
    %v8846 = vcvt.s32.f32 %v7822
    %v8847 = vcvt.s32.f32 %v7823
    %v8848 = vcvt.s32.f32 %v7824
    %v8849 = vcvt.s32.f32 %v7825
    %v8850 = vcvt.s32.f32 %v7826
    %v8851 = vcvt.s32.f32 %v7827
    %v8852 = vcvt.s32.f32 %v7828
    %v8853 = vcvt.s32.f32 %v7829
    %v8854 = vcvt.s32.f32 %v7830
    %v8855 = vcvt.s32.f32 %v7831
    %v8856 = vcvt.s32.f32 %v7832
    %v8857 = vcvt.s32.f32 %v7833
    %v8858 = vcvt.s32.f32 %v7834
    %v8859 = vcvt.s32.f32 %v7835
    %v8860 = vcvt.s32.f32 %v7836
    %v8861 = vcvt.s32.f32 %v7837
    %v8862 = vcvt.s32.f32 %v7838
    %v8863 = vcvt.s32.f32 %v7839
    %v8864 = vcvt.s32.f32 %v7840
    %v8865 = vcvt.s32.f32 %v7841
    %v8866 = vcvt.s32.f32 %v7842
    %v8867 = vcvt.s32.f32 %v7843
    %v8868 = vcvt.s32.f32 %v7844
    %v8869 = vcvt.s32.f32 %v7845
    %v8870 = vcvt.s32.f32 %v7846
    %v8871 = vcvt.s32.f32 %v7847
    %v8872 = vcvt.s32.f32 %v7848
    %v8873 = vcvt.s32.f32 %v7849
    %v8874 = vcvt.s32.f32 %v7850
    %v8875 = vcvt.s32.f32 %v7851
    %v8876 = vcvt.s32.f32 %v7852
    %v8877 = vcvt.s32.f32 %v7853
    %v8878 = vcvt.s32.f32 %v7854
    %v8879 = vcvt.s32.f32 %v7855
    %v8880 = vcvt.s32.f32 %v7856
    %v8881 = vcvt.s32.f32 %v7857
    %v8882 = vcvt.s32.f32 %v7858
    %v8883 = vcvt.s32.f32 %v7859
    %v8884 = vcvt.s32.f32 %v7860
    %v8885 = vcvt.s32.f32 %v7861
    %v8886 = vcvt.s32.f32 %v7862
    %v8887 = vcvt.s32.f32 %v7863
    %v8888 = vcvt.s32.f32 %v7864
    %v8889 = vcvt.s32.f32 %v7865
    %v8890 = vcvt.s32.f32 %v7866
    %v8891 = vcvt.s32.f32 %v7867
    %v8892 = vcvt.s32.f32 %v7868
    %v8893 = vcvt.s32.f32 %v7869
    %v8894 = vcvt.s32.f32 %v7870
    %v8895 = vcvt.s32.f32 %v7871
    %v8896 = vcvt.s32.f32 %v7872
    %v8897 = vcvt.s32.f32 %v7873
    %v8898 = vcvt.s32.f32 %v7874
    %v8899 = vcvt.s32.f32 %v7875
    %v8900 = vcvt.s32.f32 %v7876
    %v8901 = vcvt.s32.f32 %v7877
    %v8902 = vcvt.s32.f32 %v7878
    %v8903 = vcvt.s32.f32 %v7879
    %v8904 = vcvt.s32.f32 %v7880
    %v8905 = vcvt.s32.f32 %v7881
    %v8906 = vcvt.s32.f32 %v7882
    %v8907 = vcvt.s32.f32 %v7883
    %v8908 = vcvt.s32.f32 %v7884
    %v8909 = vcvt.s32.f32 %v7885
    %v8910 = vcvt.s32.f32 %v7886
    %v8911 = vcvt.s32.f32 %v7887
    %v8912 = vcvt.s32.f32 %v7888
    %v8913 = vcvt.s32.f32 %v7889
    %v8914 = vcvt.s32.f32 %v7890
    %v8915 = vcvt.s32.f32 %v7891
    %v8916 = vcvt.s32.f32 %v7892
    %v8917 = vcvt.s32.f32 %v7893
    %v8918 = vcvt.s32.f32 %v7894
    %v8919 = vcvt.s32.f32 %v7895
    %v8920 = vcvt.s32.f32 %v7896
    %v8921 = vcvt.s32.f32 %v7897
    %v8922 = vcvt.s32.f32 %v7898
    %v8923 = vcvt.s32.f32 %v7899
    %v8924 = vcvt.s32.f32 %v7900
    %v8925 = vcvt.s32.f32 %v7901
    %v8926 = vcvt.s32.f32 %v7902
    %v8927 = vcvt.s32.f32 %v7903
    %v8928 = vcvt.s32.f32 %v7904
    %v8929 = vcvt.s32.f32 %v7905
    %v8930 = vcvt.s32.f32 %v7906
    %v8931 = vcvt.s32.f32 %v7907
    %v8932 = vcvt.s32.f32 %v7908
    %v8933 = vcvt.s32.f32 %v7909
    %v8934 = vcvt.s32.f32 %v7910
    %v8935 = vcvt.s32.f32 %v7911
    %v8936 = vcvt.s32.f32 %v7912
    %v8937 = vcvt.s32.f32 %v7913
    %v8938 = vcvt.s32.f32 %v7914
    %v8939 = vcvt.s32.f32 %v7915
    %v8940 = vcvt.s32.f32 %v7916
    %v8941 = vcvt.s32.f32 %v7917
    %v8942 = vcvt.s32.f32 %v7918
    %v8943 = vcvt.s32.f32 %v7919
    %v8944 = vcvt.s32.f32 %v7920
    %v8945 = vcvt.s32.f32 %v7921
    %v8946 = vcvt.s32.f32 %v7922
    %v8947 = vcvt.s32.f32 %v7923
    %v8948 = vcvt.s32.f32 %v7924
    %v8949 = vcvt.s32.f32 %v7925
    %v8950 = vcvt.s32.f32 %v7926
    %v8951 = vcvt.s32.f32 %v7927
    %v8952 = vcvt.s32.f32 %v7928
    %v8953 = vcvt.s32.f32 %v7929
    %v8954 = vcvt.s32.f32 %v7930
    %v8955 = vcvt.s32.f32 %v7931
    %v8956 = vcvt.s32.f32 %v7932
    %v8957 = vcvt.s32.f32 %v7933
    %v8958 = vcvt.s32.f32 %v7934
    %v8959 = vcvt.s32.f32 %v7935
    %v8960 = vcvt.s32.f32 %v7936
    %v8961 = vcvt.s32.f32 %v7937
    %v8962 = vcvt.s32.f32 %v7938
    %v8963 = vcvt.s32.f32 %v7939
    %v8964 = vcvt.s32.f32 %v7940
    %v8965 = vcvt.s32.f32 %v7941
    %v8966 = vcvt.s32.f32 %v7942
    %v8967 = vcvt.s32.f32 %v7943
    %v8968 = vcvt.s32.f32 %v7944
    %v8969 = vcvt.s32.f32 %v7945
    %v8970 = vcvt.s32.f32 %v7946
    %v8971 = vcvt.s32.f32 %v7947
    %v8972 = vcvt.s32.f32 %v7948
    %v8973 = vcvt.s32.f32 %v7949
    %v8974 = vcvt.s32.f32 %v7950
    %v8975 = vcvt.s32.f32 %v7951
    %v8976 = vcvt.s32.f32 %v7952
    %v8977 = vcvt.s32.f32 %v7953
    %v8978 = vcvt.s32.f32 %v7954
    %v8979 = vcvt.s32.f32 %v7955
    %v8980 = vcvt.s32.f32 %v7956
    %v8981 = vcvt.s32.f32 %v7957
    %v8982 = vcvt.s32.f32 %v7958
    %v8983 = vcvt.s32.f32 %v7959
    %v8984 = vcvt.s32.f32 %v7960
    %v8985 = vcvt.s32.f32 %v7961
    %v8986 = vcvt.s32.f32 %v7962
    %v8987 = vcvt.s32.f32 %v7963
    %v8988 = vcvt.s32.f32 %v7964
    %v8989 = vcvt.s32.f32 %v7965
    %v8990 = vcvt.s32.f32 %v7966
    %v8991 = vcvt.s32.f32 %v7967
    %v8992 = vcvt.s32.f32 %v7968
    %v8993 = vcvt.s32.f32 %v7969
    %v8994 = vcvt.s32.f32 %v7970
    %v8995 = vcvt.s32.f32 %v7971
    %v8996 = vcvt.s32.f32 %v7972
    %v8997 = vcvt.s32.f32 %v7973
    %v8998 = vcvt.s32.f32 %v7974
    %v8999 = vcvt.s32.f32 %v7975
    %v9000 = vcvt.s32.f32 %v7976
    %v9001 = vcvt.s32.f32 %v7977
    %v9002 = vcvt.s32.f32 %v7978
    %v9003 = vcvt.s32.f32 %v7979
    %v9004 = vcvt.s32.f32 %v7980
    %v9005 = vcvt.s32.f32 %v7981
    %v9006 = vcvt.s32.f32 %v7982
    %v9007 = vcvt.s32.f32 %v7983
    %v9008 = vcvt.s32.f32 %v7984
    %v9009 = vcvt.s32.f32 %v7985
    %v9010 = vcvt.s32.f32 %v7986
    %v9011 = vcvt.s32.f32 %v7987
    %v9012 = vcvt.s32.f32 %v7988
    %v9013 = vcvt.s32.f32 %v7989
    %v9014 = vcvt.s32.f32 %v7990
    %v9015 = vcvt.s32.f32 %v7991
    %v9016 = vcvt.s32.f32 %v7992
    %v9017 = vcvt.s32.f32 %v7993
    %v9018 = vcvt.s32.f32 %v7994
    %v9019 = vcvt.s32.f32 %v7995
    %v9020 = vcvt.s32.f32 %v7996
    %v9021 = vcvt.s32.f32 %v7997
    %v9022 = vcvt.s32.f32 %v7998
    %v9023 = vcvt.s32.f32 %v7999
    %v9024 = vcvt.s32.f32 %v8000
    %v9025 = vcvt.s32.f32 %v8001
    %v9026 = vcvt.s32.f32 %v8002
    %v9027 = vcvt.s32.f32 %v8003
    %v9028 = vcvt.s32.f32 %v8004
    %v9029 = vcvt.s32.f32 %v8005
    %v9030 = vcvt.s32.f32 %v8006
    %v9031 = vcvt.s32.f32 %v8007
    %v9032 = vcvt.s32.f32 %v8008
    %v9033 = vcvt.s32.f32 %v8009
    %v9034 = vcvt.s32.f32 %v8010
    %v9035 = vcvt.s32.f32 %v8011
    %v9036 = vcvt.s32.f32 %v8012
    %v9037 = vcvt.s32.f32 %v8013
    %v9038 = vcvt.s32.f32 %v8014
    %v9039 = vcvt.s32.f32 %v8015
    %v9040 = vcvt.s32.f32 %v8016
    %v9041 = vcvt.s32.f32 %v8017
    %v9042 = vcvt.s32.f32 %v8018
    %v9043 = vcvt.s32.f32 %v8019
    %v9044 = vcvt.s32.f32 %v8020
    %v9045 = vcvt.s32.f32 %v8021
    %v9046 = vcvt.s32.f32 %v8022
    %v9047 = vcvt.s32.f32 %v8023
    %v9048 = vcvt.s32.f32 %v8024
    %v9049 = vcvt.s32.f32 %v8025
    %v9050 = vcvt.s32.f32 %v8026
    %v9051 = vcvt.s32.f32 %v8027
    %v9052 = vcvt.s32.f32 %v8028
    %v9053 = vcvt.s32.f32 %v8029
    %v9054 = vcvt.s32.f32 %v8030
    %v9055 = vcvt.s32.f32 %v8031
    %v9056 = vcvt.s32.f32 %v8032
    %v9057 = vcvt.s32.f32 %v8033
    %v9058 = vcvt.s32.f32 %v8034
    %v9059 = vcvt.s32.f32 %v8035
    %v9060 = vcvt.s32.f32 %v8036
    %v9061 = vcvt.s32.f32 %v8037
    %v9062 = vcvt.s32.f32 %v8038
    %v9063 = vcvt.s32.f32 %v8039
    %v9064 = vcvt.s32.f32 %v8040
    %v9065 = vcvt.s32.f32 %v8041
    %v9066 = vcvt.s32.f32 %v8042
    %v9067 = vcvt.s32.f32 %v8043
    %v9068 = vcvt.s32.f32 %v8044
    %v9069 = vcvt.s32.f32 %v8045
    %v9070 = vcvt.s32.f32 %v8046
    %v9071 = vcvt.s32.f32 %v8047
    %v9072 = vcvt.s32.f32 %v8048
    %v9073 = vcvt.s32.f32 %v8049
    %v9074 = vcvt.s32.f32 %v8050
    %v9075 = vcvt.s32.f32 %v8051
    %v9076 = vcvt.s32.f32 %v8052
    %v9077 = vcvt.s32.f32 %v8053
    %v9078 = vcvt.s32.f32 %v8054
    %v9079 = vcvt.s32.f32 %v8055
    %v9080 = vcvt.s32.f32 %v8056
    %v9081 = vcvt.s32.f32 %v8057
    %v9082 = vcvt.s32.f32 %v8058
    %v9083 = vcvt.s32.f32 %v8059
    %v9084 = vcvt.s32.f32 %v8060
    %v9085 = vcvt.s32.f32 %v8061
    %v9086 = vcvt.s32.f32 %v8062
    %v9087 = vcvt.s32.f32 %v8063
    %v9088 = vcvt.s32.f32 %v8064
    %v9089 = vcvt.s32.f32 %v8065
    %v9090 = vcvt.s32.f32 %v8066
    %v9091 = vcvt.s32.f32 %v8067
    %v9092 = vcvt.s32.f32 %v8068
    %v9093 = vcvt.s32.f32 %v8069
    %v9094 = vcvt.s32.f32 %v8070
    %v9095 = vcvt.s32.f32 %v8071
    %v9096 = vcvt.s32.f32 %v8072
    %v9097 = vcvt.s32.f32 %v8073
    %v9098 = vcvt.s32.f32 %v8074
    %v9099 = vcvt.s32.f32 %v8075
    %v9100 = vcvt.s32.f32 %v8076
    %v9101 = vcvt.s32.f32 %v8077
    %v9102 = vcvt.s32.f32 %v8078
    %v9103 = vcvt.s32.f32 %v8079
    %v9104 = vcvt.s32.f32 %v8080
    %v9105 = vcvt.s32.f32 %v8081
    %v9106 = vcvt.s32.f32 %v8082
    %v9107 = vcvt.s32.f32 %v8083
    %v9108 = vcvt.s32.f32 %v8084
    %v9109 = vcvt.s32.f32 %v8085
    %v9110 = vcvt.s32.f32 %v8086
    %v9111 = vcvt.s32.f32 %v8087
    %v9112 = vcvt.s32.f32 %v8088
    %v9113 = vcvt.s32.f32 %v8089
    %v9114 = vcvt.s32.f32 %v8090
    %v9115 = vcvt.s32.f32 %v8091
    %v9116 = vcvt.s32.f32 %v8092
    %v9117 = vcvt.s32.f32 %v8093
    %v9118 = vcvt.s32.f32 %v8094
    %v9119 = vcvt.s32.f32 %v8095
    %v9120 = vcvt.s32.f32 %v8096
    %v9121 = vcvt.s32.f32 %v8097
    %v9122 = vcvt.s32.f32 %v8098
    %v9123 = vcvt.s32.f32 %v8099
    %v9124 = vcvt.s32.f32 %v8100
    %v9125 = vcvt.s32.f32 %v8101
    %v9126 = vcvt.s32.f32 %v8102
    %v9127 = vcvt.s32.f32 %v8103
    %v9128 = vcvt.s32.f32 %v8104
    %v9129 = vcvt.s32.f32 %v8105
    %v9130 = vcvt.s32.f32 %v8106
    %v9131 = vcvt.s32.f32 %v8107
    %v9132 = vcvt.s32.f32 %v8108
    %v9133 = vcvt.s32.f32 %v8109
    %v9134 = vcvt.s32.f32 %v8110
    %v9135 = vcvt.s32.f32 %v8111
    %v9136 = vcvt.s32.f32 %v8112
    %v9137 = vcvt.s32.f32 %v8113
    %v9138 = vcvt.s32.f32 %v8114
    %v9139 = vcvt.s32.f32 %v8115
    %v9140 = vcvt.s32.f32 %v8116
    %v9141 = vcvt.s32.f32 %v8117
    %v9142 = vcvt.s32.f32 %v8118
    %v9143 = vcvt.s32.f32 %v8119
    %v9144 = vcvt.s32.f32 %v8120
    %v9145 = vcvt.s32.f32 %v8121
    %v9146 = vcvt.s32.f32 %v8122
    %v9147 = vcvt.s32.f32 %v8123
    %v9148 = vcvt.s32.f32 %v8124
    %v9149 = vcvt.s32.f32 %v8125
    %v9150 = vcvt.s32.f32 %v8126
    %v9151 = vcvt.s32.f32 %v8127
    %v9152 = vcvt.s32.f32 %v8128
    %v9153 = vcvt.s32.f32 %v8129
    %v9154 = vcvt.s32.f32 %v8130
    %v9155 = vcvt.s32.f32 %v8131
    %v9156 = vcvt.s32.f32 %v8132
    %v9157 = vcvt.s32.f32 %v8133
    %v9158 = vcvt.s32.f32 %v8134
    %v9159 = vcvt.s32.f32 %v8135
    %v9160 = vcvt.s32.f32 %v8136
    %v9161 = vcvt.s32.f32 %v8137
    %v9162 = vcvt.s32.f32 %v8138
    %v9163 = vcvt.s32.f32 %v8139
    %v9164 = vcvt.s32.f32 %v8140
    %v9165 = vcvt.s32.f32 %v8141
    %v9166 = vcvt.s32.f32 %v8142
    %v9167 = vcvt.s32.f32 %v8143
    %v9168 = vcvt.s32.f32 %v8144
    %v9169 = vcvt.s32.f32 %v8145
    %v9170 = vcvt.s32.f32 %v8146
    %v9171 = vcvt.s32.f32 %v8147
    %v9172 = vcvt.s32.f32 %v8148
    %v9173 = vcvt.s32.f32 %v8149
    %v9174 = vcvt.s32.f32 %v8150
    %v9175 = vcvt.s32.f32 %v8151
    %v9176 = vcvt.s32.f32 %v8152
    %v9177 = vcvt.s32.f32 %v8153
    %v9178 = vcvt.s32.f32 %v8154
    %v9179 = vcvt.s32.f32 %v8155
    %v9180 = vcvt.s32.f32 %v8156
    %v9181 = vcvt.s32.f32 %v8157
    %v9182 = vcvt.s32.f32 %v8158
    %v9183 = vcvt.s32.f32 %v8159
    %v9184 = vcvt.s32.f32 %v8160
    %v9185 = vcvt.s32.f32 %v8161
    %v9186 = vcvt.s32.f32 %v8162
    %v9187 = vcvt.s32.f32 %v8163
    %v9188 = vcvt.s32.f32 %v8164
    %v9189 = vcvt.s32.f32 %v8165
    %v9190 = vcvt.s32.f32 %v8166
    %v9191 = vcvt.s32.f32 %v8167
    %v9192 = vcvt.s32.f32 %v8168
    %v9193 = vcvt.s32.f32 %v8169
    %v9194 = vcvt.s32.f32 %v8170
    %v9195 = vcvt.s32.f32 %v8171
    %v9196 = vcvt.s32.f32 %v8172
    %v9197 = vcvt.s32.f32 %v8173
    %v9198 = vcvt.s32.f32 %v8174
    %v9199 = vcvt.s32.f32 %v8175
    %v9200 = vcvt.s32.f32 %v8176
    %v9201 = vcvt.s32.f32 %v8177
    %v9202 = vcvt.s32.f32 %v8178
    %v9203 = vcvt.s32.f32 %v8179
    %v9204 = vcvt.s32.f32 %v8180
    %v9205 = vcvt.s32.f32 %v8181
    %v9206 = vcvt.s32.f32 %v8182
    %v9207 = vcvt.s32.f32 %v8183
    %v9208 = vcvt.s32.f32 %v8184
    %v9209 = vcvt.s32.f32 %v8185
    %v9210 = vcvt.s32.f32 %v8186
    %v9211 = vcvt.s32.f32 %v8187
    %v9212 = vcvt.s32.f32 %v8188
    %v9213 = vcvt.s32.f32 %v8189
    %v9214 = vcvt.s32.f32 %v8190
    %v9215 = vcvt.s32.f32 %v8191
    %v9216 = vcvt.s32.f32 %v8192
    %v9217 = vcvt.s32.f32 %v8193
    %v9218 = vcvt.s32.f32 %v8194
    %v9219 = vcvt.s32.f32 %v8195
    %v9220 = vcvt.s32.f32 %v8196
    %v9221 = vcvt.s32.f32 %v8197
    %v9222 = vcvt.s32.f32 %v8198
    %v9223 = vcvt.s32.f32 %v8199
    %v9224 = vcvt.s32.f32 %v8200
    %v9225 = vcvt.s32.f32 %v8201
    %v9226 = vcvt.s32.f32 %v8202
    %v9227 = vcvt.s32.f32 %v8203
    %v9228 = vcvt.s32.f32 %v8204
    %v9229 = vcvt.s32.f32 %v8205
    %v9230 = vcvt.s32.f32 %v8206
    %v9231 = vcvt.s32.f32 %v8207
    %v9232 = vcvt.s32.f32 %v8208
    %v9233 = vcvt.s32.f32 %v8209
    %v9234 = vcvt.s32.f32 %v8210
    %v9235 = vcvt.s32.f32 %v8211
    %v9236 = vcvt.s32.f32 %v8212
    %v9237 = vcvt.s32.f32 %v8213
    %v9238 = vcvt.s32.f32 %v8214
    %v9239 = vcvt.s32.f32 %v8215
    %v9240 = vcvt.s32.f32 %v8216
    %v9241 = vcvt.s32.f32 %v8217
    %v9242 = vcvt.s32.f32 %v8218
    %v9243 = vcvt.s32.f32 %v8219
    %v9244 = vcvt.s32.f32 %v8220
    %v9245 = vcvt.s32.f32 %v8221
    %v9246 = vcvt.s32.f32 %v8222
    %v9247 = vcvt.s32.f32 %v8223
    %v9248 = vcvt.s32.f32 %v8224
    %v9249 = vcvt.s32.f32 %v8225
    %v9250 = vcvt.s32.f32 %v8226
    %v9251 = vcvt.s32.f32 %v8227
    %v9252 = vcvt.s32.f32 %v8228
    %v9253 = vcvt.s32.f32 %v8229
    %v9254 = vcvt.s32.f32 %v8230
    %v9255 = vcvt.s32.f32 %v8231
    %v9256 = vcvt.s32.f32 %v8232
    %v9257 = vcvt.s32.f32 %v8233
    %v9258 = vcvt.s32.f32 %v8234
    %v9259 = vcvt.s32.f32 %v8235
    %v9260 = vcvt.s32.f32 %v8236
    %v9261 = vcvt.s32.f32 %v8237
    %v9262 = vcvt.s32.f32 %v8238
    %v9263 = vcvt.s32.f32 %v8239
    %v9264 = vcvt.s32.f32 %v8240
    %v9265 = vcvt.s32.f32 %v8241
    %v9266 = vcvt.s32.f32 %v8242
    %v9267 = vcvt.s32.f32 %v8243
    %v9268 = vcvt.s32.f32 %v8244
    %v9269 = vcvt.s32.f32 %v8245
    %v9270 = vcvt.s32.f32 %v8246
    %v9271 = vcvt.s32.f32 %v8247
    %v9272 = vcvt.s32.f32 %v8248
    %v9273 = vcvt.s32.f32 %v8249
    %v9274 = vcvt.s32.f32 %v8250
    %v9275 = vcvt.s32.f32 %v8251
    %v9276 = vcvt.s32.f32 %v8252
    %v9277 = vcvt.s32.f32 %v8253
    %v9278 = vcvt.s32.f32 %v8254
    %v9279 = vcvt.s32.f32 %v8255
    %v9280 = vcvt.s32.f32 %v8256
    %v9281 = vcvt.s32.f32 %v8257
    %v9282 = vcvt.s32.f32 %v8258
    %v9283 = vcvt.s32.f32 %v8259
    %v9284 = vcvt.s32.f32 %v8260
    %v9285 = vcvt.s32.f32 %v8261
    %v9286 = vcvt.s32.f32 %v8262
    %v9287 = vcvt.s32.f32 %v8263
    %v9288 = vcvt.s32.f32 %v8264
    %v9289 = vcvt.s32.f32 %v8265
    %v9290 = vcvt.s32.f32 %v8266
    %v9291 = vcvt.s32.f32 %v8267
    %v9292 = vcvt.s32.f32 %v8268
    %v9293 = vcvt.s32.f32 %v8269
    %v9294 = vcvt.s32.f32 %v8270
    %v9295 = vcvt.s32.f32 %v8271
    %v9296 = vcvt.s32.f32 %v8272
    %v9297 = vcvt.s32.f32 %v8273
    %v9298 = vcvt.s32.f32 %v8274
    %v9299 = vcvt.s32.f32 %v8275
    %v9300 = vcvt.s32.f32 %v8276
    %v9301 = vcvt.s32.f32 %v8277
    %v9302 = vcvt.s32.f32 %v8278
    %v9303 = vcvt.s32.f32 %v8279
    %v9304 = vcvt.s32.f32 %v8280
    %v9305 = vcvt.s32.f32 %v8281
    %v9306 = vcvt.s32.f32 %v8282
    %v9307 = vcvt.s32.f32 %v8283
    %v9308 = vcvt.s32.f32 %v8284
    %v9309 = vcvt.s32.f32 %v8285
    %v9310 = vcvt.s32.f32 %v8286
    %v9311 = vcvt.s32.f32 %v8287
    %v9312 = vcvt.s32.f32 %v8288
    %v9313 = vcvt.s32.f32 %v8289
    %v9314 = vcvt.s32.f32 %v8290
    %v9315 = vcvt.s32.f32 %v8291
    %v9316 = vcvt.s32.f32 %v8292
    %v9317 = vcvt.s32.f32 %v8293
    %v9318 = vcvt.s32.f32 %v8294
    %v9319 = vcvt.s32.f32 %v8295
    %v9320 = vcvt.s32.f32 %v8296
    %v9321 = vcvt.s32.f32 %v8297
    %v9322 = vcvt.s32.f32 %v8298
    %v9323 = vcvt.s32.f32 %v8299
    %v9324 = vcvt.s32.f32 %v8300
    %v9325 = vcvt.s32.f32 %v8301
    %v9326 = vcvt.s32.f32 %v8302
    %v9327 = vcvt.s32.f32 %v8303
    %v9328 = vcvt.s32.f32 %v8304
    %v9329 = vcvt.s32.f32 %v8305
    %v9330 = vcvt.s32.f32 %v8306
    %v9331 = vcvt.s32.f32 %v8307
    %v9332 = vcvt.s32.f32 %v8308
    %v9333 = vcvt.s32.f32 %v8309
    %v9334 = vcvt.s32.f32 %v8310
    %v9335 = vcvt.s32.f32 %v8311
    %v9336 = vcvt.s32.f32 %v8312
    %v9337 = vcvt.s32.f32 %v8313
    %v9338 = vcvt.s32.f32 %v8314
    %v9339 = vcvt.s32.f32 %v8315
    %v9340 = vcvt.s32.f32 %v8316
    %v9341 = vcvt.s32.f32 %v8317
    %v9342 = vcvt.s32.f32 %v8318
    %v9343 = vcvt.s32.f32 %v8319
    %v9344 = vcvt.s32.f32 %v8320
    %v9345 = vcvt.s32.f32 %v8321
    %v9346 = vcvt.s32.f32 %v8322
    %v9347 = vcvt.s32.f32 %v8323
    %v9348 = vcvt.s32.f32 %v8324
    %v9349 = vcvt.s32.f32 %v8325
    %v9350 = vcvt.s32.f32 %v8326
    %v9351 = vcvt.s32.f32 %v8327
    %v9352 = vcvt.s32.f32 %v8328
    %v9353 = vcvt.s32.f32 %v8329
    %v9354 = vcvt.s32.f32 %v8330
    %v9355 = vcvt.s32.f32 %v8331
    %v9356 = vcvt.s32.f32 %v8332
    %v9357 = vcvt.s32.f32 %v8333
    %v9358 = vcvt.s32.f32 %v8334
    %v9359 = vcvt.s32.f32 %v8335
    %v9360 = vcvt.s32.f32 %v8336
    %v9361 = vcvt.s32.f32 %v8337
    %v9362 = vcvt.s32.f32 %v8338
    %v9363 = vcvt.s32.f32 %v8339
    %v9364 = vcvt.s32.f32 %v8340
    %v9365 = vcvt.s32.f32 %v8341
    %v9366 = vcvt.s32.f32 %v8342
    %v9367 = vcvt.s32.f32 %v8343
    %v9368 = vcvt.s32.f32 %v8344
    %v9369 = vcvt.s32.f32 %v8345
    %v9370 = vcvt.s32.f32 %v8346
    %v9371 = vcvt.s32.f32 %v8347
    %v9372 = vcvt.s32.f32 %v8348
    %v9373 = vcvt.s32.f32 %v8349
    %v9374 = vcvt.s32.f32 %v8350
    %v9375 = vcvt.s32.f32 %v8351
    %v9376 = vcvt.s32.f32 %v8352
    %v9377 = vcvt.s32.f32 %v8353
    %v9378 = vcvt.s32.f32 %v8354
    %v9379 = vcvt.s32.f32 %v8355
    %v9380 = vcvt.s32.f32 %v8356
    %v9381 = vcvt.s32.f32 %v8357
    %v9382 = vcvt.s32.f32 %v8358
    %v9383 = vcvt.s32.f32 %v8359
    %v9384 = vcvt.s32.f32 %v8360
    %v9385 = vcvt.s32.f32 %v8361
    %v9386 = vcvt.s32.f32 %v8362
    %v9387 = vcvt.s32.f32 %v8363
    %v9388 = vcvt.s32.f32 %v8364
    %v9389 = vcvt.s32.f32 %v8365
    %v9390 = vcvt.s32.f32 %v8366
    %v9391 = vcvt.s32.f32 %v8367
    %v9392 = vcvt.s32.f32 %v8368
    %v9393 = vcvt.s32.f32 %v8369
    %v9394 = vcvt.s32.f32 %v8370
    %v9395 = vcvt.s32.f32 %v8371
    %v9396 = vcvt.s32.f32 %v8372
    %v9397 = vcvt.s32.f32 %v8373
    %v9398 = vcvt.s32.f32 %v8374
    %v9399 = vcvt.s32.f32 %v8375
    %v9400 = vcvt.s32.f32 %v8376
    %v9401 = vcvt.s32.f32 %v8377
    %v9402 = vcvt.s32.f32 %v8378
    %v9403 = vcvt.s32.f32 %v8379
    %v9404 = vcvt.s32.f32 %v8380
    %v9405 = vcvt.s32.f32 %v8381
    %v9406 = vcvt.s32.f32 %v8382
    %v9407 = vcvt.s32.f32 %v8383
    %v9408 = vcvt.s32.f32 %v8384
    %v9409 = vcvt.s32.f32 %v8385
    %v9410 = vcvt.s32.f32 %v8386
    %v9411 = vcvt.s32.f32 %v8387
    %v9412 = vcvt.s32.f32 %v8388
    %v9413 = vcvt.s32.f32 %v8389
    %v9414 = vcvt.s32.f32 %v8390
    %v9415 = vcvt.s32.f32 %v8391
    %v9416 = vcvt.s32.f32 %v8392
    %v9417 = vcvt.s32.f32 %v8393
    %v9418 = vcvt.s32.f32 %v8394
    %v9419 = vcvt.s32.f32 %v8395
    %v9420 = vcvt.s32.f32 %v8396
    %v9421 = vcvt.s32.f32 %v8397
    %v9422 = vcvt.s32.f32 %v8398
    %v9423 = vcvt.s32.f32 %v8399
    %v9424 = vcvt.s32.f32 %v8400
    %v9425 = vcvt.s32.f32 %v8401
    %v9426 = vcvt.s32.f32 %v8402
    %v9427 = vcvt.s32.f32 %v8403
    %v9428 = vcvt.s32.f32 %v8404
    %v9429 = vcvt.s32.f32 %v8405
    %v9430 = vcvt.s32.f32 %v8406
    %v9431 = vcvt.s32.f32 %v8407
    %v9432 = vcvt.s32.f32 %v8408
    %v9433 = vcvt.s32.f32 %v8409
    %v9434 = vcvt.s32.f32 %v8410
    %v9435 = vcvt.s32.f32 %v8411
    %v9436 = vcvt.s32.f32 %v8412
    %v9437 = vcvt.s32.f32 %v8413
    %v9438 = vcvt.s32.f32 %v8414
    %v9439 = vcvt.s32.f32 %v8415
    %v9440 = vcvt.s32.f32 %v8416
    %v9441 = vcvt.s32.f32 %v8417
    %v9442 = vcvt.s32.f32 %v8418
    %v9443 = vcvt.s32.f32 %v8419
    %v9444 = vcvt.s32.f32 %v8420
    %v9445 = vcvt.s32.f32 %v8421
    %v9446 = vcvt.s32.f32 %v8422
    %v9447 = vcvt.s32.f32 %v8423
    %v9448 = vcvt.s32.f32 %v8424
    %v9449 = vcvt.s32.f32 %v8425
    %v9450 = vcvt.s32.f32 %v8426
    %v9451 = vcvt.s32.f32 %v8427
    %v9452 = vcvt.s32.f32 %v8428
    %v9453 = vcvt.s32.f32 %v8429
    %v9454 = vcvt.s32.f32 %v8430
    %v9455 = vcvt.s32.f32 %v8431
    %v9456 = vcvt.s32.f32 %v8432
    %v9457 = vcvt.s32.f32 %v8433
    %v9458 = vcvt.s32.f32 %v8434
    %v9459 = vcvt.s32.f32 %v8435
    %v9460 = vcvt.s32.f32 %v8436
    %v9461 = vcvt.s32.f32 %v8437
    %v9462 = vcvt.s32.f32 %v8438
    %v9463 = vcvt.s32.f32 %v8439
    %v9464 = vcvt.s32.f32 %v8440
    %v9465 = vcvt.s32.f32 %v8441
    %v9466 = vcvt.s32.f32 %v8442
    %v9467 = vcvt.s32.f32 %v8443
    %v9468 = vcvt.s32.f32 %v8444
    %v9469 = vcvt.s32.f32 %v8445
    %v9470 = vcvt.s32.f32 %v8446
    %v9471 = vcvt.s32.f32 %v8447
    %v9472 = vcvt.s32.f32 %v8448
    %v9473 = vcvt.s32.f32 %v8449
    %v9474 = vcvt.s32.f32 %v8450
    %v9475 = vcvt.s32.f32 %v8451
    %v9476 = vcvt.s32.f32 %v8452
    %v9477 = vcvt.s32.f32 %v8453
    %v9478 = vcvt.s32.f32 %v8454
    %v9479 = vcvt.s32.f32 %v8455
    %v9480 = vcvt.s32.f32 %v8456
    %v9481 = vcvt.s32.f32 %v8457
    %v9482 = vcvt.s32.f32 %v8458
    %v9483 = vcvt.s32.f32 %v8459
    %v9484 = vcvt.s32.f32 %v8460
    %v9485 = vcvt.s32.f32 %v8461
    %v9486 = vcvt.s32.f32 %v8462
    %v9487 = vcvt.s32.f32 %v8463
    %v9488 = vcvt.s32.f32 %v8464
    %v9489 = vcvt.s32.f32 %v8465
    %v9490 = vcvt.s32.f32 %v8466
    %v9491 = vcvt.s32.f32 %v8467
    %v9492 = vcvt.s32.f32 %v8468
    %v9493 = vcvt.s32.f32 %v8469
    %v9494 = vcvt.s32.f32 %v8470
    %v9495 = vcvt.s32.f32 %v8471
    %v9496 = vcvt.s32.f32 %v8472
    %v9497 = vcvt.s32.f32 %v8473
    %v9498 = vcvt.s32.f32 %v8474
    %v9499 = vcvt.s32.f32 %v8475
    %v9500 = vcvt.s32.f32 %v8476
    %v9501 = vcvt.s32.f32 %v8477
    %v9502 = vcvt.s32.f32 %v8478
    %v9503 = vcvt.s32.f32 %v8479
    %v9504 = vcvt.s32.f32 %v8480
    %v9505 = vcvt.s32.f32 %v8481
    %v9506 = vcvt.s32.f32 %v8482
    %v9507 = vcvt.s32.f32 %v8483
    %v9508 = vcvt.s32.f32 %v8484
    %v9509 = vcvt.s32.f32 %v8485
    %v9510 = vcvt.s32.f32 %v8486
    %v9511 = vcvt.s32.f32 %v8487
    %v9512 = vcvt.s32.f32 %v8488
    %v9513 = vcvt.s32.f32 %v8489
    %v9514 = vcvt.s32.f32 %v8490
    %v9515 = vcvt.s32.f32 %v8491
    %v9516 = vcvt.s32.f32 %v8492
    %v9517 = vcvt.s32.f32 %v8493
    %v9518 = vcvt.s32.f32 %v8494
    %v9519 = vcvt.s32.f32 %v8495
    %v9520 = vcvt.s32.f32 %v8496
    %v9521 = vcvt.s32.f32 %v8497
    %v9522 = vcvt.s32.f32 %v8498
    %v9523 = vcvt.s32.f32 %v8499
    %v9524 = vcvt.s32.f32 %v8500
    %v9525 = vcvt.s32.f32 %v8501
    %v9526 = vcvt.s32.f32 %v8502
    %v9527 = vcvt.s32.f32 %v8503
    %v9528 = vcvt.s32.f32 %v8504
    %v9529 = vcvt.s32.f32 %v8505
    %v9530 = vcvt.s32.f32 %v8506
    %v9531 = vcvt.s32.f32 %v8507
    %v9532 = vcvt.s32.f32 %v8508
    %v9533 = vcvt.s32.f32 %v8509
    %v9534 = vcvt.s32.f32 %v8510
    %v9535 = vcvt.s32.f32 %v8511
    %v9536 = vcvt.s32.f32 %v8512
    %v9537 = vcvt.s32.f32 %v8513
    %v9538 = vcvt.s32.f32 %v8514
    %v9539 = vcvt.s32.f32 %v8515
    %v9540 = vcvt.s32.f32 %v8516
    %v9541 = vcvt.s32.f32 %v8517
    %v9542 = vcvt.s32.f32 %v8518
    %v9543 = vcvt.s32.f32 %v8519
    %v9544 = vcvt.s32.f32 %v8520
    %v9545 = vcvt.s32.f32 %v8521
    %v9546 = vcvt.s32.f32 %v8522
    %v9547 = vcvt.s32.f32 %v8523
    %v9548 = vcvt.s32.f32 %v8524
    %v9549 = vcvt.s32.f32 %v8525
    %v9550 = vcvt.s32.f32 %v8526
    %v9551 = vcvt.s32.f32 %v8527
    %v9552 = vcvt.s32.f32 %v8528
    %v9553 = vcvt.s32.f32 %v8529
    %v9554 = vcvt.s32.f32 %v8530
    %v9555 = vcvt.s32.f32 %v8531
    %v9556 = vcvt.s32.f32 %v8532
    %v9557 = vcvt.s32.f32 %v8533
    %v9558 = vcvt.s32.f32 %v8534
    %v9559 = vcvt.s32.f32 %v8535
    %v9560 = vcvt.s32.f32 %v8536
    %v9561 = vcvt.s32.f32 %v8537
    %v9562 = vcvt.s32.f32 %v8538
    %v9563 = vcvt.s32.f32 %v8539
    %v9564 = vcvt.s32.f32 %v8540
    %v9565 = vcvt.s32.f32 %v8541
    %v9566 = vcvt.s32.f32 %v8542
    %v9567 = vcvt.s32.f32 %v8543
    %v9568 = vcvt.s32.f32 %v8544
    %v9569 = vcvt.s32.f32 %v8545
    %v9570 = vcvt.s32.f32 %v8546
    %v9571 = vcvt.s32.f32 %v8547
    %v9572 = vcvt.s32.f32 %v8548
    %v9573 = vcvt.s32.f32 %v8549
    %v9574 = vcvt.s32.f32 %v8550
    %v9575 = vcvt.s32.f32 %v8551
    %v9576 = vcvt.s32.f32 %v8552
    %v9577 = vcvt.s32.f32 %v8553
    %v9578 = vcvt.s32.f32 %v8554
    %v9579 = vcvt.s32.f32 %v8555
    %v9580 = vcvt.s32.f32 %v8556
    %v9581 = vcvt.s32.f32 %v8557
    %v9582 = vcvt.s32.f32 %v8558
    %v9583 = vcvt.s32.f32 %v8559
    %v9584 = vcvt.s32.f32 %v8560
    %v9585 = vcvt.s32.f32 %v8561
    %v9586 = vcvt.s32.f32 %v8562
    %v9587 = vcvt.s32.f32 %v8563
    %v9588 = vcvt.s32.f32 %v8564
    %v9589 = vcvt.s32.f32 %v8565
    %v9590 = vcvt.s32.f32 %v8566
    %v9591 = vcvt.s32.f32 %v8567
    %v9592 = vcvt.s32.f32 %v8568
    %v9593 = vcvt.s32.f32 %v8569
    %v9594 = vcvt.s32.f32 %v8570
    %v9595 = vcvt.s32.f32 %v8571
    %v9596 = vcvt.s32.f32 %v8572
    %v9597 = vcvt.s32.f32 %v8573
    %v9598 = vcvt.s32.f32 %v8574
    %v9599 = vcvt.s32.f32 %v8575
    %v9600 = vcvt.s32.f32 %v8576
    %v9601 = vcvt.s32.f32 %v8577
    %v9602 = vcvt.s32.f32 %v8578
    %v9603 = vcvt.s32.f32 %v8579
    %v9604 = vcvt.s32.f32 %v8580
    %v9605 = vcvt.s32.f32 %v8581
    %v9606 = vcvt.s32.f32 %v8582
    %v9607 = vcvt.s32.f32 %v8583
    %v9608 = vcvt.s32.f32 %v8584
    %v9609 = vcvt.s32.f32 %v8585
    %v9610 = vcvt.s32.f32 %v8586
    %v9611 = vcvt.s32.f32 %v8587
    %v9612 = vcvt.s32.f32 %v8588
    %v9613 = vcvt.s32.f32 %v8589
    %v9614 = vcvt.s32.f32 %v8590
    %v9615 = vcvt.s32.f32 %v8591
    %v9616 = vcvt.s32.f32 %v8592
    %v9617 = vcvt.s32.f32 %v8593
    %v9618 = vcvt.s32.f32 %v8594
    %v9619 = vcvt.s32.f32 %v8595
    %v9620 = vcvt.s32.f32 %v8596
    %v9621 = vcvt.s32.f32 %v8597
    %v9622 = vcvt.s32.f32 %v8598
    %v9623 = vcvt.s32.f32 %v8599
    %v9624 = vcvt.s32.f32 %v8600
    %v9625 = vcvt.s32.f32 %v8601
    %v9626 = vcvt.s32.f32 %v8602
    %v9627 = vcvt.s32.f32 %v8603
    %v9628 = vcvt.s32.f32 %v8604
    %v9629 = vcvt.s32.f32 %v8605
    %v9630 = vcvt.s32.f32 %v8606
    %v9631 = vcvt.s32.f32 %v8607
    %v9632 = vcvt.s32.f32 %v8608
    %v9633 = vcvt.s32.f32 %v8609
    %v9634 = vcvt.s32.f32 %v8610
    %v9635 = vcvt.s32.f32 %v8611
    %v9636 = vcvt.s32.f32 %v8612
    %v9637 = vcvt.s32.f32 %v8613
    %v9638 = vcvt.s32.f32 %v8614
    %v9639 = vcvt.s32.f32 %v8615
    %v9640 = vcvt.s32.f32 %v8616
    %v9641 = vcvt.s32.f32 %v8617
    %v9642 = vcvt.s32.f32 %v8618
    %v9643 = vcvt.s32.f32 %v8619
    %v9644 = vcvt.s32.f32 %v8620
    %v9645 = vcvt.s32.f32 %v8621
    %v9646 = vcvt.s32.f32 %v8622
    %v9647 = vcvt.s32.f32 %v8623
    %v9648 = vcvt.s32.f32 %v8624
    %v9649 = vcvt.s32.f32 %v8625
    %v9650 = vcvt.s32.f32 %v8626
    %v9651 = vcvt.s32.f32 %v8627
    %v9652 = vcvt.s32.f32 %v8628
    %v9653 = vcvt.s32.f32 %v8629
    %v9654 = vcvt.s32.f32 %v8630
    %v9655 = vcvt.s32.f32 %v8631
    %v9656 = vcvt.s32.f32 %v8632
    %v9657 = vcvt.s32.f32 %v8633
    %v9658 = vcvt.s32.f32 %v8634
    %v9659 = vcvt.s32.f32 %v8635
    %v9660 = vcvt.s32.f32 %v8636
    %v9661 = vcvt.s32.f32 %v8637
    %v9662 = vcvt.s32.f32 %v8638
    %v9663 = vcvt.s32.f32 %v8639
    %v9664 = vcvt.s32.f32 %v8640
    %v9665 = vcvt.s32.f32 %v8641
    %v9666 = vcvt.s32.f32 %v8642
    %v9667 = vcvt.s32.f32 %v8643
    %v9668 = vcvt.s32.f32 %v8644
    %v9669 = vcvt.s32.f32 %v8645
    %v9670 = vcvt.s32.f32 %v8646
    %v9671 = vcvt.s32.f32 %v8647
    %v9672 = vcvt.s32.f32 %v8648
    %v9673 = vcvt.s32.f32 %v8649
    %v9674 = vcvt.s32.f32 %v8650
    %v9675 = vcvt.s32.f32 %v8651
    %v9676 = vcvt.s32.f32 %v8652
    %v9677 = vcvt.s32.f32 %v8653
    %v9678 = vcvt.s32.f32 %v8654
    %v9679 = vcvt.s32.f32 %v8655
    %v9680 = vcvt.s32.f32 %v8656
    %v9681 = vcvt.s32.f32 %v8657
    %v9682 = vcvt.s32.f32 %v8658
    %v9683 = vcvt.s32.f32 %v8659
    %v9684 = vcvt.s32.f32 %v8660
    %v9685 = vcvt.s32.f32 %v8661
    %v9686 = vcvt.s32.f32 %v8662
    %v9687 = vcvt.s32.f32 %v8663
    %v9688 = vcvt.s32.f32 %v8664
    %v9689 = vcvt.s32.f32 %v8665
    %v9690 = vcvt.s32.f32 %v8666
    %v9691 = vcvt.s32.f32 %v8667
    %v9692 = vcvt.s32.f32 %v8668
    %v9693 = vcvt.s32.f32 %v8669
    %v9694 = vcvt.s32.f32 %v8670
    %v9695 = vcvt.s32.f32 %v8671
    %v9696 = vcvt.s32.f32 %v8672
    %v9697 = vcvt.s32.f32 %v8673
    %v9698 = vcvt.s32.f32 %v8674
    %v9699 = vcvt.s32.f32 %v8675
    %v9700 = vcvt.s32.f32 %v8676
    %v9701 = vcvt.s32.f32 %v8677
    %v9702 = vcvt.s32.f32 %v8678
    %v9703 = vcvt.s32.f32 %v8679
    %v9704 = vcvt.s32.f32 %v8680
    %v9705 = vcvt.s32.f32 %v8681
    %v9706 = vcvt.s32.f32 %v8682
    %v9707 = vcvt.s32.f32 %v8683
    %v9708 = vcvt.s32.f32 %v8684
    %v9709 = vcvt.s32.f32 %v8685
    %v9710 = vcvt.s32.f32 %v8686
    %v9711 = vcvt.s32.f32 %v8687
    %v9712 = vcvt.s32.f32 %v8688
    %v9713 = vcvt.s32.f32 %v8689
    %v9714 = vcvt.s32.f32 %v8690
    %v9715 = vcvt.s32.f32 %v8691
    %v9716 = vcvt.s32.f32 %v8692
    %v9717 = vcvt.s32.f32 %v8693
    %v9718 = vcvt.s32.f32 %v8694
    %v9719 = vcvt.s32.f32 %v8695
    %v9720 = vcvt.s32.f32 %v8696
    %v9721 = vcvt.s32.f32 %v8697
    %v9722 = vcvt.s32.f32 %v8698
    %v9723 = vcvt.s32.f32 %v8699
    %v9724 = vcvt.s32.f32 %v8700
    %v9725 = vcvt.s32.f32 %v8701
    %v9726 = vcvt.s32.f32 %v8702
    %v9727 = vcvt.s32.f32 %v8703
    %v9728 = vcvt.s32.f32 %v8704
    %v9729 = vcvt.s32.f32 %v8705
    %v9730 = vcvt.s32.f32 %v8706
    %v9731 = vcvt.s32.f32 %v8707
    %v9732 = vcvt.s32.f32 %v8708
    %v9733 = vcvt.s32.f32 %v8709
    %v9734 = vcvt.s32.f32 %v8710
    %v9735 = vcvt.s32.f32 %v8711
    %v9736 = vcvt.s32.f32 %v8712
    %v9737 = vcvt.s32.f32 %v8713
    %v9738 = vcvt.s32.f32 %v8714
    %v9739 = vcvt.s32.f32 %v8715
    %v9740 = vcvt.s32.f32 %v8716
    %v9741 = vcvt.s32.f32 %v8717
    %v9742 = vcvt.s32.f32 %v8718
    %v9743 = vcvt.s32.f32 %v8719
    %v9744 = vcvt.s32.f32 %v8720
    %v9745 = vcvt.s32.f32 %v8721
    %v9746 = vcvt.s32.f32 %v8722
    %v9747 = vcvt.s32.f32 %v8723
    %v9748 = vcvt.s32.f32 %v8724
    %v9749 = vcvt.s32.f32 %v8725
    %v9750 = vcvt.s32.f32 %v8726
    %v9751 = vcvt.s32.f32 %v8727
    %v9752 = vcvt.s32.f32 %v8728
    %v9753 = vcvt.s32.f32 %v8729
    %v9754 = vcvt.s32.f32 %v8730
    %v9755 = vcvt.s32.f32 %v8731
    %v9756 = vcvt.s32.f32 %v8732
    %v9757 = vcvt.s32.f32 %v8733
    %v9758 = vcvt.s32.f32 %v8734
    %v9759 = vcvt.s32.f32 %v8735
    %v9760 = vcvt.s32.f32 %v8736
    %v9761 = vcvt.s32.f32 %v8737
    %v9762 = vcvt.s32.f32 %v8738
    %v9763 = vcvt.s32.f32 %v8739
    %v9764 = vcvt.s32.f32 %v8740
    %v9765 = vcvt.s32.f32 %v8741
    %v9766 = vcvt.s32.f32 %v8742
    %v9767 = vcvt.s32.f32 %v8743
    %v9768 = vcvt.s32.f32 %v8744
    %v9769 = vcvt.s32.f32 %v8745
    %v9770 = vcvt.s32.f32 %v8746
    %v9771 = vcvt.s32.f32 %v8747
    %v9772 = vcvt.s32.f32 %v8748
    %v9773 = vcvt.s32.f32 %v8749
    %v9774 = vcvt.s32.f32 %v8750
    %v9775 = vcvt.s32.f32 %v8751
    %v9776 = vcvt.s32.f32 %v8752
    %v9777 = vcvt.s32.f32 %v8753
    %v9778 = vcvt.s32.f32 %v8754
    %v9779 = vcvt.s32.f32 %v8755
    %v9780 = vcvt.s32.f32 %v8756
    %v9781 = vcvt.s32.f32 %v8757
    %v9782 = vcvt.s32.f32 %v8758
    %v9783 = vcvt.s32.f32 %v8759
    %v9784 = vcvt.s32.f32 %v8760
    %v9785 = vcvt.s32.f32 %v8761
    %v9786 = vcvt.s32.f32 %v8762
    %v9787 = vcvt.s32.f32 %v8763
    %v9788 = vcvt.s32.f32 %v8764
    %v9789 = vcvt.s32.f32 %v8765
    %v9790 = vcvt.s32.f32 %v8766
    %v9791 = vpack.c.bf16 %v8775, %v8767
    %v9792 = vpack.c.bf16 %v8776, %v8768
    %v9793 = vpack.c.bf16 %v8777, %v8769
    %v9794 = vpack.c.bf16 %v8778, %v8770
    %v9795 = vpack.c.bf16 %v8779, %v8771
    %v9796 = vpack.c.bf16 %v8780, %v8772
    %v9797 = vpack.c.bf16 %v8781, %v8773
    %v9798 = vpack.c.bf16 %v8782, %v8774
    %v9799 = vpack.c.bf16 %v8791, %v8783
    %v9800 = vpack.c.bf16 %v8792, %v8784
    %v9801 = vpack.c.bf16 %v8793, %v8785
    %v9802 = vpack.c.bf16 %v8794, %v8786
    %v9803 = vpack.c.bf16 %v8795, %v8787
    %v9804 = vpack.c.bf16 %v8796, %v8788
    %v9805 = vpack.c.bf16 %v8797, %v8789
    %v9806 = vpack.c.bf16 %v8798, %v8790
    %v9807 = vpack.c.bf16 %v8807, %v8799
    %v9808 = vpack.c.bf16 %v8808, %v8800
    %v9809 = vpack.c.bf16 %v8809, %v8801
    %v9810 = vpack.c.bf16 %v8810, %v8802
    %v9811 = vpack.c.bf16 %v8811, %v8803
    %v9812 = vpack.c.bf16 %v8812, %v8804
    %v9813 = vpack.c.bf16 %v8813, %v8805
    %v9814 = vpack.c.bf16 %v8814, %v8806
    %v9815 = vpack.c.bf16 %v8823, %v8815
    %v9816 = vpack.c.bf16 %v8824, %v8816
    %v9817 = vpack.c.bf16 %v8825, %v8817
    %v9818 = vpack.c.bf16 %v8826, %v8818
    %v9819 = vpack.c.bf16 %v8827, %v8819
    %v9820 = vpack.c.bf16 %v8828, %v8820
    %v9821 = vpack.c.bf16 %v8829, %v8821
    %v9822 = vpack.c.bf16 %v8830, %v8822
    %v9823 = vpack.c.bf16 %v8839, %v8831
    %v9824 = vpack.c.bf16 %v8840, %v8832
    %v9825 = vpack.c.bf16 %v8841, %v8833
    %v9826 = vpack.c.bf16 %v8842, %v8834
    %v9827 = vpack.c.bf16 %v8843, %v8835
    %v9828 = vpack.c.bf16 %v8844, %v8836
    %v9829 = vpack.c.bf16 %v8845, %v8837
    %v9830 = vpack.c.bf16 %v8846, %v8838
    %v9831 = vpack.c.bf16 %v8855, %v8847
    %v9832 = vpack.c.bf16 %v8856, %v8848
    %v9833 = vpack.c.bf16 %v8857, %v8849
    %v9834 = vpack.c.bf16 %v8858, %v8850
    %v9835 = vpack.c.bf16 %v8859, %v8851
    %v9836 = vpack.c.bf16 %v8860, %v8852
    %v9837 = vpack.c.bf16 %v8861, %v8853
    %v9838 = vpack.c.bf16 %v8862, %v8854
    %v9839 = vpack.c.bf16 %v8871, %v8863
    %v9840 = vpack.c.bf16 %v8872, %v8864
    %v9841 = vpack.c.bf16 %v8873, %v8865
    %v9842 = vpack.c.bf16 %v8874, %v8866
    %v9843 = vpack.c.bf16 %v8875, %v8867
    %v9844 = vpack.c.bf16 %v8876, %v8868
    %v9845 = vpack.c.bf16 %v8877, %v8869
    %v9846 = vpack.c.bf16 %v8878, %v8870
    %v9847 = vpack.c.bf16 %v8887, %v8879
    %v9848 = vpack.c.bf16 %v8888, %v8880
    %v9849 = vpack.c.bf16 %v8889, %v8881
    %v9850 = vpack.c.bf16 %v8890, %v8882
    %v9851 = vpack.c.bf16 %v8891, %v8883
    %v9852 = vpack.c.bf16 %v8892, %v8884
    %v9853 = vpack.c.bf16 %v8893, %v8885
    %v9854 = vpack.c.bf16 %v8894, %v8886
    %v9855 = vpack.c.bf16 %v8903, %v8895
    %v9856 = vpack.c.bf16 %v8904, %v8896
    %v9857 = vpack.c.bf16 %v8905, %v8897
    %v9858 = vpack.c.bf16 %v8906, %v8898
    %v9859 = vpack.c.bf16 %v8907, %v8899
    %v9860 = vpack.c.bf16 %v8908, %v8900
    %v9861 = vpack.c.bf16 %v8909, %v8901
    %v9862 = vpack.c.bf16 %v8910, %v8902
    %v9863 = vpack.c.bf16 %v8919, %v8911
    %v9864 = vpack.c.bf16 %v8920, %v8912
    %v9865 = vpack.c.bf16 %v8921, %v8913
    %v9866 = vpack.c.bf16 %v8922, %v8914
    %v9867 = vpack.c.bf16 %v8923, %v8915
    %v9868 = vpack.c.bf16 %v8924, %v8916
    %v9869 = vpack.c.bf16 %v8925, %v8917
    %v9870 = vpack.c.bf16 %v8926, %v8918
    %v9871 = vpack.c.bf16 %v8935, %v8927
    %v9872 = vpack.c.bf16 %v8936, %v8928
    %v9873 = vpack.c.bf16 %v8937, %v8929
    %v9874 = vpack.c.bf16 %v8938, %v8930
    %v9875 = vpack.c.bf16 %v8939, %v8931
    %v9876 = vpack.c.bf16 %v8940, %v8932
    %v9877 = vpack.c.bf16 %v8941, %v8933
    %v9878 = vpack.c.bf16 %v8942, %v8934
    %v9879 = vpack.c.bf16 %v8951, %v8943
    %v9880 = vpack.c.bf16 %v8952, %v8944
    %v9881 = vpack.c.bf16 %v8953, %v8945
    %v9882 = vpack.c.bf16 %v8954, %v8946
    %v9883 = vpack.c.bf16 %v8955, %v8947
    %v9884 = vpack.c.bf16 %v8956, %v8948
    %v9885 = vpack.c.bf16 %v8957, %v8949
    %v9886 = vpack.c.bf16 %v8958, %v8950
    %v9887 = vpack.c.bf16 %v8967, %v8959
    %v9888 = vpack.c.bf16 %v8968, %v8960
    %v9889 = vpack.c.bf16 %v8969, %v8961
    %v9890 = vpack.c.bf16 %v8970, %v8962
    %v9891 = vpack.c.bf16 %v8971, %v8963
    %v9892 = vpack.c.bf16 %v8972, %v8964
    %v9893 = vpack.c.bf16 %v8973, %v8965
    %v9894 = vpack.c.bf16 %v8974, %v8966
    %v9895 = vpack.c.bf16 %v8983, %v8975
    %v9896 = vpack.c.bf16 %v8984, %v8976
    %v9897 = vpack.c.bf16 %v8985, %v8977
    %v9898 = vpack.c.bf16 %v8986, %v8978
    %v9899 = vpack.c.bf16 %v8987, %v8979
    %v9900 = vpack.c.bf16 %v8988, %v8980
    %v9901 = vpack.c.bf16 %v8989, %v8981
    %v9902 = vpack.c.bf16 %v8990, %v8982
    %v9903 = vpack.c.bf16 %v8999, %v8991
    %v9904 = vpack.c.bf16 %v9000, %v8992
    %v9905 = vpack.c.bf16 %v9001, %v8993
    %v9906 = vpack.c.bf16 %v9002, %v8994
    %v9907 = vpack.c.bf16 %v9003, %v8995
    %v9908 = vpack.c.bf16 %v9004, %v8996
    %v9909 = vpack.c.bf16 %v9005, %v8997
    %v9910 = vpack.c.bf16 %v9006, %v8998
    %v9911 = vpack.c.bf16 %v9015, %v9007
    %v9912 = vpack.c.bf16 %v9016, %v9008
    %v9913 = vpack.c.bf16 %v9017, %v9009
    %v9914 = vpack.c.bf16 %v9018, %v9010
    %v9915 = vpack.c.bf16 %v9019, %v9011
    %v9916 = vpack.c.bf16 %v9020, %v9012
    %v9917 = vpack.c.bf16 %v9021, %v9013
    %v9918 = vpack.c.bf16 %v9022, %v9014
    %v9919 = vpack.c.bf16 %v9031, %v9023
    %v9920 = vpack.c.bf16 %v9032, %v9024
    %v9921 = vpack.c.bf16 %v9033, %v9025
    %v9922 = vpack.c.bf16 %v9034, %v9026
    %v9923 = vpack.c.bf16 %v9035, %v9027
    %v9924 = vpack.c.bf16 %v9036, %v9028
    %v9925 = vpack.c.bf16 %v9037, %v9029
    %v9926 = vpack.c.bf16 %v9038, %v9030
    %v9927 = vpack.c.bf16 %v9047, %v9039
    %v9928 = vpack.c.bf16 %v9048, %v9040
    %v9929 = vpack.c.bf16 %v9049, %v9041
    %v9930 = vpack.c.bf16 %v9050, %v9042
    %v9931 = vpack.c.bf16 %v9051, %v9043
    %v9932 = vpack.c.bf16 %v9052, %v9044
    %v9933 = vpack.c.bf16 %v9053, %v9045
    %v9934 = vpack.c.bf16 %v9054, %v9046
    %v9935 = vpack.c.bf16 %v9063, %v9055
    %v9936 = vpack.c.bf16 %v9064, %v9056
    %v9937 = vpack.c.bf16 %v9065, %v9057
    %v9938 = vpack.c.bf16 %v9066, %v9058
    %v9939 = vpack.c.bf16 %v9067, %v9059
    %v9940 = vpack.c.bf16 %v9068, %v9060
    %v9941 = vpack.c.bf16 %v9069, %v9061
    %v9942 = vpack.c.bf16 %v9070, %v9062
    %v9943 = vpack.c.bf16 %v9079, %v9071
    %v9944 = vpack.c.bf16 %v9080, %v9072
    %v9945 = vpack.c.bf16 %v9081, %v9073
    %v9946 = vpack.c.bf16 %v9082, %v9074
    %v9947 = vpack.c.bf16 %v9083, %v9075
    %v9948 = vpack.c.bf16 %v9084, %v9076
    %v9949 = vpack.c.bf16 %v9085, %v9077
    %v9950 = vpack.c.bf16 %v9086, %v9078
    %v9951 = vpack.c.bf16 %v9095, %v9087
    %v9952 = vpack.c.bf16 %v9096, %v9088
    %v9953 = vpack.c.bf16 %v9097, %v9089
    %v9954 = vpack.c.bf16 %v9098, %v9090
    %v9955 = vpack.c.bf16 %v9099, %v9091
    %v9956 = vpack.c.bf16 %v9100, %v9092
    %v9957 = vpack.c.bf16 %v9101, %v9093
    %v9958 = vpack.c.bf16 %v9102, %v9094
    %v9959 = vpack.c.bf16 %v9111, %v9103
    %v9960 = vpack.c.bf16 %v9112, %v9104
    %v9961 = vpack.c.bf16 %v9113, %v9105
    %v9962 = vpack.c.bf16 %v9114, %v9106
    %v9963 = vpack.c.bf16 %v9115, %v9107
    %v9964 = vpack.c.bf16 %v9116, %v9108
    %v9965 = vpack.c.bf16 %v9117, %v9109
    %v9966 = vpack.c.bf16 %v9118, %v9110
    %v9967 = vpack.c.bf16 %v9127, %v9119
    %v9968 = vpack.c.bf16 %v9128, %v9120
    %v9969 = vpack.c.bf16 %v9129, %v9121
    %v9970 = vpack.c.bf16 %v9130, %v9122
    %v9971 = vpack.c.bf16 %v9131, %v9123
    %v9972 = vpack.c.bf16 %v9132, %v9124
    %v9973 = vpack.c.bf16 %v9133, %v9125
    %v9974 = vpack.c.bf16 %v9134, %v9126
    %v9975 = vpack.c.bf16 %v9143, %v9135
    %v9976 = vpack.c.bf16 %v9144, %v9136
    %v9977 = vpack.c.bf16 %v9145, %v9137
    %v9978 = vpack.c.bf16 %v9146, %v9138
    %v9979 = vpack.c.bf16 %v9147, %v9139
    %v9980 = vpack.c.bf16 %v9148, %v9140
    %v9981 = vpack.c.bf16 %v9149, %v9141
    %v9982 = vpack.c.bf16 %v9150, %v9142
    %v9983 = vpack.c.bf16 %v9159, %v9151
    %v9984 = vpack.c.bf16 %v9160, %v9152
    %v9985 = vpack.c.bf16 %v9161, %v9153
    %v9986 = vpack.c.bf16 %v9162, %v9154
    %v9987 = vpack.c.bf16 %v9163, %v9155
    %v9988 = vpack.c.bf16 %v9164, %v9156
    %v9989 = vpack.c.bf16 %v9165, %v9157
    %v9990 = vpack.c.bf16 %v9166, %v9158
    %v9991 = vpack.c.bf16 %v9175, %v9167
    %v9992 = vpack.c.bf16 %v9176, %v9168
    %v9993 = vpack.c.bf16 %v9177, %v9169
    %v9994 = vpack.c.bf16 %v9178, %v9170
    %v9995 = vpack.c.bf16 %v9179, %v9171
    %v9996 = vpack.c.bf16 %v9180, %v9172
    %v9997 = vpack.c.bf16 %v9181, %v9173
    %v9998 = vpack.c.bf16 %v9182, %v9174
    %v9999 = vpack.c.bf16 %v9191, %v9183
    %v10000 = vpack.c.bf16 %v9192, %v9184
    %v10001 = vpack.c.bf16 %v9193, %v9185
    %v10002 = vpack.c.bf16 %v9194, %v9186
    %v10003 = vpack.c.bf16 %v9195, %v9187
    %v10004 = vpack.c.bf16 %v9196, %v9188
    %v10005 = vpack.c.bf16 %v9197, %v9189
    %v10006 = vpack.c.bf16 %v9198, %v9190
    %v10007 = vpack.c.bf16 %v9207, %v9199
    %v10008 = vpack.c.bf16 %v9208, %v9200
    %v10009 = vpack.c.bf16 %v9209, %v9201
    %v10010 = vpack.c.bf16 %v9210, %v9202
    %v10011 = vpack.c.bf16 %v9211, %v9203
    %v10012 = vpack.c.bf16 %v9212, %v9204
    %v10013 = vpack.c.bf16 %v9213, %v9205
    %v10014 = vpack.c.bf16 %v9214, %v9206
    %v10015 = vpack.c.bf16 %v9223, %v9215
    %v10016 = vpack.c.bf16 %v9224, %v9216
    %v10017 = vpack.c.bf16 %v9225, %v9217
    %v10018 = vpack.c.bf16 %v9226, %v9218
    %v10019 = vpack.c.bf16 %v9227, %v9219
    %v10020 = vpack.c.bf16 %v9228, %v9220
    %v10021 = vpack.c.bf16 %v9229, %v9221
    %v10022 = vpack.c.bf16 %v9230, %v9222
    %v10023 = vpack.c.bf16 %v9239, %v9231
    %v10024 = vpack.c.bf16 %v9240, %v9232
    %v10025 = vpack.c.bf16 %v9241, %v9233
    %v10026 = vpack.c.bf16 %v9242, %v9234
    %v10027 = vpack.c.bf16 %v9243, %v9235
    %v10028 = vpack.c.bf16 %v9244, %v9236
    %v10029 = vpack.c.bf16 %v9245, %v9237
    %v10030 = vpack.c.bf16 %v9246, %v9238
    %v10031 = vpack.c.bf16 %v9255, %v9247
    %v10032 = vpack.c.bf16 %v9256, %v9248
    %v10033 = vpack.c.bf16 %v9257, %v9249
    %v10034 = vpack.c.bf16 %v9258, %v9250
    %v10035 = vpack.c.bf16 %v9259, %v9251
    %v10036 = vpack.c.bf16 %v9260, %v9252
    %v10037 = vpack.c.bf16 %v9261, %v9253
    %v10038 = vpack.c.bf16 %v9262, %v9254
    %v10039 = vpack.c.bf16 %v9271, %v9263
    %v10040 = vpack.c.bf16 %v9272, %v9264
    %v10041 = vpack.c.bf16 %v9273, %v9265
    %v10042 = vpack.c.bf16 %v9274, %v9266
    %v10043 = vpack.c.bf16 %v9275, %v9267
    %v10044 = vpack.c.bf16 %v9276, %v9268
    %v10045 = vpack.c.bf16 %v9277, %v9269
    %v10046 = vpack.c.bf16 %v9278, %v9270
    %v10047 = vpack.c.bf16 %v9287, %v9279
    %v10048 = vpack.c.bf16 %v9288, %v9280
    %v10049 = vpack.c.bf16 %v9289, %v9281
    %v10050 = vpack.c.bf16 %v9290, %v9282
    %v10051 = vpack.c.bf16 %v9291, %v9283
    %v10052 = vpack.c.bf16 %v9292, %v9284
    %v10053 = vpack.c.bf16 %v9293, %v9285
    %v10054 = vpack.c.bf16 %v9294, %v9286
    %v10055 = vpack.c.bf16 %v9303, %v9295
    %v10056 = vpack.c.bf16 %v9304, %v9296
    %v10057 = vpack.c.bf16 %v9305, %v9297
    %v10058 = vpack.c.bf16 %v9306, %v9298
    %v10059 = vpack.c.bf16 %v9307, %v9299
    %v10060 = vpack.c.bf16 %v9308, %v9300
    %v10061 = vpack.c.bf16 %v9309, %v9301
    %v10062 = vpack.c.bf16 %v9310, %v9302
    %v10063 = vpack.c.bf16 %v9319, %v9311
    %v10064 = vpack.c.bf16 %v9320, %v9312
    %v10065 = vpack.c.bf16 %v9321, %v9313
    %v10066 = vpack.c.bf16 %v9322, %v9314
    %v10067 = vpack.c.bf16 %v9323, %v9315
    %v10068 = vpack.c.bf16 %v9324, %v9316
    %v10069 = vpack.c.bf16 %v9325, %v9317
    %v10070 = vpack.c.bf16 %v9326, %v9318
    %v10071 = vpack.c.bf16 %v9335, %v9327
    %v10072 = vpack.c.bf16 %v9336, %v9328
    %v10073 = vpack.c.bf16 %v9337, %v9329
    %v10074 = vpack.c.bf16 %v9338, %v9330
    %v10075 = vpack.c.bf16 %v9339, %v9331
    %v10076 = vpack.c.bf16 %v9340, %v9332
    %v10077 = vpack.c.bf16 %v9341, %v9333
    %v10078 = vpack.c.bf16 %v9342, %v9334
    %v10079 = vpack.c.bf16 %v9351, %v9343
    %v10080 = vpack.c.bf16 %v9352, %v9344
    %v10081 = vpack.c.bf16 %v9353, %v9345
    %v10082 = vpack.c.bf16 %v9354, %v9346
    %v10083 = vpack.c.bf16 %v9355, %v9347
    %v10084 = vpack.c.bf16 %v9356, %v9348
    %v10085 = vpack.c.bf16 %v9357, %v9349
    %v10086 = vpack.c.bf16 %v9358, %v9350
    %v10087 = vpack.c.bf16 %v9367, %v9359
    %v10088 = vpack.c.bf16 %v9368, %v9360
    %v10089 = vpack.c.bf16 %v9369, %v9361
    %v10090 = vpack.c.bf16 %v9370, %v9362
    %v10091 = vpack.c.bf16 %v9371, %v9363
    %v10092 = vpack.c.bf16 %v9372, %v9364
    %v10093 = vpack.c.bf16 %v9373, %v9365
    %v10094 = vpack.c.bf16 %v9374, %v9366
    %v10095 = vpack.c.bf16 %v9383, %v9375
    %v10096 = vpack.c.bf16 %v9384, %v9376
    %v10097 = vpack.c.bf16 %v9385, %v9377
    %v10098 = vpack.c.bf16 %v9386, %v9378
    %v10099 = vpack.c.bf16 %v9387, %v9379
    %v10100 = vpack.c.bf16 %v9388, %v9380
    %v10101 = vpack.c.bf16 %v9389, %v9381
    %v10102 = vpack.c.bf16 %v9390, %v9382
    %v10103 = vpack.c.bf16 %v9399, %v9391
    %v10104 = vpack.c.bf16 %v9400, %v9392
    %v10105 = vpack.c.bf16 %v9401, %v9393
    %v10106 = vpack.c.bf16 %v9402, %v9394
    %v10107 = vpack.c.bf16 %v9403, %v9395
    %v10108 = vpack.c.bf16 %v9404, %v9396
    %v10109 = vpack.c.bf16 %v9405, %v9397
    %v10110 = vpack.c.bf16 %v9406, %v9398
    %v10111 = vpack.c.bf16 %v9415, %v9407
    %v10112 = vpack.c.bf16 %v9416, %v9408
    %v10113 = vpack.c.bf16 %v9417, %v9409
    %v10114 = vpack.c.bf16 %v9418, %v9410
    %v10115 = vpack.c.bf16 %v9419, %v9411
    %v10116 = vpack.c.bf16 %v9420, %v9412
    %v10117 = vpack.c.bf16 %v9421, %v9413
    %v10118 = vpack.c.bf16 %v9422, %v9414
    %v10119 = vpack.c.bf16 %v9431, %v9423
    %v10120 = vpack.c.bf16 %v9432, %v9424
    %v10121 = vpack.c.bf16 %v9433, %v9425
    %v10122 = vpack.c.bf16 %v9434, %v9426
    %v10123 = vpack.c.bf16 %v9435, %v9427
    %v10124 = vpack.c.bf16 %v9436, %v9428
    %v10125 = vpack.c.bf16 %v9437, %v9429
    %v10126 = vpack.c.bf16 %v9438, %v9430
    %v10127 = vpack.c.bf16 %v9447, %v9439
    %v10128 = vpack.c.bf16 %v9448, %v9440
    %v10129 = vpack.c.bf16 %v9449, %v9441
    %v10130 = vpack.c.bf16 %v9450, %v9442
    %v10131 = vpack.c.bf16 %v9451, %v9443
    %v10132 = vpack.c.bf16 %v9452, %v9444
    %v10133 = vpack.c.bf16 %v9453, %v9445
    %v10134 = vpack.c.bf16 %v9454, %v9446
    %v10135 = vpack.c.bf16 %v9463, %v9455
    %v10136 = vpack.c.bf16 %v9464, %v9456
    %v10137 = vpack.c.bf16 %v9465, %v9457
    %v10138 = vpack.c.bf16 %v9466, %v9458
    %v10139 = vpack.c.bf16 %v9467, %v9459
    %v10140 = vpack.c.bf16 %v9468, %v9460
    %v10141 = vpack.c.bf16 %v9469, %v9461
    %v10142 = vpack.c.bf16 %v9470, %v9462
    %v10143 = vpack.c.bf16 %v9479, %v9471
    %v10144 = vpack.c.bf16 %v9480, %v9472
    %v10145 = vpack.c.bf16 %v9481, %v9473
    %v10146 = vpack.c.bf16 %v9482, %v9474
    %v10147 = vpack.c.bf16 %v9483, %v9475
    %v10148 = vpack.c.bf16 %v9484, %v9476
    %v10149 = vpack.c.bf16 %v9485, %v9477
    %v10150 = vpack.c.bf16 %v9486, %v9478
    %v10151 = vpack.c.bf16 %v9495, %v9487
    %v10152 = vpack.c.bf16 %v9496, %v9488
    %v10153 = vpack.c.bf16 %v9497, %v9489
    %v10154 = vpack.c.bf16 %v9498, %v9490
    %v10155 = vpack.c.bf16 %v9499, %v9491
    %v10156 = vpack.c.bf16 %v9500, %v9492
    %v10157 = vpack.c.bf16 %v9501, %v9493
    %v10158 = vpack.c.bf16 %v9502, %v9494
    %v10159 = vpack.c.bf16 %v9511, %v9503
    %v10160 = vpack.c.bf16 %v9512, %v9504
    %v10161 = vpack.c.bf16 %v9513, %v9505
    %v10162 = vpack.c.bf16 %v9514, %v9506
    %v10163 = vpack.c.bf16 %v9515, %v9507
    %v10164 = vpack.c.bf16 %v9516, %v9508
    %v10165 = vpack.c.bf16 %v9517, %v9509
    %v10166 = vpack.c.bf16 %v9518, %v9510
    %v10167 = vpack.c.bf16 %v9527, %v9519
    %v10168 = vpack.c.bf16 %v9528, %v9520
    %v10169 = vpack.c.bf16 %v9529, %v9521
    %v10170 = vpack.c.bf16 %v9530, %v9522
    %v10171 = vpack.c.bf16 %v9531, %v9523
    %v10172 = vpack.c.bf16 %v9532, %v9524
    %v10173 = vpack.c.bf16 %v9533, %v9525
    %v10174 = vpack.c.bf16 %v9534, %v9526
    %v10175 = vpack.c.bf16 %v9543, %v9535
    %v10176 = vpack.c.bf16 %v9544, %v9536
    %v10177 = vpack.c.bf16 %v9545, %v9537
    %v10178 = vpack.c.bf16 %v9546, %v9538
    %v10179 = vpack.c.bf16 %v9547, %v9539
    %v10180 = vpack.c.bf16 %v9548, %v9540
    %v10181 = vpack.c.bf16 %v9549, %v9541
    %v10182 = vpack.c.bf16 %v9550, %v9542
    %v10183 = vpack.c.bf16 %v9559, %v9551
    %v10184 = vpack.c.bf16 %v9560, %v9552
    %v10185 = vpack.c.bf16 %v9561, %v9553
    %v10186 = vpack.c.bf16 %v9562, %v9554
    %v10187 = vpack.c.bf16 %v9563, %v9555
    %v10188 = vpack.c.bf16 %v9564, %v9556
    %v10189 = vpack.c.bf16 %v9565, %v9557
    %v10190 = vpack.c.bf16 %v9566, %v9558
    %v10191 = vpack.c.bf16 %v9575, %v9567
    %v10192 = vpack.c.bf16 %v9576, %v9568
    %v10193 = vpack.c.bf16 %v9577, %v9569
    %v10194 = vpack.c.bf16 %v9578, %v9570
    %v10195 = vpack.c.bf16 %v9579, %v9571
    %v10196 = vpack.c.bf16 %v9580, %v9572
    %v10197 = vpack.c.bf16 %v9581, %v9573
    %v10198 = vpack.c.bf16 %v9582, %v9574
    %v10199 = vpack.c.bf16 %v9591, %v9583
    %v10200 = vpack.c.bf16 %v9592, %v9584
    %v10201 = vpack.c.bf16 %v9593, %v9585
    %v10202 = vpack.c.bf16 %v9594, %v9586
    %v10203 = vpack.c.bf16 %v9595, %v9587
    %v10204 = vpack.c.bf16 %v9596, %v9588
    %v10205 = vpack.c.bf16 %v9597, %v9589
    %v10206 = vpack.c.bf16 %v9598, %v9590
    %v10207 = vpack.c.bf16 %v9607, %v9599
    %v10208 = vpack.c.bf16 %v9608, %v9600
    %v10209 = vpack.c.bf16 %v9609, %v9601
    %v10210 = vpack.c.bf16 %v9610, %v9602
    %v10211 = vpack.c.bf16 %v9611, %v9603
    %v10212 = vpack.c.bf16 %v9612, %v9604
    %v10213 = vpack.c.bf16 %v9613, %v9605
    %v10214 = vpack.c.bf16 %v9614, %v9606
    %v10215 = vpack.c.bf16 %v9623, %v9615
    %v10216 = vpack.c.bf16 %v9624, %v9616
    %v10217 = vpack.c.bf16 %v9625, %v9617
    %v10218 = vpack.c.bf16 %v9626, %v9618
    %v10219 = vpack.c.bf16 %v9627, %v9619
    %v10220 = vpack.c.bf16 %v9628, %v9620
    %v10221 = vpack.c.bf16 %v9629, %v9621
    %v10222 = vpack.c.bf16 %v9630, %v9622
    %v10223 = vpack.c.bf16 %v9639, %v9631
    %v10224 = vpack.c.bf16 %v9640, %v9632
    %v10225 = vpack.c.bf16 %v9641, %v9633
    %v10226 = vpack.c.bf16 %v9642, %v9634
    %v10227 = vpack.c.bf16 %v9643, %v9635
    %v10228 = vpack.c.bf16 %v9644, %v9636
    %v10229 = vpack.c.bf16 %v9645, %v9637
    %v10230 = vpack.c.bf16 %v9646, %v9638
    %v10231 = vpack.c.bf16 %v9655, %v9647
    %v10232 = vpack.c.bf16 %v9656, %v9648
    %v10233 = vpack.c.bf16 %v9657, %v9649
    %v10234 = vpack.c.bf16 %v9658, %v9650
    %v10235 = vpack.c.bf16 %v9659, %v9651
    %v10236 = vpack.c.bf16 %v9660, %v9652
    %v10237 = vpack.c.bf16 %v9661, %v9653
    %v10238 = vpack.c.bf16 %v9662, %v9654
    %v10239 = vpack.c.bf16 %v9671, %v9663
    %v10240 = vpack.c.bf16 %v9672, %v9664
    %v10241 = vpack.c.bf16 %v9673, %v9665
    %v10242 = vpack.c.bf16 %v9674, %v9666
    %v10243 = vpack.c.bf16 %v9675, %v9667
    %v10244 = vpack.c.bf16 %v9676, %v9668
    %v10245 = vpack.c.bf16 %v9677, %v9669
    %v10246 = vpack.c.bf16 %v9678, %v9670
    %v10247 = vpack.c.bf16 %v9687, %v9679
    %v10248 = vpack.c.bf16 %v9688, %v9680
    %v10249 = vpack.c.bf16 %v9689, %v9681
    %v10250 = vpack.c.bf16 %v9690, %v9682
    %v10251 = vpack.c.bf16 %v9691, %v9683
    %v10252 = vpack.c.bf16 %v9692, %v9684
    %v10253 = vpack.c.bf16 %v9693, %v9685
    %v10254 = vpack.c.bf16 %v9694, %v9686
    %v10255 = vpack.c.bf16 %v9703, %v9695
    %v10256 = vpack.c.bf16 %v9704, %v9696
    %v10257 = vpack.c.bf16 %v9705, %v9697
    %v10258 = vpack.c.bf16 %v9706, %v9698
    %v10259 = vpack.c.bf16 %v9707, %v9699
    %v10260 = vpack.c.bf16 %v9708, %v9700
    %v10261 = vpack.c.bf16 %v9709, %v9701
    %v10262 = vpack.c.bf16 %v9710, %v9702
    %v10263 = vpack.c.bf16 %v9719, %v9711
    %v10264 = vpack.c.bf16 %v9720, %v9712
    %v10265 = vpack.c.bf16 %v9721, %v9713
    %v10266 = vpack.c.bf16 %v9722, %v9714
    %v10267 = vpack.c.bf16 %v9723, %v9715
    %v10268 = vpack.c.bf16 %v9724, %v9716
    %v10269 = vpack.c.bf16 %v9725, %v9717
    %v10270 = vpack.c.bf16 %v9726, %v9718
    %v10271 = vpack.c.bf16 %v9735, %v9727
    %v10272 = vpack.c.bf16 %v9736, %v9728
    %v10273 = vpack.c.bf16 %v9737, %v9729
    %v10274 = vpack.c.bf16 %v9738, %v9730
    %v10275 = vpack.c.bf16 %v9739, %v9731
    %v10276 = vpack.c.bf16 %v9740, %v9732
    %v10277 = vpack.c.bf16 %v9741, %v9733
    %v10278 = vpack.c.bf16 %v9742, %v9734
    %v10279 = vpack.c.bf16 %v9751, %v9743
    %v10280 = vpack.c.bf16 %v9752, %v9744
    %v10281 = vpack.c.bf16 %v9753, %v9745
    %v10282 = vpack.c.bf16 %v9754, %v9746
    %v10283 = vpack.c.bf16 %v9755, %v9747
    %v10284 = vpack.c.bf16 %v9756, %v9748
    %v10285 = vpack.c.bf16 %v9757, %v9749
    %v10286 = vpack.c.bf16 %v9758, %v9750
    %v10287 = vpack.c.bf16 %v9767, %v9759
    %v10288 = vpack.c.bf16 %v9768, %v9760
    %v10289 = vpack.c.bf16 %v9769, %v9761
    %v10290 = vpack.c.bf16 %v9770, %v9762
    %v10291 = vpack.c.bf16 %v9771, %v9763
    %v10292 = vpack.c.bf16 %v9772, %v9764
    %v10293 = vpack.c.bf16 %v9773, %v9765
    %v10294 = vpack.c.bf16 %v9774, %v9766
    %v10295 = vpack.c.bf16 %v9783, %v9775
    %v10296 = vpack.c.bf16 %v9784, %v9776
    %v10297 = vpack.c.bf16 %v9785, %v9777
    %v10298 = vpack.c.bf16 %v9786, %v9778
    %v10299 = vpack.c.bf16 %v9787, %v9779
    %v10300 = vpack.c.bf16 %v9788, %v9780
    %v10301 = vpack.c.bf16 %v9789, %v9781
    %v10302 = vpack.c.bf16 %v9790, %v9782
    %v10303 = vpack.c.bf16 %v7479, %v7479
    %v10304 = vpack.c.bf16 %v7480, %v7480
    %v10305 = vpack.c.bf16 %v7481, %v7481
    %v10306 = vpack.c.bf16 %v7482, %v7482
    %v10307 = vpack.c.bf16 %v7483, %v7483
    %v10308 = vpack.c.bf16 %v7484, %v7484
    %v10309 = vpack.c.bf16 %v7485, %v7485
    %v10310 = vpack.c.bf16 %v7486, %v7486
    %10311 = vmatpush.bf16.msra.mxu0 %v9847
    %10312 = vmatpush.bf16.msra.mxu0 %v9839
    %10313 = vmatpush.bf16.msra.mxu0 %v9831
    %10314 = vmatpush.bf16.msra.mxu0 %v9823
    %10315 = vmatpush.bf16.msra.mxu0 %v9815
    %10316 = vmatpush.bf16.msra.mxu0 %v9807
    %10317 = vmatpush.bf16.msra.mxu0 %v9799
    %10318 = vmatpush.bf16.msra.mxu0 %v9791
    %10319 = vmatmul.bf16.gmra.mxu0 %v10303
    %v10320 = vpop.f32.mrf.mxu0
    %v10321 = vadd.f32 0.0, %v10320
    %v10322 = vpop.f32.mrf.mxu0
    %10323 = vdwg.mxu0
    %10324 = vmatpush.bf16.msra.mxu0 %v9911
    %10325 = vmatpush.bf16.msra.mxu0 %v9903
    %10326 = vmatpush.bf16.msra.mxu0 %v9895
    %10327 = vmatpush.bf16.msra.mxu0 %v9887
    %10328 = vmatpush.bf16.msra.mxu0 %v9879
    %10329 = vmatpush.bf16.msra.mxu0 %v9871
    %10330 = vmatpush.bf16.msra.mxu0 %v9863
    %10331 = vmatpush.bf16.msra.mxu0 %v9855
    %10332 = vmatmul.bf16.gmra.mxu0 %v10304
    %v10333 = vpop.f32.mrf.mxu0
    %v10334 = vadd.f32 %v10321, %v10333
    %v10335 = vpop.f32.mrf.mxu0
    %10336 = vdwg.mxu0
    %10337 = vmatpush.bf16.msra.mxu0 %v9975
    %10338 = vmatpush.bf16.msra.mxu0 %v9967
    %10339 = vmatpush.bf16.msra.mxu0 %v9959
    %10340 = vmatpush.bf16.msra.mxu0 %v9951
    %10341 = vmatpush.bf16.msra.mxu0 %v9943
    %10342 = vmatpush.bf16.msra.mxu0 %v9935
    %10343 = vmatpush.bf16.msra.mxu0 %v9927
    %10344 = vmatpush.bf16.msra.mxu0 %v9919
    %10345 = vmatmul.bf16.gmra.mxu0 %v10305
    %v10346 = vpop.f32.mrf.mxu0
    %v10347 = vadd.f32 %v10334, %v10346
    %v10348 = vpop.f32.mrf.mxu0
    %10349 = vdwg.mxu0
    %10350 = vmatpush.bf16.msra.mxu0 %v10039
    %10351 = vmatpush.bf16.msra.mxu0 %v10031
    %10352 = vmatpush.bf16.msra.mxu0 %v10023
    %10353 = vmatpush.bf16.msra.mxu0 %v10015
    %10354 = vmatpush.bf16.msra.mxu0 %v10007
    %10355 = vmatpush.bf16.msra.mxu0 %v9999
    %10356 = vmatpush.bf16.msra.mxu0 %v9991
    %10357 = vmatpush.bf16.msra.mxu0 %v9983
    %10358 = vmatmul.bf16.gmra.mxu0 %v10306
    %v10359 = vpop.f32.mrf.mxu0
    %v10360 = vadd.f32 %v10347, %v10359
    %v10361 = vpop.f32.mrf.mxu0
    %10362 = vdwg.mxu0
    %10363 = vmatpush.bf16.msra.mxu0 %v10103
    %10364 = vmatpush.bf16.msra.mxu0 %v10095
    %10365 = vmatpush.bf16.msra.mxu0 %v10087
    %10366 = vmatpush.bf16.msra.mxu0 %v10079
    %10367 = vmatpush.bf16.msra.mxu0 %v10071
    %10368 = vmatpush.bf16.msra.mxu0 %v10063
    %10369 = vmatpush.bf16.msra.mxu0 %v10055
    %10370 = vmatpush.bf16.msra.mxu0 %v10047
    %10371 = vmatmul.bf16.gmra.mxu0 %v10307
    %v10372 = vpop.f32.mrf.mxu0
    %v10373 = vadd.f32 %v10360, %v10372
    %v10374 = vpop.f32.mrf.mxu0
    %10375 = vdwg.mxu0
    %10376 = vmatpush.bf16.msra.mxu0 %v10167
    %10377 = vmatpush.bf16.msra.mxu0 %v10159
    %10378 = vmatpush.bf16.msra.mxu0 %v10151
    %10379 = vmatpush.bf16.msra.mxu0 %v10143
    %10380 = vmatpush.bf16.msra.mxu0 %v10135
    %10381 = vmatpush.bf16.msra.mxu0 %v10127
    %10382 = vmatpush.bf16.msra.mxu0 %v10119
    %10383 = vmatpush.bf16.msra.mxu0 %v10111
    %10384 = vmatmul.bf16.gmra.mxu0 %v10308
    %v10385 = vpop.f32.mrf.mxu0
    %v10386 = vadd.f32 %v10373, %v10385
    %v10387 = vpop.f32.mrf.mxu0
    %10388 = vdwg.mxu0
    %10389 = vmatpush.bf16.msra.mxu0 %v10231
    %10390 = vmatpush.bf16.msra.mxu0 %v10223
    %10391 = vmatpush.bf16.msra.mxu0 %v10215
    %10392 = vmatpush.bf16.msra.mxu0 %v10207
    %10393 = vmatpush.bf16.msra.mxu0 %v10199
    %10394 = vmatpush.bf16.msra.mxu0 %v10191
    %10395 = vmatpush.bf16.msra.mxu0 %v10183
    %10396 = vmatpush.bf16.msra.mxu0 %v10175
    %10397 = vmatmul.bf16.gmra.mxu0 %v10309
    %v10398 = vpop.f32.mrf.mxu0
    %v10399 = vadd.f32 %v10386, %v10398
    %v10400 = vpop.f32.mrf.mxu0
    %10401 = vdwg.mxu0
    %10402 = vmatpush.bf16.msra.mxu0 %v10295
    %10403 = vmatpush.bf16.msra.mxu0 %v10287
    %10404 = vmatpush.bf16.msra.mxu0 %v10279
    %10405 = vmatpush.bf16.msra.mxu0 %v10271
    %10406 = vmatpush.bf16.msra.mxu0 %v10263
    %10407 = vmatpush.bf16.msra.mxu0 %v10255
    %10408 = vmatpush.bf16.msra.mxu0 %v10247
    %10409 = vmatpush.bf16.msra.mxu0 %v10239
    %10410 = vmatmul.bf16.gmra.mxu0 %v10310
    %v10411 = vpop.f32.mrf.mxu0
    %v10412 = vadd.f32 %v10399, %v10411
    %v10413 = vpop.f32.mrf.mxu0
    %10414 = vdwg.mxu0
    %10415 = vmatpush.bf16.msra.mxu0 %v9848
    %10416 = vmatpush.bf16.msra.mxu0 %v9840
    %10417 = vmatpush.bf16.msra.mxu0 %v9832
    %10418 = vmatpush.bf16.msra.mxu0 %v9824
    %10419 = vmatpush.bf16.msra.mxu0 %v9816
    %10420 = vmatpush.bf16.msra.mxu0 %v9808
    %10421 = vmatpush.bf16.msra.mxu0 %v9800
    %10422 = vmatpush.bf16.msra.mxu0 %v9792
    %10423 = vmatmul.bf16.gmra.mxu0 %v10303
    %v10424 = vpop.f32.mrf.mxu0
    %v10425 = vadd.f32 0.0, %v10424
    %v10426 = vpop.f32.mrf.mxu0
    %10427 = vdwg.mxu0
    %10428 = vmatpush.bf16.msra.mxu0 %v9912
    %10429 = vmatpush.bf16.msra.mxu0 %v9904
    %10430 = vmatpush.bf16.msra.mxu0 %v9896
    %10431 = vmatpush.bf16.msra.mxu0 %v9888
    %10432 = vmatpush.bf16.msra.mxu0 %v9880
    %10433 = vmatpush.bf16.msra.mxu0 %v9872
    %10434 = vmatpush.bf16.msra.mxu0 %v9864
    %10435 = vmatpush.bf16.msra.mxu0 %v9856
    %10436 = vmatmul.bf16.gmra.mxu0 %v10304
    %v10437 = vpop.f32.mrf.mxu0
    %v10438 = vadd.f32 %v10425, %v10437
    %v10439 = vpop.f32.mrf.mxu0
    %10440 = vdwg.mxu0
    %10441 = vmatpush.bf16.msra.mxu0 %v9976
    %10442 = vmatpush.bf16.msra.mxu0 %v9968
    %10443 = vmatpush.bf16.msra.mxu0 %v9960
    %10444 = vmatpush.bf16.msra.mxu0 %v9952
    %10445 = vmatpush.bf16.msra.mxu0 %v9944
    %10446 = vmatpush.bf16.msra.mxu0 %v9936
    %10447 = vmatpush.bf16.msra.mxu0 %v9928
    %10448 = vmatpush.bf16.msra.mxu0 %v9920
    %10449 = vmatmul.bf16.gmra.mxu0 %v10305
    %v10450 = vpop.f32.mrf.mxu0
    %v10451 = vadd.f32 %v10438, %v10450
    %v10452 = vpop.f32.mrf.mxu0
    %10453 = vdwg.mxu0
    %10454 = vmatpush.bf16.msra.mxu0 %v10040
    %10455 = vmatpush.bf16.msra.mxu0 %v10032
    %10456 = vmatpush.bf16.msra.mxu0 %v10024
    %10457 = vmatpush.bf16.msra.mxu0 %v10016
    %10458 = vmatpush.bf16.msra.mxu0 %v10008
    %10459 = vmatpush.bf16.msra.mxu0 %v10000
    %10460 = vmatpush.bf16.msra.mxu0 %v9992
    %10461 = vmatpush.bf16.msra.mxu0 %v9984
    %10462 = vmatmul.bf16.gmra.mxu0 %v10306
    %v10463 = vpop.f32.mrf.mxu0
    %v10464 = vadd.f32 %v10451, %v10463
    %v10465 = vpop.f32.mrf.mxu0
    %10466 = vdwg.mxu0
    %10467 = vmatpush.bf16.msra.mxu0 %v10104
    %10468 = vmatpush.bf16.msra.mxu0 %v10096
    %10469 = vmatpush.bf16.msra.mxu0 %v10088
    %10470 = vmatpush.bf16.msra.mxu0 %v10080
    %10471 = vmatpush.bf16.msra.mxu0 %v10072
    %10472 = vmatpush.bf16.msra.mxu0 %v10064
    %10473 = vmatpush.bf16.msra.mxu0 %v10056
    %10474 = vmatpush.bf16.msra.mxu0 %v10048
    %10475 = vmatmul.bf16.gmra.mxu0 %v10307
    %v10476 = vpop.f32.mrf.mxu0
    %v10477 = vadd.f32 %v10464, %v10476
    %v10478 = vpop.f32.mrf.mxu0
    %10479 = vdwg.mxu0
    %10480 = vmatpush.bf16.msra.mxu0 %v10168
    %10481 = vmatpush.bf16.msra.mxu0 %v10160
    %10482 = vmatpush.bf16.msra.mxu0 %v10152
    %10483 = vmatpush.bf16.msra.mxu0 %v10144
    %10484 = vmatpush.bf16.msra.mxu0 %v10136
    %10485 = vmatpush.bf16.msra.mxu0 %v10128
    %10486 = vmatpush.bf16.msra.mxu0 %v10120
    %10487 = vmatpush.bf16.msra.mxu0 %v10112
    %10488 = vmatmul.bf16.gmra.mxu0 %v10308
    %v10489 = vpop.f32.mrf.mxu0
    %v10490 = vadd.f32 %v10477, %v10489
    %v10491 = vpop.f32.mrf.mxu0
    %10492 = vdwg.mxu0
    %10493 = vmatpush.bf16.msra.mxu0 %v10232
    %10494 = vmatpush.bf16.msra.mxu0 %v10224
    %10495 = vmatpush.bf16.msra.mxu0 %v10216
    %10496 = vmatpush.bf16.msra.mxu0 %v10208
    %10497 = vmatpush.bf16.msra.mxu0 %v10200
    %10498 = vmatpush.bf16.msra.mxu0 %v10192
    %10499 = vmatpush.bf16.msra.mxu0 %v10184
    %10500 = vmatpush.bf16.msra.mxu0 %v10176
    %10501 = vmatmul.bf16.gmra.mxu0 %v10309
    %v10502 = vpop.f32.mrf.mxu0
    %v10503 = vadd.f32 %v10490, %v10502
    %v10504 = vpop.f32.mrf.mxu0
    %10505 = vdwg.mxu0
    %10506 = vmatpush.bf16.msra.mxu0 %v10296
    %10507 = vmatpush.bf16.msra.mxu0 %v10288
    %10508 = vmatpush.bf16.msra.mxu0 %v10280
    %10509 = vmatpush.bf16.msra.mxu0 %v10272
    %10510 = vmatpush.bf16.msra.mxu0 %v10264
    %10511 = vmatpush.bf16.msra.mxu0 %v10256
    %10512 = vmatpush.bf16.msra.mxu0 %v10248
    %10513 = vmatpush.bf16.msra.mxu0 %v10240
    %10514 = vmatmul.bf16.gmra.mxu0 %v10310
    %v10515 = vpop.f32.mrf.mxu0
    %v10516 = vadd.f32 %v10503, %v10515
    %v10517 = vpop.f32.mrf.mxu0
    %10518 = vdwg.mxu0
    %10519 = vmatpush.bf16.msra.mxu0 %v9849
    %10520 = vmatpush.bf16.msra.mxu0 %v9841
    %10521 = vmatpush.bf16.msra.mxu0 %v9833
    %10522 = vmatpush.bf16.msra.mxu0 %v9825
    %10523 = vmatpush.bf16.msra.mxu0 %v9817
    %10524 = vmatpush.bf16.msra.mxu0 %v9809
    %10525 = vmatpush.bf16.msra.mxu0 %v9801
    %10526 = vmatpush.bf16.msra.mxu0 %v9793
    %10527 = vmatmul.bf16.gmra.mxu0 %v10303
    %v10528 = vpop.f32.mrf.mxu0
    %v10529 = vadd.f32 0.0, %v10528
    %v10530 = vpop.f32.mrf.mxu0
    %10531 = vdwg.mxu0
    %10532 = vmatpush.bf16.msra.mxu0 %v9913
    %10533 = vmatpush.bf16.msra.mxu0 %v9905
    %10534 = vmatpush.bf16.msra.mxu0 %v9897
    %10535 = vmatpush.bf16.msra.mxu0 %v9889
    %10536 = vmatpush.bf16.msra.mxu0 %v9881
    %10537 = vmatpush.bf16.msra.mxu0 %v9873
    %10538 = vmatpush.bf16.msra.mxu0 %v9865
    %10539 = vmatpush.bf16.msra.mxu0 %v9857
    %10540 = vmatmul.bf16.gmra.mxu0 %v10304
    %v10541 = vpop.f32.mrf.mxu0
    %v10542 = vadd.f32 %v10529, %v10541
    %v10543 = vpop.f32.mrf.mxu0
    %10544 = vdwg.mxu0
    %10545 = vmatpush.bf16.msra.mxu0 %v9977
    %10546 = vmatpush.bf16.msra.mxu0 %v9969
    %10547 = vmatpush.bf16.msra.mxu0 %v9961
    %10548 = vmatpush.bf16.msra.mxu0 %v9953
    %10549 = vmatpush.bf16.msra.mxu0 %v9945
    %10550 = vmatpush.bf16.msra.mxu0 %v9937
    %10551 = vmatpush.bf16.msra.mxu0 %v9929
    %10552 = vmatpush.bf16.msra.mxu0 %v9921
    %10553 = vmatmul.bf16.gmra.mxu0 %v10305
    %v10554 = vpop.f32.mrf.mxu0
    %v10555 = vadd.f32 %v10542, %v10554
    %v10556 = vpop.f32.mrf.mxu0
    %10557 = vdwg.mxu0
    %10558 = vmatpush.bf16.msra.mxu0 %v10041
    %10559 = vmatpush.bf16.msra.mxu0 %v10033
    %10560 = vmatpush.bf16.msra.mxu0 %v10025
    %10561 = vmatpush.bf16.msra.mxu0 %v10017
    %10562 = vmatpush.bf16.msra.mxu0 %v10009
    %10563 = vmatpush.bf16.msra.mxu0 %v10001
    %10564 = vmatpush.bf16.msra.mxu0 %v9993
    %10565 = vmatpush.bf16.msra.mxu0 %v9985
    %10566 = vmatmul.bf16.gmra.mxu0 %v10306
    %v10567 = vpop.f32.mrf.mxu0
    %v10568 = vadd.f32 %v10555, %v10567
    %v10569 = vpop.f32.mrf.mxu0
    %10570 = vdwg.mxu0
    %10571 = vmatpush.bf16.msra.mxu0 %v10105
    %10572 = vmatpush.bf16.msra.mxu0 %v10097
    %10573 = vmatpush.bf16.msra.mxu0 %v10089
    %10574 = vmatpush.bf16.msra.mxu0 %v10081
    %10575 = vmatpush.bf16.msra.mxu0 %v10073
    %10576 = vmatpush.bf16.msra.mxu0 %v10065
    %10577 = vmatpush.bf16.msra.mxu0 %v10057
    %10578 = vmatpush.bf16.msra.mxu0 %v10049
    %10579 = vmatmul.bf16.gmra.mxu0 %v10307
    %v10580 = vpop.f32.mrf.mxu0
    %v10581 = vadd.f32 %v10568, %v10580
    %v10582 = vpop.f32.mrf.mxu0
    %10583 = vdwg.mxu0
    %10584 = vmatpush.bf16.msra.mxu0 %v10169
    %10585 = vmatpush.bf16.msra.mxu0 %v10161
    %10586 = vmatpush.bf16.msra.mxu0 %v10153
    %10587 = vmatpush.bf16.msra.mxu0 %v10145
    %10588 = vmatpush.bf16.msra.mxu0 %v10137
    %10589 = vmatpush.bf16.msra.mxu0 %v10129
    %10590 = vmatpush.bf16.msra.mxu0 %v10121
    %10591 = vmatpush.bf16.msra.mxu0 %v10113
    %10592 = vmatmul.bf16.gmra.mxu0 %v10308
    %v10593 = vpop.f32.mrf.mxu0
    %v10594 = vadd.f32 %v10581, %v10593
    %v10595 = vpop.f32.mrf.mxu0
    %10596 = vdwg.mxu0
    %10597 = vmatpush.bf16.msra.mxu0 %v10233
    %10598 = vmatpush.bf16.msra.mxu0 %v10225
    %10599 = vmatpush.bf16.msra.mxu0 %v10217
    %10600 = vmatpush.bf16.msra.mxu0 %v10209
    %10601 = vmatpush.bf16.msra.mxu0 %v10201
    %10602 = vmatpush.bf16.msra.mxu0 %v10193
    %10603 = vmatpush.bf16.msra.mxu0 %v10185
    %10604 = vmatpush.bf16.msra.mxu0 %v10177
    %10605 = vmatmul.bf16.gmra.mxu0 %v10309
    %v10606 = vpop.f32.mrf.mxu0
    %v10607 = vadd.f32 %v10594, %v10606
    %v10608 = vpop.f32.mrf.mxu0
    %10609 = vdwg.mxu0
    %10610 = vmatpush.bf16.msra.mxu0 %v10297
    %10611 = vmatpush.bf16.msra.mxu0 %v10289
    %10612 = vmatpush.bf16.msra.mxu0 %v10281
    %10613 = vmatpush.bf16.msra.mxu0 %v10273
    %10614 = vmatpush.bf16.msra.mxu0 %v10265
    %10615 = vmatpush.bf16.msra.mxu0 %v10257
    %10616 = vmatpush.bf16.msra.mxu0 %v10249
    %10617 = vmatpush.bf16.msra.mxu0 %v10241
    %10618 = vmatmul.bf16.gmra.mxu0 %v10310
    %v10619 = vpop.f32.mrf.mxu0
    %v10620 = vadd.f32 %v10607, %v10619
    %v10621 = vpop.f32.mrf.mxu0
    %10622 = vdwg.mxu0
    %10623 = vmatpush.bf16.msra.mxu0 %v9850
    %10624 = vmatpush.bf16.msra.mxu0 %v9842
    %10625 = vmatpush.bf16.msra.mxu0 %v9834
    %10626 = vmatpush.bf16.msra.mxu0 %v9826
    %10627 = vmatpush.bf16.msra.mxu0 %v9818
    %10628 = vmatpush.bf16.msra.mxu0 %v9810
    %10629 = vmatpush.bf16.msra.mxu0 %v9802
    %10630 = vmatpush.bf16.msra.mxu0 %v9794
    %10631 = vmatmul.bf16.gmra.mxu0 %v10303
    %v10632 = vpop.f32.mrf.mxu0
    %v10633 = vadd.f32 0.0, %v10632
    %v10634 = vpop.f32.mrf.mxu0
    %10635 = vdwg.mxu0
    %10636 = vmatpush.bf16.msra.mxu0 %v9914
    %10637 = vmatpush.bf16.msra.mxu0 %v9906
    %10638 = vmatpush.bf16.msra.mxu0 %v9898
    %10639 = vmatpush.bf16.msra.mxu0 %v9890
    %10640 = vmatpush.bf16.msra.mxu0 %v9882
    %10641 = vmatpush.bf16.msra.mxu0 %v9874
    %10642 = vmatpush.bf16.msra.mxu0 %v9866
    %10643 = vmatpush.bf16.msra.mxu0 %v9858
    %10644 = vmatmul.bf16.gmra.mxu0 %v10304
    %v10645 = vpop.f32.mrf.mxu0
    %v10646 = vadd.f32 %v10633, %v10645
    %v10647 = vpop.f32.mrf.mxu0
    %10648 = vdwg.mxu0
    %10649 = vmatpush.bf16.msra.mxu0 %v9978
    %10650 = vmatpush.bf16.msra.mxu0 %v9970
    %10651 = vmatpush.bf16.msra.mxu0 %v9962
    %10652 = vmatpush.bf16.msra.mxu0 %v9954
    %10653 = vmatpush.bf16.msra.mxu0 %v9946
    %10654 = vmatpush.bf16.msra.mxu0 %v9938
    %10655 = vmatpush.bf16.msra.mxu0 %v9930
    %10656 = vmatpush.bf16.msra.mxu0 %v9922
    %10657 = vmatmul.bf16.gmra.mxu0 %v10305
    %v10658 = vpop.f32.mrf.mxu0
    %v10659 = vadd.f32 %v10646, %v10658
    %v10660 = vpop.f32.mrf.mxu0
    %10661 = vdwg.mxu0
    %10662 = vmatpush.bf16.msra.mxu0 %v10042
    %10663 = vmatpush.bf16.msra.mxu0 %v10034
    %10664 = vmatpush.bf16.msra.mxu0 %v10026
    %10665 = vmatpush.bf16.msra.mxu0 %v10018
    %10666 = vmatpush.bf16.msra.mxu0 %v10010
    %10667 = vmatpush.bf16.msra.mxu0 %v10002
    %10668 = vmatpush.bf16.msra.mxu0 %v9994
    %10669 = vmatpush.bf16.msra.mxu0 %v9986
    %10670 = vmatmul.bf16.gmra.mxu0 %v10306
    %v10671 = vpop.f32.mrf.mxu0
    %v10672 = vadd.f32 %v10659, %v10671
    %v10673 = vpop.f32.mrf.mxu0
    %10674 = vdwg.mxu0
    %10675 = vmatpush.bf16.msra.mxu0 %v10106
    %10676 = vmatpush.bf16.msra.mxu0 %v10098
    %10677 = vmatpush.bf16.msra.mxu0 %v10090
    %10678 = vmatpush.bf16.msra.mxu0 %v10082
    %10679 = vmatpush.bf16.msra.mxu0 %v10074
    %10680 = vmatpush.bf16.msra.mxu0 %v10066
    %10681 = vmatpush.bf16.msra.mxu0 %v10058
    %10682 = vmatpush.bf16.msra.mxu0 %v10050
    %10683 = vmatmul.bf16.gmra.mxu0 %v10307
    %v10684 = vpop.f32.mrf.mxu0
    %v10685 = vadd.f32 %v10672, %v10684
    %v10686 = vpop.f32.mrf.mxu0
    %10687 = vdwg.mxu0
    %10688 = vmatpush.bf16.msra.mxu0 %v10170
    %10689 = vmatpush.bf16.msra.mxu0 %v10162
    %10690 = vmatpush.bf16.msra.mxu0 %v10154
    %10691 = vmatpush.bf16.msra.mxu0 %v10146
    %10692 = vmatpush.bf16.msra.mxu0 %v10138
    %10693 = vmatpush.bf16.msra.mxu0 %v10130
    %10694 = vmatpush.bf16.msra.mxu0 %v10122
    %10695 = vmatpush.bf16.msra.mxu0 %v10114
    %10696 = vmatmul.bf16.gmra.mxu0 %v10308
    %v10697 = vpop.f32.mrf.mxu0
    %v10698 = vadd.f32 %v10685, %v10697
    %v10699 = vpop.f32.mrf.mxu0
    %10700 = vdwg.mxu0
    %10701 = vmatpush.bf16.msra.mxu0 %v10234
    %10702 = vmatpush.bf16.msra.mxu0 %v10226
    %10703 = vmatpush.bf16.msra.mxu0 %v10218
    %10704 = vmatpush.bf16.msra.mxu0 %v10210
    %10705 = vmatpush.bf16.msra.mxu0 %v10202
    %10706 = vmatpush.bf16.msra.mxu0 %v10194
    %10707 = vmatpush.bf16.msra.mxu0 %v10186
    %10708 = vmatpush.bf16.msra.mxu0 %v10178
    %10709 = vmatmul.bf16.gmra.mxu0 %v10309
    %v10710 = vpop.f32.mrf.mxu0
    %v10711 = vadd.f32 %v10698, %v10710
    %v10712 = vpop.f32.mrf.mxu0
    %10713 = vdwg.mxu0
    %10714 = vmatpush.bf16.msra.mxu0 %v10298
    %10715 = vmatpush.bf16.msra.mxu0 %v10290
    %10716 = vmatpush.bf16.msra.mxu0 %v10282
    %10717 = vmatpush.bf16.msra.mxu0 %v10274
    %10718 = vmatpush.bf16.msra.mxu0 %v10266
    %10719 = vmatpush.bf16.msra.mxu0 %v10258
    %10720 = vmatpush.bf16.msra.mxu0 %v10250
    %10721 = vmatpush.bf16.msra.mxu0 %v10242
    %10722 = vmatmul.bf16.gmra.mxu0 %v10310
    %v10723 = vpop.f32.mrf.mxu0
    %v10724 = vadd.f32 %v10711, %v10723
    %v10725 = vpop.f32.mrf.mxu0
    %10726 = vdwg.mxu0
    %10727 = vmatpush.bf16.msra.mxu0 %v9851
    %10728 = vmatpush.bf16.msra.mxu0 %v9843
    %10729 = vmatpush.bf16.msra.mxu0 %v9835
    %10730 = vmatpush.bf16.msra.mxu0 %v9827
    %10731 = vmatpush.bf16.msra.mxu0 %v9819
    %10732 = vmatpush.bf16.msra.mxu0 %v9811
    %10733 = vmatpush.bf16.msra.mxu0 %v9803
    %10734 = vmatpush.bf16.msra.mxu0 %v9795
    %10735 = vmatmul.bf16.gmra.mxu0 %v10303
    %v10736 = vpop.f32.mrf.mxu0
    %v10737 = vadd.f32 0.0, %v10736
    %v10738 = vpop.f32.mrf.mxu0
    %10739 = vdwg.mxu0
    %10740 = vmatpush.bf16.msra.mxu0 %v9915
    %10741 = vmatpush.bf16.msra.mxu0 %v9907
    %10742 = vmatpush.bf16.msra.mxu0 %v9899
    %10743 = vmatpush.bf16.msra.mxu0 %v9891
    %10744 = vmatpush.bf16.msra.mxu0 %v9883
    %10745 = vmatpush.bf16.msra.mxu0 %v9875
    %10746 = vmatpush.bf16.msra.mxu0 %v9867
    %10747 = vmatpush.bf16.msra.mxu0 %v9859
    %10748 = vmatmul.bf16.gmra.mxu0 %v10304
    %v10749 = vpop.f32.mrf.mxu0
    %v10750 = vadd.f32 %v10737, %v10749
    %v10751 = vpop.f32.mrf.mxu0
    %10752 = vdwg.mxu0
    %10753 = vmatpush.bf16.msra.mxu0 %v9979
    %10754 = vmatpush.bf16.msra.mxu0 %v9971
    %10755 = vmatpush.bf16.msra.mxu0 %v9963
    %10756 = vmatpush.bf16.msra.mxu0 %v9955
    %10757 = vmatpush.bf16.msra.mxu0 %v9947
    %10758 = vmatpush.bf16.msra.mxu0 %v9939
    %10759 = vmatpush.bf16.msra.mxu0 %v9931
    %10760 = vmatpush.bf16.msra.mxu0 %v9923
    %10761 = vmatmul.bf16.gmra.mxu0 %v10305
    %v10762 = vpop.f32.mrf.mxu0
    %v10763 = vadd.f32 %v10750, %v10762
    %v10764 = vpop.f32.mrf.mxu0
    %10765 = vdwg.mxu0
    %10766 = vmatpush.bf16.msra.mxu0 %v10043
    %10767 = vmatpush.bf16.msra.mxu0 %v10035
    %10768 = vmatpush.bf16.msra.mxu0 %v10027
    %10769 = vmatpush.bf16.msra.mxu0 %v10019
    %10770 = vmatpush.bf16.msra.mxu0 %v10011
    %10771 = vmatpush.bf16.msra.mxu0 %v10003
    %10772 = vmatpush.bf16.msra.mxu0 %v9995
    %10773 = vmatpush.bf16.msra.mxu0 %v9987
    %10774 = vmatmul.bf16.gmra.mxu0 %v10306
    %v10775 = vpop.f32.mrf.mxu0
    %v10776 = vadd.f32 %v10763, %v10775
    %v10777 = vpop.f32.mrf.mxu0
    %10778 = vdwg.mxu0
    %10779 = vmatpush.bf16.msra.mxu0 %v10107
    %10780 = vmatpush.bf16.msra.mxu0 %v10099
    %10781 = vmatpush.bf16.msra.mxu0 %v10091
    %10782 = vmatpush.bf16.msra.mxu0 %v10083
    %10783 = vmatpush.bf16.msra.mxu0 %v10075
    %10784 = vmatpush.bf16.msra.mxu0 %v10067
    %10785 = vmatpush.bf16.msra.mxu0 %v10059
    %10786 = vmatpush.bf16.msra.mxu0 %v10051
    %10787 = vmatmul.bf16.gmra.mxu0 %v10307
    %v10788 = vpop.f32.mrf.mxu0
    %v10789 = vadd.f32 %v10776, %v10788
    %v10790 = vpop.f32.mrf.mxu0
    %10791 = vdwg.mxu0
    %10792 = vmatpush.bf16.msra.mxu0 %v10171
    %10793 = vmatpush.bf16.msra.mxu0 %v10163
    %10794 = vmatpush.bf16.msra.mxu0 %v10155
    %10795 = vmatpush.bf16.msra.mxu0 %v10147
    %10796 = vmatpush.bf16.msra.mxu0 %v10139
    %10797 = vmatpush.bf16.msra.mxu0 %v10131
    %10798 = vmatpush.bf16.msra.mxu0 %v10123
    %10799 = vmatpush.bf16.msra.mxu0 %v10115
    %10800 = vmatmul.bf16.gmra.mxu0 %v10308
    %v10801 = vpop.f32.mrf.mxu0
    %v10802 = vadd.f32 %v10789, %v10801
    %v10803 = vpop.f32.mrf.mxu0
    %10804 = vdwg.mxu0
    %10805 = vmatpush.bf16.msra.mxu0 %v10235
    %10806 = vmatpush.bf16.msra.mxu0 %v10227
    %10807 = vmatpush.bf16.msra.mxu0 %v10219
    %10808 = vmatpush.bf16.msra.mxu0 %v10211
    %10809 = vmatpush.bf16.msra.mxu0 %v10203
    %10810 = vmatpush.bf16.msra.mxu0 %v10195
    %10811 = vmatpush.bf16.msra.mxu0 %v10187
    %10812 = vmatpush.bf16.msra.mxu0 %v10179
    %10813 = vmatmul.bf16.gmra.mxu0 %v10309
    %v10814 = vpop.f32.mrf.mxu0
    %v10815 = vadd.f32 %v10802, %v10814
    %v10816 = vpop.f32.mrf.mxu0
    %10817 = vdwg.mxu0
    %10818 = vmatpush.bf16.msra.mxu0 %v10299
    %10819 = vmatpush.bf16.msra.mxu0 %v10291
    %10820 = vmatpush.bf16.msra.mxu0 %v10283
    %10821 = vmatpush.bf16.msra.mxu0 %v10275
    %10822 = vmatpush.bf16.msra.mxu0 %v10267
    %10823 = vmatpush.bf16.msra.mxu0 %v10259
    %10824 = vmatpush.bf16.msra.mxu0 %v10251
    %10825 = vmatpush.bf16.msra.mxu0 %v10243
    %10826 = vmatmul.bf16.gmra.mxu0 %v10310
    %v10827 = vpop.f32.mrf.mxu0
    %v10828 = vadd.f32 %v10815, %v10827
    %v10829 = vpop.f32.mrf.mxu0
    %10830 = vdwg.mxu0
    %10831 = vmatpush.bf16.msra.mxu0 %v9852
    %10832 = vmatpush.bf16.msra.mxu0 %v9844
    %10833 = vmatpush.bf16.msra.mxu0 %v9836
    %10834 = vmatpush.bf16.msra.mxu0 %v9828
    %10835 = vmatpush.bf16.msra.mxu0 %v9820
    %10836 = vmatpush.bf16.msra.mxu0 %v9812
    %10837 = vmatpush.bf16.msra.mxu0 %v9804
    %10838 = vmatpush.bf16.msra.mxu0 %v9796
    %10839 = vmatmul.bf16.gmra.mxu0 %v10303
    %v10840 = vpop.f32.mrf.mxu0
    %v10841 = vadd.f32 0.0, %v10840
    %v10842 = vpop.f32.mrf.mxu0
    %10843 = vdwg.mxu0
    %10844 = vmatpush.bf16.msra.mxu0 %v9916
    %10845 = vmatpush.bf16.msra.mxu0 %v9908
    %10846 = vmatpush.bf16.msra.mxu0 %v9900
    %10847 = vmatpush.bf16.msra.mxu0 %v9892
    %10848 = vmatpush.bf16.msra.mxu0 %v9884
    %10849 = vmatpush.bf16.msra.mxu0 %v9876
    %10850 = vmatpush.bf16.msra.mxu0 %v9868
    %10851 = vmatpush.bf16.msra.mxu0 %v9860
    %10852 = vmatmul.bf16.gmra.mxu0 %v10304
    %v10853 = vpop.f32.mrf.mxu0
    %v10854 = vadd.f32 %v10841, %v10853
    %v10855 = vpop.f32.mrf.mxu0
    %10856 = vdwg.mxu0
    %10857 = vmatpush.bf16.msra.mxu0 %v9980
    %10858 = vmatpush.bf16.msra.mxu0 %v9972
    %10859 = vmatpush.bf16.msra.mxu0 %v9964
    %10860 = vmatpush.bf16.msra.mxu0 %v9956
    %10861 = vmatpush.bf16.msra.mxu0 %v9948
    %10862 = vmatpush.bf16.msra.mxu0 %v9940
    %10863 = vmatpush.bf16.msra.mxu0 %v9932
    %10864 = vmatpush.bf16.msra.mxu0 %v9924
    %10865 = vmatmul.bf16.gmra.mxu0 %v10305
    %v10866 = vpop.f32.mrf.mxu0
    %v10867 = vadd.f32 %v10854, %v10866
    %v10868 = vpop.f32.mrf.mxu0
    %10869 = vdwg.mxu0
    %10870 = vmatpush.bf16.msra.mxu0 %v10044
    %10871 = vmatpush.bf16.msra.mxu0 %v10036
    %10872 = vmatpush.bf16.msra.mxu0 %v10028
    %10873 = vmatpush.bf16.msra.mxu0 %v10020
    %10874 = vmatpush.bf16.msra.mxu0 %v10012
    %10875 = vmatpush.bf16.msra.mxu0 %v10004
    %10876 = vmatpush.bf16.msra.mxu0 %v9996
    %10877 = vmatpush.bf16.msra.mxu0 %v9988
    %10878 = vmatmul.bf16.gmra.mxu0 %v10306
    %v10879 = vpop.f32.mrf.mxu0
    %v10880 = vadd.f32 %v10867, %v10879
    %v10881 = vpop.f32.mrf.mxu0
    %10882 = vdwg.mxu0
    %10883 = vmatpush.bf16.msra.mxu0 %v10108
    %10884 = vmatpush.bf16.msra.mxu0 %v10100
    %10885 = vmatpush.bf16.msra.mxu0 %v10092
    %10886 = vmatpush.bf16.msra.mxu0 %v10084
    %10887 = vmatpush.bf16.msra.mxu0 %v10076
    %10888 = vmatpush.bf16.msra.mxu0 %v10068
    %10889 = vmatpush.bf16.msra.mxu0 %v10060
    %10890 = vmatpush.bf16.msra.mxu0 %v10052
    %10891 = vmatmul.bf16.gmra.mxu0 %v10307
    %v10892 = vpop.f32.mrf.mxu0
    %v10893 = vadd.f32 %v10880, %v10892
    %v10894 = vpop.f32.mrf.mxu0
    %10895 = vdwg.mxu0
    %10896 = vmatpush.bf16.msra.mxu0 %v10172
    %10897 = vmatpush.bf16.msra.mxu0 %v10164
    %10898 = vmatpush.bf16.msra.mxu0 %v10156
    %10899 = vmatpush.bf16.msra.mxu0 %v10148
    %10900 = vmatpush.bf16.msra.mxu0 %v10140
    %10901 = vmatpush.bf16.msra.mxu0 %v10132
    %10902 = vmatpush.bf16.msra.mxu0 %v10124
    %10903 = vmatpush.bf16.msra.mxu0 %v10116
    %10904 = vmatmul.bf16.gmra.mxu0 %v10308
    %v10905 = vpop.f32.mrf.mxu0
    %v10906 = vadd.f32 %v10893, %v10905
    %v10907 = vpop.f32.mrf.mxu0
    %10908 = vdwg.mxu0
    %10909 = vmatpush.bf16.msra.mxu0 %v10236
    %10910 = vmatpush.bf16.msra.mxu0 %v10228
    %10911 = vmatpush.bf16.msra.mxu0 %v10220
    %10912 = vmatpush.bf16.msra.mxu0 %v10212
    %10913 = vmatpush.bf16.msra.mxu0 %v10204
    %10914 = vmatpush.bf16.msra.mxu0 %v10196
    %10915 = vmatpush.bf16.msra.mxu0 %v10188
    %10916 = vmatpush.bf16.msra.mxu0 %v10180
    %10917 = vmatmul.bf16.gmra.mxu0 %v10309
    %v10918 = vpop.f32.mrf.mxu0
    %v10919 = vadd.f32 %v10906, %v10918
    %v10920 = vpop.f32.mrf.mxu0
    %10921 = vdwg.mxu0
    %10922 = vmatpush.bf16.msra.mxu0 %v10300
    %10923 = vmatpush.bf16.msra.mxu0 %v10292
    %10924 = vmatpush.bf16.msra.mxu0 %v10284
    %10925 = vmatpush.bf16.msra.mxu0 %v10276
    %10926 = vmatpush.bf16.msra.mxu0 %v10268
    %10927 = vmatpush.bf16.msra.mxu0 %v10260
    %10928 = vmatpush.bf16.msra.mxu0 %v10252
    %10929 = vmatpush.bf16.msra.mxu0 %v10244
    %10930 = vmatmul.bf16.gmra.mxu0 %v10310
    %v10931 = vpop.f32.mrf.mxu0
    %v10932 = vadd.f32 %v10919, %v10931
    %v10933 = vpop.f32.mrf.mxu0
    %10934 = vdwg.mxu0
    %10935 = vmatpush.bf16.msra.mxu0 %v9853
    %10936 = vmatpush.bf16.msra.mxu0 %v9845
    %10937 = vmatpush.bf16.msra.mxu0 %v9837
    %10938 = vmatpush.bf16.msra.mxu0 %v9829
    %10939 = vmatpush.bf16.msra.mxu0 %v9821
    %10940 = vmatpush.bf16.msra.mxu0 %v9813
    %10941 = vmatpush.bf16.msra.mxu0 %v9805
    %10942 = vmatpush.bf16.msra.mxu0 %v9797
    %10943 = vmatmul.bf16.gmra.mxu0 %v10303
    %v10944 = vpop.f32.mrf.mxu0
    %v10945 = vadd.f32 0.0, %v10944
    %v10946 = vpop.f32.mrf.mxu0
    %10947 = vdwg.mxu0
    %10948 = vmatpush.bf16.msra.mxu0 %v9917
    %10949 = vmatpush.bf16.msra.mxu0 %v9909
    %10950 = vmatpush.bf16.msra.mxu0 %v9901
    %10951 = vmatpush.bf16.msra.mxu0 %v9893
    %10952 = vmatpush.bf16.msra.mxu0 %v9885
    %10953 = vmatpush.bf16.msra.mxu0 %v9877
    %10954 = vmatpush.bf16.msra.mxu0 %v9869
    %10955 = vmatpush.bf16.msra.mxu0 %v9861
    %10956 = vmatmul.bf16.gmra.mxu0 %v10304
    %v10957 = vpop.f32.mrf.mxu0
    %v10958 = vadd.f32 %v10945, %v10957
    %v10959 = vpop.f32.mrf.mxu0
    %10960 = vdwg.mxu0
    %10961 = vmatpush.bf16.msra.mxu0 %v9981
    %10962 = vmatpush.bf16.msra.mxu0 %v9973
    %10963 = vmatpush.bf16.msra.mxu0 %v9965
    %10964 = vmatpush.bf16.msra.mxu0 %v9957
    %10965 = vmatpush.bf16.msra.mxu0 %v9949
    %10966 = vmatpush.bf16.msra.mxu0 %v9941
    %10967 = vmatpush.bf16.msra.mxu0 %v9933
    %10968 = vmatpush.bf16.msra.mxu0 %v9925
    %10969 = vmatmul.bf16.gmra.mxu0 %v10305
    %v10970 = vpop.f32.mrf.mxu0
    %v10971 = vadd.f32 %v10958, %v10970
    %v10972 = vpop.f32.mrf.mxu0
    %10973 = vdwg.mxu0
    %10974 = vmatpush.bf16.msra.mxu0 %v10045
    %10975 = vmatpush.bf16.msra.mxu0 %v10037
    %10976 = vmatpush.bf16.msra.mxu0 %v10029
    %10977 = vmatpush.bf16.msra.mxu0 %v10021
    %10978 = vmatpush.bf16.msra.mxu0 %v10013
    %10979 = vmatpush.bf16.msra.mxu0 %v10005
    %10980 = vmatpush.bf16.msra.mxu0 %v9997
    %10981 = vmatpush.bf16.msra.mxu0 %v9989
    %10982 = vmatmul.bf16.gmra.mxu0 %v10306
    %v10983 = vpop.f32.mrf.mxu0
    %v10984 = vadd.f32 %v10971, %v10983
    %v10985 = vpop.f32.mrf.mxu0
    %10986 = vdwg.mxu0
    %10987 = vmatpush.bf16.msra.mxu0 %v10109
    %10988 = vmatpush.bf16.msra.mxu0 %v10101
    %10989 = vmatpush.bf16.msra.mxu0 %v10093
    %10990 = vmatpush.bf16.msra.mxu0 %v10085
    %10991 = vmatpush.bf16.msra.mxu0 %v10077
    %10992 = vmatpush.bf16.msra.mxu0 %v10069
    %10993 = vmatpush.bf16.msra.mxu0 %v10061
    %10994 = vmatpush.bf16.msra.mxu0 %v10053
    %10995 = vmatmul.bf16.gmra.mxu0 %v10307
    %v10996 = vpop.f32.mrf.mxu0
    %v10997 = vadd.f32 %v10984, %v10996
    %v10998 = vpop.f32.mrf.mxu0
    %10999 = vdwg.mxu0
    %11000 = vmatpush.bf16.msra.mxu0 %v10173
    %11001 = vmatpush.bf16.msra.mxu0 %v10165
    %11002 = vmatpush.bf16.msra.mxu0 %v10157
    %11003 = vmatpush.bf16.msra.mxu0 %v10149
    %11004 = vmatpush.bf16.msra.mxu0 %v10141
    %11005 = vmatpush.bf16.msra.mxu0 %v10133
    %11006 = vmatpush.bf16.msra.mxu0 %v10125
    %11007 = vmatpush.bf16.msra.mxu0 %v10117
    %11008 = vmatmul.bf16.gmra.mxu0 %v10308
    %v11009 = vpop.f32.mrf.mxu0
    %v11010 = vadd.f32 %v10997, %v11009
    %v11011 = vpop.f32.mrf.mxu0
    %11012 = vdwg.mxu0
    %11013 = vmatpush.bf16.msra.mxu0 %v10237
    %11014 = vmatpush.bf16.msra.mxu0 %v10229
    %11015 = vmatpush.bf16.msra.mxu0 %v10221
    %11016 = vmatpush.bf16.msra.mxu0 %v10213
    %11017 = vmatpush.bf16.msra.mxu0 %v10205
    %11018 = vmatpush.bf16.msra.mxu0 %v10197
    %11019 = vmatpush.bf16.msra.mxu0 %v10189
    %11020 = vmatpush.bf16.msra.mxu0 %v10181
    %11021 = vmatmul.bf16.gmra.mxu0 %v10309
    %v11022 = vpop.f32.mrf.mxu0
    %v11023 = vadd.f32 %v11010, %v11022
    %v11024 = vpop.f32.mrf.mxu0
    %11025 = vdwg.mxu0
    %11026 = vmatpush.bf16.msra.mxu0 %v10301
    %11027 = vmatpush.bf16.msra.mxu0 %v10293
    %11028 = vmatpush.bf16.msra.mxu0 %v10285
    %11029 = vmatpush.bf16.msra.mxu0 %v10277
    %11030 = vmatpush.bf16.msra.mxu0 %v10269
    %11031 = vmatpush.bf16.msra.mxu0 %v10261
    %11032 = vmatpush.bf16.msra.mxu0 %v10253
    %11033 = vmatpush.bf16.msra.mxu0 %v10245
    %11034 = vmatmul.bf16.gmra.mxu0 %v10310
    %v11035 = vpop.f32.mrf.mxu0
    %v11036 = vadd.f32 %v11023, %v11035
    %v11037 = vpop.f32.mrf.mxu0
    %11038 = vdwg.mxu0
    %11039 = vmatpush.bf16.msra.mxu0 %v9854
    %11040 = vmatpush.bf16.msra.mxu0 %v9846
    %11041 = vmatpush.bf16.msra.mxu0 %v9838
    %11042 = vmatpush.bf16.msra.mxu0 %v9830
    %11043 = vmatpush.bf16.msra.mxu0 %v9822
    %11044 = vmatpush.bf16.msra.mxu0 %v9814
    %11045 = vmatpush.bf16.msra.mxu0 %v9806
    %11046 = vmatpush.bf16.msra.mxu0 %v9798
    %11047 = vmatmul.bf16.gmra.mxu0 %v10303
    %v11048 = vpop.f32.mrf.mxu0
    %v11049 = vadd.f32 0.0, %v11048
    %v11050 = vpop.f32.mrf.mxu0
    %11051 = vdwg.mxu0
    %11052 = vmatpush.bf16.msra.mxu0 %v9918
    %11053 = vmatpush.bf16.msra.mxu0 %v9910
    %11054 = vmatpush.bf16.msra.mxu0 %v9902
    %11055 = vmatpush.bf16.msra.mxu0 %v9894
    %11056 = vmatpush.bf16.msra.mxu0 %v9886
    %11057 = vmatpush.bf16.msra.mxu0 %v9878
    %11058 = vmatpush.bf16.msra.mxu0 %v9870
    %11059 = vmatpush.bf16.msra.mxu0 %v9862
    %11060 = vmatmul.bf16.gmra.mxu0 %v10304
    %v11061 = vpop.f32.mrf.mxu0
    %v11062 = vadd.f32 %v11049, %v11061
    %v11063 = vpop.f32.mrf.mxu0
    %11064 = vdwg.mxu0
    %11065 = vmatpush.bf16.msra.mxu0 %v9982
    %11066 = vmatpush.bf16.msra.mxu0 %v9974
    %11067 = vmatpush.bf16.msra.mxu0 %v9966
    %11068 = vmatpush.bf16.msra.mxu0 %v9958
    %11069 = vmatpush.bf16.msra.mxu0 %v9950
    %11070 = vmatpush.bf16.msra.mxu0 %v9942
    %11071 = vmatpush.bf16.msra.mxu0 %v9934
    %11072 = vmatpush.bf16.msra.mxu0 %v9926
    %11073 = vmatmul.bf16.gmra.mxu0 %v10305
    %v11074 = vpop.f32.mrf.mxu0
    %v11075 = vadd.f32 %v11062, %v11074
    %v11076 = vpop.f32.mrf.mxu0
    %11077 = vdwg.mxu0
    %11078 = vmatpush.bf16.msra.mxu0 %v10046
    %11079 = vmatpush.bf16.msra.mxu0 %v10038
    %11080 = vmatpush.bf16.msra.mxu0 %v10030
    %11081 = vmatpush.bf16.msra.mxu0 %v10022
    %11082 = vmatpush.bf16.msra.mxu0 %v10014
    %11083 = vmatpush.bf16.msra.mxu0 %v10006
    %11084 = vmatpush.bf16.msra.mxu0 %v9998
    %11085 = vmatpush.bf16.msra.mxu0 %v9990
    %11086 = vmatmul.bf16.gmra.mxu0 %v10306
    %v11087 = vpop.f32.mrf.mxu0
    %v11088 = vadd.f32 %v11075, %v11087
    %v11089 = vpop.f32.mrf.mxu0
    %11090 = vdwg.mxu0
    %11091 = vmatpush.bf16.msra.mxu0 %v10110
    %11092 = vmatpush.bf16.msra.mxu0 %v10102
    %11093 = vmatpush.bf16.msra.mxu0 %v10094
    %11094 = vmatpush.bf16.msra.mxu0 %v10086
    %11095 = vmatpush.bf16.msra.mxu0 %v10078
    %11096 = vmatpush.bf16.msra.mxu0 %v10070
    %11097 = vmatpush.bf16.msra.mxu0 %v10062
    %11098 = vmatpush.bf16.msra.mxu0 %v10054
    %11099 = vmatmul.bf16.gmra.mxu0 %v10307
    %v11100 = vpop.f32.mrf.mxu0
    %v11101 = vadd.f32 %v11088, %v11100
    %v11102 = vpop.f32.mrf.mxu0
    %11103 = vdwg.mxu0
    %11104 = vmatpush.bf16.msra.mxu0 %v10174
    %11105 = vmatpush.bf16.msra.mxu0 %v10166
    %11106 = vmatpush.bf16.msra.mxu0 %v10158
    %11107 = vmatpush.bf16.msra.mxu0 %v10150
    %11108 = vmatpush.bf16.msra.mxu0 %v10142
    %11109 = vmatpush.bf16.msra.mxu0 %v10134
    %11110 = vmatpush.bf16.msra.mxu0 %v10126
    %11111 = vmatpush.bf16.msra.mxu0 %v10118
    %11112 = vmatmul.bf16.gmra.mxu0 %v10308
    %v11113 = vpop.f32.mrf.mxu0
    %v11114 = vadd.f32 %v11101, %v11113
    %v11115 = vpop.f32.mrf.mxu0
    %11116 = vdwg.mxu0
    %11117 = vmatpush.bf16.msra.mxu0 %v10238
    %11118 = vmatpush.bf16.msra.mxu0 %v10230
    %11119 = vmatpush.bf16.msra.mxu0 %v10222
    %11120 = vmatpush.bf16.msra.mxu0 %v10214
    %11121 = vmatpush.bf16.msra.mxu0 %v10206
    %11122 = vmatpush.bf16.msra.mxu0 %v10198
    %11123 = vmatpush.bf16.msra.mxu0 %v10190
    %11124 = vmatpush.bf16.msra.mxu0 %v10182
    %11125 = vmatmul.bf16.gmra.mxu0 %v10309
    %v11126 = vpop.f32.mrf.mxu0
    %v11127 = vadd.f32 %v11114, %v11126
    %v11128 = vpop.f32.mrf.mxu0
    %11129 = vdwg.mxu0
    %11130 = vmatpush.bf16.msra.mxu0 %v10302
    %11131 = vmatpush.bf16.msra.mxu0 %v10294
    %11132 = vmatpush.bf16.msra.mxu0 %v10286
    %11133 = vmatpush.bf16.msra.mxu0 %v10278
    %11134 = vmatpush.bf16.msra.mxu0 %v10270
    %11135 = vmatpush.bf16.msra.mxu0 %v10262
    %11136 = vmatpush.bf16.msra.mxu0 %v10254
    %11137 = vmatpush.bf16.msra.mxu0 %v10246
    %11138 = vmatmul.bf16.gmra.mxu0 %v10310
    %v11139 = vpop.f32.mrf.mxu0
    %v11140 = vadd.f32 %v11127, %v11139
    %v11141 = vpop.f32.mrf.mxu0
    %11142 = vdwg.mxu0
    %s11143 = scalar_lea.vmem [#allocation6], 2
    %v11144 = vld [vmem:[%s11143] ss:$8 sm:$0xf]
    %v11145 = vld [vmem:[%s11143] ss:$8 sm:$0xf0]
    %v11146 = vor.u32 %v11144, %v11145
    %v11148 = vperm.slane %v11146, 0
    %v11149 = vperm.slane %v11146, 1
    %v11150 = vperm.slane %v11146, 2
    %v11151 = vperm.slane %v11146, 3
    %v11152 = vperm.slane %v11146, 4
    %v11153 = vperm.slane %v11146, 5
    %v11154 = vperm.slane %v11146, 6
    %v11155 = vperm.slane %v11146, 7
    %v11164 = vmul.f32 %v10412, %v11148
    %v11165 = vmul.f32 %v10516, %v11149
    %v11166 = vmul.f32 %v10620, %v11150
    %v11167 = vmul.f32 %v10724, %v11151
    %v11168 = vmul.f32 %v10828, %v11152
    %v11169 = vmul.f32 %v10932, %v11153
    %v11170 = vmul.f32 %v11036, %v11154
    %v11171 = vmul.f32 %v11140, %v11155
    %s11172 = scalar_lea.vmem [#allocation6], 3
    %v11173 = vld [vmem:[%s11172] ss:$8 sm:$0xf]
    %v11174 = vld [vmem:[%s11172] ss:$8 sm:$0xf0]
    %v11175 = vor.u32 %v11173, %v11174
    %v11177 = vperm.slane %v11175, 0
    %v11178 = vperm.slane %v11175, 1
    %v11179 = vperm.slane %v11175, 2
    %v11180 = vperm.slane %v11175, 3
    %v11181 = vperm.slane %v11175, 4
    %v11182 = vperm.slane %v11175, 5
    %v11183 = vperm.slane %v11175, 6
    %v11184 = vperm.slane %v11175, 7
    %v11193 = vadd.f32 %v11164, %v11177
    %v11194 = vadd.f32 %v11165, %v11178
    %v11195 = vadd.f32 %v11166, %v11179
    %v11196 = vadd.f32 %v11167, %v11180
    %v11197 = vadd.f32 %v11168, %v11181
    %v11198 = vadd.f32 %v11169, %v11182
    %v11199 = vadd.f32 %v11170, %v11183
    %v11200 = vadd.f32 %v11171, %v11184
    %v11201 = vmax.f32 %v11193, 0.0
    %v11202 = vmax.f32 %v11194, 0.0
    %v11203 = vmax.f32 %v11195, 0.0
    %v11204 = vmax.f32 %v11196, 0.0
    %v11205 = vmax.f32 %v11197, 0.0
    %v11206 = vmax.f32 %v11198, 0.0
    %v11207 = vmax.f32 %v11199, 0.0
    %v11208 = vmax.f32 %v11200, 0.0
    %s11209 = scalar_lea.vmem [#allocation6], 4
    %v11210 = vld [vmem:[%s11209] ss:$8 sm:$0xf]
    %v11211 = vld [vmem:[%s11209] ss:$8 sm:$0xf0]
    %v11212 = vor.u32 %v11210, %v11211
    %v11214 = vperm.slane %v11212, 0
    %v11215 = vperm.slane %v11212, 1
    %v11216 = vperm.slane %v11212, 2
    %v11217 = vperm.slane %v11212, 3
    %v11218 = vperm.slane %v11212, 4
    %v11219 = vperm.slane %v11212, 5
    %v11220 = vperm.slane %v11212, 6
    %v11221 = vperm.slane %v11212, 7
    %v11230 = vmul.f32 %v11201, %v11214
    %v11231 = vmul.f32 %v11202, %v11215
    %v11232 = vmul.f32 %v11203, %v11216
    %v11233 = vmul.f32 %v11204, %v11217
    %v11234 = vmul.f32 %v11205, %v11218
    %v11235 = vmul.f32 %v11206, %v11219
    %v11236 = vmul.f32 %v11207, %v11220
    %v11237 = vmul.f32 %v11208, %v11221
    %v11238 = vadd.f32 %v11230, %v11231
    %v11239 = vadd.f32 %v11238, %v11232
    %v11240 = vadd.f32 %v11239, %v11233
    %v11241 = vadd.f32 %v11240, %v11234
    %v11242 = vadd.f32 %v11241, %v11235
    %v11243 = vadd.f32 %v11242, %v11236
    %v11244 = vadd.f32 %v11243, %v11237
    %11245 = vadd.xlane.f32.xlu0 %v11244
    %v11246 = vpop.xlane.xlu0 %11245
    %v11247 = vld [vmem:[#allocation6 + $0x5] ss:$0 sm:$0xff]
    %v11248 = vadd.f32 %v11246, %v11247
    %v11249 = vsub.f32 0.0, %v11248
    %v11250 = vmul.f32 %v11249, 1.442695
    %v11251 = vpow.pop %v11250
    %v11252 = vadd.f32 %v11251, 1.0
    %v11253 = vrcp.pop %v11252
    %v11254 = vmul.f32 %v11252, %v11253
    %v11255 = vsub.f32 1.0, %v11254
    %v11256 = vmul.f32 %v11253, %v11255
    %v11257 = vadd.f32 %v11253, %v11256
    %vm11258 = vweird.f32 %v11252
    %vm11259 = vweird.f32 %v11253
    %vm11260 = vmor %vm11258, %vm11259
    %v11261 = vsel %vm11260, %v11253, %v11257
    %v11262 = vand.u32 2147483647, %v11252
    %vm11263 = vcmp.eq.f32.partialorder %v11262, 8.507059e+37
    %v11264 = vand.u32 %v11252, 2147483648
    %v11265 = vor.u32 1.1754944e-38, %v11264
    %v11266 = vsel %vm11263, %v11265, %v11261
    %v11267 = vmul.f32 1.0, %v11266
    %vm11268 = vcmask 7168
    %11269 = vst.msk [vmem:[%s4] sm:$0xff] %vm11268, %v11267
    // Predicated region
    $region30: #{domain_classifier_forward.1} parent=1 // pred_check
      _
    $region31: #{domain_classifier_forward.1} parent=1 // pred_check_branch
      %11271 = sbr.rel (0) target = $region33
    $region32: #{domain_classifier_forward.1} parent=1 // pred_region
      _
    $region33: #{domain_classifier_forward.1} parent=1 // pred_fallthru
      _
    // Predicated region
    $region34: #{domain_classifier_forward.1} parent=1 // pred_check
      _
    $region35: #{domain_classifier_forward.1} parent=1 // pred_check_branch
      %11273 = sbr.rel (0) target = $region37
    $region36: #{domain_classifier_forward.1} parent=1 // pred_region
      _
    $region37: #{domain_classifier_forward.1} parent=1 // pred_fallthru
      _
    %11274 = vsyncpa [#allocation3], 1
    %11275 = vsyncpa [#allocation5], 1

</llo_original>
